<compile_context>
chip_gen: v6e
topology: v6e:2x2x1
jax: 0.10.0
libtpu: 0.0.40
codegen_flags: <defaults>
</compile_context>

<pallas_src>
import math
import functools

import jax
import jax.numpy as jnp
from jax import lax
from jax.experimental import pallas as pl
from jax.experimental.pallas import tpu as pltpu

D_MODEL = 256
N_HEADS = 4
HEAD_DIM = D_MODEL // N_HEADS
FF_DIM = 256
MLP_HID = 64
HEAD_OUT_PAD = 128           # lane-dense padded head output (sliced in wrapper)
LN_EPS = 1e-5
MAX_LEN = 40
ATT_SCALE = 1.0 / math.sqrt(HEAD_DIM)
NEG_INF = -1e30
F32 = jnp.float32
BF16 = jnp.bfloat16


# ----------------------------------------------------------------------------
# in-kernel helpers (only traced inside Pallas kernel bodies)
# ----------------------------------------------------------------------------
def _layernorm(x, g_ref, b_ref):
    mean = jnp.mean(x, axis=-1, keepdims=True)
    var = jnp.mean((x - mean) ** 2, axis=-1, keepdims=True)
    return (x - mean) * lax.rsqrt(var + LN_EPS) * g_ref[...] + b_ref[...]


def _gelu(x):  # exact erf GELU (torch.nn.GELU default)
    return 0.5 * x * (1.0 + lax.erf(x * (1.0 / math.sqrt(2.0))))


def _mm(x, w_ref):
    # bf16 MXU matmul, f32 accumulation
    return jnp.dot(x.astype(BF16), w_ref[...], preferred_element_type=F32)


def _mmb(x, w_ref, b_ref):
    return _mm(x, w_ref) + b_ref[...]


def _mha(q, k, v, wo_ref, bo_ref, mask):
    """Multi-head attention on packed [Mq,256]/[Mk,256] tensors.

    1/sqrt(head_dim) is pre-folded into the Q weights.  `mask` is an additive
    block-diagonal batch mask (batch is folded into the row dimension).  Per-head
    outputs are accumulated through sublane-aligned row slices of Wo (no concat).
    """
    out = jnp.zeros((q.shape[0], D_MODEL), F32)
    for h in range(N_HEADS):
        sl = slice(h * HEAD_DIM, (h + 1) * HEAD_DIM)
        qh = q[:, sl].astype(BF16)
        kh = k[:, sl].astype(BF16)
        vh = v[:, sl].astype(BF16)
        s = lax.dot_general(qh, kh, (((1,), (1,)), ((), ())),
                            preferred_element_type=F32) + mask
        m = jnp.max(s, axis=-1, keepdims=True)
        p = jnp.exp(s - m)
        p = p / jnp.sum(p, axis=-1, keepdims=True)        # exact fp32 softmax
        oh = jnp.dot(p.astype(BF16), vh, preferred_element_type=F32)
        out = out + jnp.dot(oh.astype(BF16), wo_ref[sl, :],
                            preferred_element_type=F32)
    return out + bo_ref[...]


# ----------------------------------------------------------------------------
# fused kernels (one grid step == one transformer layer)
# ----------------------------------------------------------------------------
def _encoder_stack_kernel(o_all_ref, pe_all_ref, emb_w_ref, emb_b_ref, mask_ref,
                          wqkv_ref, bqkv_ref, wo_ref, bo_ref,
                          n1g_ref, n1b_ref,
                          wf1_ref, bf1_ref, wf2_ref, bf2_ref,
                          n2g_ref, n2b_ref,
                          fg_ref, fb_ref,
                          mem_ref, y0_ref, x_scr, *, n_enc_rows):
    l = pl.program_id(0)

    @pl.when(l == 0)
    def _():
        # fused state_embeder + positional encoding; one matmul produces both the
        # encoder rows and the decoder-seed rows (emb(O[-1]) per batch).
        z = _mm(o_all_ref[...], emb_w_ref) + emb_b_ref[...] + pe_all_ref[...]
        x_scr[...] = z[:n_enc_rows]
        y0_ref[...] = z[n_enc_rows:]

    x = x_scr[...]
    qkv = _mmb(x, wqkv_ref, bqkv_ref)                       # fused QKV [M,768]
    a = _mha(qkv[:, :D_MODEL], qkv[:, D_MODEL:2 * D_MODEL],
             qkv[:, 2 * D_MODEL:], wo_ref, bo_ref, mask_ref[...])
    x2 = _layernorm(x + a, n1g_ref, n1b_ref)                # post-norm add & LN
    h = jnp.maximum(_mmb(x2, wf1_ref, bf1_ref), 0.0)        # relu FFN
    h = _mmb(h, wf2_ref, bf2_ref)
    y = _layernorm(x2 + h, n2g_ref, n2b_ref)
    x_scr[...] = y

    @pl.when(l == pl.num_programs(0) - 1)
    def _():
        mem_ref[...] = _layernorm(y, fg_ref, fb_ref)        # encoder-final LN


def _decoder_stack_kernel(y0_ref, mem_ref, smask_ref, cmask_ref,
                          wsqkv_ref, bsqkv_ref, wso_ref, bso_ref,
                          n1g_ref, n1b_ref,
                          wcq_ref, bcq_ref, wckv_ref, bckv_ref, wco_ref, bco_ref,
                          n2g_ref, n2b_ref,
                          wf1_ref, bf1_ref, wf2_ref, bf2_ref,
                          n3g_ref, n3b_ref,
                          fg_ref, fb_ref,
                          hw1_ref, hb1_ref, hw2_ref, hb2_ref,
                          hw3_ref, hb3_ref, hw4_ref, hb4_ref,
                          out_ref, y_scr):
    l = pl.program_id(0)

    @pl.when(l == 0)
    def _():
        y_scr[...] = y0_ref[...]

    y = y_scr[...]
    mem = mem_ref[...]
    # --- self attention (fused QKV; reference forward passes no causal mask) ---
    qkv = _mmb(y, wsqkv_ref, bsqkv_ref)
    sa = _mha(qkv[:, :D_MODEL], qkv[:, D_MODEL:2 * D_MODEL],
              qkv[:, 2 * D_MODEL:], wso_ref, bso_ref, smask_ref[...])
    y2 = _layernorm(y + sa, n1g_ref, n1b_ref)
    # --- cross attention (fused KV projection of encoder memory) ---
    q = _mmb(y2, wcq_ref, bcq_ref)
    kv = _mmb(mem, wckv_ref, bckv_ref)
    ca = _mha(q, kv[:, :D_MODEL], kv[:, D_MODEL:], wco_ref, bco_ref,
              cmask_ref[...])
    y3 = _layernorm(y2 + ca, n2g_ref, n2b_ref)
    # --- feed-forward ---
    h = jnp.maximum(_mmb(y3, wf1_ref, bf1_ref), 0.0)
    h = _mmb(h, wf2_ref, bf2_ref)
    y4 = _layernorm(y3 + h, n3g_ref, n3b_ref)
    y_scr[...] = y4

    @pl.when(l == pl.num_programs(0) - 1)
    def _():
        # decoder-final LayerNorm + fused 4-layer MLP head, lane-dense output
        z = _layernorm(y4, fg_ref, fb_ref)
        h1 = _gelu(_mmb(z, hw1_ref, hb1_ref))
        h2 = _gelu(_mmb(h1, hw2_ref, hb2_ref))
        h3 = _gelu(_mmb(h2, hw3_ref, hb3_ref))
        out_ref[...] = jnp.tanh(_mmb(h3, hw4_ref, hb4_ref))


# ----------------------------------------------------------------------------
# pallas_call wrappers
# ----------------------------------------------------------------------------
def _const_spec(shape):
    nd = len(shape)
    return pl.BlockSpec(tuple(shape), lambda l, _nd=nd: (0,) * _nd)


def _layer_spec(per_layer_shape):
    nd = len(per_layer_shape)
    return pl.BlockSpec((None,) + tuple(per_layer_shape),
                        lambda l, _nd=nd: (l,) + (0,) * _nd)


_ARBITRARY = pltpu.CompilerParams(dimension_semantics=("arbitrary",))


def encoder_stack_call(o_all, pe_all, emb_w, emb_b, mask, enc, fin_g, fin_b,
                       n_enc_rows, n_dec_rows):
    n_layers = enc["wqkv"].shape[0]
    inputs = [o_all, pe_all, emb_w, emb_b, mask,
              enc["wqkv"], enc["bqkv"], enc["wo"], enc["bo"],
              enc["n1g"], enc["n1b"],
              enc["wf1"], enc["bf1"], enc["wf2"], enc["bf2"],
              enc["n2g"], enc["n2b"],
              fin_g, fin_b]
    in_specs = ([_const_spec(a.shape) for a in inputs[:5]] +
                [_layer_spec(a.shape[1:]) for a in inputs[5:17]] +
                [_const_spec(a.shape) for a in inputs[17:]])
    return pl.pallas_call(
        functools.partial(_encoder_stack_kernel, n_enc_rows=n_enc_rows),
        out_shape=(jax.ShapeDtypeStruct((n_enc_rows, D_MODEL), F32),
                   jax.ShapeDtypeStruct((n_dec_rows, D_MODEL), F32)),
        grid=(n_layers,),
        in_specs=in_specs,
        out_specs=(_const_spec((n_enc_rows, D_MODEL)),
                   _const_spec((n_dec_rows, D_MODEL))),
        scratch_shapes=[pltpu.VMEM((n_enc_rows, D_MODEL), F32)],
        compiler_params=_ARBITRARY,
    )(*inputs)


def decoder_stack_call(y0, mem, smask, cmask, dec, fin_g, fin_b, head):
    n_layers = dec["wsqkv"].shape[0]
    n_dec_rows = y0.shape[0]
    inputs = [y0, mem, smask, cmask,
              dec["wsqkv"], dec["bsqkv"], dec["wso"], dec["bso"],
              dec["n1g"], dec["n1b"],
              dec["wcq"], dec["bcq"], dec["wckv"], dec["bckv"],
              dec["wco"], dec["bco"],
              dec["n2g"], dec["n2b"],
              dec["wf1"], dec["bf1"], dec["wf2"], dec["bf2"],
              dec["n3g"], dec["n3b"],
              fin_g, fin_b,
              head["w1"], head["b1"], head["w2"], head["b2"],
              head["w3"], head["b3"], head["w4"], head["b4"]]
    in_specs = ([_const_spec(a.shape) for a in inputs[:4]] +
                [_layer_spec(a.shape[1:]) for a in inputs[4:24]] +
                [_const_spec(a.shape) for a in inputs[24:]])
    return pl.pallas_call(
        _decoder_stack_kernel,
        out_shape=jax.ShapeDtypeStruct((n_dec_rows, HEAD_OUT_PAD), F32),
        grid=(n_layers,),
        in_specs=in_specs,
        out_specs=_const_spec((n_dec_rows, HEAD_OUT_PAD)),
        scratch_shapes=[pltpu.VMEM((n_dec_rows, D_MODEL), F32)],
        compiler_params=_ARBITRARY,
    )(*inputs)


# ----------------------------------------------------------------------------
# PI forward
# ----------------------------------------------------------------------------
def _batch_block_mask(rows_q, rows_k, B):
    qb = jnp.repeat(jnp.arange(B), rows_q)
    kb = jnp.repeat(jnp.arange(B), rows_k)
    return jnp.where(qb[:, None] == kb[None, :], 0.0, NEG_INF).astype(F32)


def pi_forward(O, params, K, act_shape):
    """O: [N, B, obs] (seq-first, PyTorch convention). Returns [K, B, act]."""
    N_, B, obs = O.shape
    BN, BK = B * N_, B * K

    # fold batch into the matmul M dimension (batch-major row blocks)
    O_enc = jnp.transpose(O, (1, 0, 2)).reshape(BN, obs)          # [B*N, obs]
    O_dec = jnp.repeat(O[-1], K, axis=0)                          # rows = O[-1] per batch
    O_all = jnp.concatenate([O_enc, O_dec], axis=0)               # [B*N+B*K, obs]
    pe_all = jnp.concatenate([jnp.tile(params["pe"][:N_], (B, 1)),
                              jnp.tile(params["pe"][:K], (B, 1))], axis=0)

    enc_mask = _batch_block_mask(N_, N_, B)                       # [BN, BN]
    dec_smask = _batch_block_mask(K, K, B)                        # [BK, BK]
    dec_cmask = _batch_block_mask(K, N_, B)                       # [BK, BN]

    mem, y0 = encoder_stack_call(O_all, pe_all, params["emb_w"], params["emb_b"],
                                 enc_mask, params["enc"],
                                 params["enc_norm_g"], params["enc_norm_b"],
                                 BN, BK)
    out = decoder_stack_call(y0, mem, dec_smask, dec_cmask, params["dec"],
                             params["dec_norm_g"], params["dec_norm_b"],
                             params["head"])
    out = out[:, :act_shape].reshape(B, K, act_shape)
    return jnp.transpose(out, (1, 0, 2))                          # [K, B, act]


# ----------------------------------------------------------------------------
# deterministic parameter init (fused / stacked / bf16 weights, f32 biases & LN)
# ----------------------------------------------------------------------------
def init_linear(key, din, dout, scale=0.05):
    kw, kb = jax.random.split(key)
    w = scale * jax.random.normal(kw, (din, dout), F32)
    b = scale * jax.random.normal(kb, (1, dout), F32)
    return w, b


def _ones_zeros():
    return jnp.ones((1, D_MODEL), F32), jnp.zeros((1, D_MODEL), F32)


def init_self_attn(key):
    ks = jax.random.split(key, 4)
    wq, bq = init_linear(ks[0], D_MODEL, D_MODEL)
    wk, bk = init_linear(ks[1], D_MODEL, D_MODEL)
    wv, bv = init_linear(ks[2], D_MODEL, D_MODEL)
    wo, bo = init_linear(ks[3], D_MODEL, D_MODEL)
    # fold 1/sqrt(head_dim) into the Q projection (weight AND bias)
    w_qkv = jnp.concatenate([wq * ATT_SCALE, wk, wv], axis=1)
    b_qkv = jnp.concatenate([bq * ATT_SCALE, bk, bv], axis=1)
    return w_qkv, b_qkv, wo, bo


def init_cross_attn(key):
    ks = jax.random.split(key, 4)
    wq, bq = init_linear(ks[0], D_MODEL, D_MODEL)
    wk, bk = init_linear(ks[1], D_MODEL, D_MODEL)
    wv, bv = init_linear(ks[2], D_MODEL, D_MODEL)
    wo, bo = init_linear(ks[3], D_MODEL, D_MODEL)
    w_kv = jnp.concatenate([wk, wv], axis=1)
    b_kv = jnp.concatenate([bk, bv], axis=1)
    return wq * ATT_SCALE, bq * ATT_SCALE, w_kv, b_kv, wo, bo


def init_encoder_stack(key, n_layers=3):
    per = []
    for k in jax.random.split(key, n_layers):
        ks = jax.random.split(k, 3)
        wqkv, bqkv, wo, bo = init_self_attn(ks[0])
        wf1, bf1 = init_linear(ks[1], D_MODEL, FF_DIM)
        wf2, bf2 = init_linear(ks[2], FF_DIM, D_MODEL)
        n1g, n1b = _ones_zeros()
        n2g, n2b = _ones_zeros()
        per.append(dict(wqkv=wqkv, bqkv=bqkv, wo=wo, bo=bo,
                        n1g=n1g, n1b=n1b, wf1=wf1, bf1=bf1,
                        wf2=wf2, bf2=bf2, n2g=n2g, n2b=n2b))
    stacked = {k: jnp.stack([p[k] for p in per]) for k in per[0]}
    for k in ("wqkv", "wo", "wf1", "wf2"):
        stacked[k] = stacked[k].astype(BF16)
    return stacked


def init_decoder_stack(key, n_layers=3):
    per = []
    for k in jax.random.split(key, n_layers):
        ks = jax.random.split(k, 4)
        wsqkv, bsqkv, wso, bso = init_self_attn(ks[0])
        wcq, bcq, wckv, bckv, wco, bco = init_cross_attn(ks[1])
        wf1, bf1 = init_linear(ks[2], D_MODEL, FF_DIM)
        wf2, bf2 = init_linear(ks[3], FF_DIM, D_MODEL)
        n1g, n1b = _ones_zeros()
        n2g, n2b = _ones_zeros()
        n3g, n3b = _ones_zeros()
        per.append(dict(wsqkv=wsqkv, bsqkv=bsqkv, wso=wso, bso=bso,
                        n1g=n1g, n1b=n1b,
                        wcq=wcq, bcq=bcq, wckv=wckv, bckv=bckv, wco=wco, bco=bco,
                        n2g=n2g, n2b=n2b,
                        wf1=wf1, bf1=bf1, wf2=wf2, bf2=bf2,
                        n3g=n3g, n3b=n3b))
    stacked = {k: jnp.stack([p[k] for p in per]) for k in per[0]}
    for k in ("wsqkv", "wso", "wcq", "wckv", "wco", "wf1", "wf2"):
        stacked[k] = stacked[k].astype(BF16)
    return stacked


def init_head(key, act_shape):
    ks = jax.random.split(key, 4)
    w1, b1 = init_linear(ks[0], D_MODEL, MLP_HID)
    w2, b2 = init_linear(ks[1], MLP_HID, MLP_HID)
    w3, b3 = init_linear(ks[2], MLP_HID, MLP_HID)
    w4, b4 = init_linear(ks[3], MLP_HID, act_shape)
    # pad the final layer to a lane-dense 128-wide output (sliced in the wrapper)
    w4p = jnp.zeros((MLP_HID, HEAD_OUT_PAD), F32).at[:, :act_shape].set(w4)
    b4p = jnp.zeros((1, HEAD_OUT_PAD), F32).at[:, :act_shape].set(b4)
    return dict(w1=w1.astype(BF16), b1=b1, w2=w2.astype(BF16), b2=b2,
                w3=w3.astype(BF16), b3=b3, w4=w4p.astype(BF16), b4=b4p)


def make_pe(d_model, max_len):
    position = jnp.arange(max_len, dtype=F32)[:, None]
    div_term = jnp.exp(
        jnp.arange(0, d_model, 2, dtype=F32) * (-math.log(10000.0) / d_model))
    pe = jnp.zeros((max_len, d_model), F32)
    pe = pe.at[:, 0::2].set(jnp.sin(position * div_term))
    pe = pe.at[:, 1::2].set(jnp.cos(position * div_term))
    return pe


def init_pi_params(key, obs_shape, act_shape):
    ks = jax.random.split(key, 8)
    emb_w, emb_b = init_linear(ks[0], obs_shape, D_MODEL)
    # NOTE: act_embeder exists in the PyTorch __init__ but is unused in forward().
    enc = init_encoder_stack(ks[1], 3)
    dec = init_decoder_stack(ks[2], 3)
    enc_ng, enc_nb = _ones_zeros()
    dec_ng, dec_nb = _ones_zeros()
    head = init_head(ks[3], act_shape)
    return dict(emb_w=emb_w.astype(BF16), emb_b=emb_b,
                enc=enc, dec=dec,
                enc_norm_g=enc_ng, enc_norm_b=enc_nb,
                dec_norm_g=dec_ng, dec_norm_b=dec_nb,
                head=head,
                pe=make_pe(D_MODEL, MAX_LEN))


# ----------------------------------------------------------------------------
if __name__ == "__main__":
    obs_shape = 16
    act_shape = 4
    N = 8      # encoder (observation) sequence length
    K = 4      # decoder sequence length
    batch = 2

    key = jax.random.PRNGKey(0)
    kp, kx = jax.random.split(key)
    params = init_pi_params(kp, obs_shape, act_shape)

    # O: [seq_len=N, batch, obs_shape]  (PyTorch seq-first convention)
    O = jax.random.normal(kx, (N, batch, obs_shape), jnp.float32)

    fwd = jax.jit(pi_forward, static_argnums=(2, 3))
    y = fwd(O, params, K, act_shape)
    y = jax.block_until_ready(y)
    assert y.shape == (K, batch, act_shape), y.shape
    assert bool(jnp.all(jnp.isfinite(y)))
    assert bool(jnp.all(jnp.abs(y) <= 1.0))  # tanh output range
    print("KERNEL_OK")
</pallas_src>

<mosaic_0001>
module attributes {stable_mosaic.version = 11 : i64} {
  func.func @_encoder_stack_kernel(%arg0: i32, %arg1: memref<24x16xf32, #tpu.memory_space<vmem>>, %arg2: memref<24x256xf32, #tpu.memory_space<vmem>>, %arg3: memref<16x256xbf16, #tpu.memory_space<vmem>>, %arg4: memref<1x256xf32, #tpu.memory_space<vmem>>, %arg5: memref<16x16xf32, #tpu.memory_space<vmem>>, %arg6: memref<1x256x768xbf16, #tpu.memory_space<vmem>>, %arg7: memref<1x1x768xf32, #tpu.memory_space<vmem>>, %arg8: memref<1x256x256xbf16, #tpu.memory_space<vmem>>, %arg9: memref<1x1x256xf32, #tpu.memory_space<vmem>>, %arg10: memref<1x1x256xf32, #tpu.memory_space<vmem>>, %arg11: memref<1x1x256xf32, #tpu.memory_space<vmem>>, %arg12: memref<1x256x256xbf16, #tpu.memory_space<vmem>>, %arg13: memref<1x1x256xf32, #tpu.memory_space<vmem>>, %arg14: memref<1x256x256xbf16, #tpu.memory_space<vmem>>, %arg15: memref<1x1x256xf32, #tpu.memory_space<vmem>>, %arg16: memref<1x1x256xf32, #tpu.memory_space<vmem>>, %arg17: memref<1x1x256xf32, #tpu.memory_space<vmem>>, %arg18: memref<1x256xf32, #tpu.memory_space<vmem>>, %arg19: memref<1x256xf32, #tpu.memory_space<vmem>>, %arg20: memref<16x256xf32, #tpu.memory_space<vmem>>, %arg21: memref<8x256xf32, #tpu.memory_space<vmem>>, %arg22: memref<16x256xf32, #tpu.memory_space<vmem>>) attributes {dimension_semantics = [#tpu.dimension_semantics<arbitrary>], iteration_bounds = array<i64: 3>, scalar_prefetch = 0 : i64, scratch_operands = 1 : i64, tpu.core_type = #tpu.core_type<tc>, window_params = [{pipeline_mode = #tpu.pipeline_mode<synchronous>, transform_indices = @transform_0, window_bounds = array<i64: 24, 16>}, {pipeline_mode = #tpu.pipeline_mode<synchronous>, transform_indices = @transform_1, window_bounds = array<i64: 24, 256>}, {pipeline_mode = #tpu.pipeline_mode<synchronous>, transform_indices = @transform_2, window_bounds = array<i64: 16, 256>}, {pipeline_mode = #tpu.pipeline_mode<synchronous>, transform_indices = @transform_3, window_bounds = array<i64: 1, 256>}, {pipeline_mode = #tpu.pipeline_mode<synchronous>, transform_indices = @transform_4, window_bounds = array<i64: 16, 16>}, {transform_indices = @transform_5, window_bounds = array<i64: 1, 256, 768>}, {transform_indices = @transform_6, window_bounds = array<i64: 1, 1, 768>}, {transform_indices = @transform_7, window_bounds = array<i64: 1, 256, 256>}, {transform_indices = @transform_8, window_bounds = array<i64: 1, 1, 256>}, {transform_indices = @transform_9, window_bounds = array<i64: 1, 1, 256>}, {transform_indices = @transform_10, window_bounds = array<i64: 1, 1, 256>}, {transform_indices = @transform_11, window_bounds = array<i64: 1, 256, 256>}, {transform_indices = @transform_12, window_bounds = array<i64: 1, 1, 256>}, {transform_indices = @transform_13, window_bounds = array<i64: 1, 256, 256>}, {transform_indices = @transform_14, window_bounds = array<i64: 1, 1, 256>}, {transform_indices = @transform_15, window_bounds = array<i64: 1, 1, 256>}, {transform_indices = @transform_16, window_bounds = array<i64: 1, 1, 256>}, {pipeline_mode = #tpu.pipeline_mode<synchronous>, transform_indices = @transform_17, window_bounds = array<i64: 1, 256>}, {pipeline_mode = #tpu.pipeline_mode<synchronous>, transform_indices = @transform_18, window_bounds = array<i64: 1, 256>}, {pipeline_mode = #tpu.pipeline_mode<synchronous>, transform_indices = @transform_19, window_bounds = array<i64: 16, 256>}, {pipeline_mode = #tpu.pipeline_mode<synchronous>, transform_indices = @transform_20, window_bounds = array<i64: 8, 256>}]} {
    %c0_i32 = arith.constant 0 : i32
    %0 = arith.cmpi eq, %arg0, %c0_i32 : i32
    %1 = arith.extui %0 : i1 to i32
    %c0_i32_0 = arith.constant 0 : i32
    %2 = arith.cmpi ne, %1, %c0_i32_0 : i32
    scf.if %2 {
      %c0_83 = arith.constant 0 : index
      %c0_84 = arith.constant 0 : index
      %193 = vector.load %arg1[%c0_83, %c0_84] : memref<24x16xf32, #tpu.memory_space<vmem>>, vector<24x16xf32>
      %194 = arith.truncf %193 : vector<24x16xf32> to vector<24x16xbf16>
      %c0_85 = arith.constant 0 : index
      %c0_86 = arith.constant 0 : index
      %195 = vector.load %arg3[%c0_85, %c0_86] : memref<16x256xbf16, #tpu.memory_space<vmem>>, vector<16x256xbf16>
      %cst_87 = arith.constant dense<0.000000e+00> : vector<24x256xf32>
      %196 = tpu.matmul %194, %195, %cst_87 {dimension_numbers = #tpu.dot_dimension_numbers<[1], [0], [0], [1], [0, 0, 1, 1], [], []>} : vector<24x16xbf16>, vector<16x256xbf16>, vector<24x256xf32> -> vector<24x256xf32>
      %c0_88 = arith.constant 0 : index
      %c0_89 = arith.constant 0 : index
      %197 = vector.load %arg4[%c0_88, %c0_89] : memref<1x256xf32, #tpu.memory_space<vmem>>, vector<1x256xf32>
      %198 = vector.broadcast %197 : vector<1x256xf32> to vector<24x256xf32>
      %199 = arith.addf %196, %198 : vector<24x256xf32>
      %c0_90 = arith.constant 0 : index
      %c0_91 = arith.constant 0 : index
      %200 = vector.load %arg2[%c0_90, %c0_91] : memref<24x256xf32, #tpu.memory_space<vmem>>, vector<24x256xf32>
      %201 = arith.addf %199, %200 : vector<24x256xf32>
      %202 = vector.extract_strided_slice %201 {offsets = [0, 0], sizes = [16, 256], strides = [1, 1]} : vector<24x256xf32> to vector<16x256xf32>
      %c0_92 = arith.constant 0 : index
      %c0_93 = arith.constant 0 : index
      %203 = vector.load %arg22[%c0_92, %c0_93] : memref<16x256xf32, #tpu.memory_space<vmem>>, vector<16x256xf32>
      tpu.vector_store %arg22[%c0_92, %c0_93], %202 {strides = array<i32>} : memref<16x256xf32, #tpu.memory_space<vmem>>, vector<16x256xf32>,
      %204 = vector.extract_strided_slice %201 {offsets = [16, 0], sizes = [8, 256], strides = [1, 1]} : vector<24x256xf32> to vector<8x256xf32>
      %c0_94 = arith.constant 0 : index
      %c0_95 = arith.constant 0 : index
      %205 = vector.load %arg21[%c0_94, %c0_95] : memref<8x256xf32, #tpu.memory_space<vmem>>, vector<8x256xf32>
      tpu.vector_store %arg21[%c0_94, %c0_95], %204 {strides = array<i32>} : memref<8x256xf32, #tpu.memory_space<vmem>>, vector<8x256xf32>,
    } else {
    }
    %c0 = arith.constant 0 : index
    %c0_1 = arith.constant 0 : index
    %3 = vector.load %arg22[%c0, %c0_1] : memref<16x256xf32, #tpu.memory_space<vmem>>, vector<16x256xf32>
    %4 = arith.truncf %3 : vector<16x256xf32> to vector<16x256xbf16>
    %c0_2 = arith.constant 0 : index
    %c0_3 = arith.constant 0 : index
    %c0_4 = arith.constant 0 : index
    %5 = vector.load %arg6[%c0_2, %c0_3, %c0_4] : memref<1x256x768xbf16, #tpu.memory_space<vmem>>, vector<1x256x768xbf16>
    %6 = vector.shape_cast %5 : vector<1x256x768xbf16> to vector<256x768xbf16>
    %cst = arith.constant dense<0.000000e+00> : vector<16x768xf32>
    %7 = tpu.matmul %4, %6, %cst {dimension_numbers = #tpu.dot_dimension_numbers<[1], [0], [0], [1], [0, 0, 1, 1], [], []>} : vector<16x256xbf16>, vector<256x768xbf16>, vector<16x768xf32> -> vector<16x768xf32>
    %c0_5 = arith.constant 0 : index
    %c0_6 = arith.constant 0 : index
    %c0_7 = arith.constant 0 : index
    %8 = vector.load %arg7[%c0_5, %c0_6, %c0_7] : memref<1x1x768xf32, #tpu.memory_space<vmem>>, vector<1x1x768xf32>
    %9 = vector.shape_cast %8 : vector<1x1x768xf32> to vector<1x768xf32>
    %10 = vector.broadcast %9 : vector<1x768xf32> to vector<16x768xf32>
    %11 = arith.addf %7, %10 : vector<16x768xf32>
    %12 = vector.extract_strided_slice %11 {offsets = [0, 0], sizes = [16, 256], strides = [1, 1]} : vector<16x768xf32> to vector<16x256xf32>
    %13 = vector.extract_strided_slice %11 {offsets = [0, 256], sizes = [16, 256], strides = [1, 1]} : vector<16x768xf32> to vector<16x256xf32>
    %14 = vector.extract_strided_slice %11 {offsets = [0, 512], sizes = [16, 256], strides = [1, 1]} : vector<16x768xf32> to vector<16x256xf32>
    %c0_8 = arith.constant 0 : index
    %c0_9 = arith.constant 0 : index
    %15 = vector.load %arg5[%c0_8, %c0_9] : memref<16x16xf32, #tpu.memory_space<vmem>>, vector<16x16xf32>
    %cst_10 = arith.constant 0.000000e+00 : f32
    %16 = vector.broadcast %cst_10 : f32 to vector<16x256xf32>
    %17 = vector.extract_strided_slice %12 {offsets = [0, 0], sizes = [16, 64], strides = [1, 1]} : vector<16x256xf32> to vector<16x64xf32>
    %18 = arith.truncf %17 : vector<16x64xf32> to vector<16x64xbf16>
    %19 = vector.extract_strided_slice %13 {offsets = [0, 0], sizes = [16, 64], strides = [1, 1]} : vector<16x256xf32> to vector<16x64xf32>
    %20 = arith.truncf %19 : vector<16x64xf32> to vector<16x64xbf16>
    %21 = vector.extract_strided_slice %14 {offsets = [0, 0], sizes = [16, 64], strides = [1, 1]} : vector<16x256xf32> to vector<16x64xf32>
    %22 = arith.truncf %21 : vector<16x64xf32> to vector<16x64xbf16>
    %cst_11 = arith.constant dense<0.000000e+00> : vector<16x16xf32>
    %23 = tpu.matmul %18, %20, %cst_11 {dimension_numbers = #tpu.dot_dimension_numbers<[1], [1], [0], [0], [0, 0, 1, 0], [], []>} : vector<16x64xbf16>, vector<16x64xbf16>, vector<16x16xf32> -> vector<16x16xf32>
    %24 = arith.addf %23, %15 : vector<16x16xf32>
    %cst_12 = arith.constant dense<0xFF800000> : vector<16xf32>
    %25 = vector.multi_reduction <maximumf>, %24, %cst_12 [1] : vector<16x16xf32> to vector<16xf32>
    %26 = vector.shape_cast %25 : vector<16xf32> to vector<16x1xf32>
    %27 = vector.broadcast %26 : vector<16x1xf32> to vector<16x16xf32>
    %28 = arith.subf %24, %27 : vector<16x16xf32>
    %29 = math.exp %28 : vector<16x16xf32>
    %cst_13 = arith.constant dense<0.000000e+00> : vector<16xf32>
    %30 = vector.multi_reduction <add>, %29, %cst_13 [1] : vector<16x16xf32> to vector<16xf32>
    %31 = vector.shape_cast %30 : vector<16xf32> to vector<16x1xf32>
    %32 = vector.broadcast %31 : vector<16x1xf32> to vector<16x16xf32>
    %33 = arith.divf %29, %32 : vector<16x16xf32>
    %34 = arith.truncf %33 : vector<16x16xf32> to vector<16x16xbf16>
    %cst_14 = arith.constant dense<0.000000e+00> : vector<16x64xf32>
    %35 = tpu.matmul %34, %22, %cst_14 {dimension_numbers = #tpu.dot_dimension_numbers<[1], [0], [0], [1], [0, 0, 1, 1], [], []>} : vector<16x16xbf16>, vector<16x64xbf16>, vector<16x64xf32> -> vector<16x64xf32>
    %36 = arith.truncf %35 : vector<16x64xf32> to vector<16x64xbf16>
    %c0_15 = arith.constant 0 : index
    %c0_16 = arith.constant 0 : index
    %c0_17 = arith.constant 0 : index
    %37 = vector.load %arg8[%c0_15, %c0_16, %c0_17] : memref<1x256x256xbf16, #tpu.memory_space<vmem>>, vector<1x64x256xbf16>
    %38 = vector.shape_cast %37 : vector<1x64x256xbf16> to vector<64x256xbf16>
    %cst_18 = arith.constant dense<0.000000e+00> : vector<16x256xf32>
    %39 = tpu.matmul %36, %38, %cst_18 {dimension_numbers = #tpu.dot_dimension_numbers<[1], [0], [0], [1], [0, 0, 1, 1], [], []>} : vector<16x64xbf16>, vector<64x256xbf16>, vector<16x256xf32> -> vector<16x256xf32>
    %40 = arith.addf %16, %39 : vector<16x256xf32>
    %41 = vector.extract_strided_slice %12 {offsets = [0, 64], sizes = [16, 64], strides = [1, 1]} : vector<16x256xf32> to vector<16x64xf32>
    %42 = arith.truncf %41 : vector<16x64xf32> to vector<16x64xbf16>
    %43 = vector.extract_strided_slice %13 {offsets = [0, 64], sizes = [16, 64], strides = [1, 1]} : vector<16x256xf32> to vector<16x64xf32>
    %44 = arith.truncf %43 : vector<16x64xf32> to vector<16x64xbf16>
    %45 = vector.extract_strided_slice %14 {offsets = [0, 64], sizes = [16, 64], strides = [1, 1]} : vector<16x256xf32> to vector<16x64xf32>
    %46 = arith.truncf %45 : vector<16x64xf32> to vector<16x64xbf16>
    %cst_19 = arith.constant dense<0.000000e+00> : vector<16x16xf32>
    %47 = tpu.matmul %42, %44, %cst_19 {dimension_numbers = #tpu.dot_dimension_numbers<[1], [1], [0], [0], [0, 0, 1, 0], [], []>} : vector<16x64xbf16>, vector<16x64xbf16>, vector<16x16xf32> -> vector<16x16xf32>
    %48 = arith.addf %47, %15 : vector<16x16xf32>
    %cst_20 = arith.constant dense<0xFF800000> : vector<16xf32>
    %49 = vector.multi_reduction <maximumf>, %48, %cst_20 [1] : vector<16x16xf32> to vector<16xf32>
    %50 = vector.shape_cast %49 : vector<16xf32> to vector<16x1xf32>
    %51 = vector.broadcast %50 : vector<16x1xf32> to vector<16x16xf32>
    %52 = arith.subf %48, %51 : vector<16x16xf32>
    %53 = math.exp %52 : vector<16x16xf32>
    %cst_21 = arith.constant dense<0.000000e+00> : vector<16xf32>
    %54 = vector.multi_reduction <add>, %53, %cst_21 [1] : vector<16x16xf32> to vector<16xf32>
    %55 = vector.shape_cast %54 : vector<16xf32> to vector<16x1xf32>
    %56 = vector.broadcast %55 : vector<16x1xf32> to vector<16x16xf32>
    %57 = arith.divf %53, %56 : vector<16x16xf32>
    %58 = arith.truncf %57 : vector<16x16xf32> to vector<16x16xbf16>
    %cst_22 = arith.constant dense<0.000000e+00> : vector<16x64xf32>
    %59 = tpu.matmul %58, %46, %cst_22 {dimension_numbers = #tpu.dot_dimension_numbers<[1], [0], [0], [1], [0, 0, 1, 1], [], []>} : vector<16x16xbf16>, vector<16x64xbf16>, vector<16x64xf32> -> vector<16x64xf32>
    %60 = arith.truncf %59 : vector<16x64xf32> to vector<16x64xbf16>
    %c0_23 = arith.constant 0 : index
    %c64 = arith.constant 64 : index
    %c0_24 = arith.constant 0 : index
    %61 = vector.load %arg8[%c0_23, %c64, %c0_24] : memref<1x256x256xbf16, #tpu.memory_space<vmem>>, vector<1x64x256xbf16>
    %62 = vector.shape_cast %61 : vector<1x64x256xbf16> to vector<64x256xbf16>
    %cst_25 = arith.constant dense<0.000000e+00> : vector<16x256xf32>
    %63 = tpu.matmul %60, %62, %cst_25 {dimension_numbers = #tpu.dot_dimension_numbers<[1], [0], [0], [1], [0, 0, 1, 1], [], []>} : vector<16x64xbf16>, vector<64x256xbf16>, vector<16x256xf32> -> vector<16x256xf32>
    %64 = arith.addf %40, %63 : vector<16x256xf32>
    %65 = vector.extract_strided_slice %12 {offsets = [0, 128], sizes = [16, 64], strides = [1, 1]} : vector<16x256xf32> to vector<16x64xf32>
    %66 = arith.truncf %65 : vector<16x64xf32> to vector<16x64xbf16>
    %67 = vector.extract_strided_slice %13 {offsets = [0, 128], sizes = [16, 64], strides = [1, 1]} : vector<16x256xf32> to vector<16x64xf32>
    %68 = arith.truncf %67 : vector<16x64xf32> to vector<16x64xbf16>
    %69 = vector.extract_strided_slice %14 {offsets = [0, 128], sizes = [16, 64], strides = [1, 1]} : vector<16x256xf32> to vector<16x64xf32>
    %70 = arith.truncf %69 : vector<16x64xf32> to vector<16x64xbf16>
    %cst_26 = arith.constant dense<0.000000e+00> : vector<16x16xf32>
    %71 = tpu.matmul %66, %68, %cst_26 {dimension_numbers = #tpu.dot_dimension_numbers<[1], [1], [0], [0], [0, 0, 1, 0], [], []>} : vector<16x64xbf16>, vector<16x64xbf16>, vector<16x16xf32> -> vector<16x16xf32>
    %72 = arith.addf %71, %15 : vector<16x16xf32>
    %cst_27 = arith.constant dense<0xFF800000> : vector<16xf32>
    %73 = vector.multi_reduction <maximumf>, %72, %cst_27 [1] : vector<16x16xf32> to vector<16xf32>
    %74 = vector.shape_cast %73 : vector<16xf32> to vector<16x1xf32>
    %75 = vector.broadcast %74 : vector<16x1xf32> to vector<16x16xf32>
    %76 = arith.subf %72, %75 : vector<16x16xf32>
    %77 = math.exp %76 : vector<16x16xf32>
    %cst_28 = arith.constant dense<0.000000e+00> : vector<16xf32>
    %78 = vector.multi_reduction <add>, %77, %cst_28 [1] : vector<16x16xf32> to vector<16xf32>
    %79 = vector.shape_cast %78 : vector<16xf32> to vector<16x1xf32>
    %80 = vector.broadcast %79 : vector<16x1xf32> to vector<16x16xf32>
    %81 = arith.divf %77, %80 : vector<16x16xf32>
    %82 = arith.truncf %81 : vector<16x16xf32> to vector<16x16xbf16>
    %cst_29 = arith.constant dense<0.000000e+00> : vector<16x64xf32>
    %83 = tpu.matmul %82, %70, %cst_29 {dimension_numbers = #tpu.dot_dimension_numbers<[1], [0], [0], [1], [0, 0, 1, 1], [], []>} : vector<16x16xbf16>, vector<16x64xbf16>, vector<16x64xf32> -> vector<16x64xf32>
    %84 = arith.truncf %83 : vector<16x64xf32> to vector<16x64xbf16>
    %c0_30 = arith.constant 0 : index
    %c128 = arith.constant 128 : index
    %c0_31 = arith.constant 0 : index
    %85 = vector.load %arg8[%c0_30, %c128, %c0_31] : memref<1x256x256xbf16, #tpu.memory_space<vmem>>, vector<1x64x256xbf16>
    %86 = vector.shape_cast %85 : vector<1x64x256xbf16> to vector<64x256xbf16>
    %cst_32 = arith.constant dense<0.000000e+00> : vector<16x256xf32>
    %87 = tpu.matmul %84, %86, %cst_32 {dimension_numbers = #tpu.dot_dimension_numbers<[1], [0], [0], [1], [0, 0, 1, 1], [], []>} : vector<16x64xbf16>, vector<64x256xbf16>, vector<16x256xf32> -> vector<16x256xf32>
    %88 = arith.addf %64, %87 : vector<16x256xf32>
    %89 = vector.extract_strided_slice %12 {offsets = [0, 192], sizes = [16, 64], strides = [1, 1]} : vector<16x256xf32> to vector<16x64xf32>
    %90 = arith.truncf %89 : vector<16x64xf32> to vector<16x64xbf16>
    %91 = vector.extract_strided_slice %13 {offsets = [0, 192], sizes = [16, 64], strides = [1, 1]} : vector<16x256xf32> to vector<16x64xf32>
    %92 = arith.truncf %91 : vector<16x64xf32> to vector<16x64xbf16>
    %93 = vector.extract_strided_slice %14 {offsets = [0, 192], sizes = [16, 64], strides = [1, 1]} : vector<16x256xf32> to vector<16x64xf32>
    %94 = arith.truncf %93 : vector<16x64xf32> to vector<16x64xbf16>
    %cst_33 = arith.constant dense<0.000000e+00> : vector<16x16xf32>
    %95 = tpu.matmul %90, %92, %cst_33 {dimension_numbers = #tpu.dot_dimension_numbers<[1], [1], [0], [0], [0, 0, 1, 0], [], []>} : vector<16x64xbf16>, vector<16x64xbf16>, vector<16x16xf32> -> vector<16x16xf32>
    %96 = arith.addf %95, %15 : vector<16x16xf32>
    %cst_34 = arith.constant dense<0xFF800000> : vector<16xf32>
    %97 = vector.multi_reduction <maximumf>, %96, %cst_34 [1] : vector<16x16xf32> to vector<16xf32>
    %98 = vector.shape_cast %97 : vector<16xf32> to vector<16x1xf32>
    %99 = vector.broadcast %98 : vector<16x1xf32> to vector<16x16xf32>
    %100 = arith.subf %96, %99 : vector<16x16xf32>
    %101 = math.exp %100 : vector<16x16xf32>
    %cst_35 = arith.constant dense<0.000000e+00> : vector<16xf32>
    %102 = vector.multi_reduction <add>, %101, %cst_35 [1] : vector<16x16xf32> to vector<16xf32>
    %103 = vector.shape_cast %102 : vector<16xf32> to vector<16x1xf32>
    %104 = vector.broadcast %103 : vector<16x1xf32> to vector<16x16xf32>
    %105 = arith.divf %101, %104 : vector<16x16xf32>
    %106 = arith.truncf %105 : vector<16x16xf32> to vector<16x16xbf16>
    %cst_36 = arith.constant dense<0.000000e+00> : vector<16x64xf32>
    %107 = tpu.matmul %106, %94, %cst_36 {dimension_numbers = #tpu.dot_dimension_numbers<[1], [0], [0], [1], [0, 0, 1, 1], [], []>} : vector<16x16xbf16>, vector<16x64xbf16>, vector<16x64xf32> -> vector<16x64xf32>
    %108 = arith.truncf %107 : vector<16x64xf32> to vector<16x64xbf16>
    %c0_37 = arith.constant 0 : index
    %c192 = arith.constant 192 : index
    %c0_38 = arith.constant 0 : index
    %109 = vector.load %arg8[%c0_37, %c192, %c0_38] : memref<1x256x256xbf16, #tpu.memory_space<vmem>>, vector<1x64x256xbf16>
    %110 = vector.shape_cast %109 : vector<1x64x256xbf16> to vector<64x256xbf16>
    %cst_39 = arith.constant dense<0.000000e+00> : vector<16x256xf32>
    %111 = tpu.matmul %108, %110, %cst_39 {dimension_numbers = #tpu.dot_dimension_numbers<[1], [0], [0], [1], [0, 0, 1, 1], [], []>} : vector<16x64xbf16>, vector<64x256xbf16>, vector<16x256xf32> -> vector<16x256xf32>
    %112 = arith.addf %88, %111 : vector<16x256xf32>
    %c0_40 = arith.constant 0 : index
    %c0_41 = arith.constant 0 : index
    %c0_42 = arith.constant 0 : index
    %113 = vector.load %arg9[%c0_40, %c0_41, %c0_42] : memref<1x1x256xf32, #tpu.memory_space<vmem>>, vector<1x1x256xf32>
    %114 = vector.shape_cast %113 : vector<1x1x256xf32> to vector<1x256xf32>
    %115 = vector.broadcast %114 : vector<1x256xf32> to vector<16x256xf32>
    %116 = arith.addf %112, %115 : vector<16x256xf32>
    %117 = arith.addf %3, %116 : vector<16x256xf32>
    %cst_43 = arith.constant dense<0.000000e+00> : vector<16xf32>
    %118 = vector.multi_reduction <add>, %117, %cst_43 [1] : vector<16x256xf32> to vector<16xf32>
    %119 = vector.shape_cast %118 : vector<16xf32> to vector<16x1xf32>
    %cst_44 = arith.constant 2.560000e+02 : f32
    %120 = vector.broadcast %cst_44 : f32 to vector<16x1xf32>
    %121 = arith.divf %119, %120 : vector<16x1xf32>
    %122 = vector.broadcast %121 : vector<16x1xf32> to vector<16x256xf32>
    %123 = arith.subf %117, %122 : vector<16x256xf32>
    %124 = arith.mulf %123, %123 : vector<16x256xf32>
    %cst_45 = arith.constant dense<0.000000e+00> : vector<16xf32>
    %125 = vector.multi_reduction <add>, %124, %cst_45 [1] : vector<16x256xf32> to vector<16xf32>
    %126 = vector.shape_cast %125 : vector<16xf32> to vector<16x1xf32>
    %cst_46 = arith.constant 2.560000e+02 : f32
    %127 = vector.broadcast %cst_46 : f32 to vector<16x1xf32>
    %128 = arith.divf %126, %127 : vector<16x1xf32>
    %129 = vector.broadcast %121 : vector<16x1xf32> to vector<16x256xf32>
    %130 = arith.subf %117, %129 : vector<16x256xf32>
    %cst_47 = arith.constant 9.99999974E-6 : f32
    %131 = vector.broadcast %cst_47 : f32 to vector<16x1xf32>
    %132 = arith.addf %128, %131 : vector<16x1xf32>
    %133 = math.rsqrt %132 : vector<16x1xf32>
    %134 = vector.broadcast %133 : vector<16x1xf32> to vector<16x256xf32>
    %135 = arith.mulf %130, %134 : vector<16x256xf32>
    %c0_48 = arith.constant 0 : index
    %c0_49 = arith.constant 0 : index
    %c0_50 = arith.constant 0 : index
    %136 = vector.load %arg10[%c0_48, %c0_49, %c0_50] : memref<1x1x256xf32, #tpu.memory_space<vmem>>, vector<1x1x256xf32>
    %137 = vector.shape_cast %136 : vector<1x1x256xf32> to vector<1x256xf32>
    %138 = vector.broadcast %137 : vector<1x256xf32> to vector<16x256xf32>
    %139 = arith.mulf %135, %138 : vector<16x256xf32>
    %c0_51 = arith.constant 0 : index
    %c0_52 = arith.constant 0 : index
    %c0_53 = arith.constant 0 : index
    %140 = vector.load %arg11[%c0_51, %c0_52, %c0_53] : memref<1x1x256xf32, #tpu.memory_space<vmem>>, vector<1x1x256xf32>
    %141 = vector.shape_cast %140 : vector<1x1x256xf32> to vector<1x256xf32>
    %142 = vector.broadcast %141 : vector<1x256xf32> to vector<16x256xf32>
    %143 = arith.addf %139, %142 : vector<16x256xf32>
    %144 = arith.truncf %143 : vector<16x256xf32> to vector<16x256xbf16>
    %c0_54 = arith.constant 0 : index
    %c0_55 = arith.constant 0 : index
    %c0_56 = arith.constant 0 : index
    %145 = vector.load %arg12[%c0_54, %c0_55, %c0_56] : memref<1x256x256xbf16, #tpu.memory_space<vmem>>, vector<1x256x256xbf16>
    %146 = vector.shape_cast %145 : vector<1x256x256xbf16> to vector<256x256xbf16>
    %cst_57 = arith.constant dense<0.000000e+00> : vector<16x256xf32>
    %147 = tpu.matmul %144, %146, %cst_57 {dimension_numbers = #tpu.dot_dimension_numbers<[1], [0], [0], [1], [0, 0, 1, 1], [], []>} : vector<16x256xbf16>, vector<256x256xbf16>, vector<16x256xf32> -> vector<16x256xf32>
    %c0_58 = arith.constant 0 : index
    %c0_59 = arith.constant 0 : index
    %c0_60 = arith.constant 0 : index
    %148 = vector.load %arg13[%c0_58, %c0_59, %c0_60] : memref<1x1x256xf32, #tpu.memory_space<vmem>>, vector<1x1x256xf32>
    %149 = vector.shape_cast %148 : vector<1x1x256xf32> to vector<1x256xf32>
    %150 = vector.broadcast %149 : vector<1x256xf32> to vector<16x256xf32>
    %151 = arith.addf %147, %150 : vector<16x256xf32>
    %cst_61 = arith.constant 0.000000e+00 : f32
    %152 = vector.broadcast %cst_61 : f32 to vector<16x256xf32>
    %153 = arith.maximumf %151, %152 : vector<16x256xf32>
    %154 = arith.truncf %153 : vector<16x256xf32> to vector<16x256xbf16>
    %c0_62 = arith.constant 0 : index
    %c0_63 = arith.constant 0 : index
    %c0_64 = arith.constant 0 : index
    %155 = vector.load %arg14[%c0_62, %c0_63, %c0_64] : memref<1x256x256xbf16, #tpu.memory_space<vmem>>, vector<1x256x256xbf16>
    %156 = vector.shape_cast %155 : vector<1x256x256xbf16> to vector<256x256xbf16>
    %cst_65 = arith.constant dense<0.000000e+00> : vector<16x256xf32>
    %157 = tpu.matmul %154, %156, %cst_65 {dimension_numbers = #tpu.dot_dimension_numbers<[1], [0], [0], [1], [0, 0, 1, 1], [], []>} : vector<16x256xbf16>, vector<256x256xbf16>, vector<16x256xf32> -> vector<16x256xf32>
    %c0_66 = arith.constant 0 : index
    %c0_67 = arith.constant 0 : index
    %c0_68 = arith.constant 0 : index
    %158 = vector.load %arg15[%c0_66, %c0_67, %c0_68] : memref<1x1x256xf32, #tpu.memory_space<vmem>>, vector<1x1x256xf32>
    %159 = vector.shape_cast %158 : vector<1x1x256xf32> to vector<1x256xf32>
    %160 = vector.broadcast %159 : vector<1x256xf32> to vector<16x256xf32>
    %161 = arith.addf %157, %160 : vector<16x256xf32>
    %162 = arith.addf %143, %161 : vector<16x256xf32>
    %cst_69 = arith.constant dense<0.000000e+00> : vector<16xf32>
    %163 = vector.multi_reduction <add>, %162, %cst_69 [1] : vector<16x256xf32> to vector<16xf32>
    %164 = vector.shape_cast %163 : vector<16xf32> to vector<16x1xf32>
    %cst_70 = arith.constant 2.560000e+02 : f32
    %165 = vector.broadcast %cst_70 : f32 to vector<16x1xf32>
    %166 = arith.divf %164, %165 : vector<16x1xf32>
    %167 = vector.broadcast %166 : vector<16x1xf32> to vector<16x256xf32>
    %168 = arith.subf %162, %167 : vector<16x256xf32>
    %169 = arith.mulf %168, %168 : vector<16x256xf32>
    %cst_71 = arith.constant dense<0.000000e+00> : vector<16xf32>
    %170 = vector.multi_reduction <add>, %169, %cst_71 [1] : vector<16x256xf32> to vector<16xf32>
    %171 = vector.shape_cast %170 : vector<16xf32> to vector<16x1xf32>
    %cst_72 = arith.constant 2.560000e+02 : f32
    %172 = vector.broadcast %cst_72 : f32 to vector<16x1xf32>
    %173 = arith.divf %171, %172 : vector<16x1xf32>
    %174 = vector.broadcast %166 : vector<16x1xf32> to vector<16x256xf32>
    %175 = arith.subf %162, %174 : vector<16x256xf32>
    %cst_73 = arith.constant 9.99999974E-6 : f32
    %176 = vector.broadcast %cst_73 : f32 to vector<16x1xf32>
    %177 = arith.addf %173, %176 : vector<16x1xf32>
    %178 = math.rsqrt %177 : vector<16x1xf32>
    %179 = vector.broadcast %178 : vector<16x1xf32> to vector<16x256xf32>
    %180 = arith.mulf %175, %179 : vector<16x256xf32>
    %c0_74 = arith.constant 0 : index
    %c0_75 = arith.constant 0 : index
    %c0_76 = arith.constant 0 : index
    %181 = vector.load %arg16[%c0_74, %c0_75, %c0_76] : memref<1x1x256xf32, #tpu.memory_space<vmem>>, vector<1x1x256xf32>
    %182 = vector.shape_cast %181 : vector<1x1x256xf32> to vector<1x256xf32>
    %183 = vector.broadcast %182 : vector<1x256xf32> to vector<16x256xf32>
    %184 = arith.mulf %180, %183 : vector<16x256xf32>
    %c0_77 = arith.constant 0 : index
    %c0_78 = arith.constant 0 : index
    %c0_79 = arith.constant 0 : index
    %185 = vector.load %arg17[%c0_77, %c0_78, %c0_79] : memref<1x1x256xf32, #tpu.memory_space<vmem>>, vector<1x1x256xf32>
    %186 = vector.shape_cast %185 : vector<1x1x256xf32> to vector<1x256xf32>
    %187 = vector.broadcast %186 : vector<1x256xf32> to vector<16x256xf32>
    %188 = arith.addf %184, %187 : vector<16x256xf32>
    %c0_80 = arith.constant 0 : index
    %c0_81 = arith.constant 0 : index
    %189 = vector.load %arg22[%c0_80, %c0_81] : memref<16x256xf32, #tpu.memory_space<vmem>>, vector<16x256xf32>
    tpu.vector_store %arg22[%c0_80, %c0_81], %188 {strides = array<i32>} : memref<16x256xf32, #tpu.memory_space<vmem>>, vector<16x256xf32>,
    %c2_i32 = arith.constant 2 : i32
    %190 = arith.cmpi eq, %arg0, %c2_i32 : i32
    %191 = arith.extui %190 : i1 to i32
    %c0_i32_82 = arith.constant 0 : i32
    %192 = arith.cmpi ne, %191, %c0_i32_82 : i32
    scf.if %192 {
      %cst_83 = arith.constant dense<0.000000e+00> : vector<16xf32>
      %193 = vector.multi_reduction <add>, %188, %cst_83 [1] : vector<16x256xf32> to vector<16xf32>
      %194 = vector.shape_cast %193 : vector<16xf32> to vector<16x1xf32>
      %cst_84 = arith.constant 2.560000e+02 : f32
      %195 = vector.broadcast %cst_84 : f32 to vector<16x1xf32>
      %196 = arith.divf %194, %195 : vector<16x1xf32>
      %197 = vector.broadcast %196 : vector<16x1xf32> to vector<16x256xf32>
      %198 = arith.subf %188, %197 : vector<16x256xf32>
      %199 = arith.mulf %198, %198 : vector<16x256xf32>
      %cst_85 = arith.constant dense<0.000000e+00> : vector<16xf32>
      %200 = vector.multi_reduction <add>, %199, %cst_85 [1] : vector<16x256xf32> to vector<16xf32>
      %201 = vector.shape_cast %200 : vector<16xf32> to vector<16x1xf32>
      %cst_86 = arith.constant 2.560000e+02 : f32
      %202 = vector.broadcast %cst_86 : f32 to vector<16x1xf32>
      %203 = arith.divf %201, %202 : vector<16x1xf32>
      %204 = vector.broadcast %196 : vector<16x1xf32> to vector<16x256xf32>
      %205 = arith.subf %188, %204 : vector<16x256xf32>
      %cst_87 = arith.constant 9.99999974E-6 : f32
      %206 = vector.broadcast %cst_87 : f32 to vector<16x1xf32>
      %207 = arith.addf %203, %206 : vector<16x1xf32>
      %208 = math.rsqrt %207 : vector<16x1xf32>
      %209 = vector.broadcast %208 : vector<16x1xf32> to vector<16x256xf32>
      %210 = arith.mulf %205, %209 : vector<16x256xf32>
      %c0_88 = arith.constant 0 : index
      %c0_89 = arith.constant 0 : index
      %211 = vector.load %arg18[%c0_88, %c0_89] : memref<1x256xf32, #tpu.memory_space<vmem>>, vector<1x256xf32>
      %212 = vector.broadcast %211 : vector<1x256xf32> to vector<16x256xf32>
      %213 = arith.mulf %210, %212 : vector<16x256xf32>
      %c0_90 = arith.constant 0 : index
      %c0_91 = arith.constant 0 : index
      %214 = vector.load %arg19[%c0_90, %c0_91] : memref<1x256xf32, #tpu.memory_space<vmem>>, vector<1x256xf32>
      %215 = vector.broadcast %214 : vector<1x256xf32> to vector<16x256xf32>
      %216 = arith.addf %213, %215 : vector<16x256xf32>
      %c0_92 = arith.constant 0 : index
      %c0_93 = arith.constant 0 : index
      %217 = vector.load %arg20[%c0_92, %c0_93] : memref<16x256xf32, #tpu.memory_space<vmem>>, vector<16x256xf32>
      tpu.vector_store %arg20[%c0_92, %c0_93], %216 {strides = array<i32>} : memref<16x256xf32, #tpu.memory_space<vmem>>, vector<16x256xf32>,
    } else {
    }
    return
  }
  func.func @transform_0(%arg0: i32) -> (i32, i32) {
    %c0_i32 = arith.constant 0 : i32
    %c0_i32_0 = arith.constant 0 : i32
    %c0_i32_1 = arith.constant 0 : i32
    return %c0_i32, %c0_i32_0 : i32, i32
  }
  func.func @transform_1(%arg0: i32) -> (i32, i32) {
    %c0_i32 = arith.constant 0 : i32
    %c0_i32_0 = arith.constant 0 : i32
    %c0_i32_1 = arith.constant 0 : i32
    return %c0_i32, %c0_i32_0 : i32, i32
  }
  func.func @transform_2(%arg0: i32) -> (i32, i32) {
    %c0_i32 = arith.constant 0 : i32
    %c0_i32_0 = arith.constant 0 : i32
    %c0_i32_1 = arith.constant 0 : i32
    return %c0_i32, %c0_i32_0 : i32, i32
  }
  func.func @transform_3(%arg0: i32) -> (i32, i32) {
    %c0_i32 = arith.constant 0 : i32
    %c0_i32_0 = arith.constant 0 : i32
    %c0_i32_1 = arith.constant 0 : i32
    return %c0_i32, %c0_i32_0 : i32, i32
  }
  func.func @transform_4(%arg0: i32) -> (i32, i32) {
    %c0_i32 = arith.constant 0 : i32
    %c0_i32_0 = arith.constant 0 : i32
    %c0_i32_1 = arith.constant 0 : i32
    return %c0_i32, %c0_i32_0 : i32, i32
  }
  func.func @transform_5(%arg0: i32) -> (i32, i32, i32) {
    %c0_i32 = arith.constant 0 : i32
    %c0_i32_0 = arith.constant 0 : i32
    %c0_i32_1 = arith.constant 0 : i32
    return %arg0, %c0_i32, %c0_i32_0 : i32, i32, i32
  }
  func.func @transform_6(%arg0: i32) -> (i32, i32, i32) {
    %c0_i32 = arith.constant 0 : i32
    %c0_i32_0 = arith.constant 0 : i32
    %c0_i32_1 = arith.constant 0 : i32
    return %arg0, %c0_i32, %c0_i32_0 : i32, i32, i32
  }
  func.func @transform_7(%arg0: i32) -> (i32, i32, i32) {
    %c0_i32 = arith.constant 0 : i32
    %c0_i32_0 = arith.constant 0 : i32
    %c0_i32_1 = arith.constant 0 : i32
    return %arg0, %c0_i32, %c0_i32_0 : i32, i32, i32
  }
  func.func @transform_8(%arg0: i32) -> (i32, i32, i32) {
    %c0_i32 = arith.constant 0 : i32
    %c0_i32_0 = arith.constant 0 : i32
    %c0_i32_1 = arith.constant 0 : i32
    return %arg0, %c0_i32, %c0_i32_0 : i32, i32, i32
  }
  func.func @transform_9(%arg0: i32) -> (i32, i32, i32) {
    %c0_i32 = arith.constant 0 : i32
    %c0_i32_0 = arith.constant 0 : i32
    %c0_i32_1 = arith.constant 0 : i32
    return %arg0, %c0_i32, %c0_i32_0 : i32, i32, i32
  }
  func.func @transform_10(%arg0: i32) -> (i32, i32, i32) {
    %c0_i32 = arith.constant 0 : i32
    %c0_i32_0 = arith.constant 0 : i32
    %c0_i32_1 = arith.constant 0 : i32
    return %arg0, %c0_i32, %c0_i32_0 : i32, i32, i32
  }
  func.func @transform_11(%arg0: i32) -> (i32, i32, i32) {
    %c0_i32 = arith.constant 0 : i32
    %c0_i32_0 = arith.constant 0 : i32
    %c0_i32_1 = arith.constant 0 : i32
    return %arg0, %c0_i32, %c0_i32_0 : i32, i32, i32
  }
  func.func @transform_12(%arg0: i32) -> (i32, i32, i32) {
    %c0_i32 = arith.constant 0 : i32
    %c0_i32_0 = arith.constant 0 : i32
    %c0_i32_1 = arith.constant 0 : i32
    return %arg0, %c0_i32, %c0_i32_0 : i32, i32, i32
  }
  func.func @transform_13(%arg0: i32) -> (i32, i32, i32) {
    %c0_i32 = arith.constant 0 : i32
    %c0_i32_0 = arith.constant 0 : i32
    %c0_i32_1 = arith.constant 0 : i32
    return %arg0, %c0_i32, %c0_i32_0 : i32, i32, i32
  }
  func.func @transform_14(%arg0: i32) -> (i32, i32, i32) {
    %c0_i32 = arith.constant 0 : i32
    %c0_i32_0 = arith.constant 0 : i32
    %c0_i32_1 = arith.constant 0 : i32
    return %arg0, %c0_i32, %c0_i32_0 : i32, i32, i32
  }
  func.func @transform_15(%arg0: i32) -> (i32, i32, i32) {
    %c0_i32 = arith.constant 0 : i32
    %c0_i32_0 = arith.constant 0 : i32
    %c0_i32_1 = arith.constant 0 : i32
    return %arg0, %c0_i32, %c0_i32_0 : i32, i32, i32
  }
  func.func @transform_16(%arg0: i32) -> (i32, i32, i32) {
    %c0_i32 = arith.constant 0 : i32
    %c0_i32_0 = arith.constant 0 : i32
    %c0_i32_1 = arith.constant 0 : i32
    return %arg0, %c0_i32, %c0_i32_0 : i32, i32, i32
  }
  func.func @transform_17(%arg0: i32) -> (i32, i32) {
    %c0_i32 = arith.constant 0 : i32
    %c0_i32_0 = arith.constant 0 : i32
    %c0_i32_1 = arith.constant 0 : i32
    return %c0_i32, %c0_i32_0 : i32, i32
  }
  func.func @transform_18(%arg0: i32) -> (i32, i32) {
    %c0_i32 = arith.constant 0 : i32
    %c0_i32_0 = arith.constant 0 : i32
    %c0_i32_1 = arith.constant 0 : i32
    return %c0_i32, %c0_i32_0 : i32, i32
  }
  func.func @transform_19(%arg0: i32) -> (i32, i32) {
    %c0_i32 = arith.constant 0 : i32
    %c0_i32_0 = arith.constant 0 : i32
    %c0_i32_1 = arith.constant 0 : i32
    return %c0_i32, %c0_i32_0 : i32, i32
  }
  func.func @transform_20(%arg0: i32) -> (i32, i32) {
    %c0_i32 = arith.constant 0 : i32
    %c0_i32_0 = arith.constant 0 : i32
    %c0_i32_1 = arith.constant 0 : i32
    return %c0_i32, %c0_i32_0 : i32, i32
  }
}

module attributes {stable_mosaic.version = 11 : i64} {
  func.func @_decoder_stack_kernel(%arg0: i32, %arg1: memref<8x256xf32, #tpu.memory_space<vmem>>, %arg2: memref<16x256xf32, #tpu.memory_space<vmem>>, %arg3: memref<8x8xf32, #tpu.memory_space<vmem>>, %arg4: memref<8x16xf32, #tpu.memory_space<vmem>>, %arg5: memref<1x256x768xbf16, #tpu.memory_space<vmem>>, %arg6: memref<1x1x768xf32, #tpu.memory_space<vmem>>, %arg7: memref<1x256x256xbf16, #tpu.memory_space<vmem>>, %arg8: memref<1x1x256xf32, #tpu.memory_space<vmem>>, %arg9: memref<1x1x256xf32, #tpu.memory_space<vmem>>, %arg10: memref<1x1x256xf32, #tpu.memory_space<vmem>>, %arg11: memref<1x256x256xbf16, #tpu.memory_space<vmem>>, %arg12: memref<1x1x256xf32, #tpu.memory_space<vmem>>, %arg13: memref<1x256x512xbf16, #tpu.memory_space<vmem>>, %arg14: memref<1x1x512xf32, #tpu.memory_space<vmem>>, %arg15: memref<1x256x256xbf16, #tpu.memory_space<vmem>>, %arg16: memref<1x1x256xf32, #tpu.memory_space<vmem>>, %arg17: memref<1x1x256xf32, #tpu.memory_space<vmem>>, %arg18: memref<1x1x256xf32, #tpu.memory_space<vmem>>, %arg19: memref<1x256x256xbf16, #tpu.memory_space<vmem>>, %arg20: memref<1x1x256xf32, #tpu.memory_space<vmem>>, %arg21: memref<1x256x256xbf16, #tpu.memory_space<vmem>>, %arg22: memref<1x1x256xf32, #tpu.memory_space<vmem>>, %arg23: memref<1x1x256xf32, #tpu.memory_space<vmem>>, %arg24: memref<1x1x256xf32, #tpu.memory_space<vmem>>, %arg25: memref<1x256xf32, #tpu.memory_space<vmem>>, %arg26: memref<1x256xf32, #tpu.memory_space<vmem>>, %arg27: memref<256x64xbf16, #tpu.memory_space<vmem>>, %arg28: memref<1x64xf32, #tpu.memory_space<vmem>>, %arg29: memref<64x64xbf16, #tpu.memory_space<vmem>>, %arg30: memref<1x64xf32, #tpu.memory_space<vmem>>, %arg31: memref<64x64xbf16, #tpu.memory_space<vmem>>, %arg32: memref<1x64xf32, #tpu.memory_space<vmem>>, %arg33: memref<64x128xbf16, #tpu.memory_space<vmem>>, %arg34: memref<1x128xf32, #tpu.memory_space<vmem>>, %arg35: memref<8x128xf32, #tpu.memory_space<vmem>>, %arg36: memref<8x256xf32, #tpu.memory_space<vmem>>) attributes {dimension_semantics = [#tpu.dimension_semantics<arbitrary>], iteration_bounds = array<i64: 3>, scalar_prefetch = 0 : i64, scratch_operands = 1 : i64, tpu.core_type = #tpu.core_type<tc>, window_params = [{pipeline_mode = #tpu.pipeline_mode<synchronous>, transform_indices = @transform_0, window_bounds = array<i64: 8, 256>}, {pipeline_mode = #tpu.pipeline_mode<synchronous>, transform_indices = @transform_1, window_bounds = array<i64: 16, 256>}, {pipeline_mode = #tpu.pipeline_mode<synchronous>, transform_indices = @transform_2, window_bounds = array<i64: 8, 8>}, {pipeline_mode = #tpu.pipeline_mode<synchronous>, transform_indices = @transform_3, window_bounds = array<i64: 8, 16>}, {transform_indices = @transform_4, window_bounds = array<i64: 1, 256, 768>}, {transform_indices = @transform_5, window_bounds = array<i64: 1, 1, 768>}, {transform_indices = @transform_6, window_bounds = array<i64: 1, 256, 256>}, {transform_indices = @transform_7, window_bounds = array<i64: 1, 1, 256>}, {transform_indices = @transform_8, window_bounds = array<i64: 1, 1, 256>}, {transform_indices = @transform_9, window_bounds = array<i64: 1, 1, 256>}, {transform_indices = @transform_10, window_bounds = array<i64: 1, 256, 256>}, {transform_indices = @transform_11, window_bounds = array<i64: 1, 1, 256>}, {transform_indices = @transform_12, window_bounds = array<i64: 1, 256, 512>}, {transform_indices = @transform_13, window_bounds = array<i64: 1, 1, 512>}, {transform_indices = @transform_14, window_bounds = array<i64: 1, 256, 256>}, {transform_indices = @transform_15, window_bounds = array<i64: 1, 1, 256>}, {transform_indices = @transform_16, window_bounds = array<i64: 1, 1, 256>}, {transform_indices = @transform_17, window_bounds = array<i64: 1, 1, 256>}, {transform_indices = @transform_18, window_bounds = array<i64: 1, 256, 256>}, {transform_indices = @transform_19, window_bounds = array<i64: 1, 1, 256>}, {transform_indices = @transform_20, window_bounds = array<i64: 1, 256, 256>}, {transform_indices = @transform_21, window_bounds = array<i64: 1, 1, 256>}, {transform_indices = @transform_22, window_bounds = array<i64: 1, 1, 256>}, {transform_indices = @transform_23, window_bounds = array<i64: 1, 1, 256>}, {pipeline_mode = #tpu.pipeline_mode<synchronous>, transform_indices = @transform_24, window_bounds = array<i64: 1, 256>}, {pipeline_mode = #tpu.pipeline_mode<synchronous>, transform_indices = @transform_25, window_bounds = array<i64: 1, 256>}, {pipeline_mode = #tpu.pipeline_mode<synchronous>, transform_indices = @transform_26, window_bounds = array<i64: 256, 64>}, {pipeline_mode = #tpu.pipeline_mode<synchronous>, transform_indices = @transform_27, window_bounds = array<i64: 1, 64>}, {pipeline_mode = #tpu.pipeline_mode<synchronous>, transform_indices = @transform_28, window_bounds = array<i64: 64, 64>}, {pipeline_mode = #tpu.pipeline_mode<synchronous>, transform_indices = @transform_29, window_bounds = array<i64: 1, 64>}, {pipeline_mode = #tpu.pipeline_mode<synchronous>, transform_indices = @transform_30, window_bounds = array<i64: 64, 64>}, {pipeline_mode = #tpu.pipeline_mode<synchronous>, transform_indices = @transform_31, window_bounds = array<i64: 1, 64>}, {pipeline_mode = #tpu.pipeline_mode<synchronous>, transform_indices = @transform_32, window_bounds = array<i64: 64, 128>}, {pipeline_mode = #tpu.pipeline_mode<synchronous>, transform_indices = @transform_33, window_bounds = array<i64: 1, 128>}, {pipeline_mode = #tpu.pipeline_mode<synchronous>, transform_indices = @transform_34, window_bounds = array<i64: 8, 128>}]} {
    %c0_i32 = arith.constant 0 : i32
    %0 = arith.cmpi eq, %arg0, %c0_i32 : i32
    %1 = arith.extui %0 : i1 to i32
    %c0_i32_0 = arith.constant 0 : i32
    %2 = arith.cmpi ne, %1, %c0_i32_0 : i32
    scf.if %2 {
      %c0_148 = arith.constant 0 : index
      %c0_149 = arith.constant 0 : index
      %341 = vector.load %arg1[%c0_148, %c0_149] : memref<8x256xf32, #tpu.memory_space<vmem>>, vector<8x256xf32>
      %c0_150 = arith.constant 0 : index
      %c0_151 = arith.constant 0 : index
      %342 = vector.load %arg36[%c0_150, %c0_151] : memref<8x256xf32, #tpu.memory_space<vmem>>, vector<8x256xf32>
      tpu.vector_store %arg36[%c0_150, %c0_151], %341 {strides = array<i32>} : memref<8x256xf32, #tpu.memory_space<vmem>>, vector<8x256xf32>,
    } else {
    }
    %c0 = arith.constant 0 : index
    %c0_1 = arith.constant 0 : index
    %3 = vector.load %arg36[%c0, %c0_1] : memref<8x256xf32, #tpu.memory_space<vmem>>, vector<8x256xf32>
    %c0_2 = arith.constant 0 : index
    %c0_3 = arith.constant 0 : index
    %4 = vector.load %arg2[%c0_2, %c0_3] : memref<16x256xf32, #tpu.memory_space<vmem>>, vector<16x256xf32>
    %5 = arith.truncf %3 : vector<8x256xf32> to vector<8x256xbf16>
    %c0_4 = arith.constant 0 : index
    %c0_5 = arith.constant 0 : index
    %c0_6 = arith.constant 0 : index
    %6 = vector.load %arg5[%c0_4, %c0_5, %c0_6] : memref<1x256x768xbf16, #tpu.memory_space<vmem>>, vector<1x256x768xbf16>
    %7 = vector.shape_cast %6 : vector<1x256x768xbf16> to vector<256x768xbf16>
    %cst = arith.constant dense<0.000000e+00> : vector<8x768xf32>
    %8 = tpu.matmul %5, %7, %cst {dimension_numbers = #tpu.dot_dimension_numbers<[1], [0], [0], [1], [0, 0, 1, 1], [], []>} : vector<8x256xbf16>, vector<256x768xbf16>, vector<8x768xf32> -> vector<8x768xf32>
    %c0_7 = arith.constant 0 : index
    %c0_8 = arith.constant 0 : index
    %c0_9 = arith.constant 0 : index
    %9 = vector.load %arg6[%c0_7, %c0_8, %c0_9] : memref<1x1x768xf32, #tpu.memory_space<vmem>>, vector<1x1x768xf32>
    %10 = vector.shape_cast %9 : vector<1x1x768xf32> to vector<1x768xf32>
    %11 = vector.broadcast %10 : vector<1x768xf32> to vector<8x768xf32>
    %12 = arith.addf %8, %11 : vector<8x768xf32>
    %13 = vector.extract_strided_slice %12 {offsets = [0, 0], sizes = [8, 256], strides = [1, 1]} : vector<8x768xf32> to vector<8x256xf32>
    %14 = vector.extract_strided_slice %12 {offsets = [0, 256], sizes = [8, 256], strides = [1, 1]} : vector<8x768xf32> to vector<8x256xf32>
    %15 = vector.extract_strided_slice %12 {offsets = [0, 512], sizes = [8, 256], strides = [1, 1]} : vector<8x768xf32> to vector<8x256xf32>
    %c0_10 = arith.constant 0 : index
    %c0_11 = arith.constant 0 : index
    %16 = vector.load %arg3[%c0_10, %c0_11] : memref<8x8xf32, #tpu.memory_space<vmem>>, vector<8x8xf32>
    %cst_12 = arith.constant 0.000000e+00 : f32
    %17 = vector.broadcast %cst_12 : f32 to vector<8x256xf32>
    %18 = vector.extract_strided_slice %13 {offsets = [0, 0], sizes = [8, 64], strides = [1, 1]} : vector<8x256xf32> to vector<8x64xf32>
    %19 = arith.truncf %18 : vector<8x64xf32> to vector<8x64xbf16>
    %20 = vector.extract_strided_slice %14 {offsets = [0, 0], sizes = [8, 64], strides = [1, 1]} : vector<8x256xf32> to vector<8x64xf32>
    %21 = arith.truncf %20 : vector<8x64xf32> to vector<8x64xbf16>
    %22 = vector.extract_strided_slice %15 {offsets = [0, 0], sizes = [8, 64], strides = [1, 1]} : vector<8x256xf32> to vector<8x64xf32>
    %23 = arith.truncf %22 : vector<8x64xf32> to vector<8x64xbf16>
    %cst_13 = arith.constant dense<0.000000e+00> : vector<8x8xf32>
    %24 = tpu.matmul %19, %21, %cst_13 {dimension_numbers = #tpu.dot_dimension_numbers<[1], [1], [0], [0], [0, 0, 1, 0], [], []>} : vector<8x64xbf16>, vector<8x64xbf16>, vector<8x8xf32> -> vector<8x8xf32>
    %25 = arith.addf %24, %16 : vector<8x8xf32>
    %cst_14 = arith.constant dense<0xFF800000> : vector<8xf32>
    %26 = vector.multi_reduction <maximumf>, %25, %cst_14 [1] : vector<8x8xf32> to vector<8xf32>
    %27 = vector.shape_cast %26 : vector<8xf32> to vector<8x1xf32>
    %28 = vector.broadcast %27 : vector<8x1xf32> to vector<8x8xf32>
    %29 = arith.subf %25, %28 : vector<8x8xf32>
    %30 = math.exp %29 : vector<8x8xf32>
    %cst_15 = arith.constant dense<0.000000e+00> : vector<8xf32>
    %31 = vector.multi_reduction <add>, %30, %cst_15 [1] : vector<8x8xf32> to vector<8xf32>
    %32 = vector.shape_cast %31 : vector<8xf32> to vector<8x1xf32>
    %33 = vector.broadcast %32 : vector<8x1xf32> to vector<8x8xf32>
    %34 = arith.divf %30, %33 : vector<8x8xf32>
    %35 = arith.truncf %34 : vector<8x8xf32> to vector<8x8xbf16>
    %cst_16 = arith.constant dense<0.000000e+00> : vector<8x64xf32>
    %36 = tpu.matmul %35, %23, %cst_16 {dimension_numbers = #tpu.dot_dimension_numbers<[1], [0], [0], [1], [0, 0, 1, 1], [], []>} : vector<8x8xbf16>, vector<8x64xbf16>, vector<8x64xf32> -> vector<8x64xf32>
    %37 = arith.truncf %36 : vector<8x64xf32> to vector<8x64xbf16>
    %c0_17 = arith.constant 0 : index
    %c0_18 = arith.constant 0 : index
    %c0_19 = arith.constant 0 : index
    %38 = vector.load %arg7[%c0_17, %c0_18, %c0_19] : memref<1x256x256xbf16, #tpu.memory_space<vmem>>, vector<1x64x256xbf16>
    %39 = vector.shape_cast %38 : vector<1x64x256xbf16> to vector<64x256xbf16>
    %cst_20 = arith.constant dense<0.000000e+00> : vector<8x256xf32>
    %40 = tpu.matmul %37, %39, %cst_20 {dimension_numbers = #tpu.dot_dimension_numbers<[1], [0], [0], [1], [0, 0, 1, 1], [], []>} : vector<8x64xbf16>, vector<64x256xbf16>, vector<8x256xf32> -> vector<8x256xf32>
    %41 = arith.addf %17, %40 : vector<8x256xf32>
    %42 = vector.extract_strided_slice %13 {offsets = [0, 64], sizes = [8, 64], strides = [1, 1]} : vector<8x256xf32> to vector<8x64xf32>
    %43 = arith.truncf %42 : vector<8x64xf32> to vector<8x64xbf16>
    %44 = vector.extract_strided_slice %14 {offsets = [0, 64], sizes = [8, 64], strides = [1, 1]} : vector<8x256xf32> to vector<8x64xf32>
    %45 = arith.truncf %44 : vector<8x64xf32> to vector<8x64xbf16>
    %46 = vector.extract_strided_slice %15 {offsets = [0, 64], sizes = [8, 64], strides = [1, 1]} : vector<8x256xf32> to vector<8x64xf32>
    %47 = arith.truncf %46 : vector<8x64xf32> to vector<8x64xbf16>
    %cst_21 = arith.constant dense<0.000000e+00> : vector<8x8xf32>
    %48 = tpu.matmul %43, %45, %cst_21 {dimension_numbers = #tpu.dot_dimension_numbers<[1], [1], [0], [0], [0, 0, 1, 0], [], []>} : vector<8x64xbf16>, vector<8x64xbf16>, vector<8x8xf32> -> vector<8x8xf32>
    %49 = arith.addf %48, %16 : vector<8x8xf32>
    %cst_22 = arith.constant dense<0xFF800000> : vector<8xf32>
    %50 = vector.multi_reduction <maximumf>, %49, %cst_22 [1] : vector<8x8xf32> to vector<8xf32>
    %51 = vector.shape_cast %50 : vector<8xf32> to vector<8x1xf32>
    %52 = vector.broadcast %51 : vector<8x1xf32> to vector<8x8xf32>
    %53 = arith.subf %49, %52 : vector<8x8xf32>
    %54 = math.exp %53 : vector<8x8xf32>
    %cst_23 = arith.constant dense<0.000000e+00> : vector<8xf32>
    %55 = vector.multi_reduction <add>, %54, %cst_23 [1] : vector<8x8xf32> to vector<8xf32>
    %56 = vector.shape_cast %55 : vector<8xf32> to vector<8x1xf32>
    %57 = vector.broadcast %56 : vector<8x1xf32> to vector<8x8xf32>
    %58 = arith.divf %54, %57 : vector<8x8xf32>
    %59 = arith.truncf %58 : vector<8x8xf32> to vector<8x8xbf16>
    %cst_24 = arith.constant dense<0.000000e+00> : vector<8x64xf32>
    %60 = tpu.matmul %59, %47, %cst_24 {dimension_numbers = #tpu.dot_dimension_numbers<[1], [0], [0], [1], [0, 0, 1, 1], [], []>} : vector<8x8xbf16>, vector<8x64xbf16>, vector<8x64xf32> -> vector<8x64xf32>
    %61 = arith.truncf %60 : vector<8x64xf32> to vector<8x64xbf16>
    %c0_25 = arith.constant 0 : index
    %c64 = arith.constant 64 : index
    %c0_26 = arith.constant 0 : index
    %62 = vector.load %arg7[%c0_25, %c64, %c0_26] : memref<1x256x256xbf16, #tpu.memory_space<vmem>>, vector<1x64x256xbf16>
    %63 = vector.shape_cast %62 : vector<1x64x256xbf16> to vector<64x256xbf16>
    %cst_27 = arith.constant dense<0.000000e+00> : vector<8x256xf32>
    %64 = tpu.matmul %61, %63, %cst_27 {dimension_numbers = #tpu.dot_dimension_numbers<[1], [0], [0], [1], [0, 0, 1, 1], [], []>} : vector<8x64xbf16>, vector<64x256xbf16>, vector<8x256xf32> -> vector<8x256xf32>
    %65 = arith.addf %41, %64 : vector<8x256xf32>
    %66 = vector.extract_strided_slice %13 {offsets = [0, 128], sizes = [8, 64], strides = [1, 1]} : vector<8x256xf32> to vector<8x64xf32>
    %67 = arith.truncf %66 : vector<8x64xf32> to vector<8x64xbf16>
    %68 = vector.extract_strided_slice %14 {offsets = [0, 128], sizes = [8, 64], strides = [1, 1]} : vector<8x256xf32> to vector<8x64xf32>
    %69 = arith.truncf %68 : vector<8x64xf32> to vector<8x64xbf16>
    %70 = vector.extract_strided_slice %15 {offsets = [0, 128], sizes = [8, 64], strides = [1, 1]} : vector<8x256xf32> to vector<8x64xf32>
    %71 = arith.truncf %70 : vector<8x64xf32> to vector<8x64xbf16>
    %cst_28 = arith.constant dense<0.000000e+00> : vector<8x8xf32>
    %72 = tpu.matmul %67, %69, %cst_28 {dimension_numbers = #tpu.dot_dimension_numbers<[1], [1], [0], [0], [0, 0, 1, 0], [], []>} : vector<8x64xbf16>, vector<8x64xbf16>, vector<8x8xf32> -> vector<8x8xf32>
    %73 = arith.addf %72, %16 : vector<8x8xf32>
    %cst_29 = arith.constant dense<0xFF800000> : vector<8xf32>
    %74 = vector.multi_reduction <maximumf>, %73, %cst_29 [1] : vector<8x8xf32> to vector<8xf32>
    %75 = vector.shape_cast %74 : vector<8xf32> to vector<8x1xf32>
    %76 = vector.broadcast %75 : vector<8x1xf32> to vector<8x8xf32>
    %77 = arith.subf %73, %76 : vector<8x8xf32>
    %78 = math.exp %77 : vector<8x8xf32>
    %cst_30 = arith.constant dense<0.000000e+00> : vector<8xf32>
    %79 = vector.multi_reduction <add>, %78, %cst_30 [1] : vector<8x8xf32> to vector<8xf32>
    %80 = vector.shape_cast %79 : vector<8xf32> to vector<8x1xf32>
    %81 = vector.broadcast %80 : vector<8x1xf32> to vector<8x8xf32>
    %82 = arith.divf %78, %81 : vector<8x8xf32>
    %83 = arith.truncf %82 : vector<8x8xf32> to vector<8x8xbf16>
    %cst_31 = arith.constant dense<0.000000e+00> : vector<8x64xf32>
    %84 = tpu.matmul %83, %71, %cst_31 {dimension_numbers = #tpu.dot_dimension_numbers<[1], [0], [0], [1], [0, 0, 1, 1], [], []>} : vector<8x8xbf16>, vector<8x64xbf16>, vector<8x64xf32> -> vector<8x64xf32>
    %85 = arith.truncf %84 : vector<8x64xf32> to vector<8x64xbf16>
    %c0_32 = arith.constant 0 : index
    %c128 = arith.constant 128 : index
    %c0_33 = arith.constant 0 : index
    %86 = vector.load %arg7[%c0_32, %c128, %c0_33] : memref<1x256x256xbf16, #tpu.memory_space<vmem>>, vector<1x64x256xbf16>
    %87 = vector.shape_cast %86 : vector<1x64x256xbf16> to vector<64x256xbf16>
    %cst_34 = arith.constant dense<0.000000e+00> : vector<8x256xf32>
    %88 = tpu.matmul %85, %87, %cst_34 {dimension_numbers = #tpu.dot_dimension_numbers<[1], [0], [0], [1], [0, 0, 1, 1], [], []>} : vector<8x64xbf16>, vector<64x256xbf16>, vector<8x256xf32> -> vector<8x256xf32>
    %89 = arith.addf %65, %88 : vector<8x256xf32>
    %90 = vector.extract_strided_slice %13 {offsets = [0, 192], sizes = [8, 64], strides = [1, 1]} : vector<8x256xf32> to vector<8x64xf32>
    %91 = arith.truncf %90 : vector<8x64xf32> to vector<8x64xbf16>
    %92 = vector.extract_strided_slice %14 {offsets = [0, 192], sizes = [8, 64], strides = [1, 1]} : vector<8x256xf32> to vector<8x64xf32>
    %93 = arith.truncf %92 : vector<8x64xf32> to vector<8x64xbf16>
    %94 = vector.extract_strided_slice %15 {offsets = [0, 192], sizes = [8, 64], strides = [1, 1]} : vector<8x256xf32> to vector<8x64xf32>
    %95 = arith.truncf %94 : vector<8x64xf32> to vector<8x64xbf16>
    %cst_35 = arith.constant dense<0.000000e+00> : vector<8x8xf32>
    %96 = tpu.matmul %91, %93, %cst_35 {dimension_numbers = #tpu.dot_dimension_numbers<[1], [1], [0], [0], [0, 0, 1, 0], [], []>} : vector<8x64xbf16>, vector<8x64xbf16>, vector<8x8xf32> -> vector<8x8xf32>
    %97 = arith.addf %96, %16 : vector<8x8xf32>
    %cst_36 = arith.constant dense<0xFF800000> : vector<8xf32>
    %98 = vector.multi_reduction <maximumf>, %97, %cst_36 [1] : vector<8x8xf32> to vector<8xf32>
    %99 = vector.shape_cast %98 : vector<8xf32> to vector<8x1xf32>
    %100 = vector.broadcast %99 : vector<8x1xf32> to vector<8x8xf32>
    %101 = arith.subf %97, %100 : vector<8x8xf32>
    %102 = math.exp %101 : vector<8x8xf32>
    %cst_37 = arith.constant dense<0.000000e+00> : vector<8xf32>
    %103 = vector.multi_reduction <add>, %102, %cst_37 [1] : vector<8x8xf32> to vector<8xf32>
    %104 = vector.shape_cast %103 : vector<8xf32> to vector<8x1xf32>
    %105 = vector.broadcast %104 : vector<8x1xf32> to vector<8x8xf32>
    %106 = arith.divf %102, %105 : vector<8x8xf32>
    %107 = arith.truncf %106 : vector<8x8xf32> to vector<8x8xbf16>
    %cst_38 = arith.constant dense<0.000000e+00> : vector<8x64xf32>
    %108 = tpu.matmul %107, %95, %cst_38 {dimension_numbers = #tpu.dot_dimension_numbers<[1], [0], [0], [1], [0, 0, 1, 1], [], []>} : vector<8x8xbf16>, vector<8x64xbf16>, vector<8x64xf32> -> vector<8x64xf32>
    %109 = arith.truncf %108 : vector<8x64xf32> to vector<8x64xbf16>
    %c0_39 = arith.constant 0 : index
    %c192 = arith.constant 192 : index
    %c0_40 = arith.constant 0 : index
    %110 = vector.load %arg7[%c0_39, %c192, %c0_40] : memref<1x256x256xbf16, #tpu.memory_space<vmem>>, vector<1x64x256xbf16>
    %111 = vector.shape_cast %110 : vector<1x64x256xbf16> to vector<64x256xbf16>
    %cst_41 = arith.constant dense<0.000000e+00> : vector<8x256xf32>
    %112 = tpu.matmul %109, %111, %cst_41 {dimension_numbers = #tpu.dot_dimension_numbers<[1], [0], [0], [1], [0, 0, 1, 1], [], []>} : vector<8x64xbf16>, vector<64x256xbf16>, vector<8x256xf32> -> vector<8x256xf32>
    %113 = arith.addf %89, %112 : vector<8x256xf32>
    %c0_42 = arith.constant 0 : index
    %c0_43 = arith.constant 0 : index
    %c0_44 = arith.constant 0 : index
    %114 = vector.load %arg8[%c0_42, %c0_43, %c0_44] : memref<1x1x256xf32, #tpu.memory_space<vmem>>, vector<1x1x256xf32>
    %115 = vector.shape_cast %114 : vector<1x1x256xf32> to vector<1x256xf32>
    %116 = vector.broadcast %115 : vector<1x256xf32> to vector<8x256xf32>
    %117 = arith.addf %113, %116 : vector<8x256xf32>
    %118 = arith.addf %3, %117 : vector<8x256xf32>
    %cst_45 = arith.constant dense<0.000000e+00> : vector<8xf32>
    %119 = vector.multi_reduction <add>, %118, %cst_45 [1] : vector<8x256xf32> to vector<8xf32>
    %120 = vector.shape_cast %119 : vector<8xf32> to vector<8x1xf32>
    %cst_46 = arith.constant 2.560000e+02 : f32
    %121 = vector.broadcast %cst_46 : f32 to vector<8x1xf32>
    %122 = arith.divf %120, %121 : vector<8x1xf32>
    %123 = vector.broadcast %122 : vector<8x1xf32> to vector<8x256xf32>
    %124 = arith.subf %118, %123 : vector<8x256xf32>
    %125 = arith.mulf %124, %124 : vector<8x256xf32>
    %cst_47 = arith.constant dense<0.000000e+00> : vector<8xf32>
    %126 = vector.multi_reduction <add>, %125, %cst_47 [1] : vector<8x256xf32> to vector<8xf32>
    %127 = vector.shape_cast %126 : vector<8xf32> to vector<8x1xf32>
    %cst_48 = arith.constant 2.560000e+02 : f32
    %128 = vector.broadcast %cst_48 : f32 to vector<8x1xf32>
    %129 = arith.divf %127, %128 : vector<8x1xf32>
    %130 = vector.broadcast %122 : vector<8x1xf32> to vector<8x256xf32>
    %131 = arith.subf %118, %130 : vector<8x256xf32>
    %cst_49 = arith.constant 9.99999974E-6 : f32
    %132 = vector.broadcast %cst_49 : f32 to vector<8x1xf32>
    %133 = arith.addf %129, %132 : vector<8x1xf32>
    %134 = math.rsqrt %133 : vector<8x1xf32>
    %135 = vector.broadcast %134 : vector<8x1xf32> to vector<8x256xf32>
    %136 = arith.mulf %131, %135 : vector<8x256xf32>
    %c0_50 = arith.constant 0 : index
    %c0_51 = arith.constant 0 : index
    %c0_52 = arith.constant 0 : index
    %137 = vector.load %arg9[%c0_50, %c0_51, %c0_52] : memref<1x1x256xf32, #tpu.memory_space<vmem>>, vector<1x1x256xf32>
    %138 = vector.shape_cast %137 : vector<1x1x256xf32> to vector<1x256xf32>
    %139 = vector.broadcast %138 : vector<1x256xf32> to vector<8x256xf32>
    %140 = arith.mulf %136, %139 : vector<8x256xf32>
    %c0_53 = arith.constant 0 : index
    %c0_54 = arith.constant 0 : index
    %c0_55 = arith.constant 0 : index
    %141 = vector.load %arg10[%c0_53, %c0_54, %c0_55] : memref<1x1x256xf32, #tpu.memory_space<vmem>>, vector<1x1x256xf32>
    %142 = vector.shape_cast %141 : vector<1x1x256xf32> to vector<1x256xf32>
    %143 = vector.broadcast %142 : vector<1x256xf32> to vector<8x256xf32>
    %144 = arith.addf %140, %143 : vector<8x256xf32>
    %145 = arith.truncf %144 : vector<8x256xf32> to vector<8x256xbf16>
    %c0_56 = arith.constant 0 : index
    %c0_57 = arith.constant 0 : index
    %c0_58 = arith.constant 0 : index
    %146 = vector.load %arg11[%c0_56, %c0_57, %c0_58] : memref<1x256x256xbf16, #tpu.memory_space<vmem>>, vector<1x256x256xbf16>
    %147 = vector.shape_cast %146 : vector<1x256x256xbf16> to vector<256x256xbf16>
    %cst_59 = arith.constant dense<0.000000e+00> : vector<8x256xf32>
    %148 = tpu.matmul %145, %147, %cst_59 {dimension_numbers = #tpu.dot_dimension_numbers<[1], [0], [0], [1], [0, 0, 1, 1], [], []>} : vector<8x256xbf16>, vector<256x256xbf16>, vector<8x256xf32> -> vector<8x256xf32>
    %c0_60 = arith.constant 0 : index
    %c0_61 = arith.constant 0 : index
    %c0_62 = arith.constant 0 : index
    %149 = vector.load %arg12[%c0_60, %c0_61, %c0_62] : memref<1x1x256xf32, #tpu.memory_space<vmem>>, vector<1x1x256xf32>
    %150 = vector.shape_cast %149 : vector<1x1x256xf32> to vector<1x256xf32>
    %151 = vector.broadcast %150 : vector<1x256xf32> to vector<8x256xf32>
    %152 = arith.addf %148, %151 : vector<8x256xf32>
    %153 = arith.truncf %4 : vector<16x256xf32> to vector<16x256xbf16>
    %c0_63 = arith.constant 0 : index
    %c0_64 = arith.constant 0 : index
    %c0_65 = arith.constant 0 : index
    %154 = vector.load %arg13[%c0_63, %c0_64, %c0_65] : memref<1x256x512xbf16, #tpu.memory_space<vmem>>, vector<1x256x512xbf16>
    %155 = vector.shape_cast %154 : vector<1x256x512xbf16> to vector<256x512xbf16>
    %cst_66 = arith.constant dense<0.000000e+00> : vector<16x512xf32>
    %156 = tpu.matmul %153, %155, %cst_66 {dimension_numbers = #tpu.dot_dimension_numbers<[1], [0], [0], [1], [0, 0, 1, 1], [], []>} : vector<16x256xbf16>, vector<256x512xbf16>, vector<16x512xf32> -> vector<16x512xf32>
    %c0_67 = arith.constant 0 : index
    %c0_68 = arith.constant 0 : index
    %c0_69 = arith.constant 0 : index
    %157 = vector.load %arg14[%c0_67, %c0_68, %c0_69] : memref<1x1x512xf32, #tpu.memory_space<vmem>>, vector<1x1x512xf32>
    %158 = vector.shape_cast %157 : vector<1x1x512xf32> to vector<1x512xf32>
    %159 = vector.broadcast %158 : vector<1x512xf32> to vector<16x512xf32>
    %160 = arith.addf %156, %159 : vector<16x512xf32>
    %161 = vector.extract_strided_slice %160 {offsets = [0, 0], sizes = [16, 256], strides = [1, 1]} : vector<16x512xf32> to vector<16x256xf32>
    %162 = vector.extract_strided_slice %160 {offsets = [0, 256], sizes = [16, 256], strides = [1, 1]} : vector<16x512xf32> to vector<16x256xf32>
    %c0_70 = arith.constant 0 : index
    %c0_71 = arith.constant 0 : index
    %163 = vector.load %arg4[%c0_70, %c0_71] : memref<8x16xf32, #tpu.memory_space<vmem>>, vector<8x16xf32>
    %cst_72 = arith.constant 0.000000e+00 : f32
    %164 = vector.broadcast %cst_72 : f32 to vector<8x256xf32>
    %165 = vector.extract_strided_slice %152 {offsets = [0, 0], sizes = [8, 64], strides = [1, 1]} : vector<8x256xf32> to vector<8x64xf32>
    %166 = arith.truncf %165 : vector<8x64xf32> to vector<8x64xbf16>
    %167 = vector.extract_strided_slice %161 {offsets = [0, 0], sizes = [16, 64], strides = [1, 1]} : vector<16x256xf32> to vector<16x64xf32>
    %168 = arith.truncf %167 : vector<16x64xf32> to vector<16x64xbf16>
    %169 = vector.extract_strided_slice %162 {offsets = [0, 0], sizes = [16, 64], strides = [1, 1]} : vector<16x256xf32> to vector<16x64xf32>
    %170 = arith.truncf %169 : vector<16x64xf32> to vector<16x64xbf16>
    %cst_73 = arith.constant dense<0.000000e+00> : vector<8x16xf32>
    %171 = tpu.matmul %166, %168, %cst_73 {dimension_numbers = #tpu.dot_dimension_numbers<[1], [1], [0], [0], [0, 0, 1, 0], [], []>} : vector<8x64xbf16>, vector<16x64xbf16>, vector<8x16xf32> -> vector<8x16xf32>
    %172 = arith.addf %171, %163 : vector<8x16xf32>
    %cst_74 = arith.constant dense<0xFF800000> : vector<8xf32>
    %173 = vector.multi_reduction <maximumf>, %172, %cst_74 [1] : vector<8x16xf32> to vector<8xf32>
    %174 = vector.shape_cast %173 : vector<8xf32> to vector<8x1xf32>
    %175 = vector.broadcast %174 : vector<8x1xf32> to vector<8x16xf32>
    %176 = arith.subf %172, %175 : vector<8x16xf32>
    %177 = math.exp %176 : vector<8x16xf32>
    %cst_75 = arith.constant dense<0.000000e+00> : vector<8xf32>
    %178 = vector.multi_reduction <add>, %177, %cst_75 [1] : vector<8x16xf32> to vector<8xf32>
    %179 = vector.shape_cast %178 : vector<8xf32> to vector<8x1xf32>
    %180 = vector.broadcast %179 : vector<8x1xf32> to vector<8x16xf32>
    %181 = arith.divf %177, %180 : vector<8x16xf32>
    %182 = arith.truncf %181 : vector<8x16xf32> to vector<8x16xbf16>
    %cst_76 = arith.constant dense<0.000000e+00> : vector<8x64xf32>
    %183 = tpu.matmul %182, %170, %cst_76 {dimension_numbers = #tpu.dot_dimension_numbers<[1], [0], [0], [1], [0, 0, 1, 1], [], []>} : vector<8x16xbf16>, vector<16x64xbf16>, vector<8x64xf32> -> vector<8x64xf32>
    %184 = arith.truncf %183 : vector<8x64xf32> to vector<8x64xbf16>
    %c0_77 = arith.constant 0 : index
    %c0_78 = arith.constant 0 : index
    %c0_79 = arith.constant 0 : index
    %185 = vector.load %arg15[%c0_77, %c0_78, %c0_79] : memref<1x256x256xbf16, #tpu.memory_space<vmem>>, vector<1x64x256xbf16>
    %186 = vector.shape_cast %185 : vector<1x64x256xbf16> to vector<64x256xbf16>
    %cst_80 = arith.constant dense<0.000000e+00> : vector<8x256xf32>
    %187 = tpu.matmul %184, %186, %cst_80 {dimension_numbers = #tpu.dot_dimension_numbers<[1], [0], [0], [1], [0, 0, 1, 1], [], []>} : vector<8x64xbf16>, vector<64x256xbf16>, vector<8x256xf32> -> vector<8x256xf32>
    %188 = arith.addf %164, %187 : vector<8x256xf32>
    %189 = vector.extract_strided_slice %152 {offsets = [0, 64], sizes = [8, 64], strides = [1, 1]} : vector<8x256xf32> to vector<8x64xf32>
    %190 = arith.truncf %189 : vector<8x64xf32> to vector<8x64xbf16>
    %191 = vector.extract_strided_slice %161 {offsets = [0, 64], sizes = [16, 64], strides = [1, 1]} : vector<16x256xf32> to vector<16x64xf32>
    %192 = arith.truncf %191 : vector<16x64xf32> to vector<16x64xbf16>
    %193 = vector.extract_strided_slice %162 {offsets = [0, 64], sizes = [16, 64], strides = [1, 1]} : vector<16x256xf32> to vector<16x64xf32>
    %194 = arith.truncf %193 : vector<16x64xf32> to vector<16x64xbf16>
    %cst_81 = arith.constant dense<0.000000e+00> : vector<8x16xf32>
    %195 = tpu.matmul %190, %192, %cst_81 {dimension_numbers = #tpu.dot_dimension_numbers<[1], [1], [0], [0], [0, 0, 1, 0], [], []>} : vector<8x64xbf16>, vector<16x64xbf16>, vector<8x16xf32> -> vector<8x16xf32>
    %196 = arith.addf %195, %163 : vector<8x16xf32>
    %cst_82 = arith.constant dense<0xFF800000> : vector<8xf32>
    %197 = vector.multi_reduction <maximumf>, %196, %cst_82 [1] : vector<8x16xf32> to vector<8xf32>
    %198 = vector.shape_cast %197 : vector<8xf32> to vector<8x1xf32>
    %199 = vector.broadcast %198 : vector<8x1xf32> to vector<8x16xf32>
    %200 = arith.subf %196, %199 : vector<8x16xf32>
    %201 = math.exp %200 : vector<8x16xf32>
    %cst_83 = arith.constant dense<0.000000e+00> : vector<8xf32>
    %202 = vector.multi_reduction <add>, %201, %cst_83 [1] : vector<8x16xf32> to vector<8xf32>
    %203 = vector.shape_cast %202 : vector<8xf32> to vector<8x1xf32>
    %204 = vector.broadcast %203 : vector<8x1xf32> to vector<8x16xf32>
    %205 = arith.divf %201, %204 : vector<8x16xf32>
    %206 = arith.truncf %205 : vector<8x16xf32> to vector<8x16xbf16>
    %cst_84 = arith.constant dense<0.000000e+00> : vector<8x64xf32>
    %207 = tpu.matmul %206, %194, %cst_84 {dimension_numbers = #tpu.dot_dimension_numbers<[1], [0], [0], [1], [0, 0, 1, 1], [], []>} : vector<8x16xbf16>, vector<16x64xbf16>, vector<8x64xf32> -> vector<8x64xf32>
    %208 = arith.truncf %207 : vector<8x64xf32> to vector<8x64xbf16>
    %c0_85 = arith.constant 0 : index
    %c64_86 = arith.constant 64 : index
    %c0_87 = arith.constant 0 : index
    %209 = vector.load %arg15[%c0_85, %c64_86, %c0_87] : memref<1x256x256xbf16, #tpu.memory_space<vmem>>, vector<1x64x256xbf16>
    %210 = vector.shape_cast %209 : vector<1x64x256xbf16> to vector<64x256xbf16>
    %cst_88 = arith.constant dense<0.000000e+00> : vector<8x256xf32>
    %211 = tpu.matmul %208, %210, %cst_88 {dimension_numbers = #tpu.dot_dimension_numbers<[1], [0], [0], [1], [0, 0, 1, 1], [], []>} : vector<8x64xbf16>, vector<64x256xbf16>, vector<8x256xf32> -> vector<8x256xf32>
    %212 = arith.addf %188, %211 : vector<8x256xf32>
    %213 = vector.extract_strided_slice %152 {offsets = [0, 128], sizes = [8, 64], strides = [1, 1]} : vector<8x256xf32> to vector<8x64xf32>
    %214 = arith.truncf %213 : vector<8x64xf32> to vector<8x64xbf16>
    %215 = vector.extract_strided_slice %161 {offsets = [0, 128], sizes = [16, 64], strides = [1, 1]} : vector<16x256xf32> to vector<16x64xf32>
    %216 = arith.truncf %215 : vector<16x64xf32> to vector<16x64xbf16>
    %217 = vector.extract_strided_slice %162 {offsets = [0, 128], sizes = [16, 64], strides = [1, 1]} : vector<16x256xf32> to vector<16x64xf32>
    %218 = arith.truncf %217 : vector<16x64xf32> to vector<16x64xbf16>
    %cst_89 = arith.constant dense<0.000000e+00> : vector<8x16xf32>
    %219 = tpu.matmul %214, %216, %cst_89 {dimension_numbers = #tpu.dot_dimension_numbers<[1], [1], [0], [0], [0, 0, 1, 0], [], []>} : vector<8x64xbf16>, vector<16x64xbf16>, vector<8x16xf32> -> vector<8x16xf32>
    %220 = arith.addf %219, %163 : vector<8x16xf32>
    %cst_90 = arith.constant dense<0xFF800000> : vector<8xf32>
    %221 = vector.multi_reduction <maximumf>, %220, %cst_90 [1] : vector<8x16xf32> to vector<8xf32>
    %222 = vector.shape_cast %221 : vector<8xf32> to vector<8x1xf32>
    %223 = vector.broadcast %222 : vector<8x1xf32> to vector<8x16xf32>
    %224 = arith.subf %220, %223 : vector<8x16xf32>
    %225 = math.exp %224 : vector<8x16xf32>
    %cst_91 = arith.constant dense<0.000000e+00> : vector<8xf32>
    %226 = vector.multi_reduction <add>, %225, %cst_91 [1] : vector<8x16xf32> to vector<8xf32>
    %227 = vector.shape_cast %226 : vector<8xf32> to vector<8x1xf32>
    %228 = vector.broadcast %227 : vector<8x1xf32> to vector<8x16xf32>
    %229 = arith.divf %225, %228 : vector<8x16xf32>
    %230 = arith.truncf %229 : vector<8x16xf32> to vector<8x16xbf16>
    %cst_92 = arith.constant dense<0.000000e+00> : vector<8x64xf32>
    %231 = tpu.matmul %230, %218, %cst_92 {dimension_numbers = #tpu.dot_dimension_numbers<[1], [0], [0], [1], [0, 0, 1, 1], [], []>} : vector<8x16xbf16>, vector<16x64xbf16>, vector<8x64xf32> -> vector<8x64xf32>
    %232 = arith.truncf %231 : vector<8x64xf32> to vector<8x64xbf16>
    %c0_93 = arith.constant 0 : index
    %c128_94 = arith.constant 128 : index
    %c0_95 = arith.constant 0 : index
    %233 = vector.load %arg15[%c0_93, %c128_94, %c0_95] : memref<1x256x256xbf16, #tpu.memory_space<vmem>>, vector<1x64x256xbf16>
    %234 = vector.shape_cast %233 : vector<1x64x256xbf16> to vector<64x256xbf16>
    %cst_96 = arith.constant dense<0.000000e+00> : vector<8x256xf32>
    %235 = tpu.matmul %232, %234, %cst_96 {dimension_numbers = #tpu.dot_dimension_numbers<[1], [0], [0], [1], [0, 0, 1, 1], [], []>} : vector<8x64xbf16>, vector<64x256xbf16>, vector<8x256xf32> -> vector<8x256xf32>
    %236 = arith.addf %212, %235 : vector<8x256xf32>
    %237 = vector.extract_strided_slice %152 {offsets = [0, 192], sizes = [8, 64], strides = [1, 1]} : vector<8x256xf32> to vector<8x64xf32>
    %238 = arith.truncf %237 : vector<8x64xf32> to vector<8x64xbf16>
    %239 = vector.extract_strided_slice %161 {offsets = [0, 192], sizes = [16, 64], strides = [1, 1]} : vector<16x256xf32> to vector<16x64xf32>
    %240 = arith.truncf %239 : vector<16x64xf32> to vector<16x64xbf16>
    %241 = vector.extract_strided_slice %162 {offsets = [0, 192], sizes = [16, 64], strides = [1, 1]} : vector<16x256xf32> to vector<16x64xf32>
    %242 = arith.truncf %241 : vector<16x64xf32> to vector<16x64xbf16>
    %cst_97 = arith.constant dense<0.000000e+00> : vector<8x16xf32>
    %243 = tpu.matmul %238, %240, %cst_97 {dimension_numbers = #tpu.dot_dimension_numbers<[1], [1], [0], [0], [0, 0, 1, 0], [], []>} : vector<8x64xbf16>, vector<16x64xbf16>, vector<8x16xf32> -> vector<8x16xf32>
    %244 = arith.addf %243, %163 : vector<8x16xf32>
    %cst_98 = arith.constant dense<0xFF800000> : vector<8xf32>
    %245 = vector.multi_reduction <maximumf>, %244, %cst_98 [1] : vector<8x16xf32> to vector<8xf32>
    %246 = vector.shape_cast %245 : vector<8xf32> to vector<8x1xf32>
    %247 = vector.broadcast %246 : vector<8x1xf32> to vector<8x16xf32>
    %248 = arith.subf %244, %247 : vector<8x16xf32>
    %249 = math.exp %248 : vector<8x16xf32>
    %cst_99 = arith.constant dense<0.000000e+00> : vector<8xf32>
    %250 = vector.multi_reduction <add>, %249, %cst_99 [1] : vector<8x16xf32> to vector<8xf32>
    %251 = vector.shape_cast %250 : vector<8xf32> to vector<8x1xf32>
    %252 = vector.broadcast %251 : vector<8x1xf32> to vector<8x16xf32>
    %253 = arith.divf %249, %252 : vector<8x16xf32>
    %254 = arith.truncf %253 : vector<8x16xf32> to vector<8x16xbf16>
    %cst_100 = arith.constant dense<0.000000e+00> : vector<8x64xf32>
    %255 = tpu.matmul %254, %242, %cst_100 {dimension_numbers = #tpu.dot_dimension_numbers<[1], [0], [0], [1], [0, 0, 1, 1], [], []>} : vector<8x16xbf16>, vector<16x64xbf16>, vector<8x64xf32> -> vector<8x64xf32>
    %256 = arith.truncf %255 : vector<8x64xf32> to vector<8x64xbf16>
    %c0_101 = arith.constant 0 : index
    %c192_102 = arith.constant 192 : index
    %c0_103 = arith.constant 0 : index
    %257 = vector.load %arg15[%c0_101, %c192_102, %c0_103] : memref<1x256x256xbf16, #tpu.memory_space<vmem>>, vector<1x64x256xbf16>
    %258 = vector.shape_cast %257 : vector<1x64x256xbf16> to vector<64x256xbf16>
    %cst_104 = arith.constant dense<0.000000e+00> : vector<8x256xf32>
    %259 = tpu.matmul %256, %258, %cst_104 {dimension_numbers = #tpu.dot_dimension_numbers<[1], [0], [0], [1], [0, 0, 1, 1], [], []>} : vector<8x64xbf16>, vector<64x256xbf16>, vector<8x256xf32> -> vector<8x256xf32>
    %260 = arith.addf %236, %259 : vector<8x256xf32>
    %c0_105 = arith.constant 0 : index
    %c0_106 = arith.constant 0 : index
    %c0_107 = arith.constant 0 : index
    %261 = vector.load %arg16[%c0_105, %c0_106, %c0_107] : memref<1x1x256xf32, #tpu.memory_space<vmem>>, vector<1x1x256xf32>
    %262 = vector.shape_cast %261 : vector<1x1x256xf32> to vector<1x256xf32>
    %263 = vector.broadcast %262 : vector<1x256xf32> to vector<8x256xf32>
    %264 = arith.addf %260, %263 : vector<8x256xf32>
    %265 = arith.addf %144, %264 : vector<8x256xf32>
    %cst_108 = arith.constant dense<0.000000e+00> : vector<8xf32>
    %266 = vector.multi_reduction <add>, %265, %cst_108 [1] : vector<8x256xf32> to vector<8xf32>
    %267 = vector.shape_cast %266 : vector<8xf32> to vector<8x1xf32>
    %cst_109 = arith.constant 2.560000e+02 : f32
    %268 = vector.broadcast %cst_109 : f32 to vector<8x1xf32>
    %269 = arith.divf %267, %268 : vector<8x1xf32>
    %270 = vector.broadcast %269 : vector<8x1xf32> to vector<8x256xf32>
    %271 = arith.subf %265, %270 : vector<8x256xf32>
    %272 = arith.mulf %271, %271 : vector<8x256xf32>
    %cst_110 = arith.constant dense<0.000000e+00> : vector<8xf32>
    %273 = vector.multi_reduction <add>, %272, %cst_110 [1] : vector<8x256xf32> to vector<8xf32>
    %274 = vector.shape_cast %273 : vector<8xf32> to vector<8x1xf32>
    %cst_111 = arith.constant 2.560000e+02 : f32
    %275 = vector.broadcast %cst_111 : f32 to vector<8x1xf32>
    %276 = arith.divf %274, %275 : vector<8x1xf32>
    %277 = vector.broadcast %269 : vector<8x1xf32> to vector<8x256xf32>
    %278 = arith.subf %265, %277 : vector<8x256xf32>
    %cst_112 = arith.constant 9.99999974E-6 : f32
    %279 = vector.broadcast %cst_112 : f32 to vector<8x1xf32>
    %280 = arith.addf %276, %279 : vector<8x1xf32>
    %281 = math.rsqrt %280 : vector<8x1xf32>
    %282 = vector.broadcast %281 : vector<8x1xf32> to vector<8x256xf32>
    %283 = arith.mulf %278, %282 : vector<8x256xf32>
    %c0_113 = arith.constant 0 : index
    %c0_114 = arith.constant 0 : index
    %c0_115 = arith.constant 0 : index
    %284 = vector.load %arg17[%c0_113, %c0_114, %c0_115] : memref<1x1x256xf32, #tpu.memory_space<vmem>>, vector<1x1x256xf32>
    %285 = vector.shape_cast %284 : vector<1x1x256xf32> to vector<1x256xf32>
    %286 = vector.broadcast %285 : vector<1x256xf32> to vector<8x256xf32>
    %287 = arith.mulf %283, %286 : vector<8x256xf32>
    %c0_116 = arith.constant 0 : index
    %c0_117 = arith.constant 0 : index
    %c0_118 = arith.constant 0 : index
    %288 = vector.load %arg18[%c0_116, %c0_117, %c0_118] : memref<1x1x256xf32, #tpu.memory_space<vmem>>, vector<1x1x256xf32>
    %289 = vector.shape_cast %288 : vector<1x1x256xf32> to vector<1x256xf32>
    %290 = vector.broadcast %289 : vector<1x256xf32> to vector<8x256xf32>
    %291 = arith.addf %287, %290 : vector<8x256xf32>
    %292 = arith.truncf %291 : vector<8x256xf32> to vector<8x256xbf16>
    %c0_119 = arith.constant 0 : index
    %c0_120 = arith.constant 0 : index
    %c0_121 = arith.constant 0 : index
    %293 = vector.load %arg19[%c0_119, %c0_120, %c0_121] : memref<1x256x256xbf16, #tpu.memory_space<vmem>>, vector<1x256x256xbf16>
    %294 = vector.shape_cast %293 : vector<1x256x256xbf16> to vector<256x256xbf16>
    %cst_122 = arith.constant dense<0.000000e+00> : vector<8x256xf32>
    %295 = tpu.matmul %292, %294, %cst_122 {dimension_numbers = #tpu.dot_dimension_numbers<[1], [0], [0], [1], [0, 0, 1, 1], [], []>} : vector<8x256xbf16>, vector<256x256xbf16>, vector<8x256xf32> -> vector<8x256xf32>
    %c0_123 = arith.constant 0 : index
    %c0_124 = arith.constant 0 : index
    %c0_125 = arith.constant 0 : index
    %296 = vector.load %arg20[%c0_123, %c0_124, %c0_125] : memref<1x1x256xf32, #tpu.memory_space<vmem>>, vector<1x1x256xf32>
    %297 = vector.shape_cast %296 : vector<1x1x256xf32> to vector<1x256xf32>
    %298 = vector.broadcast %297 : vector<1x256xf32> to vector<8x256xf32>
    %299 = arith.addf %295, %298 : vector<8x256xf32>
    %cst_126 = arith.constant 0.000000e+00 : f32
    %300 = vector.broadcast %cst_126 : f32 to vector<8x256xf32>
    %301 = arith.maximumf %299, %300 : vector<8x256xf32>
    %302 = arith.truncf %301 : vector<8x256xf32> to vector<8x256xbf16>
    %c0_127 = arith.constant 0 : index
    %c0_128 = arith.constant 0 : index
    %c0_129 = arith.constant 0 : index
    %303 = vector.load %arg21[%c0_127, %c0_128, %c0_129] : memref<1x256x256xbf16, #tpu.memory_space<vmem>>, vector<1x256x256xbf16>
    %304 = vector.shape_cast %303 : vector<1x256x256xbf16> to vector<256x256xbf16>
    %cst_130 = arith.constant dense<0.000000e+00> : vector<8x256xf32>
    %305 = tpu.matmul %302, %304, %cst_130 {dimension_numbers = #tpu.dot_dimension_numbers<[1], [0], [0], [1], [0, 0, 1, 1], [], []>} : vector<8x256xbf16>, vector<256x256xbf16>, vector<8x256xf32> -> vector<8x256xf32>
    %c0_131 = arith.constant 0 : index
    %c0_132 = arith.constant 0 : index
    %c0_133 = arith.constant 0 : index
    %306 = vector.load %arg22[%c0_131, %c0_132, %c0_133] : memref<1x1x256xf32, #tpu.memory_space<vmem>>, vector<1x1x256xf32>
    %307 = vector.shape_cast %306 : vector<1x1x256xf32> to vector<1x256xf32>
    %308 = vector.broadcast %307 : vector<1x256xf32> to vector<8x256xf32>
    %309 = arith.addf %305, %308 : vector<8x256xf32>
    %310 = arith.addf %291, %309 : vector<8x256xf32>
    %cst_134 = arith.constant dense<0.000000e+00> : vector<8xf32>
    %311 = vector.multi_reduction <add>, %310, %cst_134 [1] : vector<8x256xf32> to vector<8xf32>
    %312 = vector.shape_cast %311 : vector<8xf32> to vector<8x1xf32>
    %cst_135 = arith.constant 2.560000e+02 : f32
    %313 = vector.broadcast %cst_135 : f32 to vector<8x1xf32>
    %314 = arith.divf %312, %313 : vector<8x1xf32>
    %315 = vector.broadcast %314 : vector<8x1xf32> to vector<8x256xf32>
    %316 = arith.subf %310, %315 : vector<8x256xf32>
    %317 = arith.mulf %316, %316 : vector<8x256xf32>
    %cst_136 = arith.constant dense<0.000000e+00> : vector<8xf32>
    %318 = vector.multi_reduction <add>, %317, %cst_136 [1] : vector<8x256xf32> to vector<8xf32>
    %319 = vector.shape_cast %318 : vector<8xf32> to vector<8x1xf32>
    %cst_137 = arith.constant 2.560000e+02 : f32
    %320 = vector.broadcast %cst_137 : f32 to vector<8x1xf32>
    %321 = arith.divf %319, %320 : vector<8x1xf32>
    %322 = vector.broadcast %314 : vector<8x1xf32> to vector<8x256xf32>
    %323 = arith.subf %310, %322 : vector<8x256xf32>
    %cst_138 = arith.constant 9.99999974E-6 : f32
    %324 = vector.broadcast %cst_138 : f32 to vector<8x1xf32>
    %325 = arith.addf %321, %324 : vector<8x1xf32>
    %326 = math.rsqrt %325 : vector<8x1xf32>
    %327 = vector.broadcast %326 : vector<8x1xf32> to vector<8x256xf32>
    %328 = arith.mulf %323, %327 : vector<8x256xf32>
    %c0_139 = arith.constant 0 : index
    %c0_140 = arith.constant 0 : index
    %c0_141 = arith.constant 0 : index
    %329 = vector.load %arg23[%c0_139, %c0_140, %c0_141] : memref<1x1x256xf32, #tpu.memory_space<vmem>>, vector<1x1x256xf32>
    %330 = vector.shape_cast %329 : vector<1x1x256xf32> to vector<1x256xf32>
    %331 = vector.broadcast %330 : vector<1x256xf32> to vector<8x256xf32>
    %332 = arith.mulf %328, %331 : vector<8x256xf32>
    %c0_142 = arith.constant 0 : index
    %c0_143 = arith.constant 0 : index
    %c0_144 = arith.constant 0 : index
    %333 = vector.load %arg24[%c0_142, %c0_143, %c0_144] : memref<1x1x256xf32, #tpu.memory_space<vmem>>, vector<1x1x256xf32>
    %334 = vector.shape_cast %333 : vector<1x1x256xf32> to vector<1x256xf32>
    %335 = vector.broadcast %334 : vector<1x256xf32> to vector<8x256xf32>
    %336 = arith.addf %332, %335 : vector<8x256xf32>
    %c0_145 = arith.constant 0 : index
    %c0_146 = arith.constant 0 : index
    %337 = vector.load %arg36[%c0_145, %c0_146] : memref<8x256xf32, #tpu.memory_space<vmem>>, vector<8x256xf32>
    tpu.vector_store %arg36[%c0_145, %c0_146], %336 {strides = array<i32>} : memref<8x256xf32, #tpu.memory_space<vmem>>, vector<8x256xf32>,
    %c2_i32 = arith.constant 2 : i32
    %338 = arith.cmpi eq, %arg0, %c2_i32 : i32
    %339 = arith.extui %338 : i1 to i32
    %c0_i32_147 = arith.constant 0 : i32
    %340 = arith.cmpi ne, %339, %c0_i32_147 : i32
    scf.if %340 {
      %cst_148 = arith.constant dense<0.000000e+00> : vector<8xf32>
      %341 = vector.multi_reduction <add>, %336, %cst_148 [1] : vector<8x256xf32> to vector<8xf32>
      %342 = vector.shape_cast %341 : vector<8xf32> to vector<8x1xf32>
      %cst_149 = arith.constant 2.560000e+02 : f32
      %343 = vector.broadcast %cst_149 : f32 to vector<8x1xf32>
      %344 = arith.divf %342, %343 : vector<8x1xf32>
      %345 = vector.broadcast %344 : vector<8x1xf32> to vector<8x256xf32>
      %346 = arith.subf %336, %345 : vector<8x256xf32>
      %347 = arith.mulf %346, %346 : vector<8x256xf32>
      %cst_150 = arith.constant dense<0.000000e+00> : vector<8xf32>
      %348 = vector.multi_reduction <add>, %347, %cst_150 [1] : vector<8x256xf32> to vector<8xf32>
      %349 = vector.shape_cast %348 : vector<8xf32> to vector<8x1xf32>
      %cst_151 = arith.constant 2.560000e+02 : f32
      %350 = vector.broadcast %cst_151 : f32 to vector<8x1xf32>
      %351 = arith.divf %349, %350 : vector<8x1xf32>
      %352 = vector.broadcast %344 : vector<8x1xf32> to vector<8x256xf32>
      %353 = arith.subf %336, %352 : vector<8x256xf32>
      %cst_152 = arith.constant 9.99999974E-6 : f32
      %354 = vector.broadcast %cst_152 : f32 to vector<8x1xf32>
      %355 = arith.addf %351, %354 : vector<8x1xf32>
      %356 = math.rsqrt %355 : vector<8x1xf32>
      %357 = vector.broadcast %356 : vector<8x1xf32> to vector<8x256xf32>
      %358 = arith.mulf %353, %357 : vector<8x256xf32>
      %c0_153 = arith.constant 0 : index
      %c0_154 = arith.constant 0 : index
      %359 = vector.load %arg25[%c0_153, %c0_154] : memref<1x256xf32, #tpu.memory_space<vmem>>, vector<1x256xf32>
      %360 = vector.broadcast %359 : vector<1x256xf32> to vector<8x256xf32>
      %361 = arith.mulf %358, %360 : vector<8x256xf32>
      %c0_155 = arith.constant 0 : index
      %c0_156 = arith.constant 0 : index
      %362 = vector.load %arg26[%c0_155, %c0_156] : memref<1x256xf32, #tpu.memory_space<vmem>>, vector<1x256xf32>
      %363 = vector.broadcast %362 : vector<1x256xf32> to vector<8x256xf32>
      %364 = arith.addf %361, %363 : vector<8x256xf32>
      %365 = arith.truncf %364 : vector<8x256xf32> to vector<8x256xbf16>
      %c0_157 = arith.constant 0 : index
      %c0_158 = arith.constant 0 : index
      %366 = vector.load %arg27[%c0_157, %c0_158] : memref<256x64xbf16, #tpu.memory_space<vmem>>, vector<256x64xbf16>
      %cst_159 = arith.constant dense<0.000000e+00> : vector<8x64xf32>
      %367 = tpu.matmul %365, %366, %cst_159 {dimension_numbers = #tpu.dot_dimension_numbers<[1], [0], [0], [1], [0, 0, 1, 1], [], []>} : vector<8x256xbf16>, vector<256x64xbf16>, vector<8x64xf32> -> vector<8x64xf32>
      %c0_160 = arith.constant 0 : index
      %c0_161 = arith.constant 0 : index
      %368 = vector.load %arg28[%c0_160, %c0_161] : memref<1x64xf32, #tpu.memory_space<vmem>>, vector<1x64xf32>
      %369 = vector.broadcast %368 : vector<1x64xf32> to vector<8x64xf32>
      %370 = arith.addf %367, %369 : vector<8x64xf32>
      %cst_162 = arith.constant 5.000000e-01 : f32
      %371 = vector.broadcast %cst_162 : f32 to vector<8x64xf32>
      %372 = arith.mulf %371, %370 : vector<8x64xf32>
      %cst_163 = arith.constant 0.707106769 : f32
      %373 = vector.broadcast %cst_163 : f32 to vector<8x64xf32>
      %374 = arith.mulf %370, %373 : vector<8x64xf32>
      %375 = math.erf %374 : vector<8x64xf32>
      %cst_164 = arith.constant 1.000000e+00 : f32
      %376 = vector.broadcast %cst_164 : f32 to vector<8x64xf32>
      %377 = arith.addf %376, %375 : vector<8x64xf32>
      %378 = arith.mulf %372, %377 : vector<8x64xf32>
      %379 = arith.truncf %378 : vector<8x64xf32> to vector<8x64xbf16>
      %c0_165 = arith.constant 0 : index
      %c0_166 = arith.constant 0 : index
      %380 = vector.load %arg29[%c0_165, %c0_166] : memref<64x64xbf16, #tpu.memory_space<vmem>>, vector<64x64xbf16>
      %cst_167 = arith.constant dense<0.000000e+00> : vector<8x64xf32>
      %381 = tpu.matmul %379, %380, %cst_167 {dimension_numbers = #tpu.dot_dimension_numbers<[1], [0], [0], [1], [0, 0, 1, 1], [], []>} : vector<8x64xbf16>, vector<64x64xbf16>, vector<8x64xf32> -> vector<8x64xf32>
      %c0_168 = arith.constant 0 : index
      %c0_169 = arith.constant 0 : index
      %382 = vector.load %arg30[%c0_168, %c0_169] : memref<1x64xf32, #tpu.memory_space<vmem>>, vector<1x64xf32>
      %383 = vector.broadcast %382 : vector<1x64xf32> to vector<8x64xf32>
      %384 = arith.addf %381, %383 : vector<8x64xf32>
      %cst_170 = arith.constant 5.000000e-01 : f32
      %385 = vector.broadcast %cst_170 : f32 to vector<8x64xf32>
      %386 = arith.mulf %385, %384 : vector<8x64xf32>
      %cst_171 = arith.constant 0.707106769 : f32
      %387 = vector.broadcast %cst_171 : f32 to vector<8x64xf32>
      %388 = arith.mulf %384, %387 : vector<8x64xf32>
      %389 = math.erf %388 : vector<8x64xf32>
      %cst_172 = arith.constant 1.000000e+00 : f32
      %390 = vector.broadcast %cst_172 : f32 to vector<8x64xf32>
      %391 = arith.addf %390, %389 : vector<8x64xf32>
      %392 = arith.mulf %386, %391 : vector<8x64xf32>
      %393 = arith.truncf %392 : vector<8x64xf32> to vector<8x64xbf16>
      %c0_173 = arith.constant 0 : index
      %c0_174 = arith.constant 0 : index
      %394 = vector.load %arg31[%c0_173, %c0_174] : memref<64x64xbf16, #tpu.memory_space<vmem>>, vector<64x64xbf16>
      %cst_175 = arith.constant dense<0.000000e+00> : vector<8x64xf32>
      %395 = tpu.matmul %393, %394, %cst_175 {dimension_numbers = #tpu.dot_dimension_numbers<[1], [0], [0], [1], [0, 0, 1, 1], [], []>} : vector<8x64xbf16>, vector<64x64xbf16>, vector<8x64xf32> -> vector<8x64xf32>
      %c0_176 = arith.constant 0 : index
      %c0_177 = arith.constant 0 : index
      %396 = vector.load %arg32[%c0_176, %c0_177] : memref<1x64xf32, #tpu.memory_space<vmem>>, vector<1x64xf32>
      %397 = vector.broadcast %396 : vector<1x64xf32> to vector<8x64xf32>
      %398 = arith.addf %395, %397 : vector<8x64xf32>
      %cst_178 = arith.constant 5.000000e-01 : f32
      %399 = vector.broadcast %cst_178 : f32 to vector<8x64xf32>
      %400 = arith.mulf %399, %398 : vector<8x64xf32>
      %cst_179 = arith.constant 0.707106769 : f32
      %401 = vector.broadcast %cst_179 : f32 to vector<8x64xf32>
      %402 = arith.mulf %398, %401 : vector<8x64xf32>
      %403 = math.erf %402 : vector<8x64xf32>
      %cst_180 = arith.constant 1.000000e+00 : f32
      %404 = vector.broadcast %cst_180 : f32 to vector<8x64xf32>
      %405 = arith.addf %404, %403 : vector<8x64xf32>
      %406 = arith.mulf %400, %405 : vector<8x64xf32>
      %407 = arith.truncf %406 : vector<8x64xf32> to vector<8x64xbf16>
      %c0_181 = arith.constant 0 : index
      %c0_182 = arith.constant 0 : index
      %408 = vector.load %arg33[%c0_181, %c0_182] : memref<64x128xbf16, #tpu.memory_space<vmem>>, vector<64x128xbf16>
      %cst_183 = arith.constant dense<0.000000e+00> : vector<8x128xf32>
      %409 = tpu.matmul %407, %408, %cst_183 {dimension_numbers = #tpu.dot_dimension_numbers<[1], [0], [0], [1], [0, 0, 1, 1], [], []>} : vector<8x64xbf16>, vector<64x128xbf16>, vector<8x128xf32> -> vector<8x128xf32>
      %c0_184 = arith.constant 0 : index
      %c0_185 = arith.constant 0 : index
      %410 = vector.load %arg34[%c0_184, %c0_185] : memref<1x128xf32, #tpu.memory_space<vmem>>, vector<1x128xf32>
      %411 = vector.broadcast %410 : vector<1x128xf32> to vector<8x128xf32>
      %412 = arith.addf %409, %411 : vector<8x128xf32>
      %413 = math.tanh %412 : vector<8x128xf32>
      %c0_186 = arith.constant 0 : index
      %c0_187 = arith.constant 0 : index
      %414 = vector.load %arg35[%c0_186, %c0_187] : memref<8x128xf32, #tpu.memory_space<vmem>>, vector<8x128xf32>
      tpu.vector_store %arg35[%c0_186, %c0_187], %413 {strides = array<i32>} : memref<8x128xf32, #tpu.memory_space<vmem>>, vector<8x128xf32>,
    } else {
    }
    return
  }
  func.func @transform_0(%arg0: i32) -> (i32, i32) {
    %c0_i32 = arith.constant 0 : i32
    %c0_i32_0 = arith.constant 0 : i32
    %c0_i32_1 = arith.constant 0 : i32
    return %c0_i32, %c0_i32_0 : i32, i32
  }
  func.func @transform_1(%arg0: i32) -> (i32, i32) {
    %c0_i32 = arith.constant 0 : i32
    %c0_i32_0 = arith.constant 0 : i32
    %c0_i32_1 = arith.constant 0 : i32
    return %c0_i32, %c0_i32_0 : i32, i32
  }
  func.func @transform_2(%arg0: i32) -> (i32, i32) {
    %c0_i32 = arith.constant 0 : i32
    %c0_i32_0 = arith.constant 0 : i32
    %c0_i32_1 = arith.constant 0 : i32
    return %c0_i32, %c0_i32_0 : i32, i32
  }
  func.func @transform_3(%arg0: i32) -> (i32, i32) {
    %c0_i32 = arith.constant 0 : i32
    %c0_i32_0 = arith.constant 0 : i32
    %c0_i32_1 = arith.constant 0 : i32
    return %c0_i32, %c0_i32_0 : i32, i32
  }
  func.func @transform_4(%arg0: i32) -> (i32, i32, i32) {
    %c0_i32 = arith.constant 0 : i32
    %c0_i32_0 = arith.constant 0 : i32
    %c0_i32_1 = arith.constant 0 : i32
    return %arg0, %c0_i32, %c0_i32_0 : i32, i32, i32
  }
  func.func @transform_5(%arg0: i32) -> (i32, i32, i32) {
    %c0_i32 = arith.constant 0 : i32
    %c0_i32_0 = arith.constant 0 : i32
    %c0_i32_1 = arith.constant 0 : i32
    return %arg0, %c0_i32, %c0_i32_0 : i32, i32, i32
  }
  func.func @transform_6(%arg0: i32) -> (i32, i32, i32) {
    %c0_i32 = arith.constant 0 : i32
    %c0_i32_0 = arith.constant 0 : i32
    %c0_i32_1 = arith.constant 0 : i32
    return %arg0, %c0_i32, %c0_i32_0 : i32, i32, i32
  }
  func.func @transform_7(%arg0: i32) -> (i32, i32, i32) {
    %c0_i32 = arith.constant 0 : i32
    %c0_i32_0 = arith.constant 0 : i32
    %c0_i32_1 = arith.constant 0 : i32
    return %arg0, %c0_i32, %c0_i32_0 : i32, i32, i32
  }
  func.func @transform_8(%arg0: i32) -> (i32, i32, i32) {
    %c0_i32 = arith.constant 0 : i32
    %c0_i32_0 = arith.constant 0 : i32
    %c0_i32_1 = arith.constant 0 : i32
    return %arg0, %c0_i32, %c0_i32_0 : i32, i32, i32
  }
  func.func @transform_9(%arg0: i32) -> (i32, i32, i32) {
    %c0_i32 = arith.constant 0 : i32
    %c0_i32_0 = arith.constant 0 : i32
    %c0_i32_1 = arith.constant 0 : i32
    return %arg0, %c0_i32, %c0_i32_0 : i32, i32, i32
  }
  func.func @transform_10(%arg0: i32) -> (i32, i32, i32) {
    %c0_i32 = arith.constant 0 : i32
    %c0_i32_0 = arith.constant 0 : i32
    %c0_i32_1 = arith.constant 0 : i32
    return %arg0, %c0_i32, %c0_i32_0 : i32, i32, i32
  }
  func.func @transform_11(%arg0: i32) -> (i32, i32, i32) {
    %c0_i32 = arith.constant 0 : i32
    %c0_i32_0 = arith.constant 0 : i32
    %c0_i32_1 = arith.constant 0 : i32
    return %arg0, %c0_i32, %c0_i32_0 : i32, i32, i32
  }
  func.func @transform_12(%arg0: i32) -> (i32, i32, i32) {
    %c0_i32 = arith.constant 0 : i32
    %c0_i32_0 = arith.constant 0 : i32
    %c0_i32_1 = arith.constant 0 : i32
    return %arg0, %c0_i32, %c0_i32_0 : i32, i32, i32
  }
  func.func @transform_13(%arg0: i32) -> (i32, i32, i32) {
    %c0_i32 = arith.constant 0 : i32
    %c0_i32_0 = arith.constant 0 : i32
    %c0_i32_1 = arith.constant 0 : i32
    return %arg0, %c0_i32, %c0_i32_0 : i32, i32, i32
  }
  func.func @transform_14(%arg0: i32) -> (i32, i32, i32) {
    %c0_i32 = arith.constant 0 : i32
    %c0_i32_0 = arith.constant 0 : i32
    %c0_i32_1 = arith.constant 0 : i32
    return %arg0, %c0_i32, %c0_i32_0 : i32, i32, i32
  }
  func.func @transform_15(%arg0: i32) -> (i32, i32, i32) {
    %c0_i32 = arith.constant 0 : i32
    %c0_i32_0 = arith.constant 0 : i32
    %c0_i32_1 = arith.constant 0 : i32
    return %arg0, %c0_i32, %c0_i32_0 : i32, i32, i32
  }
  func.func @transform_16(%arg0: i32) -> (i32, i32, i32) {
    %c0_i32 = arith.constant 0 : i32
    %c0_i32_0 = arith.constant 0 : i32
    %c0_i32_1 = arith.constant 0 : i32
    return %arg0, %c0_i32, %c0_i32_0 : i32, i32, i32
  }
  func.func @transform_17(%arg0: i32) -> (i32, i32, i32) {
    %c0_i32 = arith.constant 0 : i32
    %c0_i32_0 = arith.constant 0 : i32
    %c0_i32_1 = arith.constant 0 : i32
    return %arg0, %c0_i32, %c0_i32_0 : i32, i32, i32
  }
  func.func @transform_18(%arg0: i32) -> (i32, i32, i32) {
    %c0_i32 = arith.constant 0 : i32
    %c0_i32_0 = arith.constant 0 : i32
    %c0_i32_1 = arith.constant 0 : i32
    return %arg0, %c0_i32, %c0_i32_0 : i32, i32, i32
  }
  func.func @transform_19(%arg0: i32) -> (i32, i32, i32) {
    %c0_i32 = arith.constant 0 : i32
    %c0_i32_0 = arith.constant 0 : i32
    %c0_i32_1 = arith.constant 0 : i32
    return %arg0, %c0_i32, %c0_i32_0 : i32, i32, i32
  }
  func.func @transform_20(%arg0: i32) -> (i32, i32, i32) {
    %c0_i32 = arith.constant 0 : i32
    %c0_i32_0 = arith.constant 0 : i32
    %c0_i32_1 = arith.constant 0 : i32
    return %arg0, %c0_i32, %c0_i32_0 : i32, i32, i32
  }
  func.func @transform_21(%arg0: i32) -> (i32, i32, i32) {
    %c0_i32 = arith.constant 0 : i32
    %c0_i32_0 = arith.constant 0 : i32
    %c0_i32_1 = arith.constant 0 : i32
    return %arg0, %c0_i32, %c0_i32_0 : i32, i32, i32
  }
  func.func @transform_22(%arg0: i32) -> (i32, i32, i32) {
    %c0_i32 = arith.constant 0 : i32
    %c0_i32_0 = arith.constant 0 : i32
    %c0_i32_1 = arith.constant 0 : i32
    return %arg0, %c0_i32, %c0_i32_0 : i32, i32, i32
  }
  func.func @transform_23(%arg0: i32) -> (i32, i32, i32) {
    %c0_i32 = arith.constant 0 : i32
    %c0_i32_0 = arith.constant 0 : i32
    %c0_i32_1 = arith.constant 0 : i32
    return %arg0, %c0_i32, %c0_i32_0 : i32, i32, i32
  }
  func.func @transform_24(%arg0: i32) -> (i32, i32) {
    %c0_i32 = arith.constant 0 : i32
    %c0_i32_0 = arith.constant 0 : i32
    %c0_i32_1 = arith.constant 0 : i32
    return %c0_i32, %c0_i32_0 : i32, i32
  }
  func.func @transform_25(%arg0: i32) -> (i32, i32) {
    %c0_i32 = arith.constant 0 : i32
    %c0_i32_0 = arith.constant 0 : i32
    %c0_i32_1 = arith.constant 0 : i32
    return %c0_i32, %c0_i32_0 : i32, i32
  }
  func.func @transform_26(%arg0: i32) -> (i32, i32) {
    %c0_i32 = arith.constant 0 : i32
    %c0_i32_0 = arith.constant 0 : i32
    %c0_i32_1 = arith.constant 0 : i32
    return %c0_i32, %c0_i32_0 : i32, i32
  }
  func.func @transform_27(%arg0: i32) -> (i32, i32) {
    %c0_i32 = arith.constant 0 : i32
    %c0_i32_0 = arith.constant 0 : i32
    %c0_i32_1 = arith.constant 0 : i32
    return %c0_i32, %c0_i32_0 : i32, i32
  }
  func.func @transform_28(%arg0: i32) -> (i32, i32) {
    %c0_i32 = arith.constant 0 : i32
    %c0_i32_0 = arith.constant 0 : i32
    %c0_i32_1 = arith.constant 0 : i32
    return %c0_i32, %c0_i32_0 : i32, i32
  }
  func.func @transform_29(%arg0: i32) -> (i32, i32) {
    %c0_i32 = arith.constant 0 : i32
    %c0_i32_0 = arith.constant 0 : i32
    %c0_i32_1 = arith.constant 0 : i32
    return %c0_i32, %c0_i32_0 : i32, i32
  }
  func.func @transform_30(%arg0: i32) -> (i32, i32) {
    %c0_i32 = arith.constant 0 : i32
    %c0_i32_0 = arith.constant 0 : i32
    %c0_i32_1 = arith.constant 0 : i32
    return %c0_i32, %c0_i32_0 : i32, i32
  }
  func.func @transform_31(%arg0: i32) -> (i32, i32) {
    %c0_i32 = arith.constant 0 : i32
    %c0_i32_0 = arith.constant 0 : i32
    %c0_i32_1 = arith.constant 0 : i32
    return %c0_i32, %c0_i32_0 : i32, i32
  }
  func.func @transform_32(%arg0: i32) -> (i32, i32) {
    %c0_i32 = arith.constant 0 : i32
    %c0_i32_0 = arith.constant 0 : i32
    %c0_i32_1 = arith.constant 0 : i32
    return %c0_i32, %c0_i32_0 : i32, i32
  }
  func.func @transform_33(%arg0: i32) -> (i32, i32) {
    %c0_i32 = arith.constant 0 : i32
    %c0_i32_0 = arith.constant 0 : i32
    %c0_i32_1 = arith.constant 0 : i32
    return %c0_i32, %c0_i32_0 : i32, i32
  }
  func.func @transform_34(%arg0: i32) -> (i32, i32) {
    %c0_i32 = arith.constant 0 : i32
    %c0_i32_0 = arith.constant 0 : i32
    %c0_i32_1 = arith.constant 0 : i32
    return %c0_i32, %c0_i32_0 : i32, i32
  }
}

</mosaic_0001>

<llo_original>
// kernel: eq.29
$region0: #{eq.29}
  %s0 = inlined_call_operand.vmem [shape: s32[2,4], index: 0, kind: input, shape index: {}]
  %s1 = inlined_call_operand.vmem [shape: s32[8], index: 1, kind: output, shape index: {}]
  $region1: #{eq.29} parent=0
    #allocation0 [shape = 'u8[4096]{0}', space=vmem, size = 0x1000, scoped, tag = 'scoped mem for output reshape']
    #allocation1 [shape = 'u8[4096]{0}', space=vmem, size = 0x1000, scoped, tag = 'scoped mem for input reshape']
    %s3 = sshll.u32 1, 2
    %s4 = ssub.s32 %s3, 1
    %v5 = vld [vmem:[%s0] sm:%s4]
    %6 = vst [vmem:[#allocation1] sm:%s4] %v5
    %v7 = vld [vmem:[#allocation1] sm:$0x1]
    %vm8 = vcmask 31744
    %9 = vst.msk [vmem:[#allocation0] sm:$0x1] %vm8, %v7
    %s10 = scalar_lea.vmem [#allocation1], 1
    %v11 = vld [vmem:[%s10] sm:$0x1]
    %12 = vrot.lane.b32.xlu0 %v11, 4
    %v13 = vpop.permute.xlu0 %12
    %vm14 = vcmask 64544
    %15 = vst.msk [vmem:[#allocation0] sm:$0x1] %vm14, %v13
    %s17 = sshll.u32 1, 1
    %s18 = ssub.s32 %s17, 1
    %v20 = vld [vmem:[#allocation0] sm:%s18]
    %s21 = sshll.u32 1, 1
    %s22 = ssub.s32 %s21, 1
    %23 = vst [vmem:[%s1] sm:%s22] %v20

// kernel: eq.22
$region0: #{eq.22}
  %s0 = inlined_call_operand.vmem [shape: s32[2,8], index: 0, kind: input, shape index: {}]
  %s1 = inlined_call_operand.vmem [shape: s32[16], index: 1, kind: output, shape index: {}]
  $region1: #{eq.22} parent=0
    #allocation0 [shape = 'u8[4096]{0}', space=vmem, size = 0x1000, scoped, tag = 'scoped mem for output reshape']
    #allocation1 [shape = 'u8[4096]{0}', space=vmem, size = 0x1000, scoped, tag = 'scoped mem for input reshape']
    %s3 = sshll.u32 1, 2
    %s4 = ssub.s32 %s3, 1
    %v5 = vld [vmem:[%s0] sm:%s4]
    %6 = vst [vmem:[#allocation1] sm:%s4] %v5
    %v7 = vld [vmem:[#allocation1] sm:$0x1]
    %vm8 = vcmask 64512
    %9 = vst.msk [vmem:[#allocation0] sm:$0x1] %vm8, %v7
    %s10 = scalar_lea.vmem [#allocation1], 1
    %v11 = vld [vmem:[%s10] sm:$0x1]
    %12 = vrot.lane.b32.xlu0 %v11, 8
    %v13 = vpop.permute.xlu0 %12
    %vm14 = vcmask 130112
    %15 = vst.msk [vmem:[#allocation0] sm:$0x1] %vm14, %v13
    %s17 = sshll.u32 1, 1
    %s18 = ssub.s32 %s17, 1
    %v20 = vld [vmem:[#allocation0] sm:%s18]
    %s21 = sshll.u32 1, 1
    %s22 = ssub.s32 %s21, 1
    %23 = vst [vmem:[%s1] sm:%s22] %v20

// kernel: tile.19
$region0: #{tile.19}
  %s0 = inlined_call_operand.vmem [shape: f32[2,4,256], index: 0, kind: input, shape index: {}]
  %s1 = inlined_call_operand.vmem [shape: f32[8,256], index: 1, kind: output, shape index: {}]
  $region1: #{tile.19} parent=0
    #allocation0 [shape = 'u8[16384]{0}', space=vmem, size = 0x4000, scoped, tag = 'scoped mem for input reshape']
    %s3 = sshll.u32 1, 4
    %s4 = ssub.s32 %s3, 1
    %s5 = smul.addr 4, 3
    %s6 = scalar_lea.vmem %s0, %s5
    %v7 = vld [vmem:[%s6] sm:%s4]
    %s8 = scalar_lea.vmem [#allocation0], 24
    %9 = vst [vmem:[%s8] sm:%s4] %v7
    %s10 = smul.addr 4, 2
    %s11 = scalar_lea.vmem %s0, %s10
    %v12 = vld [vmem:[%s11] sm:%s4]
    %s13 = scalar_lea.vmem [#allocation0], 16
    %14 = vst [vmem:[%s13] sm:%s4] %v12
    %s15 = scalar_lea.vmem %s0, 4
    %v16 = vld [vmem:[%s15] sm:%s4]
    %s17 = scalar_lea.vmem [#allocation0], 8
    %18 = vst [vmem:[%s17] sm:%s4] %v16
    %v19 = vld [vmem:[%s0] sm:%s4]
    %20 = vst [vmem:[#allocation0] sm:%s4] %v19
    %v21 = vld [vmem:[#allocation0] sm:$0xf]
    %22 = vst [vmem:[%s1] sm:$0xf] %v21
    %s23 = scalar_lea.vmem [#allocation0], 8
    %v24 = vld [vmem:[%s23] sm:$0xf]
    %s25 = scalar_lea.vmem %s1, 8
    %26 = vst [vmem:[%s25] sm:$0xf] %v24
    %s27 = scalar_lea.vmem [#allocation0], 16
    %v28 = vld [vmem:[%s27] sm:$0xf]
    %s29 = scalar_lea.vmem %s1, 4
    %30 = vst [vmem:[%s29] sm:$0xf] %v28
    %s31 = scalar_lea.vmem [#allocation0], 24
    %v32 = vld [vmem:[%s31] sm:$0xf]
    %s33 = scalar_lea.vmem %s1, 12
    %34 = vst [vmem:[%s33] sm:$0xf] %v32

// kernel: pi_forward.2
$region0: #{pi_forward.2}
  #allocation0 [shape = 'u32[]', space=smem, size = 0x4, offset = 0x4, fixed_abs, tag = 'smem constant byte address 0x4 - core index']
  #allocation1 [shape = 'u32[144,128]{1,0:T(1,128)}', space=vmem, size = 0x12000, scoped, tag = 'internal scratch']
  #allocation2 [shape = 'f32[16,256]{1,0:T(8,128)}', space=vmem, size = 0x4000, scoped, tag = 'scratch operand']
  %s0 = inlined_call_operand.vmem [shape: f32[24,16], index: 0, kind: input, shape index: {}]
  %s1 = inlined_call_operand.vmem [shape: f32[24,256], index: 1, kind: input, shape index: {}]
  %s2 = inlined_call_operand.hbm [shape: bf16[16,256], index: 2, kind: input, shape index: {}]
  %s3 = inlined_call_operand.hbm [shape: f32[1,256], index: 3, kind: input, shape index: {}]
  %s4 = inlined_call_operand.vmem [shape: f32[16,16], index: 4, kind: input, shape index: {}]
  %s5 = inlined_call_operand.hbm [shape: bf16[3,256,768], index: 5, kind: input, shape index: {}]
  %s6 = inlined_call_operand.hbm [shape: f32[3,1,768], index: 6, kind: input, shape index: {}]
  %s7 = inlined_call_operand.hbm [shape: bf16[3,256,256], index: 7, kind: input, shape index: {}]
  %s8 = inlined_call_operand.hbm [shape: f32[3,1,256], index: 8, kind: input, shape index: {}]
  %s9 = inlined_call_operand.hbm [shape: f32[3,1,256], index: 9, kind: input, shape index: {}]
  %s10 = inlined_call_operand.hbm [shape: f32[3,1,256], index: 10, kind: input, shape index: {}]
  %s11 = inlined_call_operand.hbm [shape: bf16[3,256,256], index: 11, kind: input, shape index: {}]
  %s12 = inlined_call_operand.hbm [shape: f32[3,1,256], index: 12, kind: input, shape index: {}]
  %s13 = inlined_call_operand.hbm [shape: bf16[3,256,256], index: 13, kind: input, shape index: {}]
  %s14 = inlined_call_operand.hbm [shape: f32[3,1,256], index: 14, kind: input, shape index: {}]
  %s15 = inlined_call_operand.hbm [shape: f32[3,1,256], index: 15, kind: input, shape index: {}]
  %s16 = inlined_call_operand.hbm [shape: f32[3,1,256], index: 16, kind: input, shape index: {}]
  %s17 = inlined_call_operand.hbm [shape: f32[1,256], index: 17, kind: input, shape index: {}]
  %s18 = inlined_call_operand.hbm [shape: f32[1,256], index: 18, kind: input, shape index: {}]
  %s19 = inlined_call_operand.vmem [shape: f32[16,256], index: 19, kind: output, shape index: {0}]
  %s20 = inlined_call_operand.vmem [shape: f32[8,256], index: 20, kind: output, shape index: {1}]
  %21 = xla_tuple %s19, %s20
  %s22 = sld [smem:[#allocation0]]
  $region189: #{pi_forward.2} parent=0
    _
  %s24 = ssub.s32 1, %s22
  %s25 = scalar_select 0, %s24, %s22
  $region1: #{pi_forward.2} parent=0
    #allocation3 [shape = 'u8[8192]{0}', space=vmem, size = 0x2000, scoped, tag = 'input window, operand 2, single buffered']
    #allocation4 [shape = 's32[2]{0}', space=sflag, size = 0x8, scoped, tag = 'scoped memory for pi_forward.2']
    #allocation5 [shape = 'u8[1024]{0}', space=vmem, size = 0x400, scoped, tag = 'input window, operand 3, single buffered']
    #allocation6 [shape = 's32[1]{0}', space=sflag, size = 0x4, scoped, tag = 'scoped memory for pi_forward.2']
    #allocation7 [shape = 'u8[786432]{0}', space=vmem, size = 0xc0000, scoped, tag = 'input window, operand 5']
    #allocation8 [shape = 'u8[6144]{0}', space=vmem, size = 0x1800, scoped, tag = 'input window, operand 6']
    #allocation9 [shape = 'u8[262144]{0}', space=vmem, size = 0x40000, scoped, tag = 'input window, operand 7']
    #allocation10 [shape = 'u8[2048]{0}', space=vmem, size = 0x800, scoped, tag = 'input window, operand 8']
    #allocation11 [shape = 'u8[2048]{0}', space=vmem, size = 0x800, scoped, tag = 'input window, operand 9']
    #allocation12 [shape = 'u8[2048]{0}', space=vmem, size = 0x800, scoped, tag = 'input window, operand 10']
    #allocation13 [shape = 'u8[262144]{0}', space=vmem, size = 0x40000, scoped, tag = 'input window, operand 11']
    #allocation14 [shape = 'u8[2048]{0}', space=vmem, size = 0x800, scoped, tag = 'input window, operand 12']
    #allocation15 [shape = 'u8[262144]{0}', space=vmem, size = 0x40000, scoped, tag = 'input window, operand 13']
    #allocation16 [shape = 'u8[2048]{0}', space=vmem, size = 0x800, scoped, tag = 'input window, operand 14']
    #allocation17 [shape = 'u8[2048]{0}', space=vmem, size = 0x800, scoped, tag = 'input window, operand 15']
    #allocation18 [shape = 'u8[2048]{0}', space=vmem, size = 0x800, scoped, tag = 'input window, operand 16']
    #allocation19 [shape = 'u8[1024]{0}', space=vmem, size = 0x400, scoped, tag = 'input window, operand 17, single buffered']
    #allocation20 [shape = 'u8[1024]{0}', space=vmem, size = 0x400, scoped, tag = 'input window, operand 18, single buffered']
    #allocation21 [shape = 's32[1]{0}', space=sflag, size = 0x4, scoped, tag = 'scoped memory for pi_forward.2']
    %26 = vsyncpa [#allocation4], 0
    %27 = vsyncpa [#allocation6], 0
    %28 = vsyncpa [#allocation21], 0
    loop: start=0, step=1, limit=5
    $region2: #{pi_forward.2} parent=1 // loop_pre_header
      _
    $region3: #{pi_forward.2} parent=1 // loop_header
      %s30 = sphi 0, %s34
      %p31 = scmp.ge.s32.totalorder %s30, 5
      %s38 = sphi 0, %s38
      %s40 = sphi 0, %s38
      %s41 = sphi 0, %s40
      %s55 = sphi 0, %s41
      %s59 = sphi 0, %s59
      %s61 = sphi 0, %s59
      %s62 = sphi 0, %s61
      %s76 = sphi 0, %s62
      %s80 = sphi 0, %s80
      %s82 = sphi 0, %s80
      %s83 = sphi 0, %s82
      %s97 = sphi 0, %s83
      %s101 = sphi 0, %s101
      %s103 = sphi 0, %s101
      %s104 = sphi 0, %s103
      %s118 = sphi 0, %s104
      %s122 = sphi 0, %s122
      %s124 = sphi 0, %s122
      %s125 = sphi 0, %s124
      %s139 = sphi 0, %s125
      %s145 = sphi 0, %s147
      %s148 = sphi 0, %s145
      %s149 = sphi 0, %s148
      %s165 = sphi 0, %s149
      %s171 = sphi 0, %s173
      %s174 = sphi 0, %s171
      %s175 = sphi 0, %s174
      %s191 = sphi 0, %s175
      %s197 = sphi 0, %s199
      %s200 = sphi 0, %s197
      %s201 = sphi 0, %s200
      %s217 = sphi 0, %s201
      %s223 = sphi 0, %s225
      %s226 = sphi 0, %s223
      %s227 = sphi 0, %s226
      %s243 = sphi 0, %s227
      %s249 = sphi 0, %s251
      %s252 = sphi 0, %s249
      %s253 = sphi 0, %s252
      %s269 = sphi 0, %s253
      %s275 = sphi 0, %s277
      %s278 = sphi 0, %s275
      %s279 = sphi 0, %s278
      %s295 = sphi 0, %s279
      %s301 = sphi 0, %s303
      %s304 = sphi 0, %s301
      %s305 = sphi 0, %s304
      %s321 = sphi 0, %s305
      %s327 = sphi 0, %s329
      %s330 = sphi 0, %s327
      %s331 = sphi 0, %s330
      %s347 = sphi 0, %s331
      %s353 = sphi 0, %s355
      %s356 = sphi 0, %s353
      %s357 = sphi 0, %s356
      %s373 = sphi 0, %s357
      %s379 = sphi 0, %s381
      %s382 = sphi 0, %s379
      %s383 = sphi 0, %s382
      %s399 = sphi 0, %s383
      %s405 = sphi 0, %s407
      %s408 = sphi 0, %s405
      %s409 = sphi 0, %s408
      %s425 = sphi 0, %s409
      %s431 = sphi 0, %s433
      %s434 = sphi 0, %s431
      %s435 = sphi 0, %s434
      %s451 = sphi 0, %s435
      %s455 = sphi 0, %s455
      %s457 = sphi 0, %s455
      %s458 = sphi 0, %s457
      %s472 = sphi 0, %s458
      %s476 = sphi 0, %s476
      %s478 = sphi 0, %s476
      %s479 = sphi 0, %s478
      %s493 = sphi 0, %s479
      %s497 = sphi 0, %s497
      %s499 = sphi 0, %s497
      %s500 = sphi 0, %s499
      %s514 = sphi 0, %s500
      %s518 = sphi 0, %s518
      %s520 = sphi 0, %s518
      %s521 = sphi 0, %s520
      %s535 = sphi 0, %s521
    $region4: #{pi_forward.2} parent=1 // loop_header_branch
      %33 = sbr.rel (%p31) target = $region8
    $region5: #{pi_forward.2} parent=1 // loop_body
      %s35 = ssub.s32 %s30, 1
      %s36 = ssub.s32 %s30, 2
      %s37 = sadd.s32 %s30, 1
      %s39 = sadd.s32 %s38, 1
      %p42 = scmp.eq.s32.totalorder %s30, 2
      %p43 = scmp.ne.s32.totalorder %s38, %s40
      %p44 = scmp.eq.s32.totalorder %s30, 0
      %p45 = por %p43, %p44
      %p46 = scmp.ne.s32.totalorder %s38, %s40
      %p47 = scmp.eq.s32.totalorder %s35, 2
      %p48 = por %p46, %p47
      %p49 = scmp.ne.s32.totalorder %s40, %s41
      %p50 = scmp.eq.s32.totalorder %s35, 0
      %p51 = por %p49, %p50
      %p52 = scmp.ne.s32.totalorder %s40, %s41
      %p53 = scmp.eq.s32.totalorder %s36, 2
      %p54 = por %p52, %p53
      %p56 = scmp.ne.s32.totalorder %s41, %s55
      %p57 = scmp.eq.s32.totalorder %s36, 0
      %p58 = por %p56, %p57
      %s60 = sadd.s32 %s59, 1
      %p63 = scmp.eq.s32.totalorder %s30, 2
      %p64 = scmp.ne.s32.totalorder %s59, %s61
      %p65 = scmp.eq.s32.totalorder %s30, 0
      %p66 = por %p64, %p65
      %p67 = scmp.ne.s32.totalorder %s59, %s61
      %p68 = scmp.eq.s32.totalorder %s35, 2
      %p69 = por %p67, %p68
      %p70 = scmp.ne.s32.totalorder %s61, %s62
      %p71 = scmp.eq.s32.totalorder %s35, 0
      %p72 = por %p70, %p71
      %p73 = scmp.ne.s32.totalorder %s61, %s62
      %p74 = scmp.eq.s32.totalorder %s36, 2
      %p75 = por %p73, %p74
      %p77 = scmp.ne.s32.totalorder %s62, %s76
      %p78 = scmp.eq.s32.totalorder %s36, 0
      %p79 = por %p77, %p78
      %s81 = sadd.s32 %s80, 1
      %p84 = scmp.eq.s32.totalorder %s30, 2
      %p85 = scmp.ne.s32.totalorder %s80, %s82
      %p86 = scmp.eq.s32.totalorder %s30, 0
      %p87 = por %p85, %p86
      %p88 = scmp.ne.s32.totalorder %s80, %s82
      %p89 = scmp.eq.s32.totalorder %s35, 2
      %p90 = por %p88, %p89
      %p91 = scmp.ne.s32.totalorder %s82, %s83
      %p92 = scmp.eq.s32.totalorder %s35, 0
      %p93 = por %p91, %p92
      %p94 = scmp.ne.s32.totalorder %s82, %s83
      %p95 = scmp.eq.s32.totalorder %s36, 2
      %p96 = por %p94, %p95
      %p98 = scmp.ne.s32.totalorder %s83, %s97
      %p99 = scmp.eq.s32.totalorder %s36, 0
      %p100 = por %p98, %p99
      %s102 = sadd.s32 %s101, 1
      %p105 = scmp.eq.s32.totalorder %s30, 2
      %p106 = scmp.ne.s32.totalorder %s101, %s103
      %p107 = scmp.eq.s32.totalorder %s30, 0
      %p108 = por %p106, %p107
      %p109 = scmp.ne.s32.totalorder %s101, %s103
      %p110 = scmp.eq.s32.totalorder %s35, 2
      %p111 = por %p109, %p110
      %p112 = scmp.ne.s32.totalorder %s103, %s104
      %p113 = scmp.eq.s32.totalorder %s35, 0
      %p114 = por %p112, %p113
      %p115 = scmp.ne.s32.totalorder %s103, %s104
      %p116 = scmp.eq.s32.totalorder %s36, 2
      %p117 = por %p115, %p116
      %p119 = scmp.ne.s32.totalorder %s104, %s118
      %p120 = scmp.eq.s32.totalorder %s36, 0
      %p121 = por %p119, %p120
      %s123 = sadd.s32 %s122, 1
      %p126 = scmp.eq.s32.totalorder %s30, 2
      %p127 = scmp.ne.s32.totalorder %s122, %s124
      %p128 = scmp.eq.s32.totalorder %s30, 0
      %p129 = por %p127, %p128
      %p130 = scmp.ne.s32.totalorder %s122, %s124
      %p131 = scmp.eq.s32.totalorder %s35, 2
      %p132 = por %p130, %p131
      %p133 = scmp.ne.s32.totalorder %s124, %s125
      %p134 = scmp.eq.s32.totalorder %s35, 0
      %p135 = por %p133, %p134
      %p136 = scmp.ne.s32.totalorder %s124, %s125
      %p137 = scmp.eq.s32.totalorder %s36, 2
      %p138 = por %p136, %p137
      %p140 = scmp.ne.s32.totalorder %s125, %s139
      %p141 = scmp.eq.s32.totalorder %s36, 0
      %p142 = por %p140, %p141
      %s143 = ssub.s32 %s30, %s37
      %p144 = scmp.eq.s32.totalorder %s143, 0
      %s146 = sadd.s32 %s145, 1
      %s147 = scalar_select %p144, %s145, %s146
      %p150 = pneg %p144
      %p151 = scmp.eq.s32.totalorder %s30, 2
      %p152 = por %p150, %p151
      %p153 = scmp.ne.s32.totalorder %s145, %s148
      %p154 = scmp.eq.s32.totalorder %s30, 0
      %p155 = por %p153, %p154
      %p156 = scmp.ne.s32.totalorder %s145, %s148
      %p157 = scmp.eq.s32.totalorder %s35, 2
      %p158 = por %p156, %p157
      %p159 = scmp.ne.s32.totalorder %s148, %s149
      %p160 = scmp.eq.s32.totalorder %s35, 0
      %p161 = por %p159, %p160
      %p162 = scmp.ne.s32.totalorder %s148, %s149
      %p163 = scmp.eq.s32.totalorder %s36, 2
      %p164 = por %p162, %p163
      %p166 = scmp.ne.s32.totalorder %s149, %s165
      %p167 = scmp.eq.s32.totalorder %s36, 0
      %p168 = por %p166, %p167
      %s169 = ssub.s32 %s30, %s37
      %p170 = scmp.eq.s32.totalorder %s169, 0
      %s172 = sadd.s32 %s171, 1
      %s173 = scalar_select %p170, %s171, %s172
      %p176 = pneg %p170
      %p177 = scmp.eq.s32.totalorder %s30, 2
      %p178 = por %p176, %p177
      %p179 = scmp.ne.s32.totalorder %s171, %s174
      %p180 = scmp.eq.s32.totalorder %s30, 0
      %p181 = por %p179, %p180
      %p182 = scmp.ne.s32.totalorder %s171, %s174
      %p183 = scmp.eq.s32.totalorder %s35, 2
      %p184 = por %p182, %p183
      %p185 = scmp.ne.s32.totalorder %s174, %s175
      %p186 = scmp.eq.s32.totalorder %s35, 0
      %p187 = por %p185, %p186
      %p188 = scmp.ne.s32.totalorder %s174, %s175
      %p189 = scmp.eq.s32.totalorder %s36, 2
      %p190 = por %p188, %p189
      %p192 = scmp.ne.s32.totalorder %s175, %s191
      %p193 = scmp.eq.s32.totalorder %s36, 0
      %p194 = por %p192, %p193
      %s195 = ssub.s32 %s30, %s37
      %p196 = scmp.eq.s32.totalorder %s195, 0
      %s198 = sadd.s32 %s197, 1
      %s199 = scalar_select %p196, %s197, %s198
      %p202 = pneg %p196
      %p203 = scmp.eq.s32.totalorder %s30, 2
      %p204 = por %p202, %p203
      %p205 = scmp.ne.s32.totalorder %s197, %s200
      %p206 = scmp.eq.s32.totalorder %s30, 0
      %p207 = por %p205, %p206
      %p208 = scmp.ne.s32.totalorder %s197, %s200
      %p209 = scmp.eq.s32.totalorder %s35, 2
      %p210 = por %p208, %p209
      %p211 = scmp.ne.s32.totalorder %s200, %s201
      %p212 = scmp.eq.s32.totalorder %s35, 0
      %p213 = por %p211, %p212
      %p214 = scmp.ne.s32.totalorder %s200, %s201
      %p215 = scmp.eq.s32.totalorder %s36, 2
      %p216 = por %p214, %p215
      %p218 = scmp.ne.s32.totalorder %s201, %s217
      %p219 = scmp.eq.s32.totalorder %s36, 0
      %p220 = por %p218, %p219
      %s221 = ssub.s32 %s30, %s37
      %p222 = scmp.eq.s32.totalorder %s221, 0
      %s224 = sadd.s32 %s223, 1
      %s225 = scalar_select %p222, %s223, %s224
      %p228 = pneg %p222
      %p229 = scmp.eq.s32.totalorder %s30, 2
      %p230 = por %p228, %p229
      %p231 = scmp.ne.s32.totalorder %s223, %s226
      %p232 = scmp.eq.s32.totalorder %s30, 0
      %p233 = por %p231, %p232
      %p234 = scmp.ne.s32.totalorder %s223, %s226
      %p235 = scmp.eq.s32.totalorder %s35, 2
      %p236 = por %p234, %p235
      %p237 = scmp.ne.s32.totalorder %s226, %s227
      %p238 = scmp.eq.s32.totalorder %s35, 0
      %p239 = por %p237, %p238
      %p240 = scmp.ne.s32.totalorder %s226, %s227
      %p241 = scmp.eq.s32.totalorder %s36, 2
      %p242 = por %p240, %p241
      %p244 = scmp.ne.s32.totalorder %s227, %s243
      %p245 = scmp.eq.s32.totalorder %s36, 0
      %p246 = por %p244, %p245
      %s247 = ssub.s32 %s30, %s37
      %p248 = scmp.eq.s32.totalorder %s247, 0
      %s250 = sadd.s32 %s249, 1
      %s251 = scalar_select %p248, %s249, %s250
      %p254 = pneg %p248
      %p255 = scmp.eq.s32.totalorder %s30, 2
      %p256 = por %p254, %p255
      %p257 = scmp.ne.s32.totalorder %s249, %s252
      %p258 = scmp.eq.s32.totalorder %s30, 0
      %p259 = por %p257, %p258
      %p260 = scmp.ne.s32.totalorder %s249, %s252
      %p261 = scmp.eq.s32.totalorder %s35, 2
      %p262 = por %p260, %p261
      %p263 = scmp.ne.s32.totalorder %s252, %s253
      %p264 = scmp.eq.s32.totalorder %s35, 0
      %p265 = por %p263, %p264
      %p266 = scmp.ne.s32.totalorder %s252, %s253
      %p267 = scmp.eq.s32.totalorder %s36, 2
      %p268 = por %p266, %p267
      %p270 = scmp.ne.s32.totalorder %s253, %s269
      %p271 = scmp.eq.s32.totalorder %s36, 0
      %p272 = por %p270, %p271
      %s273 = ssub.s32 %s30, %s37
      %p274 = scmp.eq.s32.totalorder %s273, 0
      %s276 = sadd.s32 %s275, 1
      %s277 = scalar_select %p274, %s275, %s276
      %p280 = pneg %p274
      %p281 = scmp.eq.s32.totalorder %s30, 2
      %p282 = por %p280, %p281
      %p283 = scmp.ne.s32.totalorder %s275, %s278
      %p284 = scmp.eq.s32.totalorder %s30, 0
      %p285 = por %p283, %p284
      %p286 = scmp.ne.s32.totalorder %s275, %s278
      %p287 = scmp.eq.s32.totalorder %s35, 2
      %p288 = por %p286, %p287
      %p289 = scmp.ne.s32.totalorder %s278, %s279
      %p290 = scmp.eq.s32.totalorder %s35, 0
      %p291 = por %p289, %p290
      %p292 = scmp.ne.s32.totalorder %s278, %s279
      %p293 = scmp.eq.s32.totalorder %s36, 2
      %p294 = por %p292, %p293
      %p296 = scmp.ne.s32.totalorder %s279, %s295
      %p297 = scmp.eq.s32.totalorder %s36, 0
      %p298 = por %p296, %p297
      %s299 = ssub.s32 %s30, %s37
      %p300 = scmp.eq.s32.totalorder %s299, 0
      %s302 = sadd.s32 %s301, 1
      %s303 = scalar_select %p300, %s301, %s302
      %p306 = pneg %p300
      %p307 = scmp.eq.s32.totalorder %s30, 2
      %p308 = por %p306, %p307
      %p309 = scmp.ne.s32.totalorder %s301, %s304
      %p310 = scmp.eq.s32.totalorder %s30, 0
      %p311 = por %p309, %p310
      %p312 = scmp.ne.s32.totalorder %s301, %s304
      %p313 = scmp.eq.s32.totalorder %s35, 2
      %p314 = por %p312, %p313
      %p315 = scmp.ne.s32.totalorder %s304, %s305
      %p316 = scmp.eq.s32.totalorder %s35, 0
      %p317 = por %p315, %p316
      %p318 = scmp.ne.s32.totalorder %s304, %s305
      %p319 = scmp.eq.s32.totalorder %s36, 2
      %p320 = por %p318, %p319
      %p322 = scmp.ne.s32.totalorder %s305, %s321
      %p323 = scmp.eq.s32.totalorder %s36, 0
      %p324 = por %p322, %p323
      %s325 = ssub.s32 %s30, %s37
      %p326 = scmp.eq.s32.totalorder %s325, 0
      %s328 = sadd.s32 %s327, 1
      %s329 = scalar_select %p326, %s327, %s328
      %p332 = pneg %p326
      %p333 = scmp.eq.s32.totalorder %s30, 2
      %p334 = por %p332, %p333
      %p335 = scmp.ne.s32.totalorder %s327, %s330
      %p336 = scmp.eq.s32.totalorder %s30, 0
      %p337 = por %p335, %p336
      %p338 = scmp.ne.s32.totalorder %s327, %s330
      %p339 = scmp.eq.s32.totalorder %s35, 2
      %p340 = por %p338, %p339
      %p341 = scmp.ne.s32.totalorder %s330, %s331
      %p342 = scmp.eq.s32.totalorder %s35, 0
      %p343 = por %p341, %p342
      %p344 = scmp.ne.s32.totalorder %s330, %s331
      %p345 = scmp.eq.s32.totalorder %s36, 2
      %p346 = por %p344, %p345
      %p348 = scmp.ne.s32.totalorder %s331, %s347
      %p349 = scmp.eq.s32.totalorder %s36, 0
      %p350 = por %p348, %p349
      %s351 = ssub.s32 %s30, %s37
      %p352 = scmp.eq.s32.totalorder %s351, 0
      %s354 = sadd.s32 %s353, 1
      %s355 = scalar_select %p352, %s353, %s354
      %p358 = pneg %p352
      %p359 = scmp.eq.s32.totalorder %s30, 2
      %p360 = por %p358, %p359
      %p361 = scmp.ne.s32.totalorder %s353, %s356
      %p362 = scmp.eq.s32.totalorder %s30, 0
      %p363 = por %p361, %p362
      %p364 = scmp.ne.s32.totalorder %s353, %s356
      %p365 = scmp.eq.s32.totalorder %s35, 2
      %p366 = por %p364, %p365
      %p367 = scmp.ne.s32.totalorder %s356, %s357
      %p368 = scmp.eq.s32.totalorder %s35, 0
      %p369 = por %p367, %p368
      %p370 = scmp.ne.s32.totalorder %s356, %s357
      %p371 = scmp.eq.s32.totalorder %s36, 2
      %p372 = por %p370, %p371
      %p374 = scmp.ne.s32.totalorder %s357, %s373
      %p375 = scmp.eq.s32.totalorder %s36, 0
      %p376 = por %p374, %p375
      %s377 = ssub.s32 %s30, %s37
      %p378 = scmp.eq.s32.totalorder %s377, 0
      %s380 = sadd.s32 %s379, 1
      %s381 = scalar_select %p378, %s379, %s380
      %p384 = pneg %p378
      %p385 = scmp.eq.s32.totalorder %s30, 2
      %p386 = por %p384, %p385
      %p387 = scmp.ne.s32.totalorder %s379, %s382
      %p388 = scmp.eq.s32.totalorder %s30, 0
      %p389 = por %p387, %p388
      %p390 = scmp.ne.s32.totalorder %s379, %s382
      %p391 = scmp.eq.s32.totalorder %s35, 2
      %p392 = por %p390, %p391
      %p393 = scmp.ne.s32.totalorder %s382, %s383
      %p394 = scmp.eq.s32.totalorder %s35, 0
      %p395 = por %p393, %p394
      %p396 = scmp.ne.s32.totalorder %s382, %s383
      %p397 = scmp.eq.s32.totalorder %s36, 2
      %p398 = por %p396, %p397
      %p400 = scmp.ne.s32.totalorder %s383, %s399
      %p401 = scmp.eq.s32.totalorder %s36, 0
      %p402 = por %p400, %p401
      %s403 = ssub.s32 %s30, %s37
      %p404 = scmp.eq.s32.totalorder %s403, 0
      %s406 = sadd.s32 %s405, 1
      %s407 = scalar_select %p404, %s405, %s406
      %p410 = pneg %p404
      %p411 = scmp.eq.s32.totalorder %s30, 2
      %p412 = por %p410, %p411
      %p413 = scmp.ne.s32.totalorder %s405, %s408
      %p414 = scmp.eq.s32.totalorder %s30, 0
      %p415 = por %p413, %p414
      %p416 = scmp.ne.s32.totalorder %s405, %s408
      %p417 = scmp.eq.s32.totalorder %s35, 2
      %p418 = por %p416, %p417
      %p419 = scmp.ne.s32.totalorder %s408, %s409
      %p420 = scmp.eq.s32.totalorder %s35, 0
      %p421 = por %p419, %p420
      %p422 = scmp.ne.s32.totalorder %s408, %s409
      %p423 = scmp.eq.s32.totalorder %s36, 2
      %p424 = por %p422, %p423
      %p426 = scmp.ne.s32.totalorder %s409, %s425
      %p427 = scmp.eq.s32.totalorder %s36, 0
      %p428 = por %p426, %p427
      %s429 = ssub.s32 %s30, %s37
      %p430 = scmp.eq.s32.totalorder %s429, 0
      %s432 = sadd.s32 %s431, 1
      %s433 = scalar_select %p430, %s431, %s432
      %p436 = pneg %p430
      %p437 = scmp.eq.s32.totalorder %s30, 2
      %p438 = por %p436, %p437
      %p439 = scmp.ne.s32.totalorder %s431, %s434
      %p440 = scmp.eq.s32.totalorder %s30, 0
      %p441 = por %p439, %p440
      %p442 = scmp.ne.s32.totalorder %s431, %s434
      %p443 = scmp.eq.s32.totalorder %s35, 2
      %p444 = por %p442, %p443
      %p445 = scmp.ne.s32.totalorder %s434, %s435
      %p446 = scmp.eq.s32.totalorder %s35, 0
      %p447 = por %p445, %p446
      %p448 = scmp.ne.s32.totalorder %s434, %s435
      %p449 = scmp.eq.s32.totalorder %s36, 2
      %p450 = por %p448, %p449
      %p452 = scmp.ne.s32.totalorder %s435, %s451
      %p453 = scmp.eq.s32.totalorder %s36, 0
      %p454 = por %p452, %p453
      %s456 = sadd.s32 %s455, 1
      %p459 = scmp.eq.s32.totalorder %s30, 2
      %p460 = scmp.ne.s32.totalorder %s455, %s457
      %p461 = scmp.eq.s32.totalorder %s30, 0
      %p462 = por %p460, %p461
      %p463 = scmp.ne.s32.totalorder %s455, %s457
      %p464 = scmp.eq.s32.totalorder %s35, 2
      %p465 = por %p463, %p464
      %p466 = scmp.ne.s32.totalorder %s457, %s458
      %p467 = scmp.eq.s32.totalorder %s35, 0
      %p468 = por %p466, %p467
      %p469 = scmp.ne.s32.totalorder %s457, %s458
      %p470 = scmp.eq.s32.totalorder %s36, 2
      %p471 = por %p469, %p470
      %p473 = scmp.ne.s32.totalorder %s458, %s472
      %p474 = scmp.eq.s32.totalorder %s36, 0
      %p475 = por %p473, %p474
      %s477 = sadd.s32 %s476, 1
      %p480 = scmp.eq.s32.totalorder %s30, 2
      %p481 = scmp.ne.s32.totalorder %s476, %s478
      %p482 = scmp.eq.s32.totalorder %s30, 0
      %p483 = por %p481, %p482
      %p484 = scmp.ne.s32.totalorder %s476, %s478
      %p485 = scmp.eq.s32.totalorder %s35, 2
      %p486 = por %p484, %p485
      %p487 = scmp.ne.s32.totalorder %s478, %s479
      %p488 = scmp.eq.s32.totalorder %s35, 0
      %p489 = por %p487, %p488
      %p490 = scmp.ne.s32.totalorder %s478, %s479
      %p491 = scmp.eq.s32.totalorder %s36, 2
      %p492 = por %p490, %p491
      %p494 = scmp.ne.s32.totalorder %s479, %s493
      %p495 = scmp.eq.s32.totalorder %s36, 0
      %p496 = por %p494, %p495
      %s498 = sadd.s32 %s497, 1
      %p501 = scmp.eq.s32.totalorder %s30, 2
      %p502 = scmp.ne.s32.totalorder %s497, %s499
      %p503 = scmp.eq.s32.totalorder %s30, 0
      %p504 = por %p502, %p503
      %p505 = scmp.ne.s32.totalorder %s497, %s499
      %p506 = scmp.eq.s32.totalorder %s35, 2
      %p507 = por %p505, %p506
      %p508 = scmp.ne.s32.totalorder %s499, %s500
      %p509 = scmp.eq.s32.totalorder %s35, 0
      %p510 = por %p508, %p509
      %p511 = scmp.ne.s32.totalorder %s499, %s500
      %p512 = scmp.eq.s32.totalorder %s36, 2
      %p513 = por %p511, %p512
      %p515 = scmp.ne.s32.totalorder %s500, %s514
      %p516 = scmp.eq.s32.totalorder %s36, 0
      %p517 = por %p515, %p516
      %s519 = sadd.s32 %s518, 1
      %p522 = scmp.eq.s32.totalorder %s30, 2
      %p523 = scmp.ne.s32.totalorder %s518, %s520
      %p524 = scmp.eq.s32.totalorder %s30, 0
      %p525 = por %p523, %p524
      %p526 = scmp.ne.s32.totalorder %s518, %s520
      %p527 = scmp.eq.s32.totalorder %s35, 2
      %p528 = por %p526, %p527
      %p529 = scmp.ne.s32.totalorder %s520, %s521
      %p530 = scmp.eq.s32.totalorder %s35, 0
      %p531 = por %p529, %p530
      %p532 = scmp.ne.s32.totalorder %s520, %s521
      %p533 = scmp.eq.s32.totalorder %s36, 2
      %p534 = por %p532, %p533
      %p536 = scmp.ne.s32.totalorder %s521, %s535
      %p537 = scmp.eq.s32.totalorder %s36, 0
      %p538 = por %p536, %p537
      %p539 = scmp.le.s32.totalorder 1, %s30
      %p540 = scmp.lt.s32.totalorder %s30, 4
      %p541 = pnand %p539, %p540
      %p542 = pneg %p541
      // Predicated region
      $region9: #{pi_forward.2} parent=5 // pred_check
        _
      $region10: #{pi_forward.2} parent=5 // pred_check_branch
        %544 = sbr.rel (%p541) target = $region12
      $region11: #{pi_forward.2} parent=5 // pred_region
        %s545 = ssub.s32 %s30, 1
        // Predicated region
        $region13: #{pi_forward.2} parent=11 // pred_check
          %p546 = pneg %p51
        $region14: #{pi_forward.2} parent=11 // pred_check_branch
          %548 = sbr.rel (%p546) target = $region16
        $region15: #{pi_forward.2} parent=11 // pred_region
          _
        $region16: #{pi_forward.2} parent=11 // pred_fallthru
          _
        // Predicated region
        $region17: #{pi_forward.2} parent=11 // pred_check
          %p549 = pneg %p72
        $region18: #{pi_forward.2} parent=11 // pred_check_branch
          %551 = sbr.rel (%p549) target = $region20
        $region19: #{pi_forward.2} parent=11 // pred_region
          _
        $region20: #{pi_forward.2} parent=11 // pred_fallthru
          _
        // Predicated region
        $region21: #{pi_forward.2} parent=11 // pred_check
          %p552 = pneg %p93
        $region22: #{pi_forward.2} parent=11 // pred_check_branch
          %554 = sbr.rel (%p552) target = $region24
        $region23: #{pi_forward.2} parent=11 // pred_region
          %s556 = ssub.s32 256, 256
          %557 = vsyncadd [#allocation4], %s556
          %s558 = sshll.u32 [#allocation3], 4
          %s559 = int_to_ptr.vmem [resolvable:$true] %s558
          %564 = dma.hbm_to_vmem [thread:$0]  %s2, 256, %s559, [#allocation4], 128, 128, 8
        $region24: #{pi_forward.2} parent=11 // pred_fallthru
          _
        // Predicated region
        $region25: #{pi_forward.2} parent=11 // pred_check
          %p565 = pneg %p114
        $region26: #{pi_forward.2} parent=11 // pred_check_branch
          %567 = sbr.rel (%p565) target = $region28
        $region27: #{pi_forward.2} parent=11 // pred_region
          %s569 = ssub.s32 32, 32
          %570 = vsyncadd [#allocation6], %s569
          %s572 = sshll.u32 [#allocation5], 4
          %s573 = int_to_ptr.vmem [resolvable:$true] %s572
          %575 = dma.hbm_to_vmem [thread:$0]  %s3, 32, %s573, [#allocation6]
        $region28: #{pi_forward.2} parent=11 // pred_fallthru
          _
        // Predicated region
        $region29: #{pi_forward.2} parent=11 // pred_check
          %p576 = pneg %p135
        $region30: #{pi_forward.2} parent=11 // pred_check_branch
          %578 = sbr.rel (%p576) target = $region32
        $region31: #{pi_forward.2} parent=11 // pred_region
          _
        $region32: #{pi_forward.2} parent=11 // pred_fallthru
          _
        // Predicated region
        $region33: #{pi_forward.2} parent=11 // pred_check
          %p579 = pneg %p468
        $region34: #{pi_forward.2} parent=11 // pred_check_branch
          %581 = sbr.rel (%p579) target = $region36
        $region35: #{pi_forward.2} parent=11 // pred_region
          %s583 = ssub.s32 32, 32
          %584 = vsyncadd [#allocation6], %s583
          %s586 = sshll.u32 [#allocation19], 4
          %s587 = int_to_ptr.vmem [resolvable:$true] %s586
          %589 = dma.hbm_to_vmem [thread:$0]  %s17, 32, %s587, [#allocation6]
        $region36: #{pi_forward.2} parent=11 // pred_fallthru
          _
        // Predicated region
        $region37: #{pi_forward.2} parent=11 // pred_check
          %p590 = pneg %p489
        $region38: #{pi_forward.2} parent=11 // pred_check_branch
          %592 = sbr.rel (%p590) target = $region40
        $region39: #{pi_forward.2} parent=11 // pred_region
          %s594 = ssub.s32 32, 32
          %595 = vsyncadd [#allocation21], %s594
          %s597 = sshll.u32 [#allocation20], 4
          %s598 = int_to_ptr.vmem [resolvable:$true] %s597
          %600 = dma.hbm_to_vmem [thread:$0]  %s18, 32, %s598, [#allocation21]
        $region40: #{pi_forward.2} parent=11 // pred_fallthru
          _
      $region12: #{pi_forward.2} parent=5 // pred_fallthru
        _
      %p601 = scmp.lt.s32.totalorder %s30, 3
      // Predicated region
      $region41: #{pi_forward.2} parent=5 // pred_check
        %p602 = pneg %p601
      $region42: #{pi_forward.2} parent=5 // pred_check_branch
        %604 = sbr.rel (%p602) target = $region44
      $region43: #{pi_forward.2} parent=5 // pred_region
        // Predicated region
        $region45: #{pi_forward.2} parent=43 // pred_check
          %p605 = pneg %p155
        $region46: #{pi_forward.2} parent=43 // pred_check_branch
          %607 = sbr.rel (%p605) target = $region48
        $region47: #{pi_forward.2} parent=43 // pred_region
          %s608 = sand.u32 %s30, 1
          %s609 = scalar_lea.sflag [#allocation4], %s608
          %s610 = sand.u32 %s145, 1
          %s611 = smul.addr %s610, 768
          %s612 = scalar_lea.vmem [#allocation7], %s611
          %s614 = ssub.s32 12288, 12288
          %615 = vsyncadd %s609, %s614
          %s616 = smul.addr %s30, 192
          %s617 = smul.addr %s616, 64
          %s618 = scalar_lea.hbm %s5, %s617
          %s619 = sshll.u32 %s612, 4
          %s620 = int_to_ptr.vmem [resolvable:$true] %s619
          %625 = dma.hbm_to_vmem [thread:$0]  %s618, 12288, %s620, %s609, 384, 384, 24
        $region48: #{pi_forward.2} parent=43 // pred_fallthru
          _
        // Predicated region
        $region49: #{pi_forward.2} parent=43 // pred_check
          %p626 = pneg %p181
        $region50: #{pi_forward.2} parent=43 // pred_check_branch
          %628 = sbr.rel (%p626) target = $region52
        $region51: #{pi_forward.2} parent=43 // pred_region
          %s629 = sand.u32 %s30, 1
          %s630 = scalar_lea.sflag [#allocation4], %s629
          %s631 = sand.u32 %s171, 1
          %s632 = smul.addr %s631, 6
          %s633 = scalar_lea.vmem [#allocation8], %s632
          %s635 = ssub.s32 96, 96
          %636 = vsyncadd %s630, %s635
          %s637 = smul.addr %s30, 6
          %s638 = smul.addr %s637, 16
          %s639 = scalar_lea.hbm %s6, %s638
          %s641 = sshll.u32 %s633, 4
          %s642 = int_to_ptr.vmem [resolvable:$true] %s641
          %644 = dma.hbm_to_vmem [thread:$0]  %s639, 96, %s642, %s630
        $region52: #{pi_forward.2} parent=43 // pred_fallthru
          _
        // Predicated region
        $region53: #{pi_forward.2} parent=43 // pred_check
          %p645 = pneg %p207
        $region54: #{pi_forward.2} parent=43 // pred_check_branch
          %647 = sbr.rel (%p645) target = $region56
        $region55: #{pi_forward.2} parent=43 // pred_region
          %s648 = sand.u32 %s30, 1
          %s649 = scalar_lea.sflag [#allocation4], %s648
          %s650 = sand.u32 %s197, 1
          %s651 = smul.addr %s650, 256
          %s652 = scalar_lea.vmem [#allocation9], %s651
          %s654 = ssub.s32 4096, 4096
          %655 = vsyncadd %s649, %s654
          %s656 = smul.addr %s30, 64
          %s657 = smul.addr %s656, 64
          %s658 = scalar_lea.hbm %s7, %s657
          %s659 = sshll.u32 %s652, 4
          %s660 = int_to_ptr.vmem [resolvable:$true] %s659
          %665 = dma.hbm_to_vmem [thread:$0]  %s658, 4096, %s660, %s649, 128, 128, 8
        $region56: #{pi_forward.2} parent=43 // pred_fallthru
          _
        // Predicated region
        $region57: #{pi_forward.2} parent=43 // pred_check
          %p666 = pneg %p233
        $region58: #{pi_forward.2} parent=43 // pred_check_branch
          %668 = sbr.rel (%p666) target = $region60
        $region59: #{pi_forward.2} parent=43 // pred_region
          %s669 = sand.u32 %s30, 1
          %s670 = scalar_lea.sflag [#allocation4], %s669
          %s671 = sand.u32 %s223, 1
          %s672 = smul.addr %s671, 2
          %s673 = scalar_lea.vmem [#allocation10], %s672
          %s675 = ssub.s32 32, 32
          %676 = vsyncadd %s670, %s675
          %s677 = smul.addr %s30, 2
          %s678 = smul.addr %s677, 16
          %s679 = scalar_lea.hbm %s8, %s678
          %s681 = sshll.u32 %s673, 4
          %s682 = int_to_ptr.vmem [resolvable:$true] %s681
          %684 = dma.hbm_to_vmem [thread:$0]  %s679, 32, %s682, %s670
        $region60: #{pi_forward.2} parent=43 // pred_fallthru
          _
        // Predicated region
        $region61: #{pi_forward.2} parent=43 // pred_check
          %p685 = pneg %p259
        $region62: #{pi_forward.2} parent=43 // pred_check_branch
          %687 = sbr.rel (%p685) target = $region64
        $region63: #{pi_forward.2} parent=43 // pred_region
          %s688 = sand.u32 %s30, 1
          %s689 = scalar_lea.sflag [#allocation4], %s688
          %s690 = sand.u32 %s249, 1
          %s691 = smul.addr %s690, 2
          %s692 = scalar_lea.vmem [#allocation11], %s691
          %s694 = ssub.s32 32, 32
          %695 = vsyncadd %s689, %s694
          %s696 = smul.addr %s30, 2
          %s697 = smul.addr %s696, 16
          %s698 = scalar_lea.hbm %s9, %s697
          %s700 = sshll.u32 %s692, 4
          %s701 = int_to_ptr.vmem [resolvable:$true] %s700
          %703 = dma.hbm_to_vmem [thread:$0]  %s698, 32, %s701, %s689
        $region64: #{pi_forward.2} parent=43 // pred_fallthru
          _
        // Predicated region
        $region65: #{pi_forward.2} parent=43 // pred_check
          %p704 = pneg %p285
        $region66: #{pi_forward.2} parent=43 // pred_check_branch
          %706 = sbr.rel (%p704) target = $region68
        $region67: #{pi_forward.2} parent=43 // pred_region
          %s707 = sand.u32 %s30, 1
          %s708 = scalar_lea.sflag [#allocation4], %s707
          %s709 = sand.u32 %s275, 1
          %s710 = smul.addr %s709, 2
          %s711 = scalar_lea.vmem [#allocation12], %s710
          %s713 = ssub.s32 32, 32
          %714 = vsyncadd %s708, %s713
          %s715 = smul.addr %s30, 2
          %s716 = smul.addr %s715, 16
          %s717 = scalar_lea.hbm %s10, %s716
          %s719 = sshll.u32 %s711, 4
          %s720 = int_to_ptr.vmem [resolvable:$true] %s719
          %722 = dma.hbm_to_vmem [thread:$0]  %s717, 32, %s720, %s708
        $region68: #{pi_forward.2} parent=43 // pred_fallthru
          _
        // Predicated region
        $region69: #{pi_forward.2} parent=43 // pred_check
          %p723 = pneg %p311
        $region70: #{pi_forward.2} parent=43 // pred_check_branch
          %725 = sbr.rel (%p723) target = $region72
        $region71: #{pi_forward.2} parent=43 // pred_region
          %s726 = sand.u32 %s30, 1
          %s727 = scalar_lea.sflag [#allocation4], %s726
          %s728 = sand.u32 %s301, 1
          %s729 = smul.addr %s728, 256
          %s730 = scalar_lea.vmem [#allocation13], %s729
          %s732 = ssub.s32 4096, 4096
          %733 = vsyncadd %s727, %s732
          %s734 = smul.addr %s30, 64
          %s735 = smul.addr %s734, 64
          %s736 = scalar_lea.hbm %s11, %s735
          %s737 = sshll.u32 %s730, 4
          %s738 = int_to_ptr.vmem [resolvable:$true] %s737
          %743 = dma.hbm_to_vmem [thread:$0]  %s736, 4096, %s738, %s727, 128, 128, 8
        $region72: #{pi_forward.2} parent=43 // pred_fallthru
          _
        // Predicated region
        $region73: #{pi_forward.2} parent=43 // pred_check
          %p744 = pneg %p337
        $region74: #{pi_forward.2} parent=43 // pred_check_branch
          %746 = sbr.rel (%p744) target = $region76
        $region75: #{pi_forward.2} parent=43 // pred_region
          %s747 = sand.u32 %s30, 1
          %s748 = scalar_lea.sflag [#allocation4], %s747
          %s749 = sand.u32 %s327, 1
          %s750 = smul.addr %s749, 2
          %s751 = scalar_lea.vmem [#allocation14], %s750
          %s753 = ssub.s32 32, 32
          %754 = vsyncadd %s748, %s753
          %s755 = smul.addr %s30, 2
          %s756 = smul.addr %s755, 16
          %s757 = scalar_lea.hbm %s12, %s756
          %s759 = sshll.u32 %s751, 4
          %s760 = int_to_ptr.vmem [resolvable:$true] %s759
          %762 = dma.hbm_to_vmem [thread:$0]  %s757, 32, %s760, %s748
        $region76: #{pi_forward.2} parent=43 // pred_fallthru
          _
        // Predicated region
        $region77: #{pi_forward.2} parent=43 // pred_check
          %p763 = pneg %p363
        $region78: #{pi_forward.2} parent=43 // pred_check_branch
          %765 = sbr.rel (%p763) target = $region80
        $region79: #{pi_forward.2} parent=43 // pred_region
          %s766 = sand.u32 %s30, 1
          %s767 = scalar_lea.sflag [#allocation4], %s766
          %s768 = sand.u32 %s353, 1
          %s769 = smul.addr %s768, 256
          %s770 = scalar_lea.vmem [#allocation15], %s769
          %s772 = ssub.s32 4096, 4096
          %773 = vsyncadd %s767, %s772
          %s774 = smul.addr %s30, 64
          %s775 = smul.addr %s774, 64
          %s776 = scalar_lea.hbm %s13, %s775
          %s777 = sshll.u32 %s770, 4
          %s778 = int_to_ptr.vmem [resolvable:$true] %s777
          %783 = dma.hbm_to_vmem [thread:$0]  %s776, 4096, %s778, %s767, 128, 128, 8
        $region80: #{pi_forward.2} parent=43 // pred_fallthru
          _
        // Predicated region
        $region81: #{pi_forward.2} parent=43 // pred_check
          %p784 = pneg %p389
        $region82: #{pi_forward.2} parent=43 // pred_check_branch
          %786 = sbr.rel (%p784) target = $region84
        $region83: #{pi_forward.2} parent=43 // pred_region
          %s787 = sand.u32 %s30, 1
          %s788 = scalar_lea.sflag [#allocation4], %s787
          %s789 = sand.u32 %s379, 1
          %s790 = smul.addr %s789, 2
          %s791 = scalar_lea.vmem [#allocation16], %s790
          %s793 = ssub.s32 32, 32
          %794 = vsyncadd %s788, %s793
          %s795 = smul.addr %s30, 2
          %s796 = smul.addr %s795, 16
          %s797 = scalar_lea.hbm %s14, %s796
          %s799 = sshll.u32 %s791, 4
          %s800 = int_to_ptr.vmem [resolvable:$true] %s799
          %802 = dma.hbm_to_vmem [thread:$0]  %s797, 32, %s800, %s788
        $region84: #{pi_forward.2} parent=43 // pred_fallthru
          _
        // Predicated region
        $region85: #{pi_forward.2} parent=43 // pred_check
          %p803 = pneg %p415
        $region86: #{pi_forward.2} parent=43 // pred_check_branch
          %805 = sbr.rel (%p803) target = $region88
        $region87: #{pi_forward.2} parent=43 // pred_region
          %s806 = sand.u32 %s30, 1
          %s807 = scalar_lea.sflag [#allocation4], %s806
          %s808 = sand.u32 %s405, 1
          %s809 = smul.addr %s808, 2
          %s810 = scalar_lea.vmem [#allocation17], %s809
          %s812 = ssub.s32 32, 32
          %813 = vsyncadd %s807, %s812
          %s814 = smul.addr %s30, 2
          %s815 = smul.addr %s814, 16
          %s816 = scalar_lea.hbm %s15, %s815
          %s818 = sshll.u32 %s810, 4
          %s819 = int_to_ptr.vmem [resolvable:$true] %s818
          %821 = dma.hbm_to_vmem [thread:$0]  %s816, 32, %s819, %s807
        $region88: #{pi_forward.2} parent=43 // pred_fallthru
          _
        // Predicated region
        $region89: #{pi_forward.2} parent=43 // pred_check
          %p822 = pneg %p441
        $region90: #{pi_forward.2} parent=43 // pred_check_branch
          %824 = sbr.rel (%p822) target = $region92
        $region91: #{pi_forward.2} parent=43 // pred_region
          %s825 = sand.u32 %s30, 1
          %s826 = scalar_lea.sflag [#allocation4], %s825
          %s827 = sand.u32 %s431, 1
          %s828 = smul.addr %s827, 2
          %s829 = scalar_lea.vmem [#allocation18], %s828
          %s831 = ssub.s32 32, 32
          %832 = vsyncadd %s826, %s831
          %s833 = smul.addr %s30, 2
          %s834 = smul.addr %s833, 16
          %s835 = scalar_lea.hbm %s16, %s834
          %s837 = sshll.u32 %s829, 4
          %s838 = int_to_ptr.vmem [resolvable:$true] %s837
          %840 = dma.hbm_to_vmem [thread:$0]  %s835, 32, %s838, %s826
        $region92: #{pi_forward.2} parent=43 // pred_fallthru
          _
      $region44: #{pi_forward.2} parent=5 // pred_fallthru
        _
      %p841 = scmp.le.s32.totalorder 1, %s30
      %p842 = scmp.lt.s32.totalorder %s30, 4
      %p843 = pnand %p841, %p842
      %p844 = pneg %p843
      // Predicated region
      $region93: #{pi_forward.2} parent=5 // pred_check
        _
      $region94: #{pi_forward.2} parent=5 // pred_check_branch
        %846 = sbr.rel (%p843) target = $region96
      $region95: #{pi_forward.2} parent=5 // pred_region
        %s847 = ssub.s32 %s30, 1
        // Predicated region
        $region97: #{pi_forward.2} parent=95 // pred_check
          %p848 = pneg %p93
        $region98: #{pi_forward.2} parent=95 // pred_check_branch
          %850 = sbr.rel (%p848) target = $region100
        $region99: #{pi_forward.2} parent=95 // pred_region
          %851 = dma.done [#allocation4], 256
        $region100: #{pi_forward.2} parent=95 // pred_fallthru
          _
        // Predicated region
        $region101: #{pi_forward.2} parent=95 // pred_check
          %p852 = pneg %p114
        $region102: #{pi_forward.2} parent=95 // pred_check_branch
          %854 = sbr.rel (%p852) target = $region104
        $region103: #{pi_forward.2} parent=95 // pred_region
          %855 = dma.done [#allocation6], 32
        $region104: #{pi_forward.2} parent=95 // pred_fallthru
          _
        %s856 = sand.u32 %s35, 1
        %s857 = scalar_lea.sflag [#allocation4], %s856
        %s858 = sand.u32 %s148, 1
        %s859 = smul.addr %s858, 768
        %s860 = scalar_lea.vmem [#allocation7], %s859
        // Predicated region
        $region105: #{pi_forward.2} parent=95 // pred_check
          %p861 = pneg %p161
        $region106: #{pi_forward.2} parent=95 // pred_check_branch
          %863 = sbr.rel (%p861) target = $region108
        $region107: #{pi_forward.2} parent=95 // pred_region
          %864 = dma.done %s857, 12288
        $region108: #{pi_forward.2} parent=95 // pred_fallthru
          _
        %s865 = sand.u32 %s35, 1
        %s866 = scalar_lea.sflag [#allocation4], %s865
        %s867 = sand.u32 %s174, 1
        %s868 = smul.addr %s867, 6
        %s869 = scalar_lea.vmem [#allocation8], %s868
        // Predicated region
        $region109: #{pi_forward.2} parent=95 // pred_check
          %p870 = pneg %p187
        $region110: #{pi_forward.2} parent=95 // pred_check_branch
          %872 = sbr.rel (%p870) target = $region112
        $region111: #{pi_forward.2} parent=95 // pred_region
          %873 = dma.done %s866, 96
        $region112: #{pi_forward.2} parent=95 // pred_fallthru
          _
        %s874 = sand.u32 %s35, 1
        %s875 = scalar_lea.sflag [#allocation4], %s874
        %s876 = sand.u32 %s200, 1
        %s877 = smul.addr %s876, 256
        %s878 = scalar_lea.vmem [#allocation9], %s877
        // Predicated region
        $region113: #{pi_forward.2} parent=95 // pred_check
          %p879 = pneg %p213
        $region114: #{pi_forward.2} parent=95 // pred_check_branch
          %881 = sbr.rel (%p879) target = $region116
        $region115: #{pi_forward.2} parent=95 // pred_region
          %882 = dma.done %s875, 4096
        $region116: #{pi_forward.2} parent=95 // pred_fallthru
          _
        %s883 = sand.u32 %s35, 1
        %s884 = scalar_lea.sflag [#allocation4], %s883
        %s885 = sand.u32 %s226, 1
        %s886 = smul.addr %s885, 2
        %s887 = scalar_lea.vmem [#allocation10], %s886
        // Predicated region
        $region117: #{pi_forward.2} parent=95 // pred_check
          %p888 = pneg %p239
        $region118: #{pi_forward.2} parent=95 // pred_check_branch
          %890 = sbr.rel (%p888) target = $region120
        $region119: #{pi_forward.2} parent=95 // pred_region
          %891 = dma.done %s884, 32
        $region120: #{pi_forward.2} parent=95 // pred_fallthru
          _
        %s892 = sand.u32 %s35, 1
        %s893 = scalar_lea.sflag [#allocation4], %s892
        %s894 = sand.u32 %s252, 1
        %s895 = smul.addr %s894, 2
        %s896 = scalar_lea.vmem [#allocation11], %s895
        // Predicated region
        $region121: #{pi_forward.2} parent=95 // pred_check
          %p897 = pneg %p265
        $region122: #{pi_forward.2} parent=95 // pred_check_branch
          %899 = sbr.rel (%p897) target = $region124
        $region123: #{pi_forward.2} parent=95 // pred_region
          %900 = dma.done %s893, 32
        $region124: #{pi_forward.2} parent=95 // pred_fallthru
          _
        %s901 = sand.u32 %s35, 1
        %s902 = scalar_lea.sflag [#allocation4], %s901
        %s903 = sand.u32 %s278, 1
        %s904 = smul.addr %s903, 2
        %s905 = scalar_lea.vmem [#allocation12], %s904
        // Predicated region
        $region125: #{pi_forward.2} parent=95 // pred_check
          %p906 = pneg %p291
        $region126: #{pi_forward.2} parent=95 // pred_check_branch
          %908 = sbr.rel (%p906) target = $region128
        $region127: #{pi_forward.2} parent=95 // pred_region
          %909 = dma.done %s902, 32
        $region128: #{pi_forward.2} parent=95 // pred_fallthru
          _
        %s910 = sand.u32 %s35, 1
        %s911 = scalar_lea.sflag [#allocation4], %s910
        %s912 = sand.u32 %s304, 1
        %s913 = smul.addr %s912, 256
        %s914 = scalar_lea.vmem [#allocation13], %s913
        // Predicated region
        $region129: #{pi_forward.2} parent=95 // pred_check
          %p915 = pneg %p317
        $region130: #{pi_forward.2} parent=95 // pred_check_branch
          %917 = sbr.rel (%p915) target = $region132
        $region131: #{pi_forward.2} parent=95 // pred_region
          %918 = dma.done %s911, 4096
        $region132: #{pi_forward.2} parent=95 // pred_fallthru
          _
        %s919 = sand.u32 %s35, 1
        %s920 = scalar_lea.sflag [#allocation4], %s919
        %s921 = sand.u32 %s330, 1
        %s922 = smul.addr %s921, 2
        %s923 = scalar_lea.vmem [#allocation14], %s922
        // Predicated region
        $region133: #{pi_forward.2} parent=95 // pred_check
          %p924 = pneg %p343
        $region134: #{pi_forward.2} parent=95 // pred_check_branch
          %926 = sbr.rel (%p924) target = $region136
        $region135: #{pi_forward.2} parent=95 // pred_region
          %927 = dma.done %s920, 32
        $region136: #{pi_forward.2} parent=95 // pred_fallthru
          _
        %s928 = sand.u32 %s35, 1
        %s929 = scalar_lea.sflag [#allocation4], %s928
        %s930 = sand.u32 %s356, 1
        %s931 = smul.addr %s930, 256
        %s932 = scalar_lea.vmem [#allocation15], %s931
        // Predicated region
        $region137: #{pi_forward.2} parent=95 // pred_check
          %p933 = pneg %p369
        $region138: #{pi_forward.2} parent=95 // pred_check_branch
          %935 = sbr.rel (%p933) target = $region140
        $region139: #{pi_forward.2} parent=95 // pred_region
          %936 = dma.done %s929, 4096
        $region140: #{pi_forward.2} parent=95 // pred_fallthru
          _
        %s937 = sand.u32 %s35, 1
        %s938 = scalar_lea.sflag [#allocation4], %s937
        %s939 = sand.u32 %s382, 1
        %s940 = smul.addr %s939, 2
        %s941 = scalar_lea.vmem [#allocation16], %s940
        // Predicated region
        $region141: #{pi_forward.2} parent=95 // pred_check
          %p942 = pneg %p395
        $region142: #{pi_forward.2} parent=95 // pred_check_branch
          %944 = sbr.rel (%p942) target = $region144
        $region143: #{pi_forward.2} parent=95 // pred_region
          %945 = dma.done %s938, 32
        $region144: #{pi_forward.2} parent=95 // pred_fallthru
          _
        %s946 = sand.u32 %s35, 1
        %s947 = scalar_lea.sflag [#allocation4], %s946
        %s948 = sand.u32 %s408, 1
        %s949 = smul.addr %s948, 2
        %s950 = scalar_lea.vmem [#allocation17], %s949
        // Predicated region
        $region145: #{pi_forward.2} parent=95 // pred_check
          %p951 = pneg %p421
        $region146: #{pi_forward.2} parent=95 // pred_check_branch
          %953 = sbr.rel (%p951) target = $region148
        $region147: #{pi_forward.2} parent=95 // pred_region
          %954 = dma.done %s947, 32
        $region148: #{pi_forward.2} parent=95 // pred_fallthru
          _
        %s955 = sand.u32 %s35, 1
        %s956 = scalar_lea.sflag [#allocation4], %s955
        %s957 = sand.u32 %s434, 1
        %s958 = smul.addr %s957, 2
        %s959 = scalar_lea.vmem [#allocation18], %s958
        // Predicated region
        $region149: #{pi_forward.2} parent=95 // pred_check
          %p960 = pneg %p447
        $region150: #{pi_forward.2} parent=95 // pred_check_branch
          %962 = sbr.rel (%p960) target = $region152
        $region151: #{pi_forward.2} parent=95 // pred_region
          %963 = dma.done %s956, 32
        $region152: #{pi_forward.2} parent=95 // pred_fallthru
          _
        // Predicated region
        $region153: #{pi_forward.2} parent=95 // pred_check
          %p964 = pneg %p468
        $region154: #{pi_forward.2} parent=95 // pred_check_branch
          %966 = sbr.rel (%p964) target = $region156
        $region155: #{pi_forward.2} parent=95 // pred_region
          %967 = dma.done [#allocation6], 32
        $region156: #{pi_forward.2} parent=95 // pred_fallthru
          _
        // Predicated region
        $region157: #{pi_forward.2} parent=95 // pred_check
          %p968 = pneg %p489
        $region158: #{pi_forward.2} parent=95 // pred_check_branch
          %970 = sbr.rel (%p968) target = $region160
        $region159: #{pi_forward.2} parent=95 // pred_region
          %971 = dma.done [#allocation21], 32
        $region160: #{pi_forward.2} parent=95 // pred_fallthru
          _
        %p972 = pneg %p51
        %p973 = pneg %p48
        %p974 = pneg %p72
        %p975 = pneg %p69
        %p976 = pneg %p93
        %p977 = pneg %p90
        %p978 = pneg %p114
        %p979 = pneg %p111
        %p980 = pneg %p135
        %p981 = pneg %p132
        %s982 = sand.u32 %s35, 1
        %s983 = scalar_lea.sflag [#allocation4], %s982
        %s984 = sand.u32 %s148, 1
        %s985 = smul.addr %s984, 768
        %s986 = scalar_lea.vmem [#allocation7], %s985
        %p987 = pneg %p161
        %p988 = pneg %p158
        %s989 = sand.u32 %s35, 1
        %s990 = scalar_lea.sflag [#allocation4], %s989
        %s991 = sand.u32 %s174, 1
        %s992 = smul.addr %s991, 6
        %s993 = scalar_lea.vmem [#allocation8], %s992
        %p994 = pneg %p187
        %p995 = pneg %p184
        %s996 = sand.u32 %s35, 1
        %s997 = scalar_lea.sflag [#allocation4], %s996
        %s998 = sand.u32 %s200, 1
        %s999 = smul.addr %s998, 256
        %s1000 = scalar_lea.vmem [#allocation9], %s999
        %p1001 = pneg %p213
        %p1002 = pneg %p210
        %s1003 = sand.u32 %s35, 1
        %s1004 = scalar_lea.sflag [#allocation4], %s1003
        %s1005 = sand.u32 %s226, 1
        %s1006 = smul.addr %s1005, 2
        %s1007 = scalar_lea.vmem [#allocation10], %s1006
        %p1008 = pneg %p239
        %p1009 = pneg %p236
        %s1010 = sand.u32 %s35, 1
        %s1011 = scalar_lea.sflag [#allocation4], %s1010
        %s1012 = sand.u32 %s252, 1
        %s1013 = smul.addr %s1012, 2
        %s1014 = scalar_lea.vmem [#allocation11], %s1013
        %p1015 = pneg %p265
        %p1016 = pneg %p262
        %s1017 = sand.u32 %s35, 1
        %s1018 = scalar_lea.sflag [#allocation4], %s1017
        %s1019 = sand.u32 %s278, 1
        %s1020 = smul.addr %s1019, 2
        %s1021 = scalar_lea.vmem [#allocation12], %s1020
        %p1022 = pneg %p291
        %p1023 = pneg %p288
        %s1024 = sand.u32 %s35, 1
        %s1025 = scalar_lea.sflag [#allocation4], %s1024
        %s1026 = sand.u32 %s304, 1
        %s1027 = smul.addr %s1026, 256
        %s1028 = scalar_lea.vmem [#allocation13], %s1027
        %p1029 = pneg %p317
        %p1030 = pneg %p314
        %s1031 = sand.u32 %s35, 1
        %s1032 = scalar_lea.sflag [#allocation4], %s1031
        %s1033 = sand.u32 %s330, 1
        %s1034 = smul.addr %s1033, 2
        %s1035 = scalar_lea.vmem [#allocation14], %s1034
        %p1036 = pneg %p343
        %p1037 = pneg %p340
        %s1038 = sand.u32 %s35, 1
        %s1039 = scalar_lea.sflag [#allocation4], %s1038
        %s1040 = sand.u32 %s356, 1
        %s1041 = smul.addr %s1040, 256
        %s1042 = scalar_lea.vmem [#allocation15], %s1041
        %p1043 = pneg %p369
        %p1044 = pneg %p366
        %s1045 = sand.u32 %s35, 1
        %s1046 = scalar_lea.sflag [#allocation4], %s1045
        %s1047 = sand.u32 %s382, 1
        %s1048 = smul.addr %s1047, 2
        %s1049 = scalar_lea.vmem [#allocation16], %s1048
        %p1050 = pneg %p395
        %p1051 = pneg %p392
        %s1052 = sand.u32 %s35, 1
        %s1053 = scalar_lea.sflag [#allocation4], %s1052
        %s1054 = sand.u32 %s408, 1
        %s1055 = smul.addr %s1054, 2
        %s1056 = scalar_lea.vmem [#allocation17], %s1055
        %p1057 = pneg %p421
        %p1058 = pneg %p418
        %s1059 = sand.u32 %s35, 1
        %s1060 = scalar_lea.sflag [#allocation4], %s1059
        %s1061 = sand.u32 %s434, 1
        %s1062 = smul.addr %s1061, 2
        %s1063 = scalar_lea.vmem [#allocation18], %s1062
        %p1064 = pneg %p447
        %p1065 = pneg %p444
        %p1066 = pneg %p468
        %p1067 = pneg %p465
        %p1068 = pneg %p489
        %p1069 = pneg %p486
        %p1070 = pneg %p510
        %p1071 = pneg %p507
        %p1072 = pneg %p531
        %p1073 = pneg %p528
        %p1075 = scmp.eq.s32.totalorder %s35, 0
        // Predicated region
        $region161: #{pi_forward.2} parent=95 // pred_check
          %p1076 = pneg %p1075
        $region162: #{pi_forward.2} parent=95 // pred_check_branch
          %1078 = sbr.rel (%p1076) target = $region164
        $region163: #{pi_forward.2} parent=95 // pred_region
          %v1079 = vld [vmem:[%s0] sm:$0xff]
          %v1080 = vld [vmem:[%s0 + $0x8] sm:$0xff]
          %v1081 = vld [vmem:[%s0 + $0x10] sm:$0xff]
          %v1082 = vpack.c.bf16 %v1080, %v1079
          %v1083 = vpack.c.bf16 %v1081, %v1081
          %v1084 = vld [vmem:[#allocation3] sm:$0xff]
          %v1085 = vld [vmem:[#allocation3 + $0x8] sm:$0xff]
          %v1086 = vld [vmem:[#allocation5] sm:$0x3]
          %v1088 = vlaneseq
          %v1089 = vshrl.u32 %v1088, 7
          %v1090 = vsub.s32 0, %v1089
          %v1091 = vrot.slane %v1086, %v1090
          %v1092 = vlaneseq
          %v1093 = vshrl.u32 %v1092, 7
          %v1094 = vsub.s32 1, %v1093
          %v1095 = vrot.slane %v1086, %v1094
          %v1100 = vunpack.c.l.b16 %v1084
          %v1101 = vunpack.c.h.b16 %v1084
          %v1102 = vunpack.c.l.b16 %v1085
          %v1103 = vunpack.c.h.b16 %v1085
          %v1104 = vpack.c.b16 %v1102, %v1100
          %v1105 = vpack.c.b16 %v1103, %v1101
          %vm1108 = vcmask 130048
          %v1110 = vsel %vm1108, %v1082, 0
          %v1113 = vsel %vm1108, %v1083, 0
          %1115 = vmatprep.subr.bf16.mxu0 0
          %1116 = vmatpush1.bf16.msra.mxu0 0
          %1117 = vmatprep.subr.bf16.mxu0 0
          %1118 = vmatpush1.bf16.msra.mxu0 0
          %1119 = vmatprep.subr.bf16.mxu0 0
          %1120 = vmatpush1.bf16.msra.mxu0 0
          %1121 = vmatprep.subr.bf16.mxu0 0
          %1122 = vmatpush1.bf16.msra.mxu0 0
          %1123 = vmatprep.subr.bf16.mxu0 0
          %1124 = vmatpush1.bf16.msra.mxu0 0
          %1125 = vmatprep.subr.bf16.mxu0 0
          %1126 = vmatpush1.bf16.msra.mxu0 0
          %1127 = vmatprep.subr.bf16.mxu0 0
          %1128 = vmatpush1.bf16.msra.mxu0 0
          %1129 = vmatprep.subr.bf16.mxu0 %v1105
          %1130 = vmatpush1.bf16.msra.mxu0 %v1104
          %1131 = vmatprep.subr.bf16.mxu0 0
          %1132 = vmatpush2.bf16.msra.mxu0 0
          %1133 = vmatprep.subr.bf16.mxu0 0
          %1134 = vmatpush2.bf16.msra.mxu0 0
          %1135 = vmatprep.subr.bf16.mxu0 0
          %1136 = vmatpush2.bf16.msra.mxu0 0
          %1137 = vmatprep.subr.bf16.mxu0 0
          %1138 = vmatpush2.bf16.msra.mxu0 0
          %1139 = vmatprep.subr.bf16.mxu0 0
          %1140 = vmatpush2.bf16.msra.mxu0 0
          %1141 = vmatprep.subr.bf16.mxu0 0
          %1142 = vmatpush2.bf16.msra.mxu0 0
          %1143 = vmatprep.subr.bf16.mxu0 0
          %1144 = vmatpush2.bf16.msra.mxu0 0
          %1145 = vmatprep.subr.bf16.mxu0 0
          %1146 = vmatpush2.bf16.msra.mxu0 0
          %1147 = vmatprep.mubr.bf16.mxu0 0
          %1148 = vmatmul.mubr.bf16.gmra.mxu0 %v1110
          %v1149 = vpop.f32.mrf.mxu0
          %v1150 = vadd.f32 %v1091, %v1149
          %v1151 = vpop.f32.mrf.mxu0
          %v1152 = vadd.f32 %v1095, %v1151
          %v1153 = vpop.f32.mrf.mxu0
          %v1154 = vadd.f32 %v1091, %v1153
          %v1155 = vpop.f32.mrf.mxu0
          %v1156 = vadd.f32 %v1095, %v1155
          %1157 = vmatprep.mubr.bf16.mxu0 0
          %1158 = vmatmul.mubr.bf16.gmra.mxu0 %v1113
          %v1159 = vpop.f32.mrf.mxu0
          %v1160 = vadd.f32 %v1091, %v1159
          %v1161 = vpop.f32.mrf.mxu0
          %v1162 = vadd.f32 %v1095, %v1161
          %v1163 = vpop.f32.mrf.mxu0
          %v1164 = vpop.f32.mrf.mxu0
          %1165 = vdwg.mxu0
          %v1166 = vld [vmem:[%s1] sm:$0xff]
          %v1167 = vld [vmem:[%s1 + $0x8] sm:$0xff]
          %v1168 = vld [vmem:[%s1 + $0x10] sm:$0xff]
          %v1169 = vld [vmem:[%s1 + $0x18] sm:$0xff]
          %v1170 = vld [vmem:[%s1 + $0x20] sm:$0xff]
          %v1171 = vld [vmem:[%s1 + $0x28] sm:$0xff]
          %v1172 = vadd.f32 %v1150, %v1166
          %v1173 = vadd.f32 %v1152, %v1167
          %v1174 = vadd.f32 %v1154, %v1168
          %v1175 = vadd.f32 %v1156, %v1169
          %v1176 = vadd.f32 %v1160, %v1170
          %v1177 = vadd.f32 %v1162, %v1171
          %1178 = vst [vmem:[#allocation2] sm:$0xff] %v1172
          %1179 = vst [vmem:[#allocation2 + $0x8] sm:$0xff] %v1173
          %1180 = vst [vmem:[#allocation2 + $0x10] sm:$0xff] %v1174
          %1181 = vst [vmem:[#allocation2 + $0x18] sm:$0xff] %v1175
          %1182 = vst [vmem:[%s20] sm:$0xff] %v1176
          %1183 = vst [vmem:[%s20 + $0x8] sm:$0xff] %v1177
        $region164: #{pi_forward.2} parent=95 // pred_fallthru
          _
        %v1184 = vld [vmem:[#allocation2] sm:$0xff]
        %v1185 = vld [vmem:[#allocation2 + $0x8] sm:$0xff]
        %v1186 = vld [vmem:[#allocation2 + $0x10] sm:$0xff]
        %v1187 = vld [vmem:[#allocation2 + $0x18] sm:$0xff]
        %v1188 = vpack.c.bf16 %v1186, %v1184
        %v1189 = vpack.c.bf16 %v1187, %v1185
        %v1190 = vld [vmem:[%s860] sm:$0xff]
        %v1191 = vld [vmem:[%s860 + $0x8] sm:$0xff]
        %v1192 = vld [vmem:[%s860 + $0x10] sm:$0xff]
        %v1193 = vld [vmem:[%s860 + $0x18] sm:$0xff]
        %v1194 = vld [vmem:[%s860 + $0x20] sm:$0xff]
        %v1195 = vld [vmem:[%s860 + $0x28] sm:$0xff]
        %v1196 = vld [vmem:[%s860 + $0x30] sm:$0xff]
        %v1197 = vld [vmem:[%s860 + $0x38] sm:$0xff]
        %v1198 = vld [vmem:[%s860 + $0x40] sm:$0xff]
        %v1199 = vld [vmem:[%s860 + $0x48] sm:$0xff]
        %v1200 = vld [vmem:[%s860 + $0x50] sm:$0xff]
        %v1201 = vld [vmem:[%s860 + $0x58] sm:$0xff]
        %v1202 = vld [vmem:[%s860 + $0x60] sm:$0xff]
        %v1203 = vld [vmem:[%s860 + $0x68] sm:$0xff]
        %v1204 = vld [vmem:[%s860 + $0x70] sm:$0xff]
        %v1205 = vld [vmem:[%s860 + $0x78] sm:$0xff]
        %v1206 = vld [vmem:[%s860 + $0x80] sm:$0xff]
        %v1207 = vld [vmem:[%s860 + $0x88] sm:$0xff]
        %v1208 = vld [vmem:[%s860 + $0x90] sm:$0xff]
        %v1209 = vld [vmem:[%s860 + $0x98] sm:$0xff]
        %v1210 = vld [vmem:[%s860 + $0xa0] sm:$0xff]
        %v1211 = vld [vmem:[%s860 + $0xa8] sm:$0xff]
        %v1212 = vld [vmem:[%s860 + $0xb0] sm:$0xff]
        %v1213 = vld [vmem:[%s860 + $0xb8] sm:$0xff]
        %v1214 = vld [vmem:[%s860 + $0xc0] sm:$0xff]
        %v1215 = vld [vmem:[%s860 + $0xc8] sm:$0xff]
        %v1216 = vld [vmem:[%s860 + $0xd0] sm:$0xff]
        %v1217 = vld [vmem:[%s860 + $0xd8] sm:$0xff]
        %v1218 = vld [vmem:[%s860 + $0xe0] sm:$0xff]
        %v1219 = vld [vmem:[%s860 + $0xe8] sm:$0xff]
        %v1220 = vld [vmem:[%s860 + $0xf0] sm:$0xff]
        %v1221 = vld [vmem:[%s860 + $0xf8] sm:$0xff]
        %v1222 = vld [vmem:[%s860 + $0x100] sm:$0xff]
        %v1223 = vld [vmem:[%s860 + $0x108] sm:$0xff]
        %v1224 = vld [vmem:[%s860 + $0x110] sm:$0xff]
        %v1225 = vld [vmem:[%s860 + $0x118] sm:$0xff]
        %v1226 = vld [vmem:[%s860 + $0x120] sm:$0xff]
        %v1227 = vld [vmem:[%s860 + $0x128] sm:$0xff]
        %v1228 = vld [vmem:[%s860 + $0x130] sm:$0xff]
        %v1229 = vld [vmem:[%s860 + $0x138] sm:$0xff]
        %v1230 = vld [vmem:[%s860 + $0x140] sm:$0xff]
        %v1231 = vld [vmem:[%s860 + $0x148] sm:$0xff]
        %v1232 = vld [vmem:[%s860 + $0x150] sm:$0xff]
        %v1233 = vld [vmem:[%s860 + $0x158] sm:$0xff]
        %v1234 = vld [vmem:[%s860 + $0x160] sm:$0xff]
        %v1235 = vld [vmem:[%s860 + $0x168] sm:$0xff]
        %v1236 = vld [vmem:[%s860 + $0x170] sm:$0xff]
        %v1237 = vld [vmem:[%s860 + $0x178] sm:$0xff]
        %v1238 = vld [vmem:[%s860 + $0x180] sm:$0xff]
        %v1239 = vld [vmem:[%s860 + $0x188] sm:$0xff]
        %v1240 = vld [vmem:[%s860 + $0x190] sm:$0xff]
        %v1241 = vld [vmem:[%s860 + $0x198] sm:$0xff]
        %v1242 = vld [vmem:[%s860 + $0x1a0] sm:$0xff]
        %v1243 = vld [vmem:[%s860 + $0x1a8] sm:$0xff]
        %v1244 = vld [vmem:[%s860 + $0x1b0] sm:$0xff]
        %v1245 = vld [vmem:[%s860 + $0x1b8] sm:$0xff]
        %v1246 = vld [vmem:[%s860 + $0x1c0] sm:$0xff]
        %v1247 = vld [vmem:[%s860 + $0x1c8] sm:$0xff]
        %v1248 = vld [vmem:[%s860 + $0x1d0] sm:$0xff]
        %v1249 = vld [vmem:[%s860 + $0x1d8] sm:$0xff]
        %v1250 = vld [vmem:[%s860 + $0x1e0] sm:$0xff]
        %v1251 = vld [vmem:[%s860 + $0x1e8] sm:$0xff]
        %v1252 = vld [vmem:[%s860 + $0x1f0] sm:$0xff]
        %v1253 = vld [vmem:[%s860 + $0x1f8] sm:$0xff]
        %v1254 = vld [vmem:[%s860 + $0x200] sm:$0xff]
        %v1255 = vld [vmem:[%s860 + $0x208] sm:$0xff]
        %v1256 = vld [vmem:[%s860 + $0x210] sm:$0xff]
        %v1257 = vld [vmem:[%s860 + $0x218] sm:$0xff]
        %v1258 = vld [vmem:[%s860 + $0x220] sm:$0xff]
        %v1259 = vld [vmem:[%s860 + $0x228] sm:$0xff]
        %v1260 = vld [vmem:[%s860 + $0x230] sm:$0xff]
        %v1261 = vld [vmem:[%s860 + $0x238] sm:$0xff]
        %v1262 = vld [vmem:[%s860 + $0x240] sm:$0xff]
        %v1263 = vld [vmem:[%s860 + $0x248] sm:$0xff]
        %v1264 = vld [vmem:[%s860 + $0x250] sm:$0xff]
        %v1265 = vld [vmem:[%s860 + $0x258] sm:$0xff]
        %v1266 = vld [vmem:[%s860 + $0x260] sm:$0xff]
        %v1267 = vld [vmem:[%s860 + $0x268] sm:$0xff]
        %v1268 = vld [vmem:[%s860 + $0x270] sm:$0xff]
        %v1269 = vld [vmem:[%s860 + $0x278] sm:$0xff]
        %v1270 = vld [vmem:[%s860 + $0x280] sm:$0xff]
        %v1271 = vld [vmem:[%s860 + $0x288] sm:$0xff]
        %v1272 = vld [vmem:[%s860 + $0x290] sm:$0xff]
        %v1273 = vld [vmem:[%s860 + $0x298] sm:$0xff]
        %v1274 = vld [vmem:[%s860 + $0x2a0] sm:$0xff]
        %v1275 = vld [vmem:[%s860 + $0x2a8] sm:$0xff]
        %v1276 = vld [vmem:[%s860 + $0x2b0] sm:$0xff]
        %v1277 = vld [vmem:[%s860 + $0x2b8] sm:$0xff]
        %v1278 = vld [vmem:[%s860 + $0x2c0] sm:$0xff]
        %v1279 = vld [vmem:[%s860 + $0x2c8] sm:$0xff]
        %v1280 = vld [vmem:[%s860 + $0x2d0] sm:$0xff]
        %v1281 = vld [vmem:[%s860 + $0x2d8] sm:$0xff]
        %v1282 = vld [vmem:[%s860 + $0x2e0] sm:$0xff]
        %v1283 = vld [vmem:[%s860 + $0x2e8] sm:$0xff]
        %v1284 = vld [vmem:[%s860 + $0x2f0] sm:$0xff]
        %v1285 = vld [vmem:[%s860 + $0x2f8] sm:$0xff]
        %v1286 = vld [vmem:[%s869] sm:$0x3f]
        %v1288 = vlaneseq
        %v1289 = vshrl.u32 %v1288, 7
        %v1290 = vsub.s32 0, %v1289
        %v1291 = vrot.slane %v1286, %v1290
        %v1292 = vlaneseq
        %v1293 = vshrl.u32 %v1292, 7
        %v1294 = vsub.s32 1, %v1293
        %v1295 = vrot.slane %v1286, %v1294
        %v1296 = vlaneseq
        %v1297 = vshrl.u32 %v1296, 7
        %v1298 = vsub.s32 2, %v1297
        %v1299 = vrot.slane %v1286, %v1298
        %v1300 = vlaneseq
        %v1301 = vshrl.u32 %v1300, 7
        %v1302 = vsub.s32 3, %v1301
        %v1303 = vrot.slane %v1286, %v1302
        %v1304 = vlaneseq
        %v1305 = vshrl.u32 %v1304, 7
        %v1306 = vsub.s32 4, %v1305
        %v1307 = vrot.slane %v1286, %v1306
        %v1308 = vlaneseq
        %v1309 = vshrl.u32 %v1308, 7
        %v1310 = vsub.s32 5, %v1309
        %v1311 = vrot.slane %v1286, %v1310
        %v1414 = vunpack.c.l.b16 %v1190
        %v1415 = vunpack.c.h.b16 %v1190
        %v1416 = vunpack.c.l.b16 %v1191
        %v1417 = vunpack.c.h.b16 %v1191
        %v1418 = vunpack.c.l.b16 %v1192
        %v1419 = vunpack.c.h.b16 %v1192
        %v1420 = vunpack.c.l.b16 %v1193
        %v1421 = vunpack.c.h.b16 %v1193
        %v1422 = vunpack.c.l.b16 %v1194
        %v1423 = vunpack.c.h.b16 %v1194
        %v1424 = vunpack.c.l.b16 %v1195
        %v1425 = vunpack.c.h.b16 %v1195
        %v1426 = vunpack.c.l.b16 %v1196
        %v1427 = vunpack.c.h.b16 %v1196
        %v1428 = vunpack.c.l.b16 %v1197
        %v1429 = vunpack.c.h.b16 %v1197
        %v1430 = vunpack.c.l.b16 %v1198
        %v1431 = vunpack.c.h.b16 %v1198
        %v1432 = vunpack.c.l.b16 %v1199
        %v1433 = vunpack.c.h.b16 %v1199
        %v1434 = vunpack.c.l.b16 %v1200
        %v1435 = vunpack.c.h.b16 %v1200
        %v1436 = vunpack.c.l.b16 %v1201
        %v1437 = vunpack.c.h.b16 %v1201
        %v1438 = vunpack.c.l.b16 %v1202
        %v1439 = vunpack.c.h.b16 %v1202
        %v1440 = vunpack.c.l.b16 %v1203
        %v1441 = vunpack.c.h.b16 %v1203
        %v1442 = vunpack.c.l.b16 %v1204
        %v1443 = vunpack.c.h.b16 %v1204
        %v1444 = vunpack.c.l.b16 %v1205
        %v1445 = vunpack.c.h.b16 %v1205
        %v1446 = vunpack.c.l.b16 %v1206
        %v1447 = vunpack.c.h.b16 %v1206
        %v1448 = vunpack.c.l.b16 %v1207
        %v1449 = vunpack.c.h.b16 %v1207
        %v1450 = vunpack.c.l.b16 %v1208
        %v1451 = vunpack.c.h.b16 %v1208
        %v1452 = vunpack.c.l.b16 %v1209
        %v1453 = vunpack.c.h.b16 %v1209
        %v1454 = vunpack.c.l.b16 %v1210
        %v1455 = vunpack.c.h.b16 %v1210
        %v1456 = vunpack.c.l.b16 %v1211
        %v1457 = vunpack.c.h.b16 %v1211
        %v1458 = vunpack.c.l.b16 %v1212
        %v1459 = vunpack.c.h.b16 %v1212
        %v1460 = vunpack.c.l.b16 %v1213
        %v1461 = vunpack.c.h.b16 %v1213
        %v1462 = vunpack.c.l.b16 %v1214
        %v1463 = vunpack.c.h.b16 %v1214
        %v1464 = vunpack.c.l.b16 %v1215
        %v1465 = vunpack.c.h.b16 %v1215
        %v1466 = vunpack.c.l.b16 %v1216
        %v1467 = vunpack.c.h.b16 %v1216
        %v1468 = vunpack.c.l.b16 %v1217
        %v1469 = vunpack.c.h.b16 %v1217
        %v1470 = vunpack.c.l.b16 %v1218
        %v1471 = vunpack.c.h.b16 %v1218
        %v1472 = vunpack.c.l.b16 %v1219
        %v1473 = vunpack.c.h.b16 %v1219
        %v1474 = vunpack.c.l.b16 %v1220
        %v1475 = vunpack.c.h.b16 %v1220
        %v1476 = vunpack.c.l.b16 %v1221
        %v1477 = vunpack.c.h.b16 %v1221
        %v1478 = vunpack.c.l.b16 %v1222
        %v1479 = vunpack.c.h.b16 %v1222
        %v1480 = vunpack.c.l.b16 %v1223
        %v1481 = vunpack.c.h.b16 %v1223
        %v1482 = vunpack.c.l.b16 %v1224
        %v1483 = vunpack.c.h.b16 %v1224
        %v1484 = vunpack.c.l.b16 %v1225
        %v1485 = vunpack.c.h.b16 %v1225
        %v1486 = vunpack.c.l.b16 %v1226
        %v1487 = vunpack.c.h.b16 %v1226
        %v1488 = vunpack.c.l.b16 %v1227
        %v1489 = vunpack.c.h.b16 %v1227
        %v1490 = vunpack.c.l.b16 %v1228
        %v1491 = vunpack.c.h.b16 %v1228
        %v1492 = vunpack.c.l.b16 %v1229
        %v1493 = vunpack.c.h.b16 %v1229
        %v1494 = vunpack.c.l.b16 %v1230
        %v1495 = vunpack.c.h.b16 %v1230
        %v1496 = vunpack.c.l.b16 %v1231
        %v1497 = vunpack.c.h.b16 %v1231
        %v1498 = vunpack.c.l.b16 %v1232
        %v1499 = vunpack.c.h.b16 %v1232
        %v1500 = vunpack.c.l.b16 %v1233
        %v1501 = vunpack.c.h.b16 %v1233
        %v1502 = vunpack.c.l.b16 %v1234
        %v1503 = vunpack.c.h.b16 %v1234
        %v1504 = vunpack.c.l.b16 %v1235
        %v1505 = vunpack.c.h.b16 %v1235
        %v1506 = vunpack.c.l.b16 %v1236
        %v1507 = vunpack.c.h.b16 %v1236
        %v1508 = vunpack.c.l.b16 %v1237
        %v1509 = vunpack.c.h.b16 %v1237
        %v1510 = vunpack.c.l.b16 %v1238
        %v1511 = vunpack.c.h.b16 %v1238
        %v1512 = vunpack.c.l.b16 %v1239
        %v1513 = vunpack.c.h.b16 %v1239
        %v1514 = vunpack.c.l.b16 %v1240
        %v1515 = vunpack.c.h.b16 %v1240
        %v1516 = vunpack.c.l.b16 %v1241
        %v1517 = vunpack.c.h.b16 %v1241
        %v1518 = vunpack.c.l.b16 %v1242
        %v1519 = vunpack.c.h.b16 %v1242
        %v1520 = vunpack.c.l.b16 %v1243
        %v1521 = vunpack.c.h.b16 %v1243
        %v1522 = vunpack.c.l.b16 %v1244
        %v1523 = vunpack.c.h.b16 %v1244
        %v1524 = vunpack.c.l.b16 %v1245
        %v1525 = vunpack.c.h.b16 %v1245
        %v1526 = vunpack.c.l.b16 %v1246
        %v1527 = vunpack.c.h.b16 %v1246
        %v1528 = vunpack.c.l.b16 %v1247
        %v1529 = vunpack.c.h.b16 %v1247
        %v1530 = vunpack.c.l.b16 %v1248
        %v1531 = vunpack.c.h.b16 %v1248
        %v1532 = vunpack.c.l.b16 %v1249
        %v1533 = vunpack.c.h.b16 %v1249
        %v1534 = vunpack.c.l.b16 %v1250
        %v1535 = vunpack.c.h.b16 %v1250
        %v1536 = vunpack.c.l.b16 %v1251
        %v1537 = vunpack.c.h.b16 %v1251
        %v1538 = vunpack.c.l.b16 %v1252
        %v1539 = vunpack.c.h.b16 %v1252
        %v1540 = vunpack.c.l.b16 %v1253
        %v1541 = vunpack.c.h.b16 %v1253
        %v1542 = vunpack.c.l.b16 %v1254
        %v1543 = vunpack.c.h.b16 %v1254
        %v1544 = vunpack.c.l.b16 %v1255
        %v1545 = vunpack.c.h.b16 %v1255
        %v1546 = vunpack.c.l.b16 %v1256
        %v1547 = vunpack.c.h.b16 %v1256
        %v1548 = vunpack.c.l.b16 %v1257
        %v1549 = vunpack.c.h.b16 %v1257
        %v1550 = vunpack.c.l.b16 %v1258
        %v1551 = vunpack.c.h.b16 %v1258
        %v1552 = vunpack.c.l.b16 %v1259
        %v1553 = vunpack.c.h.b16 %v1259
        %v1554 = vunpack.c.l.b16 %v1260
        %v1555 = vunpack.c.h.b16 %v1260
        %v1556 = vunpack.c.l.b16 %v1261
        %v1557 = vunpack.c.h.b16 %v1261
        %v1558 = vunpack.c.l.b16 %v1262
        %v1559 = vunpack.c.h.b16 %v1262
        %v1560 = vunpack.c.l.b16 %v1263
        %v1561 = vunpack.c.h.b16 %v1263
        %v1562 = vunpack.c.l.b16 %v1264
        %v1563 = vunpack.c.h.b16 %v1264
        %v1564 = vunpack.c.l.b16 %v1265
        %v1565 = vunpack.c.h.b16 %v1265
        %v1566 = vunpack.c.l.b16 %v1266
        %v1567 = vunpack.c.h.b16 %v1266
        %v1568 = vunpack.c.l.b16 %v1267
        %v1569 = vunpack.c.h.b16 %v1267
        %v1570 = vunpack.c.l.b16 %v1268
        %v1571 = vunpack.c.h.b16 %v1268
        %v1572 = vunpack.c.l.b16 %v1269
        %v1573 = vunpack.c.h.b16 %v1269
        %v1574 = vunpack.c.l.b16 %v1270
        %v1575 = vunpack.c.h.b16 %v1270
        %v1576 = vunpack.c.l.b16 %v1271
        %v1577 = vunpack.c.h.b16 %v1271
        %v1578 = vunpack.c.l.b16 %v1272
        %v1579 = vunpack.c.h.b16 %v1272
        %v1580 = vunpack.c.l.b16 %v1273
        %v1581 = vunpack.c.h.b16 %v1273
        %v1582 = vunpack.c.l.b16 %v1274
        %v1583 = vunpack.c.h.b16 %v1274
        %v1584 = vunpack.c.l.b16 %v1275
        %v1585 = vunpack.c.h.b16 %v1275
        %v1586 = vunpack.c.l.b16 %v1276
        %v1587 = vunpack.c.h.b16 %v1276
        %v1588 = vunpack.c.l.b16 %v1277
        %v1589 = vunpack.c.h.b16 %v1277
        %v1590 = vunpack.c.l.b16 %v1278
        %v1591 = vunpack.c.h.b16 %v1278
        %v1592 = vunpack.c.l.b16 %v1279
        %v1593 = vunpack.c.h.b16 %v1279
        %v1594 = vunpack.c.l.b16 %v1280
        %v1595 = vunpack.c.h.b16 %v1280
        %v1596 = vunpack.c.l.b16 %v1281
        %v1597 = vunpack.c.h.b16 %v1281
        %v1598 = vunpack.c.l.b16 %v1282
        %v1599 = vunpack.c.h.b16 %v1282
        %v1600 = vunpack.c.l.b16 %v1283
        %v1601 = vunpack.c.h.b16 %v1283
        %v1602 = vunpack.c.l.b16 %v1284
        %v1603 = vunpack.c.h.b16 %v1284
        %v1604 = vunpack.c.l.b16 %v1285
        %v1605 = vunpack.c.h.b16 %v1285
        %v1606 = vpack.c.b16 %v1420, %v1414
        %v1607 = vpack.c.b16 %v1421, %v1415
        %v1608 = vpack.c.b16 %v1422, %v1416
        %v1609 = vpack.c.b16 %v1423, %v1417
        %v1610 = vpack.c.b16 %v1424, %v1418
        %v1611 = vpack.c.b16 %v1425, %v1419
        %v1612 = vpack.c.b16 %v1432, %v1426
        %v1613 = vpack.c.b16 %v1433, %v1427
        %v1614 = vpack.c.b16 %v1434, %v1428
        %v1615 = vpack.c.b16 %v1435, %v1429
        %v1616 = vpack.c.b16 %v1436, %v1430
        %v1617 = vpack.c.b16 %v1437, %v1431
        %v1618 = vpack.c.b16 %v1444, %v1438
        %v1619 = vpack.c.b16 %v1445, %v1439
        %v1620 = vpack.c.b16 %v1446, %v1440
        %v1621 = vpack.c.b16 %v1447, %v1441
        %v1622 = vpack.c.b16 %v1448, %v1442
        %v1623 = vpack.c.b16 %v1449, %v1443
        %v1624 = vpack.c.b16 %v1456, %v1450
        %v1625 = vpack.c.b16 %v1457, %v1451
        %v1626 = vpack.c.b16 %v1458, %v1452
        %v1627 = vpack.c.b16 %v1459, %v1453
        %v1628 = vpack.c.b16 %v1460, %v1454
        %v1629 = vpack.c.b16 %v1461, %v1455
        %v1630 = vpack.c.b16 %v1468, %v1462
        %v1631 = vpack.c.b16 %v1469, %v1463
        %v1632 = vpack.c.b16 %v1470, %v1464
        %v1633 = vpack.c.b16 %v1471, %v1465
        %v1634 = vpack.c.b16 %v1472, %v1466
        %v1635 = vpack.c.b16 %v1473, %v1467
        %v1636 = vpack.c.b16 %v1480, %v1474
        %v1637 = vpack.c.b16 %v1481, %v1475
        %v1638 = vpack.c.b16 %v1482, %v1476
        %v1639 = vpack.c.b16 %v1483, %v1477
        %v1640 = vpack.c.b16 %v1484, %v1478
        %v1641 = vpack.c.b16 %v1485, %v1479
        %v1642 = vpack.c.b16 %v1492, %v1486
        %v1643 = vpack.c.b16 %v1493, %v1487
        %v1644 = vpack.c.b16 %v1494, %v1488
        %v1645 = vpack.c.b16 %v1495, %v1489
        %v1646 = vpack.c.b16 %v1496, %v1490
        %v1647 = vpack.c.b16 %v1497, %v1491
        %v1648 = vpack.c.b16 %v1504, %v1498
        %v1649 = vpack.c.b16 %v1505, %v1499
        %v1650 = vpack.c.b16 %v1506, %v1500
        %v1651 = vpack.c.b16 %v1507, %v1501
        %v1652 = vpack.c.b16 %v1508, %v1502
        %v1653 = vpack.c.b16 %v1509, %v1503
        %v1654 = vpack.c.b16 %v1516, %v1510
        %v1655 = vpack.c.b16 %v1517, %v1511
        %v1656 = vpack.c.b16 %v1518, %v1512
        %v1657 = vpack.c.b16 %v1519, %v1513
        %v1658 = vpack.c.b16 %v1520, %v1514
        %v1659 = vpack.c.b16 %v1521, %v1515
        %v1660 = vpack.c.b16 %v1528, %v1522
        %v1661 = vpack.c.b16 %v1529, %v1523
        %v1662 = vpack.c.b16 %v1530, %v1524
        %v1663 = vpack.c.b16 %v1531, %v1525
        %v1664 = vpack.c.b16 %v1532, %v1526
        %v1665 = vpack.c.b16 %v1533, %v1527
        %v1666 = vpack.c.b16 %v1540, %v1534
        %v1667 = vpack.c.b16 %v1541, %v1535
        %v1668 = vpack.c.b16 %v1542, %v1536
        %v1669 = vpack.c.b16 %v1543, %v1537
        %v1670 = vpack.c.b16 %v1544, %v1538
        %v1671 = vpack.c.b16 %v1545, %v1539
        %v1672 = vpack.c.b16 %v1552, %v1546
        %v1673 = vpack.c.b16 %v1553, %v1547
        %v1674 = vpack.c.b16 %v1554, %v1548
        %v1675 = vpack.c.b16 %v1555, %v1549
        %v1676 = vpack.c.b16 %v1556, %v1550
        %v1677 = vpack.c.b16 %v1557, %v1551
        %v1678 = vpack.c.b16 %v1564, %v1558
        %v1679 = vpack.c.b16 %v1565, %v1559
        %v1680 = vpack.c.b16 %v1566, %v1560
        %v1681 = vpack.c.b16 %v1567, %v1561
        %v1682 = vpack.c.b16 %v1568, %v1562
        %v1683 = vpack.c.b16 %v1569, %v1563
        %v1684 = vpack.c.b16 %v1576, %v1570
        %v1685 = vpack.c.b16 %v1577, %v1571
        %v1686 = vpack.c.b16 %v1578, %v1572
        %v1687 = vpack.c.b16 %v1579, %v1573
        %v1688 = vpack.c.b16 %v1580, %v1574
        %v1689 = vpack.c.b16 %v1581, %v1575
        %v1690 = vpack.c.b16 %v1588, %v1582
        %v1691 = vpack.c.b16 %v1589, %v1583
        %v1692 = vpack.c.b16 %v1590, %v1584
        %v1693 = vpack.c.b16 %v1591, %v1585
        %v1694 = vpack.c.b16 %v1592, %v1586
        %v1695 = vpack.c.b16 %v1593, %v1587
        %v1696 = vpack.c.b16 %v1600, %v1594
        %v1697 = vpack.c.b16 %v1601, %v1595
        %v1698 = vpack.c.b16 %v1602, %v1596
        %v1699 = vpack.c.b16 %v1603, %v1597
        %v1700 = vpack.c.b16 %v1604, %v1598
        %v1701 = vpack.c.b16 %v1605, %v1599
        %1798 = vmatprep.subr.bf16.mxu0 %v1649
        %1799 = vmatpush1.bf16.msra.mxu0 %v1648
        %1800 = vmatprep.subr.bf16.mxu0 %v1643
        %1801 = vmatpush1.bf16.msra.mxu0 %v1642
        %1802 = vmatprep.subr.bf16.mxu0 %v1637
        %1803 = vmatpush1.bf16.msra.mxu0 %v1636
        %1804 = vmatprep.subr.bf16.mxu0 %v1631
        %1805 = vmatpush1.bf16.msra.mxu0 %v1630
        %1806 = vmatprep.subr.bf16.mxu0 %v1625
        %1807 = vmatpush1.bf16.msra.mxu0 %v1624
        %1808 = vmatprep.subr.bf16.mxu0 %v1619
        %1809 = vmatpush1.bf16.msra.mxu0 %v1618
        %1810 = vmatprep.subr.bf16.mxu0 %v1613
        %1811 = vmatpush1.bf16.msra.mxu0 %v1612
        %1812 = vmatprep.subr.bf16.mxu0 %v1607
        %1813 = vmatpush1.bf16.msra.mxu0 %v1606
        %1814 = vmatprep.subr.bf16.mxu0 %v1697
        %1815 = vmatpush2.bf16.msra.mxu0 %v1696
        %1816 = vmatprep.subr.bf16.mxu0 %v1691
        %1817 = vmatpush2.bf16.msra.mxu0 %v1690
        %1818 = vmatprep.subr.bf16.mxu0 %v1685
        %1819 = vmatpush2.bf16.msra.mxu0 %v1684
        %1820 = vmatprep.subr.bf16.mxu0 %v1679
        %1821 = vmatpush2.bf16.msra.mxu0 %v1678
        %1822 = vmatprep.subr.bf16.mxu0 %v1673
        %1823 = vmatpush2.bf16.msra.mxu0 %v1672
        %1824 = vmatprep.subr.bf16.mxu0 %v1667
        %1825 = vmatpush2.bf16.msra.mxu0 %v1666
        %1826 = vmatprep.subr.bf16.mxu0 %v1661
        %1827 = vmatpush2.bf16.msra.mxu0 %v1660
        %1828 = vmatprep.subr.bf16.mxu0 %v1655
        %1829 = vmatpush2.bf16.msra.mxu0 %v1654
        %1830 = vmatprep.mubr.bf16.mxu0 %v1189
        %1831 = vmatmul.mubr.bf16.gmra.mxu0 %v1188
        %v1832 = vpop.f32.mrf.mxu0
        %v1833 = vadd.f32 %v1291, %v1832
        %v1834 = vpop.f32.mrf.mxu0
        %v1835 = vadd.f32 %v1295, %v1834
        %v1836 = vpop.f32.mrf.mxu0
        %v1837 = vadd.f32 %v1291, %v1836
        %v1838 = vpop.f32.mrf.mxu0
        %v1839 = vadd.f32 %v1295, %v1838
        %1840 = vdwg.mxu0
        %1841 = vmatprep.subr.bf16.mxu0 %v1651
        %1842 = vmatpush1.bf16.msra.mxu0 %v1650
        %1843 = vmatprep.subr.bf16.mxu0 %v1645
        %1844 = vmatpush1.bf16.msra.mxu0 %v1644
        %1845 = vmatprep.subr.bf16.mxu0 %v1639
        %1846 = vmatpush1.bf16.msra.mxu0 %v1638
        %1847 = vmatprep.subr.bf16.mxu0 %v1633
        %1848 = vmatpush1.bf16.msra.mxu0 %v1632
        %1849 = vmatprep.subr.bf16.mxu0 %v1627
        %1850 = vmatpush1.bf16.msra.mxu0 %v1626
        %1851 = vmatprep.subr.bf16.mxu0 %v1621
        %1852 = vmatpush1.bf16.msra.mxu0 %v1620
        %1853 = vmatprep.subr.bf16.mxu0 %v1615
        %1854 = vmatpush1.bf16.msra.mxu0 %v1614
        %1855 = vmatprep.subr.bf16.mxu0 %v1609
        %1856 = vmatpush1.bf16.msra.mxu0 %v1608
        %1857 = vmatprep.subr.bf16.mxu0 %v1699
        %1858 = vmatpush2.bf16.msra.mxu0 %v1698
        %1859 = vmatprep.subr.bf16.mxu0 %v1693
        %1860 = vmatpush2.bf16.msra.mxu0 %v1692
        %1861 = vmatprep.subr.bf16.mxu0 %v1687
        %1862 = vmatpush2.bf16.msra.mxu0 %v1686
        %1863 = vmatprep.subr.bf16.mxu0 %v1681
        %1864 = vmatpush2.bf16.msra.mxu0 %v1680
        %1865 = vmatprep.subr.bf16.mxu0 %v1675
        %1866 = vmatpush2.bf16.msra.mxu0 %v1674
        %1867 = vmatprep.subr.bf16.mxu0 %v1669
        %1868 = vmatpush2.bf16.msra.mxu0 %v1668
        %1869 = vmatprep.subr.bf16.mxu0 %v1663
        %1870 = vmatpush2.bf16.msra.mxu0 %v1662
        %1871 = vmatprep.subr.bf16.mxu0 %v1657
        %1872 = vmatpush2.bf16.msra.mxu0 %v1656
        %1873 = vmatprep.mubr.bf16.mxu0 %v1189
        %1874 = vmatmul.mubr.bf16.gmra.mxu0 %v1188
        %v1875 = vpop.f32.mrf.mxu0
        %v1876 = vadd.f32 %v1299, %v1875
        %v1877 = vpop.f32.mrf.mxu0
        %v1878 = vadd.f32 %v1303, %v1877
        %v1879 = vpop.f32.mrf.mxu0
        %v1880 = vadd.f32 %v1299, %v1879
        %v1881 = vpop.f32.mrf.mxu0
        %v1882 = vadd.f32 %v1303, %v1881
        %1883 = vdwg.mxu0
        %1884 = vmatprep.subr.bf16.mxu0 %v1653
        %1885 = vmatpush1.bf16.msra.mxu0 %v1652
        %1886 = vmatprep.subr.bf16.mxu0 %v1647
        %1887 = vmatpush1.bf16.msra.mxu0 %v1646
        %1888 = vmatprep.subr.bf16.mxu0 %v1641
        %1889 = vmatpush1.bf16.msra.mxu0 %v1640
        %1890 = vmatprep.subr.bf16.mxu0 %v1635
        %1891 = vmatpush1.bf16.msra.mxu0 %v1634
        %1892 = vmatprep.subr.bf16.mxu0 %v1629
        %1893 = vmatpush1.bf16.msra.mxu0 %v1628
        %1894 = vmatprep.subr.bf16.mxu0 %v1623
        %1895 = vmatpush1.bf16.msra.mxu0 %v1622
        %1896 = vmatprep.subr.bf16.mxu0 %v1617
        %1897 = vmatpush1.bf16.msra.mxu0 %v1616
        %1898 = vmatprep.subr.bf16.mxu0 %v1611
        %1899 = vmatpush1.bf16.msra.mxu0 %v1610
        %1900 = vmatprep.subr.bf16.mxu0 %v1701
        %1901 = vmatpush2.bf16.msra.mxu0 %v1700
        %1902 = vmatprep.subr.bf16.mxu0 %v1695
        %1903 = vmatpush2.bf16.msra.mxu0 %v1694
        %1904 = vmatprep.subr.bf16.mxu0 %v1689
        %1905 = vmatpush2.bf16.msra.mxu0 %v1688
        %1906 = vmatprep.subr.bf16.mxu0 %v1683
        %1907 = vmatpush2.bf16.msra.mxu0 %v1682
        %1908 = vmatprep.subr.bf16.mxu0 %v1677
        %1909 = vmatpush2.bf16.msra.mxu0 %v1676
        %1910 = vmatprep.subr.bf16.mxu0 %v1671
        %1911 = vmatpush2.bf16.msra.mxu0 %v1670
        %1912 = vmatprep.subr.bf16.mxu0 %v1665
        %1913 = vmatpush2.bf16.msra.mxu0 %v1664
        %1914 = vmatprep.subr.bf16.mxu0 %v1659
        %1915 = vmatpush2.bf16.msra.mxu0 %v1658
        %1916 = vmatprep.mubr.bf16.mxu0 %v1189
        %1917 = vmatmul.mubr.bf16.gmra.mxu0 %v1188
        %v1918 = vpop.f32.mrf.mxu0
        %v1919 = vadd.f32 %v1307, %v1918
        %v1920 = vpop.f32.mrf.mxu0
        %v1921 = vadd.f32 %v1311, %v1920
        %v1922 = vpop.f32.mrf.mxu0
        %v1923 = vadd.f32 %v1307, %v1922
        %v1924 = vpop.f32.mrf.mxu0
        %v1925 = vadd.f32 %v1311, %v1924
        %1926 = vdwg.mxu0
        %v1927 = vld [vmem:[%s4] sm:$0xff]
        %v1928 = vld [vmem:[%s4 + $0x8] sm:$0xff]
        %v1929 = vpack.c.bf16 %v1837, %v1833
        %v1930 = vpack.c.bf16 %v1880, %v1876
        %v1931 = vpack.c.bf16 %v1923, %v1919
        %vm1932 = vcmask 523264
        %v1934 = vsel %vm1932, %v1929, 0
        %v1937 = vsel %vm1932, %v1930, 0
        %1939 = vmatprep.subr.bf16.mxu0 0
        %1940 = vmatpush1.bf16.xpose.msra.mxu0 0
        %1941 = vmatprep.subr.bf16.mxu0 0
        %1942 = vmatpush1.bf16.xpose.msra.mxu0 0
        %1943 = vmatprep.subr.bf16.mxu0 0
        %1944 = vmatpush1.bf16.xpose.msra.mxu0 0
        %1945 = vmatprep.subr.bf16.mxu0 0
        %1946 = vmatpush1.bf16.xpose.msra.mxu0 0
        %1947 = vmatprep.subr.bf16.mxu0 0
        %1948 = vmatpush1.bf16.xpose.msra.mxu0 0
        %1949 = vmatprep.subr.bf16.mxu0 0
        %1950 = vmatpush1.bf16.xpose.msra.mxu0 0
        %1951 = vmatprep.subr.bf16.mxu0 0
        %1952 = vmatpush1.bf16.xpose.msra.mxu0 0
        %1953 = vmatprep.subr.bf16.mxu0 0
        %1954 = vmatpush1.bf16.xpose.msra.mxu0 %v1937
        %1955 = vmatprep.subr.bf16.mxu0 0
        %1956 = vmatpush2.bf16.xpose.msra.mxu0 0
        %1957 = vmatprep.subr.bf16.mxu0 0
        %1958 = vmatpush2.bf16.xpose.msra.mxu0 0
        %1959 = vmatprep.subr.bf16.mxu0 0
        %1960 = vmatpush2.bf16.xpose.msra.mxu0 0
        %1961 = vmatprep.subr.bf16.mxu0 0
        %1962 = vmatpush2.bf16.xpose.msra.mxu0 0
        %1963 = vmatprep.subr.bf16.mxu0 0
        %1964 = vmatpush2.bf16.xpose.msra.mxu0 0
        %1965 = vmatprep.subr.bf16.mxu0 0
        %1966 = vmatpush2.bf16.xpose.msra.mxu0 0
        %1967 = vmatprep.subr.bf16.mxu0 0
        %1968 = vmatpush2.bf16.xpose.msra.mxu0 0
        %1969 = vmatprep.subr.bf16.mxu0 0
        %1970 = vmatpush2.bf16.xpose.msra.mxu0 0
        %1971 = vmatprep.mubr.bf16.mxu0 0
        %1972 = vmatmul.mubr.bf16.gmra.mxu0 %v1934
        %v1973 = vpop.f32.mrf.mxu0
        %v1974 = vadd.f32 %v1927, %v1973
        %v1975 = vpop.f32.mrf.mxu0
        %v1976 = vpop.f32.mrf.mxu0
        %v1977 = vadd.f32 %v1928, %v1976
        %v1978 = vpop.f32.mrf.mxu0
        %1979 = vdwg.mxu0
        %vm1980 = vcmask 130048
        %v1981 = vsel %vm1980, %v1974, -inf
        %1982 = vmax.xlane.f32.xlu0 %v1981
        %v1983 = vpop.xlane.xlu0 %1982
        %v1984 = vsel %vm1980, %v1977, -inf
        %1985 = vmax.xlane.f32.xlu0 %v1984
        %v1986 = vpop.xlane.xlu0 %1985
        %v1987 = vsub.f32 %v1974, %v1983
        %v1988 = vsub.f32 %v1977, %v1986
        %v1989 = vmul.f32 %v1987, 1.442695
        %v1990 = vpow.pop %v1989
        %v1991 = vmul.f32 %v1988, 1.442695
        %v1992 = vpow.pop %v1991
        %v1993 = vsel %vm1980, %v1990, 0.0
        %1994 = vadd.xlane.f32.xlu0 %v1993
        %v1995 = vpop.xlane.xlu0 %1994
        %v1996 = vsel %vm1980, %v1992, 0.0
        %1997 = vadd.xlane.f32.xlu0 %v1996
        %v1998 = vpop.xlane.xlu0 %1997
        %v1999 = vrcp.pop %v1995
        %v2000 = vmul.f32 %v1990, %v1999
        %v2001 = vrcp.pop %v1998
        %v2002 = vmul.f32 %v1992, %v2001
        %v2003 = vpack.c.bf16 %v2002, %v2000
        %v2005 = vsel %vm1980, %v2003, 0
        %2007 = vmatprep.subr.bf16.mxu0 0
        %2008 = vmatpush1.bf16.msra.mxu0 0
        %2009 = vmatprep.subr.bf16.mxu0 0
        %2010 = vmatpush1.bf16.msra.mxu0 0
        %2011 = vmatprep.subr.bf16.mxu0 0
        %2012 = vmatpush1.bf16.msra.mxu0 0
        %2013 = vmatprep.subr.bf16.mxu0 0
        %2014 = vmatpush1.bf16.msra.mxu0 0
        %2015 = vmatprep.subr.bf16.mxu0 0
        %2016 = vmatpush1.bf16.msra.mxu0 0
        %2017 = vmatprep.subr.bf16.mxu0 0
        %2018 = vmatpush1.bf16.msra.mxu0 0
        %2019 = vmatprep.subr.bf16.mxu0 0
        %2020 = vmatpush1.bf16.msra.mxu0 0
        %2021 = vmatprep.subr.bf16.mxu0 0
        %2022 = vmatpush1.bf16.msra.mxu0 %v1931
        %2023 = vmatprep.subr.bf16.mxu0 0
        %2024 = vmatpush2.bf16.msra.mxu0 0
        %2025 = vmatprep.subr.bf16.mxu0 0
        %2026 = vmatpush2.bf16.msra.mxu0 0
        %2027 = vmatprep.subr.bf16.mxu0 0
        %2028 = vmatpush2.bf16.msra.mxu0 0
        %2029 = vmatprep.subr.bf16.mxu0 0
        %2030 = vmatpush2.bf16.msra.mxu0 0
        %2031 = vmatprep.subr.bf16.mxu0 0
        %2032 = vmatpush2.bf16.msra.mxu0 0
        %2033 = vmatprep.subr.bf16.mxu0 0
        %2034 = vmatpush2.bf16.msra.mxu0 0
        %2035 = vmatprep.subr.bf16.mxu0 0
        %2036 = vmatpush2.bf16.msra.mxu0 0
        %2037 = vmatprep.subr.bf16.mxu0 0
        %2038 = vmatpush2.bf16.msra.mxu0 0
        %2039 = vmatprep.mubr.bf16.mxu0 0
        %2040 = vmatmul.mubr.bf16.gmra.mxu0 %v2005
        %v2041 = vpop.f32.mrf.mxu0
        %v2042 = vadd.f32 0.0, %v2041
        %v2043 = vpop.f32.mrf.mxu0
        %v2044 = vpop.f32.mrf.mxu0
        %v2045 = vadd.f32 0.0, %v2044
        %v2046 = vpop.f32.mrf.mxu0
        %2047 = vdwg.mxu0
        %v2048 = vpack.c.bf16 %v2045, %v2042
        %v2049 = vld [vmem:[%s878] sm:$0xff]
        %v2050 = vld [vmem:[%s878 + $0x8] sm:$0xff]
        %v2051 = vld [vmem:[%s878 + $0x10] sm:$0xff]
        %v2052 = vld [vmem:[%s878 + $0x18] sm:$0xff]
        %v2053 = vld [vmem:[%s878 + $0x20] sm:$0xff]
        %v2054 = vld [vmem:[%s878 + $0x28] sm:$0xff]
        %v2055 = vld [vmem:[%s878 + $0x30] sm:$0xff]
        %v2056 = vld [vmem:[%s878 + $0x38] sm:$0xff]
        %2058 = vrot.lane.b32.xlu0 %v1929, 64
        %v2059 = vpop.permute.xlu0 %2058
        %2061 = vrot.lane.b32.xlu0 %v1930, 64
        %v2062 = vpop.permute.xlu0 %2061
        %v2064 = vsel %vm1932, %v2059, 0
        %v2067 = vsel %vm1932, %v2062, 0
        %2069 = vmatprep.subr.bf16.mxu0 0
        %2070 = vmatpush1.bf16.xpose.msra.mxu0 0
        %2071 = vmatprep.subr.bf16.mxu0 0
        %2072 = vmatpush1.bf16.xpose.msra.mxu0 0
        %2073 = vmatprep.subr.bf16.mxu0 0
        %2074 = vmatpush1.bf16.xpose.msra.mxu0 0
        %2075 = vmatprep.subr.bf16.mxu0 0
        %2076 = vmatpush1.bf16.xpose.msra.mxu0 0
        %2077 = vmatprep.subr.bf16.mxu0 0
        %2078 = vmatpush1.bf16.xpose.msra.mxu0 0
        %2079 = vmatprep.subr.bf16.mxu0 0
        %2080 = vmatpush1.bf16.xpose.msra.mxu0 0
        %2081 = vmatprep.subr.bf16.mxu0 0
        %2082 = vmatpush1.bf16.xpose.msra.mxu0 0
        %2083 = vmatprep.subr.bf16.mxu0 0
        %2084 = vmatpush1.bf16.xpose.msra.mxu0 %v2067
        %2085 = vmatprep.subr.bf16.mxu0 0
        %2086 = vmatpush2.bf16.xpose.msra.mxu0 0
        %2087 = vmatprep.subr.bf16.mxu0 0
        %2088 = vmatpush2.bf16.xpose.msra.mxu0 0
        %2089 = vmatprep.subr.bf16.mxu0 0
        %2090 = vmatpush2.bf16.xpose.msra.mxu0 0
        %2091 = vmatprep.subr.bf16.mxu0 0
        %2092 = vmatpush2.bf16.xpose.msra.mxu0 0
        %2093 = vmatprep.subr.bf16.mxu0 0
        %2094 = vmatpush2.bf16.xpose.msra.mxu0 0
        %2095 = vmatprep.subr.bf16.mxu0 0
        %2096 = vmatpush2.bf16.xpose.msra.mxu0 0
        %2097 = vmatprep.subr.bf16.mxu0 0
        %2098 = vmatpush2.bf16.xpose.msra.mxu0 0
        %2099 = vmatprep.subr.bf16.mxu0 0
        %2100 = vmatpush2.bf16.xpose.msra.mxu0 0
        %2101 = vmatprep.mubr.bf16.mxu0 0
        %2102 = vmatmul.mubr.bf16.gmra.mxu0 %v2064
        %v2103 = vpop.f32.mrf.mxu0
        %v2104 = vadd.f32 %v1927, %v2103
        %v2105 = vpop.f32.mrf.mxu0
        %v2106 = vpop.f32.mrf.mxu0
        %v2107 = vadd.f32 %v1928, %v2106
        %v2108 = vpop.f32.mrf.mxu0
        %2109 = vdwg.mxu0
        %v2110 = vsel %vm1980, %v2104, -inf
        %2111 = vmax.xlane.f32.xlu0 %v2110
        %v2112 = vpop.xlane.xlu0 %2111
        %v2113 = vsel %vm1980, %v2107, -inf
        %2114 = vmax.xlane.f32.xlu0 %v2113
        %v2115 = vpop.xlane.xlu0 %2114
        %v2116 = vsub.f32 %v2104, %v2112
        %v2117 = vsub.f32 %v2107, %v2115
        %v2118 = vmul.f32 %v2116, 1.442695
        %v2119 = vpow.pop %v2118
        %v2120 = vmul.f32 %v2117, 1.442695
        %v2121 = vpow.pop %v2120
        %v2122 = vsel %vm1980, %v2119, 0.0
        %2123 = vadd.xlane.f32.xlu0 %v2122
        %v2124 = vpop.xlane.xlu0 %2123
        %v2125 = vsel %vm1980, %v2121, 0.0
        %2126 = vadd.xlane.f32.xlu0 %v2125
        %v2127 = vpop.xlane.xlu0 %2126
        %v2128 = vrcp.pop %v2124
        %v2129 = vmul.f32 %v2119, %v2128
        %v2130 = vrcp.pop %v2127
        %v2131 = vmul.f32 %v2121, %v2130
        %v2132 = vpack.c.bf16 %v2131, %v2129
        %2134 = vrot.lane.b32.xlu0 %v1931, 64
        %v2135 = vpop.permute.xlu0 %2134
        %v2138 = vsel %vm1980, %v2132, 0
        %2140 = vmatprep.subr.bf16.mxu0 0
        %2141 = vmatpush1.bf16.msra.mxu0 0
        %2142 = vmatprep.subr.bf16.mxu0 0
        %2143 = vmatpush1.bf16.msra.mxu0 0
        %2144 = vmatprep.subr.bf16.mxu0 0
        %2145 = vmatpush1.bf16.msra.mxu0 0
        %2146 = vmatprep.subr.bf16.mxu0 0
        %2147 = vmatpush1.bf16.msra.mxu0 0
        %2148 = vmatprep.subr.bf16.mxu0 0
        %2149 = vmatpush1.bf16.msra.mxu0 0
        %2150 = vmatprep.subr.bf16.mxu0 0
        %2151 = vmatpush1.bf16.msra.mxu0 0
        %2152 = vmatprep.subr.bf16.mxu0 0
        %2153 = vmatpush1.bf16.msra.mxu0 0
        %2154 = vmatprep.subr.bf16.mxu0 0
        %2155 = vmatpush1.bf16.msra.mxu0 %v2135
        %2156 = vmatprep.subr.bf16.mxu0 0
        %2157 = vmatpush2.bf16.msra.mxu0 0
        %2158 = vmatprep.subr.bf16.mxu0 0
        %2159 = vmatpush2.bf16.msra.mxu0 0
        %2160 = vmatprep.subr.bf16.mxu0 0
        %2161 = vmatpush2.bf16.msra.mxu0 0
        %2162 = vmatprep.subr.bf16.mxu0 0
        %2163 = vmatpush2.bf16.msra.mxu0 0
        %2164 = vmatprep.subr.bf16.mxu0 0
        %2165 = vmatpush2.bf16.msra.mxu0 0
        %2166 = vmatprep.subr.bf16.mxu0 0
        %2167 = vmatpush2.bf16.msra.mxu0 0
        %2168 = vmatprep.subr.bf16.mxu0 0
        %2169 = vmatpush2.bf16.msra.mxu0 0
        %2170 = vmatprep.subr.bf16.mxu0 0
        %2171 = vmatpush2.bf16.msra.mxu0 0
        %2172 = vmatprep.mubr.bf16.mxu0 0
        %2173 = vmatmul.mubr.bf16.gmra.mxu0 %v2138
        %v2174 = vpop.f32.mrf.mxu0
        %v2175 = vadd.f32 0.0, %v2174
        %v2176 = vpop.f32.mrf.mxu0
        %v2177 = vpop.f32.mrf.mxu0
        %v2178 = vadd.f32 0.0, %v2177
        %v2179 = vpop.f32.mrf.mxu0
        %2180 = vdwg.mxu0
        %v2181 = vpack.c.bf16 %v2178, %v2175
        %v2182 = vld [vmem:[%s878 + $0x40] sm:$0xff]
        %v2183 = vld [vmem:[%s878 + $0x48] sm:$0xff]
        %v2184 = vld [vmem:[%s878 + $0x50] sm:$0xff]
        %v2185 = vld [vmem:[%s878 + $0x58] sm:$0xff]
        %v2186 = vld [vmem:[%s878 + $0x60] sm:$0xff]
        %v2187 = vld [vmem:[%s878 + $0x68] sm:$0xff]
        %v2188 = vld [vmem:[%s878 + $0x70] sm:$0xff]
        %v2189 = vld [vmem:[%s878 + $0x78] sm:$0xff]
        %v2198 = vunpack.c.l.b16 %v2182
        %v2199 = vunpack.c.h.b16 %v2182
        %v2200 = vunpack.c.l.b16 %v2183
        %v2201 = vunpack.c.h.b16 %v2183
        %v2202 = vunpack.c.l.b16 %v2184
        %v2203 = vunpack.c.h.b16 %v2184
        %v2204 = vunpack.c.l.b16 %v2185
        %v2205 = vunpack.c.h.b16 %v2185
        %v2206 = vunpack.c.l.b16 %v2186
        %v2207 = vunpack.c.h.b16 %v2186
        %v2208 = vunpack.c.l.b16 %v2187
        %v2209 = vunpack.c.h.b16 %v2187
        %v2210 = vunpack.c.l.b16 %v2188
        %v2211 = vunpack.c.h.b16 %v2188
        %v2212 = vunpack.c.l.b16 %v2189
        %v2213 = vunpack.c.h.b16 %v2189
        %v2214 = vpack.c.b16 %v2200, %v2198
        %v2215 = vpack.c.b16 %v2201, %v2199
        %v2216 = vpack.c.b16 %v2204, %v2202
        %v2217 = vpack.c.b16 %v2205, %v2203
        %v2218 = vpack.c.b16 %v2208, %v2206
        %v2219 = vpack.c.b16 %v2209, %v2207
        %v2220 = vpack.c.b16 %v2212, %v2210
        %v2221 = vpack.c.b16 %v2213, %v2211
        %v2231 = vsel %vm1932, %v2181, 0
        %2233 = vmatprep.subr.bf16.mxu0 0
        %2234 = vmatpush1.bf16.msra.mxu0 0
        %2235 = vmatprep.subr.bf16.mxu0 0
        %2236 = vmatpush1.bf16.msra.mxu0 0
        %2237 = vmatprep.subr.bf16.mxu0 0
        %2238 = vmatpush1.bf16.msra.mxu0 0
        %2239 = vmatprep.subr.bf16.mxu0 0
        %2240 = vmatpush1.bf16.msra.mxu0 0
        %2241 = vmatprep.subr.bf16.mxu0 %v2221
        %2242 = vmatpush1.bf16.msra.mxu0 %v2220
        %2243 = vmatprep.subr.bf16.mxu0 %v2219
        %2244 = vmatpush1.bf16.msra.mxu0 %v2218
        %2245 = vmatprep.subr.bf16.mxu0 %v2217
        %2246 = vmatpush1.bf16.msra.mxu0 %v2216
        %2247 = vmatprep.subr.bf16.mxu0 %v2215
        %2248 = vmatpush1.bf16.msra.mxu0 %v2214
        %2249 = vmatprep.subr.bf16.mxu0 0
        %2250 = vmatpush2.bf16.msra.mxu0 0
        %2251 = vmatprep.subr.bf16.mxu0 0
        %2252 = vmatpush2.bf16.msra.mxu0 0
        %2253 = vmatprep.subr.bf16.mxu0 0
        %2254 = vmatpush2.bf16.msra.mxu0 0
        %2255 = vmatprep.subr.bf16.mxu0 0
        %2256 = vmatpush2.bf16.msra.mxu0 0
        %2257 = vmatprep.subr.bf16.mxu0 0
        %2258 = vmatpush2.bf16.msra.mxu0 0
        %2259 = vmatprep.subr.bf16.mxu0 0
        %2260 = vmatpush2.bf16.msra.mxu0 0
        %2261 = vmatprep.subr.bf16.mxu0 0
        %2262 = vmatpush2.bf16.msra.mxu0 0
        %2263 = vmatprep.subr.bf16.mxu0 0
        %2264 = vmatpush2.bf16.msra.mxu0 0
        %2265 = vmatprep.mubr.bf16.mxu0 0
        %2266 = vmatmul.mubr.bf16.gmra.mxu0 %v2231
        %v2267 = vpop.f32.mrf.mxu0
        %v2268 = vadd.f32 0.0, %v2267
        %v2269 = vpop.f32.mrf.mxu0
        %v2270 = vadd.f32 0.0, %v2269
        %v2271 = vpop.f32.mrf.mxu0
        %v2272 = vadd.f32 0.0, %v2271
        %v2273 = vpop.f32.mrf.mxu0
        %v2274 = vadd.f32 0.0, %v2273
        %2275 = vdwg.mxu0
        %v2284 = vunpack.c.l.b16 %v2049
        %v2285 = vunpack.c.h.b16 %v2049
        %v2286 = vunpack.c.l.b16 %v2050
        %v2287 = vunpack.c.h.b16 %v2050
        %v2288 = vunpack.c.l.b16 %v2051
        %v2289 = vunpack.c.h.b16 %v2051
        %v2290 = vunpack.c.l.b16 %v2052
        %v2291 = vunpack.c.h.b16 %v2052
        %v2292 = vunpack.c.l.b16 %v2053
        %v2293 = vunpack.c.h.b16 %v2053
        %v2294 = vunpack.c.l.b16 %v2054
        %v2295 = vunpack.c.h.b16 %v2054
        %v2296 = vunpack.c.l.b16 %v2055
        %v2297 = vunpack.c.h.b16 %v2055
        %v2298 = vunpack.c.l.b16 %v2056
        %v2299 = vunpack.c.h.b16 %v2056
        %v2300 = vpack.c.b16 %v2286, %v2284
        %v2301 = vpack.c.b16 %v2287, %v2285
        %v2302 = vpack.c.b16 %v2290, %v2288
        %v2303 = vpack.c.b16 %v2291, %v2289
        %v2304 = vpack.c.b16 %v2294, %v2292
        %v2305 = vpack.c.b16 %v2295, %v2293
        %v2306 = vpack.c.b16 %v2298, %v2296
        %v2307 = vpack.c.b16 %v2299, %v2297
        %v2317 = vsel %vm1932, %v2048, 0
        %2319 = vmatprep.subr.bf16.mxu0 0
        %2320 = vmatpush1.bf16.msra.mxu0 0
        %2321 = vmatprep.subr.bf16.mxu0 0
        %2322 = vmatpush1.bf16.msra.mxu0 0
        %2323 = vmatprep.subr.bf16.mxu0 0
        %2324 = vmatpush1.bf16.msra.mxu0 0
        %2325 = vmatprep.subr.bf16.mxu0 0
        %2326 = vmatpush1.bf16.msra.mxu0 0
        %2327 = vmatprep.subr.bf16.mxu0 %v2307
        %2328 = vmatpush1.bf16.msra.mxu0 %v2306
        %2329 = vmatprep.subr.bf16.mxu0 %v2305
        %2330 = vmatpush1.bf16.msra.mxu0 %v2304
        %2331 = vmatprep.subr.bf16.mxu0 %v2303
        %2332 = vmatpush1.bf16.msra.mxu0 %v2302
        %2333 = vmatprep.subr.bf16.mxu0 %v2301
        %2334 = vmatpush1.bf16.msra.mxu0 %v2300
        %2335 = vmatprep.subr.bf16.mxu0 0
        %2336 = vmatpush2.bf16.msra.mxu0 0
        %2337 = vmatprep.subr.bf16.mxu0 0
        %2338 = vmatpush2.bf16.msra.mxu0 0
        %2339 = vmatprep.subr.bf16.mxu0 0
        %2340 = vmatpush2.bf16.msra.mxu0 0
        %2341 = vmatprep.subr.bf16.mxu0 0
        %2342 = vmatpush2.bf16.msra.mxu0 0
        %2343 = vmatprep.subr.bf16.mxu0 0
        %2344 = vmatpush2.bf16.msra.mxu0 0
        %2345 = vmatprep.subr.bf16.mxu0 0
        %2346 = vmatpush2.bf16.msra.mxu0 0
        %2347 = vmatprep.subr.bf16.mxu0 0
        %2348 = vmatpush2.bf16.msra.mxu0 0
        %2349 = vmatprep.subr.bf16.mxu0 0
        %2350 = vmatpush2.bf16.msra.mxu0 0
        %2351 = vmatprep.mubr.bf16.mxu0 0
        %2352 = vmatmul.mubr.bf16.gmra.mxu0 %v2317
        %v2353 = vpop.f32.mrf.mxu0
        %v2354 = vadd.f32 %v2268, %v2353
        %v2355 = vpop.f32.mrf.mxu0
        %v2356 = vadd.f32 %v2270, %v2355
        %v2357 = vpop.f32.mrf.mxu0
        %v2358 = vadd.f32 %v2272, %v2357
        %v2359 = vpop.f32.mrf.mxu0
        %v2360 = vadd.f32 %v2274, %v2359
        %2361 = vdwg.mxu0
        %v2362 = vpack.c.bf16 %v1839, %v1835
        %v2363 = vpack.c.bf16 %v1882, %v1878
        %v2364 = vpack.c.bf16 %v1925, %v1921
        %v2366 = vsel %vm1932, %v2362, 0
        %v2369 = vsel %vm1932, %v2363, 0
        %2371 = vmatprep.subr.bf16.mxu0 0
        %2372 = vmatpush1.bf16.xpose.msra.mxu0 0
        %2373 = vmatprep.subr.bf16.mxu0 0
        %2374 = vmatpush1.bf16.xpose.msra.mxu0 0
        %2375 = vmatprep.subr.bf16.mxu0 0
        %2376 = vmatpush1.bf16.xpose.msra.mxu0 0
        %2377 = vmatprep.subr.bf16.mxu0 0
        %2378 = vmatpush1.bf16.xpose.msra.mxu0 0
        %2379 = vmatprep.subr.bf16.mxu0 0
        %2380 = vmatpush1.bf16.xpose.msra.mxu0 0
        %2381 = vmatprep.subr.bf16.mxu0 0
        %2382 = vmatpush1.bf16.xpose.msra.mxu0 0
        %2383 = vmatprep.subr.bf16.mxu0 0
        %2384 = vmatpush1.bf16.xpose.msra.mxu0 0
        %2385 = vmatprep.subr.bf16.mxu0 0
        %2386 = vmatpush1.bf16.xpose.msra.mxu0 %v2369
        %2387 = vmatprep.subr.bf16.mxu0 0
        %2388 = vmatpush2.bf16.xpose.msra.mxu0 0
        %2389 = vmatprep.subr.bf16.mxu0 0
        %2390 = vmatpush2.bf16.xpose.msra.mxu0 0
        %2391 = vmatprep.subr.bf16.mxu0 0
        %2392 = vmatpush2.bf16.xpose.msra.mxu0 0
        %2393 = vmatprep.subr.bf16.mxu0 0
        %2394 = vmatpush2.bf16.xpose.msra.mxu0 0
        %2395 = vmatprep.subr.bf16.mxu0 0
        %2396 = vmatpush2.bf16.xpose.msra.mxu0 0
        %2397 = vmatprep.subr.bf16.mxu0 0
        %2398 = vmatpush2.bf16.xpose.msra.mxu0 0
        %2399 = vmatprep.subr.bf16.mxu0 0
        %2400 = vmatpush2.bf16.xpose.msra.mxu0 0
        %2401 = vmatprep.subr.bf16.mxu0 0
        %2402 = vmatpush2.bf16.xpose.msra.mxu0 0
        %2403 = vmatprep.mubr.bf16.mxu0 0
        %2404 = vmatmul.mubr.bf16.gmra.mxu0 %v2366
        %v2405 = vpop.f32.mrf.mxu0
        %v2406 = vadd.f32 %v1927, %v2405
        %v2407 = vpop.f32.mrf.mxu0
        %v2408 = vpop.f32.mrf.mxu0
        %v2409 = vadd.f32 %v1928, %v2408
        %v2410 = vpop.f32.mrf.mxu0
        %2411 = vdwg.mxu0
        %v2412 = vsel %vm1980, %v2406, -inf
        %2413 = vmax.xlane.f32.xlu0 %v2412
        %v2414 = vpop.xlane.xlu0 %2413
        %v2415 = vsel %vm1980, %v2409, -inf
        %2416 = vmax.xlane.f32.xlu0 %v2415
        %v2417 = vpop.xlane.xlu0 %2416
        %v2418 = vsub.f32 %v2406, %v2414
        %v2419 = vsub.f32 %v2409, %v2417
        %v2420 = vmul.f32 %v2418, 1.442695
        %v2421 = vpow.pop %v2420
        %v2422 = vmul.f32 %v2419, 1.442695
        %v2423 = vpow.pop %v2422
        %v2424 = vsel %vm1980, %v2421, 0.0
        %2425 = vadd.xlane.f32.xlu0 %v2424
        %v2426 = vpop.xlane.xlu0 %2425
        %v2427 = vsel %vm1980, %v2423, 0.0
        %2428 = vadd.xlane.f32.xlu0 %v2427
        %v2429 = vpop.xlane.xlu0 %2428
        %v2430 = vrcp.pop %v2426
        %v2431 = vmul.f32 %v2421, %v2430
        %v2432 = vrcp.pop %v2429
        %v2433 = vmul.f32 %v2423, %v2432
        %v2434 = vpack.c.bf16 %v2433, %v2431
        %v2436 = vsel %vm1980, %v2434, 0
        %2438 = vmatprep.subr.bf16.mxu0 0
        %2439 = vmatpush1.bf16.msra.mxu0 0
        %2440 = vmatprep.subr.bf16.mxu0 0
        %2441 = vmatpush1.bf16.msra.mxu0 0
        %2442 = vmatprep.subr.bf16.mxu0 0
        %2443 = vmatpush1.bf16.msra.mxu0 0
        %2444 = vmatprep.subr.bf16.mxu0 0
        %2445 = vmatpush1.bf16.msra.mxu0 0
        %2446 = vmatprep.subr.bf16.mxu0 0
        %2447 = vmatpush1.bf16.msra.mxu0 0
        %2448 = vmatprep.subr.bf16.mxu0 0
        %2449 = vmatpush1.bf16.msra.mxu0 0
        %2450 = vmatprep.subr.bf16.mxu0 0
        %2451 = vmatpush1.bf16.msra.mxu0 0
        %2452 = vmatprep.subr.bf16.mxu0 0
        %2453 = vmatpush1.bf16.msra.mxu0 %v2364
        %2454 = vmatprep.subr.bf16.mxu0 0
        %2455 = vmatpush2.bf16.msra.mxu0 0
        %2456 = vmatprep.subr.bf16.mxu0 0
        %2457 = vmatpush2.bf16.msra.mxu0 0
        %2458 = vmatprep.subr.bf16.mxu0 0
        %2459 = vmatpush2.bf16.msra.mxu0 0
        %2460 = vmatprep.subr.bf16.mxu0 0
        %2461 = vmatpush2.bf16.msra.mxu0 0
        %2462 = vmatprep.subr.bf16.mxu0 0
        %2463 = vmatpush2.bf16.msra.mxu0 0
        %2464 = vmatprep.subr.bf16.mxu0 0
        %2465 = vmatpush2.bf16.msra.mxu0 0
        %2466 = vmatprep.subr.bf16.mxu0 0
        %2467 = vmatpush2.bf16.msra.mxu0 0
        %2468 = vmatprep.subr.bf16.mxu0 0
        %2469 = vmatpush2.bf16.msra.mxu0 0
        %2470 = vmatprep.mubr.bf16.mxu0 0
        %2471 = vmatmul.mubr.bf16.gmra.mxu0 %v2436
        %v2472 = vpop.f32.mrf.mxu0
        %v2473 = vadd.f32 0.0, %v2472
        %v2474 = vpop.f32.mrf.mxu0
        %v2475 = vpop.f32.mrf.mxu0
        %v2476 = vadd.f32 0.0, %v2475
        %v2477 = vpop.f32.mrf.mxu0
        %2478 = vdwg.mxu0
        %v2479 = vpack.c.bf16 %v2476, %v2473
        %v2480 = vld [vmem:[%s878 + $0x80] sm:$0xff]
        %v2481 = vld [vmem:[%s878 + $0x88] sm:$0xff]
        %v2482 = vld [vmem:[%s878 + $0x90] sm:$0xff]
        %v2483 = vld [vmem:[%s878 + $0x98] sm:$0xff]
        %v2484 = vld [vmem:[%s878 + $0xa0] sm:$0xff]
        %v2485 = vld [vmem:[%s878 + $0xa8] sm:$0xff]
        %v2486 = vld [vmem:[%s878 + $0xb0] sm:$0xff]
        %v2487 = vld [vmem:[%s878 + $0xb8] sm:$0xff]
        %v2496 = vunpack.c.l.b16 %v2480
        %v2497 = vunpack.c.h.b16 %v2480
        %v2498 = vunpack.c.l.b16 %v2481
        %v2499 = vunpack.c.h.b16 %v2481
        %v2500 = vunpack.c.l.b16 %v2482
        %v2501 = vunpack.c.h.b16 %v2482
        %v2502 = vunpack.c.l.b16 %v2483
        %v2503 = vunpack.c.h.b16 %v2483
        %v2504 = vunpack.c.l.b16 %v2484
        %v2505 = vunpack.c.h.b16 %v2484
        %v2506 = vunpack.c.l.b16 %v2485
        %v2507 = vunpack.c.h.b16 %v2485
        %v2508 = vunpack.c.l.b16 %v2486
        %v2509 = vunpack.c.h.b16 %v2486
        %v2510 = vunpack.c.l.b16 %v2487
        %v2511 = vunpack.c.h.b16 %v2487
        %v2512 = vpack.c.b16 %v2498, %v2496
        %v2513 = vpack.c.b16 %v2499, %v2497
        %v2514 = vpack.c.b16 %v2502, %v2500
        %v2515 = vpack.c.b16 %v2503, %v2501
        %v2516 = vpack.c.b16 %v2506, %v2504
        %v2517 = vpack.c.b16 %v2507, %v2505
        %v2518 = vpack.c.b16 %v2510, %v2508
        %v2519 = vpack.c.b16 %v2511, %v2509
        %v2529 = vsel %vm1932, %v2479, 0
        %2531 = vmatprep.subr.bf16.mxu0 0
        %2532 = vmatpush1.bf16.msra.mxu0 0
        %2533 = vmatprep.subr.bf16.mxu0 0
        %2534 = vmatpush1.bf16.msra.mxu0 0
        %2535 = vmatprep.subr.bf16.mxu0 0
        %2536 = vmatpush1.bf16.msra.mxu0 0
        %2537 = vmatprep.subr.bf16.mxu0 0
        %2538 = vmatpush1.bf16.msra.mxu0 0
        %2539 = vmatprep.subr.bf16.mxu0 %v2519
        %2540 = vmatpush1.bf16.msra.mxu0 %v2518
        %2541 = vmatprep.subr.bf16.mxu0 %v2517
        %2542 = vmatpush1.bf16.msra.mxu0 %v2516
        %2543 = vmatprep.subr.bf16.mxu0 %v2515
        %2544 = vmatpush1.bf16.msra.mxu0 %v2514
        %2545 = vmatprep.subr.bf16.mxu0 %v2513
        %2546 = vmatpush1.bf16.msra.mxu0 %v2512
        %2547 = vmatprep.subr.bf16.mxu0 0
        %2548 = vmatpush2.bf16.msra.mxu0 0
        %2549 = vmatprep.subr.bf16.mxu0 0
        %2550 = vmatpush2.bf16.msra.mxu0 0
        %2551 = vmatprep.subr.bf16.mxu0 0
        %2552 = vmatpush2.bf16.msra.mxu0 0
        %2553 = vmatprep.subr.bf16.mxu0 0
        %2554 = vmatpush2.bf16.msra.mxu0 0
        %2555 = vmatprep.subr.bf16.mxu0 0
        %2556 = vmatpush2.bf16.msra.mxu0 0
        %2557 = vmatprep.subr.bf16.mxu0 0
        %2558 = vmatpush2.bf16.msra.mxu0 0
        %2559 = vmatprep.subr.bf16.mxu0 0
        %2560 = vmatpush2.bf16.msra.mxu0 0
        %2561 = vmatprep.subr.bf16.mxu0 0
        %2562 = vmatpush2.bf16.msra.mxu0 0
        %2563 = vmatprep.mubr.bf16.mxu0 0
        %2564 = vmatmul.mubr.bf16.gmra.mxu0 %v2529
        %v2565 = vpop.f32.mrf.mxu0
        %v2566 = vadd.f32 0.0, %v2565
        %v2567 = vpop.f32.mrf.mxu0
        %v2568 = vadd.f32 0.0, %v2567
        %v2569 = vpop.f32.mrf.mxu0
        %v2570 = vadd.f32 0.0, %v2569
        %v2571 = vpop.f32.mrf.mxu0
        %v2572 = vadd.f32 0.0, %v2571
        %2573 = vdwg.mxu0
        %v2574 = vadd.f32 %v2354, %v2566
        %v2575 = vadd.f32 %v2356, %v2568
        %v2576 = vadd.f32 %v2358, %v2570
        %v2577 = vadd.f32 %v2360, %v2572
        %2579 = vrot.lane.b32.xlu0 %v2362, 64
        %v2580 = vpop.permute.xlu0 %2579
        %2582 = vrot.lane.b32.xlu0 %v2363, 64
        %v2583 = vpop.permute.xlu0 %2582
        %v2585 = vsel %vm1932, %v2580, 0
        %v2588 = vsel %vm1932, %v2583, 0
        %2590 = vmatprep.subr.bf16.mxu0 0
        %2591 = vmatpush1.bf16.xpose.msra.mxu0 0
        %2592 = vmatprep.subr.bf16.mxu0 0
        %2593 = vmatpush1.bf16.xpose.msra.mxu0 0
        %2594 = vmatprep.subr.bf16.mxu0 0
        %2595 = vmatpush1.bf16.xpose.msra.mxu0 0
        %2596 = vmatprep.subr.bf16.mxu0 0
        %2597 = vmatpush1.bf16.xpose.msra.mxu0 0
        %2598 = vmatprep.subr.bf16.mxu0 0
        %2599 = vmatpush1.bf16.xpose.msra.mxu0 0
        %2600 = vmatprep.subr.bf16.mxu0 0
        %2601 = vmatpush1.bf16.xpose.msra.mxu0 0
        %2602 = vmatprep.subr.bf16.mxu0 0
        %2603 = vmatpush1.bf16.xpose.msra.mxu0 0
        %2604 = vmatprep.subr.bf16.mxu0 0
        %2605 = vmatpush1.bf16.xpose.msra.mxu0 %v2588
        %2606 = vmatprep.subr.bf16.mxu0 0
        %2607 = vmatpush2.bf16.xpose.msra.mxu0 0
        %2608 = vmatprep.subr.bf16.mxu0 0
        %2609 = vmatpush2.bf16.xpose.msra.mxu0 0
        %2610 = vmatprep.subr.bf16.mxu0 0
        %2611 = vmatpush2.bf16.xpose.msra.mxu0 0
        %2612 = vmatprep.subr.bf16.mxu0 0
        %2613 = vmatpush2.bf16.xpose.msra.mxu0 0
        %2614 = vmatprep.subr.bf16.mxu0 0
        %2615 = vmatpush2.bf16.xpose.msra.mxu0 0
        %2616 = vmatprep.subr.bf16.mxu0 0
        %2617 = vmatpush2.bf16.xpose.msra.mxu0 0
        %2618 = vmatprep.subr.bf16.mxu0 0
        %2619 = vmatpush2.bf16.xpose.msra.mxu0 0
        %2620 = vmatprep.subr.bf16.mxu0 0
        %2621 = vmatpush2.bf16.xpose.msra.mxu0 0
        %2622 = vmatprep.mubr.bf16.mxu0 0
        %2623 = vmatmul.mubr.bf16.gmra.mxu0 %v2585
        %v2624 = vpop.f32.mrf.mxu0
        %v2625 = vadd.f32 %v1927, %v2624
        %v2626 = vpop.f32.mrf.mxu0
        %v2627 = vpop.f32.mrf.mxu0
        %v2628 = vadd.f32 %v1928, %v2627
        %v2629 = vpop.f32.mrf.mxu0
        %2630 = vdwg.mxu0
        %v2631 = vsel %vm1980, %v2625, -inf
        %2632 = vmax.xlane.f32.xlu0 %v2631
        %v2633 = vpop.xlane.xlu0 %2632
        %v2634 = vsel %vm1980, %v2628, -inf
        %2635 = vmax.xlane.f32.xlu0 %v2634
        %v2636 = vpop.xlane.xlu0 %2635
        %v2637 = vsub.f32 %v2625, %v2633
        %v2638 = vsub.f32 %v2628, %v2636
        %v2639 = vmul.f32 %v2637, 1.442695
        %v2640 = vpow.pop %v2639
        %v2641 = vmul.f32 %v2638, 1.442695
        %v2642 = vpow.pop %v2641
        %v2643 = vsel %vm1980, %v2640, 0.0
        %2644 = vadd.xlane.f32.xlu0 %v2643
        %v2645 = vpop.xlane.xlu0 %2644
        %v2646 = vsel %vm1980, %v2642, 0.0
        %2647 = vadd.xlane.f32.xlu0 %v2646
        %v2648 = vpop.xlane.xlu0 %2647
        %v2649 = vrcp.pop %v2645
        %v2650 = vmul.f32 %v2640, %v2649
        %v2651 = vrcp.pop %v2648
        %v2652 = vmul.f32 %v2642, %v2651
        %v2653 = vpack.c.bf16 %v2652, %v2650
        %2655 = vrot.lane.b32.xlu0 %v2364, 64
        %v2656 = vpop.permute.xlu0 %2655
        %v2659 = vsel %vm1980, %v2653, 0
        %2661 = vmatprep.subr.bf16.mxu0 0
        %2662 = vmatpush1.bf16.msra.mxu0 0
        %2663 = vmatprep.subr.bf16.mxu0 0
        %2664 = vmatpush1.bf16.msra.mxu0 0
        %2665 = vmatprep.subr.bf16.mxu0 0
        %2666 = vmatpush1.bf16.msra.mxu0 0
        %2667 = vmatprep.subr.bf16.mxu0 0
        %2668 = vmatpush1.bf16.msra.mxu0 0
        %2669 = vmatprep.subr.bf16.mxu0 0
        %2670 = vmatpush1.bf16.msra.mxu0 0
        %2671 = vmatprep.subr.bf16.mxu0 0
        %2672 = vmatpush1.bf16.msra.mxu0 0
        %2673 = vmatprep.subr.bf16.mxu0 0
        %2674 = vmatpush1.bf16.msra.mxu0 0
        %2675 = vmatprep.subr.bf16.mxu0 0
        %2676 = vmatpush1.bf16.msra.mxu0 %v2656
        %2677 = vmatprep.subr.bf16.mxu0 0
        %2678 = vmatpush2.bf16.msra.mxu0 0
        %2679 = vmatprep.subr.bf16.mxu0 0
        %2680 = vmatpush2.bf16.msra.mxu0 0
        %2681 = vmatprep.subr.bf16.mxu0 0
        %2682 = vmatpush2.bf16.msra.mxu0 0
        %2683 = vmatprep.subr.bf16.mxu0 0
        %2684 = vmatpush2.bf16.msra.mxu0 0
        %2685 = vmatprep.subr.bf16.mxu0 0
        %2686 = vmatpush2.bf16.msra.mxu0 0
        %2687 = vmatprep.subr.bf16.mxu0 0
        %2688 = vmatpush2.bf16.msra.mxu0 0
        %2689 = vmatprep.subr.bf16.mxu0 0
        %2690 = vmatpush2.bf16.msra.mxu0 0
        %2691 = vmatprep.subr.bf16.mxu0 0
        %2692 = vmatpush2.bf16.msra.mxu0 0
        %2693 = vmatprep.mubr.bf16.mxu0 0
        %2694 = vmatmul.mubr.bf16.gmra.mxu0 %v2659
        %v2695 = vpop.f32.mrf.mxu0
        %v2696 = vadd.f32 0.0, %v2695
        %v2697 = vpop.f32.mrf.mxu0
        %v2698 = vpop.f32.mrf.mxu0
        %v2699 = vadd.f32 0.0, %v2698
        %v2700 = vpop.f32.mrf.mxu0
        %2701 = vdwg.mxu0
        %v2702 = vpack.c.bf16 %v2699, %v2696
        %v2703 = vld [vmem:[%s878 + $0xc0] sm:$0xff]
        %v2704 = vld [vmem:[%s878 + $0xc8] sm:$0xff]
        %v2705 = vld [vmem:[%s878 + $0xd0] sm:$0xff]
        %v2706 = vld [vmem:[%s878 + $0xd8] sm:$0xff]
        %v2707 = vld [vmem:[%s878 + $0xe0] sm:$0xff]
        %v2708 = vld [vmem:[%s878 + $0xe8] sm:$0xff]
        %v2709 = vld [vmem:[%s878 + $0xf0] sm:$0xff]
        %v2710 = vld [vmem:[%s878 + $0xf8] sm:$0xff]
        %v2719 = vunpack.c.l.b16 %v2703
        %v2720 = vunpack.c.h.b16 %v2703
        %v2721 = vunpack.c.l.b16 %v2704
        %v2722 = vunpack.c.h.b16 %v2704
        %v2723 = vunpack.c.l.b16 %v2705
        %v2724 = vunpack.c.h.b16 %v2705
        %v2725 = vunpack.c.l.b16 %v2706
        %v2726 = vunpack.c.h.b16 %v2706
        %v2727 = vunpack.c.l.b16 %v2707
        %v2728 = vunpack.c.h.b16 %v2707
        %v2729 = vunpack.c.l.b16 %v2708
        %v2730 = vunpack.c.h.b16 %v2708
        %v2731 = vunpack.c.l.b16 %v2709
        %v2732 = vunpack.c.h.b16 %v2709
        %v2733 = vunpack.c.l.b16 %v2710
        %v2734 = vunpack.c.h.b16 %v2710
        %v2735 = vpack.c.b16 %v2721, %v2719
        %v2736 = vpack.c.b16 %v2722, %v2720
        %v2737 = vpack.c.b16 %v2725, %v2723
        %v2738 = vpack.c.b16 %v2726, %v2724
        %v2739 = vpack.c.b16 %v2729, %v2727
        %v2740 = vpack.c.b16 %v2730, %v2728
        %v2741 = vpack.c.b16 %v2733, %v2731
        %v2742 = vpack.c.b16 %v2734, %v2732
        %v2752 = vsel %vm1932, %v2702, 0
        %2754 = vmatprep.subr.bf16.mxu0 0
        %2755 = vmatpush1.bf16.msra.mxu0 0
        %2756 = vmatprep.subr.bf16.mxu0 0
        %2757 = vmatpush1.bf16.msra.mxu0 0
        %2758 = vmatprep.subr.bf16.mxu0 0
        %2759 = vmatpush1.bf16.msra.mxu0 0
        %2760 = vmatprep.subr.bf16.mxu0 0
        %2761 = vmatpush1.bf16.msra.mxu0 0
        %2762 = vmatprep.subr.bf16.mxu0 %v2742
        %2763 = vmatpush1.bf16.msra.mxu0 %v2741
        %2764 = vmatprep.subr.bf16.mxu0 %v2740
        %2765 = vmatpush1.bf16.msra.mxu0 %v2739
        %2766 = vmatprep.subr.bf16.mxu0 %v2738
        %2767 = vmatpush1.bf16.msra.mxu0 %v2737
        %2768 = vmatprep.subr.bf16.mxu0 %v2736
        %2769 = vmatpush1.bf16.msra.mxu0 %v2735
        %2770 = vmatprep.subr.bf16.mxu0 0
        %2771 = vmatpush2.bf16.msra.mxu0 0
        %2772 = vmatprep.subr.bf16.mxu0 0
        %2773 = vmatpush2.bf16.msra.mxu0 0
        %2774 = vmatprep.subr.bf16.mxu0 0
        %2775 = vmatpush2.bf16.msra.mxu0 0
        %2776 = vmatprep.subr.bf16.mxu0 0
        %2777 = vmatpush2.bf16.msra.mxu0 0
        %2778 = vmatprep.subr.bf16.mxu0 0
        %2779 = vmatpush2.bf16.msra.mxu0 0
        %2780 = vmatprep.subr.bf16.mxu0 0
        %2781 = vmatpush2.bf16.msra.mxu0 0
        %2782 = vmatprep.subr.bf16.mxu0 0
        %2783 = vmatpush2.bf16.msra.mxu0 0
        %2784 = vmatprep.subr.bf16.mxu0 0
        %2785 = vmatpush2.bf16.msra.mxu0 0
        %2786 = vmatprep.mubr.bf16.mxu0 0
        %2787 = vmatmul.mubr.bf16.gmra.mxu0 %v2752
        %v2788 = vpop.f32.mrf.mxu0
        %v2789 = vadd.f32 0.0, %v2788
        %v2790 = vpop.f32.mrf.mxu0
        %v2791 = vadd.f32 0.0, %v2790
        %v2792 = vpop.f32.mrf.mxu0
        %v2793 = vadd.f32 0.0, %v2792
        %v2794 = vpop.f32.mrf.mxu0
        %v2795 = vadd.f32 0.0, %v2794
        %2796 = vdwg.mxu0
        %v2797 = vadd.f32 %v2574, %v2789
        %v2798 = vadd.f32 %v2575, %v2791
        %v2799 = vadd.f32 %v2576, %v2793
        %v2800 = vadd.f32 %v2577, %v2795
        %v2801 = vld [vmem:[%s887] sm:$0x3]
        %v2803 = vlaneseq
        %v2804 = vshrl.u32 %v2803, 7
        %v2805 = vsub.s32 0, %v2804
        %v2806 = vrot.slane %v2801, %v2805
        %v2807 = vlaneseq
        %v2808 = vshrl.u32 %v2807, 7
        %v2809 = vsub.s32 1, %v2808
        %v2810 = vrot.slane %v2801, %v2809
        %v2813 = vadd.f32 %v2797, %v2806
        %v2814 = vadd.f32 %v2798, %v2810
        %v2815 = vadd.f32 %v2799, %v2806
        %v2816 = vadd.f32 %v2800, %v2810
        %v2817 = vadd.f32 %v1184, %v2813
        %v2818 = vadd.f32 %v1185, %v2814
        %v2819 = vadd.f32 %v1186, %v2815
        %v2820 = vadd.f32 %v1187, %v2816
        %v2821 = vadd.f32 %v2817, %v2818
        %2822 = vadd.xlane.f32.xlu0 %v2821
        %v2823 = vpop.xlane.xlu0 %2822
        %v2824 = vadd.f32 %v2819, %v2820
        %2825 = vadd.xlane.f32.xlu0 %v2824
        %v2826 = vpop.xlane.xlu0 %2825
        %v2827 = vrcp.pop 256.0
        %v2828 = vmul.f32 %v2823, %v2827
        %v2829 = vmul.f32 %v2826, %v2827
        %v2830 = vsub.f32 %v2817, %v2828
        %v2831 = vsub.f32 %v2818, %v2828
        %v2832 = vsub.f32 %v2819, %v2829
        %v2833 = vsub.f32 %v2820, %v2829
        %v2834 = vmul.f32 %v2830, %v2830
        %v2835 = vmul.f32 %v2831, %v2831
        %v2836 = vmul.f32 %v2832, %v2832
        %v2837 = vmul.f32 %v2833, %v2833
        %v2838 = vadd.f32 %v2834, %v2835
        %2839 = vadd.xlane.f32.xlu0 %v2838
        %v2840 = vpop.xlane.xlu0 %2839
        %v2841 = vadd.f32 %v2836, %v2837
        %2842 = vadd.xlane.f32.xlu0 %v2841
        %v2843 = vpop.xlane.xlu0 %2842
        %v2844 = vmul.f32 %v2840, %v2827
        %v2845 = vmul.f32 %v2843, %v2827
        %v2846 = vadd.f32 %v2844, 1e-05
        %v2847 = vadd.f32 %v2845, 1e-05
        %v2848 = vrsqrt.pop %v2846
        %v2849 = vrsqrt.pop %v2847
        %v2850 = vmul.f32 %v2830, %v2848
        %v2851 = vmul.f32 %v2831, %v2848
        %v2852 = vmul.f32 %v2832, %v2849
        %v2853 = vmul.f32 %v2833, %v2849
        %v2854 = vld [vmem:[%s896] sm:$0x3]
        %v2856 = vlaneseq
        %v2857 = vshrl.u32 %v2856, 7
        %v2858 = vsub.s32 0, %v2857
        %v2859 = vrot.slane %v2854, %v2858
        %v2860 = vlaneseq
        %v2861 = vshrl.u32 %v2860, 7
        %v2862 = vsub.s32 1, %v2861
        %v2863 = vrot.slane %v2854, %v2862
        %v2866 = vmul.f32 %v2850, %v2859
        %v2867 = vmul.f32 %v2851, %v2863
        %v2868 = vmul.f32 %v2852, %v2859
        %v2869 = vmul.f32 %v2853, %v2863
        %v2870 = vld [vmem:[%s905] sm:$0x3]
        %v2872 = vlaneseq
        %v2873 = vshrl.u32 %v2872, 7
        %v2874 = vsub.s32 0, %v2873
        %v2875 = vrot.slane %v2870, %v2874
        %v2876 = vlaneseq
        %v2877 = vshrl.u32 %v2876, 7
        %v2878 = vsub.s32 1, %v2877
        %v2879 = vrot.slane %v2870, %v2878
        %v2882 = vadd.f32 %v2866, %v2875
        %v2883 = vadd.f32 %v2867, %v2879
        %v2884 = vadd.f32 %v2868, %v2875
        %v2885 = vadd.f32 %v2869, %v2879
        %v2886 = vpack.c.bf16 %v2884, %v2882
        %v2887 = vpack.c.bf16 %v2885, %v2883
        %v2888 = vld [vmem:[%s914] sm:$0xff]
        %v2889 = vld [vmem:[%s914 + $0x8] sm:$0xff]
        %v2890 = vld [vmem:[%s914 + $0x10] sm:$0xff]
        %v2891 = vld [vmem:[%s914 + $0x18] sm:$0xff]
        %v2892 = vld [vmem:[%s914 + $0x20] sm:$0xff]
        %v2893 = vld [vmem:[%s914 + $0x28] sm:$0xff]
        %v2894 = vld [vmem:[%s914 + $0x30] sm:$0xff]
        %v2895 = vld [vmem:[%s914 + $0x38] sm:$0xff]
        %v2896 = vld [vmem:[%s914 + $0x40] sm:$0xff]
        %v2897 = vld [vmem:[%s914 + $0x48] sm:$0xff]
        %v2898 = vld [vmem:[%s914 + $0x50] sm:$0xff]
        %v2899 = vld [vmem:[%s914 + $0x58] sm:$0xff]
        %v2900 = vld [vmem:[%s914 + $0x60] sm:$0xff]
        %v2901 = vld [vmem:[%s914 + $0x68] sm:$0xff]
        %v2902 = vld [vmem:[%s914 + $0x70] sm:$0xff]
        %v2903 = vld [vmem:[%s914 + $0x78] sm:$0xff]
        %v2904 = vld [vmem:[%s914 + $0x80] sm:$0xff]
        %v2905 = vld [vmem:[%s914 + $0x88] sm:$0xff]
        %v2906 = vld [vmem:[%s914 + $0x90] sm:$0xff]
        %v2907 = vld [vmem:[%s914 + $0x98] sm:$0xff]
        %v2908 = vld [vmem:[%s914 + $0xa0] sm:$0xff]
        %v2909 = vld [vmem:[%s914 + $0xa8] sm:$0xff]
        %v2910 = vld [vmem:[%s914 + $0xb0] sm:$0xff]
        %v2911 = vld [vmem:[%s914 + $0xb8] sm:$0xff]
        %v2912 = vld [vmem:[%s914 + $0xc0] sm:$0xff]
        %v2913 = vld [vmem:[%s914 + $0xc8] sm:$0xff]
        %v2914 = vld [vmem:[%s914 + $0xd0] sm:$0xff]
        %v2915 = vld [vmem:[%s914 + $0xd8] sm:$0xff]
        %v2916 = vld [vmem:[%s914 + $0xe0] sm:$0xff]
        %v2917 = vld [vmem:[%s914 + $0xe8] sm:$0xff]
        %v2918 = vld [vmem:[%s914 + $0xf0] sm:$0xff]
        %v2919 = vld [vmem:[%s914 + $0xf8] sm:$0xff]
        %v2920 = vld [vmem:[%s923] sm:$0x3]
        %v2922 = vlaneseq
        %v2923 = vshrl.u32 %v2922, 7
        %v2924 = vsub.s32 0, %v2923
        %v2925 = vrot.slane %v2920, %v2924
        %v2926 = vlaneseq
        %v2927 = vshrl.u32 %v2926, 7
        %v2928 = vsub.s32 1, %v2927
        %v2929 = vrot.slane %v2920, %v2928
        %v2964 = vunpack.c.l.b16 %v2888
        %v2965 = vunpack.c.h.b16 %v2888
        %v2966 = vunpack.c.l.b16 %v2889
        %v2967 = vunpack.c.h.b16 %v2889
        %v2968 = vunpack.c.l.b16 %v2890
        %v2969 = vunpack.c.h.b16 %v2890
        %v2970 = vunpack.c.l.b16 %v2891
        %v2971 = vunpack.c.h.b16 %v2891
        %v2972 = vunpack.c.l.b16 %v2892
        %v2973 = vunpack.c.h.b16 %v2892
        %v2974 = vunpack.c.l.b16 %v2893
        %v2975 = vunpack.c.h.b16 %v2893
        %v2976 = vunpack.c.l.b16 %v2894
        %v2977 = vunpack.c.h.b16 %v2894
        %v2978 = vunpack.c.l.b16 %v2895
        %v2979 = vunpack.c.h.b16 %v2895
        %v2980 = vunpack.c.l.b16 %v2896
        %v2981 = vunpack.c.h.b16 %v2896
        %v2982 = vunpack.c.l.b16 %v2897
        %v2983 = vunpack.c.h.b16 %v2897
        %v2984 = vunpack.c.l.b16 %v2898
        %v2985 = vunpack.c.h.b16 %v2898
        %v2986 = vunpack.c.l.b16 %v2899
        %v2987 = vunpack.c.h.b16 %v2899
        %v2988 = vunpack.c.l.b16 %v2900
        %v2989 = vunpack.c.h.b16 %v2900
        %v2990 = vunpack.c.l.b16 %v2901
        %v2991 = vunpack.c.h.b16 %v2901
        %v2992 = vunpack.c.l.b16 %v2902
        %v2993 = vunpack.c.h.b16 %v2902
        %v2994 = vunpack.c.l.b16 %v2903
        %v2995 = vunpack.c.h.b16 %v2903
        %v2996 = vunpack.c.l.b16 %v2904
        %v2997 = vunpack.c.h.b16 %v2904
        %v2998 = vunpack.c.l.b16 %v2905
        %v2999 = vunpack.c.h.b16 %v2905
        %v3000 = vunpack.c.l.b16 %v2906
        %v3001 = vunpack.c.h.b16 %v2906
        %v3002 = vunpack.c.l.b16 %v2907
        %v3003 = vunpack.c.h.b16 %v2907
        %v3004 = vunpack.c.l.b16 %v2908
        %v3005 = vunpack.c.h.b16 %v2908
        %v3006 = vunpack.c.l.b16 %v2909
        %v3007 = vunpack.c.h.b16 %v2909
        %v3008 = vunpack.c.l.b16 %v2910
        %v3009 = vunpack.c.h.b16 %v2910
        %v3010 = vunpack.c.l.b16 %v2911
        %v3011 = vunpack.c.h.b16 %v2911
        %v3012 = vunpack.c.l.b16 %v2912
        %v3013 = vunpack.c.h.b16 %v2912
        %v3014 = vunpack.c.l.b16 %v2913
        %v3015 = vunpack.c.h.b16 %v2913
        %v3016 = vunpack.c.l.b16 %v2914
        %v3017 = vunpack.c.h.b16 %v2914
        %v3018 = vunpack.c.l.b16 %v2915
        %v3019 = vunpack.c.h.b16 %v2915
        %v3020 = vunpack.c.l.b16 %v2916
        %v3021 = vunpack.c.h.b16 %v2916
        %v3022 = vunpack.c.l.b16 %v2917
        %v3023 = vunpack.c.h.b16 %v2917
        %v3024 = vunpack.c.l.b16 %v2918
        %v3025 = vunpack.c.h.b16 %v2918
        %v3026 = vunpack.c.l.b16 %v2919
        %v3027 = vunpack.c.h.b16 %v2919
        %v3028 = vpack.c.b16 %v2966, %v2964
        %v3029 = vpack.c.b16 %v2967, %v2965
        %v3030 = vpack.c.b16 %v2970, %v2968
        %v3031 = vpack.c.b16 %v2971, %v2969
        %v3032 = vpack.c.b16 %v2974, %v2972
        %v3033 = vpack.c.b16 %v2975, %v2973
        %v3034 = vpack.c.b16 %v2978, %v2976
        %v3035 = vpack.c.b16 %v2979, %v2977
        %v3036 = vpack.c.b16 %v2982, %v2980
        %v3037 = vpack.c.b16 %v2983, %v2981
        %v3038 = vpack.c.b16 %v2986, %v2984
        %v3039 = vpack.c.b16 %v2987, %v2985
        %v3040 = vpack.c.b16 %v2990, %v2988
        %v3041 = vpack.c.b16 %v2991, %v2989
        %v3042 = vpack.c.b16 %v2994, %v2992
        %v3043 = vpack.c.b16 %v2995, %v2993
        %v3044 = vpack.c.b16 %v2998, %v2996
        %v3045 = vpack.c.b16 %v2999, %v2997
        %v3046 = vpack.c.b16 %v3002, %v3000
        %v3047 = vpack.c.b16 %v3003, %v3001
        %v3048 = vpack.c.b16 %v3006, %v3004
        %v3049 = vpack.c.b16 %v3007, %v3005
        %v3050 = vpack.c.b16 %v3010, %v3008
        %v3051 = vpack.c.b16 %v3011, %v3009
        %v3052 = vpack.c.b16 %v3014, %v3012
        %v3053 = vpack.c.b16 %v3015, %v3013
        %v3054 = vpack.c.b16 %v3018, %v3016
        %v3055 = vpack.c.b16 %v3019, %v3017
        %v3056 = vpack.c.b16 %v3022, %v3020
        %v3057 = vpack.c.b16 %v3023, %v3021
        %v3058 = vpack.c.b16 %v3026, %v3024
        %v3059 = vpack.c.b16 %v3027, %v3025
        %3092 = vmatprep.subr.bf16.mxu0 %v3043
        %3093 = vmatpush1.bf16.msra.mxu0 %v3042
        %3094 = vmatprep.subr.bf16.mxu0 %v3041
        %3095 = vmatpush1.bf16.msra.mxu0 %v3040
        %3096 = vmatprep.subr.bf16.mxu0 %v3039
        %3097 = vmatpush1.bf16.msra.mxu0 %v3038
        %3098 = vmatprep.subr.bf16.mxu0 %v3037
        %3099 = vmatpush1.bf16.msra.mxu0 %v3036
        %3100 = vmatprep.subr.bf16.mxu0 %v3035
        %3101 = vmatpush1.bf16.msra.mxu0 %v3034
        %3102 = vmatprep.subr.bf16.mxu0 %v3033
        %3103 = vmatpush1.bf16.msra.mxu0 %v3032
        %3104 = vmatprep.subr.bf16.mxu0 %v3031
        %3105 = vmatpush1.bf16.msra.mxu0 %v3030
        %3106 = vmatprep.subr.bf16.mxu0 %v3029
        %3107 = vmatpush1.bf16.msra.mxu0 %v3028
        %3108 = vmatprep.subr.bf16.mxu0 %v3059
        %3109 = vmatpush2.bf16.msra.mxu0 %v3058
        %3110 = vmatprep.subr.bf16.mxu0 %v3057
        %3111 = vmatpush2.bf16.msra.mxu0 %v3056
        %3112 = vmatprep.subr.bf16.mxu0 %v3055
        %3113 = vmatpush2.bf16.msra.mxu0 %v3054
        %3114 = vmatprep.subr.bf16.mxu0 %v3053
        %3115 = vmatpush2.bf16.msra.mxu0 %v3052
        %3116 = vmatprep.subr.bf16.mxu0 %v3051
        %3117 = vmatpush2.bf16.msra.mxu0 %v3050
        %3118 = vmatprep.subr.bf16.mxu0 %v3049
        %3119 = vmatpush2.bf16.msra.mxu0 %v3048
        %3120 = vmatprep.subr.bf16.mxu0 %v3047
        %3121 = vmatpush2.bf16.msra.mxu0 %v3046
        %3122 = vmatprep.subr.bf16.mxu0 %v3045
        %3123 = vmatpush2.bf16.msra.mxu0 %v3044
        %3124 = vmatprep.mubr.bf16.mxu0 %v2887
        %3125 = vmatmul.mubr.bf16.gmra.mxu0 %v2886
        %v3126 = vpop.f32.mrf.mxu0
        %v3127 = vadd.f32 %v2925, %v3126
        %v3128 = vpop.f32.mrf.mxu0
        %v3129 = vadd.f32 %v2929, %v3128
        %v3130 = vpop.f32.mrf.mxu0
        %v3131 = vadd.f32 %v2925, %v3130
        %v3132 = vpop.f32.mrf.mxu0
        %v3133 = vadd.f32 %v2929, %v3132
        %3134 = vdwg.mxu0
        %v3135 = vmax.f32 %v3127, 0.0
        %v3136 = vmax.f32 %v3129, 0.0
        %v3137 = vmax.f32 %v3131, 0.0
        %v3138 = vmax.f32 %v3133, 0.0
        %v3139 = vpack.c.bf16 %v3137, %v3135
        %v3140 = vpack.c.bf16 %v3138, %v3136
        %v3141 = vld [vmem:[%s932] sm:$0xff]
        %v3142 = vld [vmem:[%s932 + $0x8] sm:$0xff]
        %v3143 = vld [vmem:[%s932 + $0x10] sm:$0xff]
        %v3144 = vld [vmem:[%s932 + $0x18] sm:$0xff]
        %v3145 = vld [vmem:[%s932 + $0x20] sm:$0xff]
        %v3146 = vld [vmem:[%s932 + $0x28] sm:$0xff]
        %v3147 = vld [vmem:[%s932 + $0x30] sm:$0xff]
        %v3148 = vld [vmem:[%s932 + $0x38] sm:$0xff]
        %v3149 = vld [vmem:[%s932 + $0x40] sm:$0xff]
        %v3150 = vld [vmem:[%s932 + $0x48] sm:$0xff]
        %v3151 = vld [vmem:[%s932 + $0x50] sm:$0xff]
        %v3152 = vld [vmem:[%s932 + $0x58] sm:$0xff]
        %v3153 = vld [vmem:[%s932 + $0x60] sm:$0xff]
        %v3154 = vld [vmem:[%s932 + $0x68] sm:$0xff]
        %v3155 = vld [vmem:[%s932 + $0x70] sm:$0xff]
        %v3156 = vld [vmem:[%s932 + $0x78] sm:$0xff]
        %v3157 = vld [vmem:[%s932 + $0x80] sm:$0xff]
        %v3158 = vld [vmem:[%s932 + $0x88] sm:$0xff]
        %v3159 = vld [vmem:[%s932 + $0x90] sm:$0xff]
        %v3160 = vld [vmem:[%s932 + $0x98] sm:$0xff]
        %v3161 = vld [vmem:[%s932 + $0xa0] sm:$0xff]
        %v3162 = vld [vmem:[%s932 + $0xa8] sm:$0xff]
        %v3163 = vld [vmem:[%s932 + $0xb0] sm:$0xff]
        %v3164 = vld [vmem:[%s932 + $0xb8] sm:$0xff]
        %v3165 = vld [vmem:[%s932 + $0xc0] sm:$0xff]
        %v3166 = vld [vmem:[%s932 + $0xc8] sm:$0xff]
        %v3167 = vld [vmem:[%s932 + $0xd0] sm:$0xff]
        %v3168 = vld [vmem:[%s932 + $0xd8] sm:$0xff]
        %v3169 = vld [vmem:[%s932 + $0xe0] sm:$0xff]
        %v3170 = vld [vmem:[%s932 + $0xe8] sm:$0xff]
        %v3171 = vld [vmem:[%s932 + $0xf0] sm:$0xff]
        %v3172 = vld [vmem:[%s932 + $0xf8] sm:$0xff]
        %v3173 = vld [vmem:[%s941] sm:$0x3]
        %v3175 = vlaneseq
        %v3176 = vshrl.u32 %v3175, 7
        %v3177 = vsub.s32 0, %v3176
        %v3178 = vrot.slane %v3173, %v3177
        %v3179 = vlaneseq
        %v3180 = vshrl.u32 %v3179, 7
        %v3181 = vsub.s32 1, %v3180
        %v3182 = vrot.slane %v3173, %v3181
        %v3217 = vunpack.c.l.b16 %v3141
        %v3218 = vunpack.c.h.b16 %v3141
        %v3219 = vunpack.c.l.b16 %v3142
        %v3220 = vunpack.c.h.b16 %v3142
        %v3221 = vunpack.c.l.b16 %v3143
        %v3222 = vunpack.c.h.b16 %v3143
        %v3223 = vunpack.c.l.b16 %v3144
        %v3224 = vunpack.c.h.b16 %v3144
        %v3225 = vunpack.c.l.b16 %v3145
        %v3226 = vunpack.c.h.b16 %v3145
        %v3227 = vunpack.c.l.b16 %v3146
        %v3228 = vunpack.c.h.b16 %v3146
        %v3229 = vunpack.c.l.b16 %v3147
        %v3230 = vunpack.c.h.b16 %v3147
        %v3231 = vunpack.c.l.b16 %v3148
        %v3232 = vunpack.c.h.b16 %v3148
        %v3233 = vunpack.c.l.b16 %v3149
        %v3234 = vunpack.c.h.b16 %v3149
        %v3235 = vunpack.c.l.b16 %v3150
        %v3236 = vunpack.c.h.b16 %v3150
        %v3237 = vunpack.c.l.b16 %v3151
        %v3238 = vunpack.c.h.b16 %v3151
        %v3239 = vunpack.c.l.b16 %v3152
        %v3240 = vunpack.c.h.b16 %v3152
        %v3241 = vunpack.c.l.b16 %v3153
        %v3242 = vunpack.c.h.b16 %v3153
        %v3243 = vunpack.c.l.b16 %v3154
        %v3244 = vunpack.c.h.b16 %v3154
        %v3245 = vunpack.c.l.b16 %v3155
        %v3246 = vunpack.c.h.b16 %v3155
        %v3247 = vunpack.c.l.b16 %v3156
        %v3248 = vunpack.c.h.b16 %v3156
        %v3249 = vunpack.c.l.b16 %v3157
        %v3250 = vunpack.c.h.b16 %v3157
        %v3251 = vunpack.c.l.b16 %v3158
        %v3252 = vunpack.c.h.b16 %v3158
        %v3253 = vunpack.c.l.b16 %v3159
        %v3254 = vunpack.c.h.b16 %v3159
        %v3255 = vunpack.c.l.b16 %v3160
        %v3256 = vunpack.c.h.b16 %v3160
        %v3257 = vunpack.c.l.b16 %v3161
        %v3258 = vunpack.c.h.b16 %v3161
        %v3259 = vunpack.c.l.b16 %v3162
        %v3260 = vunpack.c.h.b16 %v3162
        %v3261 = vunpack.c.l.b16 %v3163
        %v3262 = vunpack.c.h.b16 %v3163
        %v3263 = vunpack.c.l.b16 %v3164
        %v3264 = vunpack.c.h.b16 %v3164
        %v3265 = vunpack.c.l.b16 %v3165
        %v3266 = vunpack.c.h.b16 %v3165
        %v3267 = vunpack.c.l.b16 %v3166
        %v3268 = vunpack.c.h.b16 %v3166
        %v3269 = vunpack.c.l.b16 %v3167
        %v3270 = vunpack.c.h.b16 %v3167
        %v3271 = vunpack.c.l.b16 %v3168
        %v3272 = vunpack.c.h.b16 %v3168
        %v3273 = vunpack.c.l.b16 %v3169
        %v3274 = vunpack.c.h.b16 %v3169
        %v3275 = vunpack.c.l.b16 %v3170
        %v3276 = vunpack.c.h.b16 %v3170
        %v3277 = vunpack.c.l.b16 %v3171
        %v3278 = vunpack.c.h.b16 %v3171
        %v3279 = vunpack.c.l.b16 %v3172
        %v3280 = vunpack.c.h.b16 %v3172
        %v3281 = vpack.c.b16 %v3219, %v3217
        %v3282 = vpack.c.b16 %v3220, %v3218
        %v3283 = vpack.c.b16 %v3223, %v3221
        %v3284 = vpack.c.b16 %v3224, %v3222
        %v3285 = vpack.c.b16 %v3227, %v3225
        %v3286 = vpack.c.b16 %v3228, %v3226
        %v3287 = vpack.c.b16 %v3231, %v3229
        %v3288 = vpack.c.b16 %v3232, %v3230
        %v3289 = vpack.c.b16 %v3235, %v3233
        %v3290 = vpack.c.b16 %v3236, %v3234
        %v3291 = vpack.c.b16 %v3239, %v3237
        %v3292 = vpack.c.b16 %v3240, %v3238
        %v3293 = vpack.c.b16 %v3243, %v3241
        %v3294 = vpack.c.b16 %v3244, %v3242
        %v3295 = vpack.c.b16 %v3247, %v3245
        %v3296 = vpack.c.b16 %v3248, %v3246
        %v3297 = vpack.c.b16 %v3251, %v3249
        %v3298 = vpack.c.b16 %v3252, %v3250
        %v3299 = vpack.c.b16 %v3255, %v3253
        %v3300 = vpack.c.b16 %v3256, %v3254
        %v3301 = vpack.c.b16 %v3259, %v3257
        %v3302 = vpack.c.b16 %v3260, %v3258
        %v3303 = vpack.c.b16 %v3263, %v3261
        %v3304 = vpack.c.b16 %v3264, %v3262
        %v3305 = vpack.c.b16 %v3267, %v3265
        %v3306 = vpack.c.b16 %v3268, %v3266
        %v3307 = vpack.c.b16 %v3271, %v3269
        %v3308 = vpack.c.b16 %v3272, %v3270
        %v3309 = vpack.c.b16 %v3275, %v3273
        %v3310 = vpack.c.b16 %v3276, %v3274
        %v3311 = vpack.c.b16 %v3279, %v3277
        %v3312 = vpack.c.b16 %v3280, %v3278
        %3345 = vmatprep.subr.bf16.mxu0 %v3296
        %3346 = vmatpush1.bf16.msra.mxu0 %v3295
        %3347 = vmatprep.subr.bf16.mxu0 %v3294
        %3348 = vmatpush1.bf16.msra.mxu0 %v3293
        %3349 = vmatprep.subr.bf16.mxu0 %v3292
        %3350 = vmatpush1.bf16.msra.mxu0 %v3291
        %3351 = vmatprep.subr.bf16.mxu0 %v3290
        %3352 = vmatpush1.bf16.msra.mxu0 %v3289
        %3353 = vmatprep.subr.bf16.mxu0 %v3288
        %3354 = vmatpush1.bf16.msra.mxu0 %v3287
        %3355 = vmatprep.subr.bf16.mxu0 %v3286
        %3356 = vmatpush1.bf16.msra.mxu0 %v3285
        %3357 = vmatprep.subr.bf16.mxu0 %v3284
        %3358 = vmatpush1.bf16.msra.mxu0 %v3283
        %3359 = vmatprep.subr.bf16.mxu0 %v3282
        %3360 = vmatpush1.bf16.msra.mxu0 %v3281
        %3361 = vmatprep.subr.bf16.mxu0 %v3312
        %3362 = vmatpush2.bf16.msra.mxu0 %v3311
        %3363 = vmatprep.subr.bf16.mxu0 %v3310
        %3364 = vmatpush2.bf16.msra.mxu0 %v3309
        %3365 = vmatprep.subr.bf16.mxu0 %v3308
        %3366 = vmatpush2.bf16.msra.mxu0 %v3307
        %3367 = vmatprep.subr.bf16.mxu0 %v3306
        %3368 = vmatpush2.bf16.msra.mxu0 %v3305
        %3369 = vmatprep.subr.bf16.mxu0 %v3304
        %3370 = vmatpush2.bf16.msra.mxu0 %v3303
        %3371 = vmatprep.subr.bf16.mxu0 %v3302
        %3372 = vmatpush2.bf16.msra.mxu0 %v3301
        %3373 = vmatprep.subr.bf16.mxu0 %v3300
        %3374 = vmatpush2.bf16.msra.mxu0 %v3299
        %3375 = vmatprep.subr.bf16.mxu0 %v3298
        %3376 = vmatpush2.bf16.msra.mxu0 %v3297
        %3377 = vmatprep.mubr.bf16.mxu0 %v3140
        %3378 = vmatmul.mubr.bf16.gmra.mxu0 %v3139
        %v3379 = vpop.f32.mrf.mxu0
        %v3380 = vadd.f32 %v3178, %v3379
        %v3381 = vpop.f32.mrf.mxu0
        %v3382 = vadd.f32 %v3182, %v3381
        %v3383 = vpop.f32.mrf.mxu0
        %v3384 = vadd.f32 %v3178, %v3383
        %v3385 = vpop.f32.mrf.mxu0
        %v3386 = vadd.f32 %v3182, %v3385
        %3387 = vdwg.mxu0
        %v3388 = vadd.f32 %v2882, %v3380
        %v3389 = vadd.f32 %v2883, %v3382
        %v3390 = vadd.f32 %v2884, %v3384
        %v3391 = vadd.f32 %v2885, %v3386
        %v3392 = vadd.f32 %v3388, %v3389
        %3393 = vadd.xlane.f32.xlu0 %v3392
        %v3394 = vpop.xlane.xlu0 %3393
        %v3395 = vadd.f32 %v3390, %v3391
        %3396 = vadd.xlane.f32.xlu0 %v3395
        %v3397 = vpop.xlane.xlu0 %3396
        %v3398 = vmul.f32 %v3394, %v2827
        %v3399 = vmul.f32 %v3397, %v2827
        %v3400 = vsub.f32 %v3388, %v3398
        %v3401 = vsub.f32 %v3389, %v3398
        %v3402 = vsub.f32 %v3390, %v3399
        %v3403 = vsub.f32 %v3391, %v3399
        %v3404 = vmul.f32 %v3400, %v3400
        %v3405 = vmul.f32 %v3401, %v3401
        %v3406 = vmul.f32 %v3402, %v3402
        %v3407 = vmul.f32 %v3403, %v3403
        %v3408 = vadd.f32 %v3404, %v3405
        %3409 = vadd.xlane.f32.xlu0 %v3408
        %v3410 = vpop.xlane.xlu0 %3409
        %v3411 = vadd.f32 %v3406, %v3407
        %3412 = vadd.xlane.f32.xlu0 %v3411
        %v3413 = vpop.xlane.xlu0 %3412
        %v3414 = vmul.f32 %v3410, %v2827
        %v3415 = vmul.f32 %v3413, %v2827
        %v3416 = vadd.f32 %v3414, 1e-05
        %v3417 = vadd.f32 %v3415, 1e-05
        %v3418 = vrsqrt.pop %v3416
        %v3419 = vrsqrt.pop %v3417
        %v3420 = vmul.f32 %v3400, %v3418
        %v3421 = vmul.f32 %v3401, %v3418
        %v3422 = vmul.f32 %v3402, %v3419
        %v3423 = vmul.f32 %v3403, %v3419
        %v3424 = vld [vmem:[%s950] sm:$0x3]
        %v3426 = vlaneseq
        %v3427 = vshrl.u32 %v3426, 7
        %v3428 = vsub.s32 0, %v3427
        %v3429 = vrot.slane %v3424, %v3428
        %v3430 = vlaneseq
        %v3431 = vshrl.u32 %v3430, 7
        %v3432 = vsub.s32 1, %v3431
        %v3433 = vrot.slane %v3424, %v3432
        %v3436 = vmul.f32 %v3420, %v3429
        %v3437 = vmul.f32 %v3421, %v3433
        %v3438 = vmul.f32 %v3422, %v3429
        %v3439 = vmul.f32 %v3423, %v3433
        %v3440 = vld [vmem:[%s959] sm:$0x3]
        %v3442 = vlaneseq
        %v3443 = vshrl.u32 %v3442, 7
        %v3444 = vsub.s32 0, %v3443
        %v3445 = vrot.slane %v3440, %v3444
        %v3446 = vlaneseq
        %v3447 = vshrl.u32 %v3446, 7
        %v3448 = vsub.s32 1, %v3447
        %v3449 = vrot.slane %v3440, %v3448
        %v3452 = vadd.f32 %v3436, %v3445
        %v3453 = vadd.f32 %v3437, %v3449
        %v3454 = vadd.f32 %v3438, %v3445
        %v3455 = vadd.f32 %v3439, %v3449
        %3456 = vst [vmem:[#allocation2] sm:$0xff] %v3452
        %3457 = vst [vmem:[#allocation2 + $0x8] sm:$0xff] %v3453
        %3458 = vst [vmem:[#allocation2 + $0x10] sm:$0xff] %v3454
        %3459 = vst [vmem:[#allocation2 + $0x18] sm:$0xff] %v3455
        %p3460 = scmp.eq.s32.totalorder %s35, 2
        // Predicated region
        $region165: #{pi_forward.2} parent=95 // pred_check
          %p3461 = pneg %p3460
        $region166: #{pi_forward.2} parent=95 // pred_check_branch
          %3463 = sbr.rel (%p3461) target = $region168
        $region167: #{pi_forward.2} parent=95 // pred_region
          %v3464 = vadd.f32 %v3452, %v3453
          %3465 = vadd.xlane.f32.xlu0 %v3464
          %v3466 = vpop.xlane.xlu0 %3465
          %v3467 = vadd.f32 %v3454, %v3455
          %3468 = vadd.xlane.f32.xlu0 %v3467
          %v3469 = vpop.xlane.xlu0 %3468
          %v3470 = vmul.f32 %v3466, %v2827
          %v3471 = vmul.f32 %v3469, %v2827
          %v3472 = vsub.f32 %v3452, %v3470
          %v3473 = vsub.f32 %v3453, %v3470
          %v3474 = vsub.f32 %v3454, %v3471
          %v3475 = vsub.f32 %v3455, %v3471
          %v3476 = vmul.f32 %v3472, %v3472
          %v3477 = vmul.f32 %v3473, %v3473
          %v3478 = vmul.f32 %v3474, %v3474
          %v3479 = vmul.f32 %v3475, %v3475
          %v3480 = vadd.f32 %v3476, %v3477
          %3481 = vadd.xlane.f32.xlu0 %v3480
          %v3482 = vpop.xlane.xlu0 %3481
          %v3483 = vadd.f32 %v3478, %v3479
          %3484 = vadd.xlane.f32.xlu0 %v3483
          %v3485 = vpop.xlane.xlu0 %3484
          %v3486 = vmul.f32 %v3482, %v2827
          %v3487 = vmul.f32 %v3485, %v2827
          %v3488 = vadd.f32 %v3486, 1e-05
          %v3489 = vadd.f32 %v3487, 1e-05
          %v3490 = vrsqrt.pop %v3488
          %v3491 = vrsqrt.pop %v3489
          %v3492 = vmul.f32 %v3472, %v3490
          %v3493 = vmul.f32 %v3473, %v3490
          %v3494 = vmul.f32 %v3474, %v3491
          %v3495 = vmul.f32 %v3475, %v3491
          %v3496 = vld [vmem:[#allocation19] sm:$0x3]
          %v3498 = vlaneseq
          %v3499 = vshrl.u32 %v3498, 7
          %v3500 = vsub.s32 0, %v3499
          %v3501 = vrot.slane %v3496, %v3500
          %v3502 = vlaneseq
          %v3503 = vshrl.u32 %v3502, 7
          %v3504 = vsub.s32 1, %v3503
          %v3505 = vrot.slane %v3496, %v3504
          %v3508 = vmul.f32 %v3492, %v3501
          %v3509 = vmul.f32 %v3493, %v3505
          %v3510 = vmul.f32 %v3494, %v3501
          %v3511 = vmul.f32 %v3495, %v3505
          %v3512 = vld [vmem:[#allocation20] sm:$0x3]
          %v3514 = vlaneseq
          %v3515 = vshrl.u32 %v3514, 7
          %v3516 = vsub.s32 0, %v3515
          %v3517 = vrot.slane %v3512, %v3516
          %v3518 = vlaneseq
          %v3519 = vshrl.u32 %v3518, 7
          %v3520 = vsub.s32 1, %v3519
          %v3521 = vrot.slane %v3512, %v3520
          %v3524 = vadd.f32 %v3508, %v3517
          %v3525 = vadd.f32 %v3509, %v3521
          %v3526 = vadd.f32 %v3510, %v3517
          %v3527 = vadd.f32 %v3511, %v3521
          %3528 = vst [vmem:[%s19] sm:$0xff] %v3524
          %3529 = vst [vmem:[%s19 + $0x8] sm:$0xff] %v3525
          %3530 = vst [vmem:[%s19 + $0x10] sm:$0xff] %v3526
          %3531 = vst [vmem:[%s19 + $0x18] sm:$0xff] %v3527
        $region168: #{pi_forward.2} parent=95 // pred_fallthru
          _
        // Predicated region
        $region169: #{pi_forward.2} parent=95 // pred_check
          %p3532 = pneg %p507
        $region170: #{pi_forward.2} parent=95 // pred_check_branch
          %3534 = sbr.rel (%p3532) target = $region172
        $region171: #{pi_forward.2} parent=95 // pred_region
          _
        $region172: #{pi_forward.2} parent=95 // pred_fallthru
          _
        // Predicated region
        $region173: #{pi_forward.2} parent=95 // pred_check
          %p3535 = pneg %p528
        $region174: #{pi_forward.2} parent=95 // pred_check_branch
          %3537 = sbr.rel (%p3535) target = $region176
        $region175: #{pi_forward.2} parent=95 // pred_region
          _
        $region176: #{pi_forward.2} parent=95 // pred_fallthru
          _
        // Predicated region
        $region177: #{pi_forward.2} parent=95 // pred_check
          %p3538 = pneg %p507
        $region178: #{pi_forward.2} parent=95 // pred_check_branch
          %3540 = sbr.rel (%p3538) target = $region180
        $region179: #{pi_forward.2} parent=95 // pred_region
          _
        $region180: #{pi_forward.2} parent=95 // pred_fallthru
          _
        // Predicated region
        $region181: #{pi_forward.2} parent=95 // pred_check
          %p3541 = pneg %p528
        $region182: #{pi_forward.2} parent=95 // pred_check_branch
          %3543 = sbr.rel (%p3541) target = $region184
        $region183: #{pi_forward.2} parent=95 // pred_region
          _
        $region184: #{pi_forward.2} parent=95 // pred_fallthru
          _
      $region96: #{pi_forward.2} parent=5 // pred_fallthru
        _
      %p3544 = scmp.le.s32.totalorder 2, %s30
      // Predicated region
      $region185: #{pi_forward.2} parent=5 // pred_check
        %p3545 = pneg %p3544
      $region186: #{pi_forward.2} parent=5 // pred_check_branch
        %3547 = sbr.rel (%p3545) target = $region188
      $region187: #{pi_forward.2} parent=5 // pred_region
        %s3548 = ssub.s32 %s30, 2
      $region188: #{pi_forward.2} parent=5 // pred_fallthru
        _
    $region6: #{pi_forward.2} parent=1 // loop_footer
      %s34 = sadd.s32 1, %s30
    $region7: #{pi_forward.2} parent=1 // loop_footer_branch
      %29 = sbr.rel target = $region3
    $region8: #{pi_forward.2} parent=1 // loop_exit
      _
    %3549 = vsyncpa [#allocation4], 1
    %s3550 = scalar_lea.sflag [#allocation4], 1
    %3551 = vsyncpa %s3550, 1
    %3552 = vsyncpa [#allocation6], 1
    %3553 = vsyncpa [#allocation21], 1

// kernel: pi_forward.3
$region0: #{pi_forward.3}
  #allocation0 [shape = 'u32[]', space=smem, size = 0x4, offset = 0x4, fixed_abs, tag = 'smem constant byte address 0x4 - core index']
  #allocation1 [shape = 'u32[144,128]{1,0:T(1,128)}', space=vmem, size = 0x12000, scoped, tag = 'internal scratch']
  #allocation2 [shape = 'f32[8,256]{1,0:T(8,128)}', space=vmem, size = 0x2000, scoped, tag = 'scratch operand']
  %s0 = inlined_call_operand.smem [shape: u32[35], index: -1, kind: input, shape index: {}]
  %s1 = sld [smem:[%s0]]
  %s2 = scalar_lea.smem %s0, 1
  %s3 = sld [smem:[%s2]]
  %s4 = scalar_lea.smem %s0, 2
  %s5 = sld [smem:[%s4]]
  %s6 = scalar_lea.smem %s0, 3
  %s7 = sld [smem:[%s6]]
  %s8 = scalar_lea.smem %s0, 4
  %s9 = sld [smem:[%s8]]
  %s10 = scalar_lea.smem %s0, 5
  %s11 = sld [smem:[%s10]]
  %s12 = scalar_lea.smem %s0, 6
  %s13 = sld [smem:[%s12]]
  %s14 = scalar_lea.smem %s0, 7
  %s15 = sld [smem:[%s14]]
  %s16 = scalar_lea.smem %s0, 8
  %s17 = sld [smem:[%s16]]
  %s18 = scalar_lea.smem %s0, 9
  %s19 = sld [smem:[%s18]]
  %s20 = scalar_lea.smem %s0, 10
  %s21 = sld [smem:[%s20]]
  %s22 = scalar_lea.smem %s0, 11
  %s23 = sld [smem:[%s22]]
  %s24 = scalar_lea.smem %s0, 12
  %s25 = sld [smem:[%s24]]
  %s26 = scalar_lea.smem %s0, 13
  %s27 = sld [smem:[%s26]]
  %s28 = scalar_lea.smem %s0, 14
  %s29 = sld [smem:[%s28]]
  %s30 = scalar_lea.smem %s0, 15
  %s31 = sld [smem:[%s30]]
  %s32 = scalar_lea.smem %s0, 16
  %s33 = sld [smem:[%s32]]
  %s34 = scalar_lea.smem %s0, 17
  %s35 = sld [smem:[%s34]]
  %s36 = scalar_lea.smem %s0, 18
  %s37 = sld [smem:[%s36]]
  %s38 = scalar_lea.smem %s0, 19
  %s39 = sld [smem:[%s38]]
  %s40 = scalar_lea.smem %s0, 20
  %s41 = sld [smem:[%s40]]
  %s42 = scalar_lea.smem %s0, 21
  %s43 = sld [smem:[%s42]]
  %s44 = scalar_lea.smem %s0, 22
  %s45 = sld [smem:[%s44]]
  %s46 = scalar_lea.smem %s0, 23
  %s47 = sld [smem:[%s46]]
  %s48 = scalar_lea.smem %s0, 24
  %s49 = sld [smem:[%s48]]
  %s50 = scalar_lea.smem %s0, 25
  %s51 = sld [smem:[%s50]]
  %s52 = scalar_lea.smem %s0, 26
  %s53 = sld [smem:[%s52]]
  %s54 = scalar_lea.smem %s0, 27
  %s55 = sld [smem:[%s54]]
  %s56 = scalar_lea.smem %s0, 28
  %s57 = sld [smem:[%s56]]
  %s58 = scalar_lea.smem %s0, 29
  %s59 = sld [smem:[%s58]]
  %s60 = scalar_lea.smem %s0, 30
  %s61 = sld [smem:[%s60]]
  %s62 = scalar_lea.smem %s0, 31
  %s63 = sld [smem:[%s62]]
  %s64 = scalar_lea.smem %s0, 32
  %s65 = sld [smem:[%s64]]
  %s66 = scalar_lea.smem %s0, 33
  %s67 = sld [smem:[%s66]]
  %s68 = scalar_lea.smem %s0, 34
  %s69 = sld [smem:[%s68]]
  %s70 = sld [smem:[#allocation0]]
  $region193: #{pi_forward.3} parent=0
    _
  %s72 = ssub.s32 1, %s70
  %s73 = scalar_select 0, %s72, %s70
  $region1: #{pi_forward.3} parent=0
    #allocation3 [shape = 'u8[262144]{0}', space=vmem, size = 0x40000, scoped, tag = 'input window, operand 10']
    #allocation4 [shape = 's32[2]{0}', space=sflag, size = 0x8, scoped, tag = 'scoped memory for pi_forward.3']
    #allocation5 [shape = 'u8[262144]{0}', space=vmem, size = 0x40000, scoped, tag = 'input window, operand 14']
    #allocation6 [shape = 's32[2]{0}', space=sflag, size = 0x8, scoped, tag = 'scoped memory for pi_forward.3']
    #allocation7 [shape = 'u8[262144]{0}', space=vmem, size = 0x40000, scoped, tag = 'input window, operand 18']
    #allocation8 [shape = 'u8[262144]{0}', space=vmem, size = 0x40000, scoped, tag = 'input window, operand 20']
    #allocation9 [shape = 's32[2]{0}', space=sflag, size = 0x8, scoped, tag = 'scoped memory for pi_forward.3']
    %74 = vsyncpa [#allocation4], 0
    %s75 = scalar_lea.sflag [#allocation4], 1
    %76 = vsyncpa %s75, 0
    %77 = vsyncpa [#allocation6], 0
    %s78 = scalar_lea.sflag [#allocation6], 1
    %79 = vsyncpa %s78, 0
    %80 = vsyncpa [#allocation9], 0
    %s81 = scalar_lea.sflag [#allocation9], 1
    %82 = vsyncpa %s81, 0
    loop: start=0, step=1, limit=5
    $region2: #{pi_forward.3} parent=1 // loop_pre_header
      _
    $region3: #{pi_forward.3} parent=1 // loop_header
      %s84 = sphi 0, %s88
      %p85 = scmp.ge.s32.totalorder %s84, 5
      %s92 = sphi 0, %s92
      %s94 = sphi 0, %s92
      %s95 = sphi 0, %s94
      %s109 = sphi 0, %s95
      %s113 = sphi 0, %s113
      %s115 = sphi 0, %s113
      %s116 = sphi 0, %s115
      %s130 = sphi 0, %s116
      %s134 = sphi 0, %s134
      %s136 = sphi 0, %s134
      %s137 = sphi 0, %s136
      %s151 = sphi 0, %s137
      %s155 = sphi 0, %s155
      %s157 = sphi 0, %s155
      %s158 = sphi 0, %s157
      %s172 = sphi 0, %s158
      %s178 = sphi 0, %s180
      %s181 = sphi 0, %s178
      %s182 = sphi 0, %s181
      %s198 = sphi 0, %s182
      %s204 = sphi 0, %s206
      %s207 = sphi 0, %s204
      %s208 = sphi 0, %s207
      %s224 = sphi 0, %s208
      %s230 = sphi 0, %s232
      %s233 = sphi 0, %s230
      %s234 = sphi 0, %s233
      %s250 = sphi 0, %s234
      %s256 = sphi 0, %s258
      %s259 = sphi 0, %s256
      %s260 = sphi 0, %s259
      %s276 = sphi 0, %s260
      %s282 = sphi 0, %s284
      %s285 = sphi 0, %s282
      %s286 = sphi 0, %s285
      %s302 = sphi 0, %s286
      %s308 = sphi 0, %s310
      %s311 = sphi 0, %s308
      %s312 = sphi 0, %s311
      %s328 = sphi 0, %s312
      %s334 = sphi 0, %s336
      %s337 = sphi 0, %s334
      %s338 = sphi 0, %s337
      %s354 = sphi 0, %s338
      %s360 = sphi 0, %s362
      %s363 = sphi 0, %s360
      %s364 = sphi 0, %s363
      %s380 = sphi 0, %s364
      %s386 = sphi 0, %s388
      %s389 = sphi 0, %s386
      %s390 = sphi 0, %s389
      %s406 = sphi 0, %s390
      %s412 = sphi 0, %s414
      %s415 = sphi 0, %s412
      %s416 = sphi 0, %s415
      %s432 = sphi 0, %s416
      %s438 = sphi 0, %s440
      %s441 = sphi 0, %s438
      %s442 = sphi 0, %s441
      %s458 = sphi 0, %s442
      %s464 = sphi 0, %s466
      %s467 = sphi 0, %s464
      %s468 = sphi 0, %s467
      %s484 = sphi 0, %s468
      %s490 = sphi 0, %s492
      %s493 = sphi 0, %s490
      %s494 = sphi 0, %s493
      %s510 = sphi 0, %s494
      %s516 = sphi 0, %s518
      %s519 = sphi 0, %s516
      %s520 = sphi 0, %s519
      %s536 = sphi 0, %s520
      %s542 = sphi 0, %s544
      %s545 = sphi 0, %s542
      %s546 = sphi 0, %s545
      %s562 = sphi 0, %s546
      %s568 = sphi 0, %s570
      %s571 = sphi 0, %s568
      %s572 = sphi 0, %s571
      %s588 = sphi 0, %s572
      %s594 = sphi 0, %s596
      %s597 = sphi 0, %s594
      %s598 = sphi 0, %s597
      %s614 = sphi 0, %s598
      %s620 = sphi 0, %s622
      %s623 = sphi 0, %s620
      %s624 = sphi 0, %s623
      %s640 = sphi 0, %s624
      %s646 = sphi 0, %s648
      %s649 = sphi 0, %s646
      %s650 = sphi 0, %s649
      %s666 = sphi 0, %s650
      %s672 = sphi 0, %s674
      %s675 = sphi 0, %s672
      %s676 = sphi 0, %s675
      %s692 = sphi 0, %s676
      %s696 = sphi 0, %s696
      %s698 = sphi 0, %s696
      %s699 = sphi 0, %s698
      %s713 = sphi 0, %s699
      %s717 = sphi 0, %s717
      %s719 = sphi 0, %s717
      %s720 = sphi 0, %s719
      %s734 = sphi 0, %s720
      %s738 = sphi 0, %s738
      %s740 = sphi 0, %s738
      %s741 = sphi 0, %s740
      %s755 = sphi 0, %s741
      %s759 = sphi 0, %s759
      %s761 = sphi 0, %s759
      %s762 = sphi 0, %s761
      %s776 = sphi 0, %s762
      %s780 = sphi 0, %s780
      %s782 = sphi 0, %s780
      %s783 = sphi 0, %s782
      %s797 = sphi 0, %s783
      %s801 = sphi 0, %s801
      %s803 = sphi 0, %s801
      %s804 = sphi 0, %s803
      %s818 = sphi 0, %s804
      %s822 = sphi 0, %s822
      %s824 = sphi 0, %s822
      %s825 = sphi 0, %s824
      %s839 = sphi 0, %s825
      %s843 = sphi 0, %s843
      %s845 = sphi 0, %s843
      %s846 = sphi 0, %s845
      %s860 = sphi 0, %s846
      %s864 = sphi 0, %s864
      %s866 = sphi 0, %s864
      %s867 = sphi 0, %s866
      %s881 = sphi 0, %s867
      %s885 = sphi 0, %s885
      %s887 = sphi 0, %s885
      %s888 = sphi 0, %s887
      %s902 = sphi 0, %s888
      %s906 = sphi 0, %s906
      %s908 = sphi 0, %s906
      %s909 = sphi 0, %s908
      %s923 = sphi 0, %s909
    $region4: #{pi_forward.3} parent=1 // loop_header_branch
      %87 = sbr.rel (%p85) target = $region8
    $region5: #{pi_forward.3} parent=1 // loop_body
      %s89 = ssub.s32 %s84, 1
      %s90 = ssub.s32 %s84, 2
      %s91 = sadd.s32 %s84, 1
      %s93 = sadd.s32 %s92, 1
      %p96 = scmp.eq.s32.totalorder %s84, 2
      %p97 = scmp.ne.s32.totalorder %s92, %s94
      %p98 = scmp.eq.s32.totalorder %s84, 0
      %p99 = por %p97, %p98
      %p100 = scmp.ne.s32.totalorder %s92, %s94
      %p101 = scmp.eq.s32.totalorder %s89, 2
      %p102 = por %p100, %p101
      %p103 = scmp.ne.s32.totalorder %s94, %s95
      %p104 = scmp.eq.s32.totalorder %s89, 0
      %p105 = por %p103, %p104
      %p106 = scmp.ne.s32.totalorder %s94, %s95
      %p107 = scmp.eq.s32.totalorder %s90, 2
      %p108 = por %p106, %p107
      %p110 = scmp.ne.s32.totalorder %s95, %s109
      %p111 = scmp.eq.s32.totalorder %s90, 0
      %p112 = por %p110, %p111
      %s114 = sadd.s32 %s113, 1
      %p117 = scmp.eq.s32.totalorder %s84, 2
      %p118 = scmp.ne.s32.totalorder %s113, %s115
      %p119 = scmp.eq.s32.totalorder %s84, 0
      %p120 = por %p118, %p119
      %p121 = scmp.ne.s32.totalorder %s113, %s115
      %p122 = scmp.eq.s32.totalorder %s89, 2
      %p123 = por %p121, %p122
      %p124 = scmp.ne.s32.totalorder %s115, %s116
      %p125 = scmp.eq.s32.totalorder %s89, 0
      %p126 = por %p124, %p125
      %p127 = scmp.ne.s32.totalorder %s115, %s116
      %p128 = scmp.eq.s32.totalorder %s90, 2
      %p129 = por %p127, %p128
      %p131 = scmp.ne.s32.totalorder %s116, %s130
      %p132 = scmp.eq.s32.totalorder %s90, 0
      %p133 = por %p131, %p132
      %s135 = sadd.s32 %s134, 1
      %p138 = scmp.eq.s32.totalorder %s84, 2
      %p139 = scmp.ne.s32.totalorder %s134, %s136
      %p140 = scmp.eq.s32.totalorder %s84, 0
      %p141 = por %p139, %p140
      %p142 = scmp.ne.s32.totalorder %s134, %s136
      %p143 = scmp.eq.s32.totalorder %s89, 2
      %p144 = por %p142, %p143
      %p145 = scmp.ne.s32.totalorder %s136, %s137
      %p146 = scmp.eq.s32.totalorder %s89, 0
      %p147 = por %p145, %p146
      %p148 = scmp.ne.s32.totalorder %s136, %s137
      %p149 = scmp.eq.s32.totalorder %s90, 2
      %p150 = por %p148, %p149
      %p152 = scmp.ne.s32.totalorder %s137, %s151
      %p153 = scmp.eq.s32.totalorder %s90, 0
      %p154 = por %p152, %p153
      %s156 = sadd.s32 %s155, 1
      %p159 = scmp.eq.s32.totalorder %s84, 2
      %p160 = scmp.ne.s32.totalorder %s155, %s157
      %p161 = scmp.eq.s32.totalorder %s84, 0
      %p162 = por %p160, %p161
      %p163 = scmp.ne.s32.totalorder %s155, %s157
      %p164 = scmp.eq.s32.totalorder %s89, 2
      %p165 = por %p163, %p164
      %p166 = scmp.ne.s32.totalorder %s157, %s158
      %p167 = scmp.eq.s32.totalorder %s89, 0
      %p168 = por %p166, %p167
      %p169 = scmp.ne.s32.totalorder %s157, %s158
      %p170 = scmp.eq.s32.totalorder %s90, 2
      %p171 = por %p169, %p170
      %p173 = scmp.ne.s32.totalorder %s158, %s172
      %p174 = scmp.eq.s32.totalorder %s90, 0
      %p175 = por %p173, %p174
      %s176 = ssub.s32 %s84, %s91
      %p177 = scmp.eq.s32.totalorder %s176, 0
      %s179 = sadd.s32 %s178, 1
      %s180 = scalar_select %p177, %s178, %s179
      %p183 = pneg %p177
      %p184 = scmp.eq.s32.totalorder %s84, 2
      %p185 = por %p183, %p184
      %p186 = scmp.ne.s32.totalorder %s178, %s181
      %p187 = scmp.eq.s32.totalorder %s84, 0
      %p188 = por %p186, %p187
      %p189 = scmp.ne.s32.totalorder %s178, %s181
      %p190 = scmp.eq.s32.totalorder %s89, 2
      %p191 = por %p189, %p190
      %p192 = scmp.ne.s32.totalorder %s181, %s182
      %p193 = scmp.eq.s32.totalorder %s89, 0
      %p194 = por %p192, %p193
      %p195 = scmp.ne.s32.totalorder %s181, %s182
      %p196 = scmp.eq.s32.totalorder %s90, 2
      %p197 = por %p195, %p196
      %p199 = scmp.ne.s32.totalorder %s182, %s198
      %p200 = scmp.eq.s32.totalorder %s90, 0
      %p201 = por %p199, %p200
      %s202 = ssub.s32 %s84, %s91
      %p203 = scmp.eq.s32.totalorder %s202, 0
      %s205 = sadd.s32 %s204, 1
      %s206 = scalar_select %p203, %s204, %s205
      %p209 = pneg %p203
      %p210 = scmp.eq.s32.totalorder %s84, 2
      %p211 = por %p209, %p210
      %p212 = scmp.ne.s32.totalorder %s204, %s207
      %p213 = scmp.eq.s32.totalorder %s84, 0
      %p214 = por %p212, %p213
      %p215 = scmp.ne.s32.totalorder %s204, %s207
      %p216 = scmp.eq.s32.totalorder %s89, 2
      %p217 = por %p215, %p216
      %p218 = scmp.ne.s32.totalorder %s207, %s208
      %p219 = scmp.eq.s32.totalorder %s89, 0
      %p220 = por %p218, %p219
      %p221 = scmp.ne.s32.totalorder %s207, %s208
      %p222 = scmp.eq.s32.totalorder %s90, 2
      %p223 = por %p221, %p222
      %p225 = scmp.ne.s32.totalorder %s208, %s224
      %p226 = scmp.eq.s32.totalorder %s90, 0
      %p227 = por %p225, %p226
      %s228 = ssub.s32 %s84, %s91
      %p229 = scmp.eq.s32.totalorder %s228, 0
      %s231 = sadd.s32 %s230, 1
      %s232 = scalar_select %p229, %s230, %s231
      %p235 = pneg %p229
      %p236 = scmp.eq.s32.totalorder %s84, 2
      %p237 = por %p235, %p236
      %p238 = scmp.ne.s32.totalorder %s230, %s233
      %p239 = scmp.eq.s32.totalorder %s84, 0
      %p240 = por %p238, %p239
      %p241 = scmp.ne.s32.totalorder %s230, %s233
      %p242 = scmp.eq.s32.totalorder %s89, 2
      %p243 = por %p241, %p242
      %p244 = scmp.ne.s32.totalorder %s233, %s234
      %p245 = scmp.eq.s32.totalorder %s89, 0
      %p246 = por %p244, %p245
      %p247 = scmp.ne.s32.totalorder %s233, %s234
      %p248 = scmp.eq.s32.totalorder %s90, 2
      %p249 = por %p247, %p248
      %p251 = scmp.ne.s32.totalorder %s234, %s250
      %p252 = scmp.eq.s32.totalorder %s90, 0
      %p253 = por %p251, %p252
      %s254 = ssub.s32 %s84, %s91
      %p255 = scmp.eq.s32.totalorder %s254, 0
      %s257 = sadd.s32 %s256, 1
      %s258 = scalar_select %p255, %s256, %s257
      %p261 = pneg %p255
      %p262 = scmp.eq.s32.totalorder %s84, 2
      %p263 = por %p261, %p262
      %p264 = scmp.ne.s32.totalorder %s256, %s259
      %p265 = scmp.eq.s32.totalorder %s84, 0
      %p266 = por %p264, %p265
      %p267 = scmp.ne.s32.totalorder %s256, %s259
      %p268 = scmp.eq.s32.totalorder %s89, 2
      %p269 = por %p267, %p268
      %p270 = scmp.ne.s32.totalorder %s259, %s260
      %p271 = scmp.eq.s32.totalorder %s89, 0
      %p272 = por %p270, %p271
      %p273 = scmp.ne.s32.totalorder %s259, %s260
      %p274 = scmp.eq.s32.totalorder %s90, 2
      %p275 = por %p273, %p274
      %p277 = scmp.ne.s32.totalorder %s260, %s276
      %p278 = scmp.eq.s32.totalorder %s90, 0
      %p279 = por %p277, %p278
      %s280 = ssub.s32 %s84, %s91
      %p281 = scmp.eq.s32.totalorder %s280, 0
      %s283 = sadd.s32 %s282, 1
      %s284 = scalar_select %p281, %s282, %s283
      %p287 = pneg %p281
      %p288 = scmp.eq.s32.totalorder %s84, 2
      %p289 = por %p287, %p288
      %p290 = scmp.ne.s32.totalorder %s282, %s285
      %p291 = scmp.eq.s32.totalorder %s84, 0
      %p292 = por %p290, %p291
      %p293 = scmp.ne.s32.totalorder %s282, %s285
      %p294 = scmp.eq.s32.totalorder %s89, 2
      %p295 = por %p293, %p294
      %p296 = scmp.ne.s32.totalorder %s285, %s286
      %p297 = scmp.eq.s32.totalorder %s89, 0
      %p298 = por %p296, %p297
      %p299 = scmp.ne.s32.totalorder %s285, %s286
      %p300 = scmp.eq.s32.totalorder %s90, 2
      %p301 = por %p299, %p300
      %p303 = scmp.ne.s32.totalorder %s286, %s302
      %p304 = scmp.eq.s32.totalorder %s90, 0
      %p305 = por %p303, %p304
      %s306 = ssub.s32 %s84, %s91
      %p307 = scmp.eq.s32.totalorder %s306, 0
      %s309 = sadd.s32 %s308, 1
      %s310 = scalar_select %p307, %s308, %s309
      %p313 = pneg %p307
      %p314 = scmp.eq.s32.totalorder %s84, 2
      %p315 = por %p313, %p314
      %p316 = scmp.ne.s32.totalorder %s308, %s311
      %p317 = scmp.eq.s32.totalorder %s84, 0
      %p318 = por %p316, %p317
      %p319 = scmp.ne.s32.totalorder %s308, %s311
      %p320 = scmp.eq.s32.totalorder %s89, 2
      %p321 = por %p319, %p320
      %p322 = scmp.ne.s32.totalorder %s311, %s312
      %p323 = scmp.eq.s32.totalorder %s89, 0
      %p324 = por %p322, %p323
      %p325 = scmp.ne.s32.totalorder %s311, %s312
      %p326 = scmp.eq.s32.totalorder %s90, 2
      %p327 = por %p325, %p326
      %p329 = scmp.ne.s32.totalorder %s312, %s328
      %p330 = scmp.eq.s32.totalorder %s90, 0
      %p331 = por %p329, %p330
      %s332 = ssub.s32 %s84, %s91
      %p333 = scmp.eq.s32.totalorder %s332, 0
      %s335 = sadd.s32 %s334, 1
      %s336 = scalar_select %p333, %s334, %s335
      %p339 = pneg %p333
      %p340 = scmp.eq.s32.totalorder %s84, 2
      %p341 = por %p339, %p340
      %p342 = scmp.ne.s32.totalorder %s334, %s337
      %p343 = scmp.eq.s32.totalorder %s84, 0
      %p344 = por %p342, %p343
      %p345 = scmp.ne.s32.totalorder %s334, %s337
      %p346 = scmp.eq.s32.totalorder %s89, 2
      %p347 = por %p345, %p346
      %p348 = scmp.ne.s32.totalorder %s337, %s338
      %p349 = scmp.eq.s32.totalorder %s89, 0
      %p350 = por %p348, %p349
      %p351 = scmp.ne.s32.totalorder %s337, %s338
      %p352 = scmp.eq.s32.totalorder %s90, 2
      %p353 = por %p351, %p352
      %p355 = scmp.ne.s32.totalorder %s338, %s354
      %p356 = scmp.eq.s32.totalorder %s90, 0
      %p357 = por %p355, %p356
      %s358 = ssub.s32 %s84, %s91
      %p359 = scmp.eq.s32.totalorder %s358, 0
      %s361 = sadd.s32 %s360, 1
      %s362 = scalar_select %p359, %s360, %s361
      %p365 = pneg %p359
      %p366 = scmp.eq.s32.totalorder %s84, 2
      %p367 = por %p365, %p366
      %p368 = scmp.ne.s32.totalorder %s360, %s363
      %p369 = scmp.eq.s32.totalorder %s84, 0
      %p370 = por %p368, %p369
      %p371 = scmp.ne.s32.totalorder %s360, %s363
      %p372 = scmp.eq.s32.totalorder %s89, 2
      %p373 = por %p371, %p372
      %p374 = scmp.ne.s32.totalorder %s363, %s364
      %p375 = scmp.eq.s32.totalorder %s89, 0
      %p376 = por %p374, %p375
      %p377 = scmp.ne.s32.totalorder %s363, %s364
      %p378 = scmp.eq.s32.totalorder %s90, 2
      %p379 = por %p377, %p378
      %p381 = scmp.ne.s32.totalorder %s364, %s380
      %p382 = scmp.eq.s32.totalorder %s90, 0
      %p383 = por %p381, %p382
      %s384 = ssub.s32 %s84, %s91
      %p385 = scmp.eq.s32.totalorder %s384, 0
      %s387 = sadd.s32 %s386, 1
      %s388 = scalar_select %p385, %s386, %s387
      %p391 = pneg %p385
      %p392 = scmp.eq.s32.totalorder %s84, 2
      %p393 = por %p391, %p392
      %p394 = scmp.ne.s32.totalorder %s386, %s389
      %p395 = scmp.eq.s32.totalorder %s84, 0
      %p396 = por %p394, %p395
      %p397 = scmp.ne.s32.totalorder %s386, %s389
      %p398 = scmp.eq.s32.totalorder %s89, 2
      %p399 = por %p397, %p398
      %p400 = scmp.ne.s32.totalorder %s389, %s390
      %p401 = scmp.eq.s32.totalorder %s89, 0
      %p402 = por %p400, %p401
      %p403 = scmp.ne.s32.totalorder %s389, %s390
      %p404 = scmp.eq.s32.totalorder %s90, 2
      %p405 = por %p403, %p404
      %p407 = scmp.ne.s32.totalorder %s390, %s406
      %p408 = scmp.eq.s32.totalorder %s90, 0
      %p409 = por %p407, %p408
      %s410 = ssub.s32 %s84, %s91
      %p411 = scmp.eq.s32.totalorder %s410, 0
      %s413 = sadd.s32 %s412, 1
      %s414 = scalar_select %p411, %s412, %s413
      %p417 = pneg %p411
      %p418 = scmp.eq.s32.totalorder %s84, 2
      %p419 = por %p417, %p418
      %p420 = scmp.ne.s32.totalorder %s412, %s415
      %p421 = scmp.eq.s32.totalorder %s84, 0
      %p422 = por %p420, %p421
      %p423 = scmp.ne.s32.totalorder %s412, %s415
      %p424 = scmp.eq.s32.totalorder %s89, 2
      %p425 = por %p423, %p424
      %p426 = scmp.ne.s32.totalorder %s415, %s416
      %p427 = scmp.eq.s32.totalorder %s89, 0
      %p428 = por %p426, %p427
      %p429 = scmp.ne.s32.totalorder %s415, %s416
      %p430 = scmp.eq.s32.totalorder %s90, 2
      %p431 = por %p429, %p430
      %p433 = scmp.ne.s32.totalorder %s416, %s432
      %p434 = scmp.eq.s32.totalorder %s90, 0
      %p435 = por %p433, %p434
      %s436 = ssub.s32 %s84, %s91
      %p437 = scmp.eq.s32.totalorder %s436, 0
      %s439 = sadd.s32 %s438, 1
      %s440 = scalar_select %p437, %s438, %s439
      %p443 = pneg %p437
      %p444 = scmp.eq.s32.totalorder %s84, 2
      %p445 = por %p443, %p444
      %p446 = scmp.ne.s32.totalorder %s438, %s441
      %p447 = scmp.eq.s32.totalorder %s84, 0
      %p448 = por %p446, %p447
      %p449 = scmp.ne.s32.totalorder %s438, %s441
      %p450 = scmp.eq.s32.totalorder %s89, 2
      %p451 = por %p449, %p450
      %p452 = scmp.ne.s32.totalorder %s441, %s442
      %p453 = scmp.eq.s32.totalorder %s89, 0
      %p454 = por %p452, %p453
      %p455 = scmp.ne.s32.totalorder %s441, %s442
      %p456 = scmp.eq.s32.totalorder %s90, 2
      %p457 = por %p455, %p456
      %p459 = scmp.ne.s32.totalorder %s442, %s458
      %p460 = scmp.eq.s32.totalorder %s90, 0
      %p461 = por %p459, %p460
      %s462 = ssub.s32 %s84, %s91
      %p463 = scmp.eq.s32.totalorder %s462, 0
      %s465 = sadd.s32 %s464, 1
      %s466 = scalar_select %p463, %s464, %s465
      %p469 = pneg %p463
      %p470 = scmp.eq.s32.totalorder %s84, 2
      %p471 = por %p469, %p470
      %p472 = scmp.ne.s32.totalorder %s464, %s467
      %p473 = scmp.eq.s32.totalorder %s84, 0
      %p474 = por %p472, %p473
      %p475 = scmp.ne.s32.totalorder %s464, %s467
      %p476 = scmp.eq.s32.totalorder %s89, 2
      %p477 = por %p475, %p476
      %p478 = scmp.ne.s32.totalorder %s467, %s468
      %p479 = scmp.eq.s32.totalorder %s89, 0
      %p480 = por %p478, %p479
      %p481 = scmp.ne.s32.totalorder %s467, %s468
      %p482 = scmp.eq.s32.totalorder %s90, 2
      %p483 = por %p481, %p482
      %p485 = scmp.ne.s32.totalorder %s468, %s484
      %p486 = scmp.eq.s32.totalorder %s90, 0
      %p487 = por %p485, %p486
      %s488 = ssub.s32 %s84, %s91
      %p489 = scmp.eq.s32.totalorder %s488, 0
      %s491 = sadd.s32 %s490, 1
      %s492 = scalar_select %p489, %s490, %s491
      %p495 = pneg %p489
      %p496 = scmp.eq.s32.totalorder %s84, 2
      %p497 = por %p495, %p496
      %p498 = scmp.ne.s32.totalorder %s490, %s493
      %p499 = scmp.eq.s32.totalorder %s84, 0
      %p500 = por %p498, %p499
      %p501 = scmp.ne.s32.totalorder %s490, %s493
      %p502 = scmp.eq.s32.totalorder %s89, 2
      %p503 = por %p501, %p502
      %p504 = scmp.ne.s32.totalorder %s493, %s494
      %p505 = scmp.eq.s32.totalorder %s89, 0
      %p506 = por %p504, %p505
      %p507 = scmp.ne.s32.totalorder %s493, %s494
      %p508 = scmp.eq.s32.totalorder %s90, 2
      %p509 = por %p507, %p508
      %p511 = scmp.ne.s32.totalorder %s494, %s510
      %p512 = scmp.eq.s32.totalorder %s90, 0
      %p513 = por %p511, %p512
      %s514 = ssub.s32 %s84, %s91
      %p515 = scmp.eq.s32.totalorder %s514, 0
      %s517 = sadd.s32 %s516, 1
      %s518 = scalar_select %p515, %s516, %s517
      %p521 = pneg %p515
      %p522 = scmp.eq.s32.totalorder %s84, 2
      %p523 = por %p521, %p522
      %p524 = scmp.ne.s32.totalorder %s516, %s519
      %p525 = scmp.eq.s32.totalorder %s84, 0
      %p526 = por %p524, %p525
      %p527 = scmp.ne.s32.totalorder %s516, %s519
      %p528 = scmp.eq.s32.totalorder %s89, 2
      %p529 = por %p527, %p528
      %p530 = scmp.ne.s32.totalorder %s519, %s520
      %p531 = scmp.eq.s32.totalorder %s89, 0
      %p532 = por %p530, %p531
      %p533 = scmp.ne.s32.totalorder %s519, %s520
      %p534 = scmp.eq.s32.totalorder %s90, 2
      %p535 = por %p533, %p534
      %p537 = scmp.ne.s32.totalorder %s520, %s536
      %p538 = scmp.eq.s32.totalorder %s90, 0
      %p539 = por %p537, %p538
      %s540 = ssub.s32 %s84, %s91
      %p541 = scmp.eq.s32.totalorder %s540, 0
      %s543 = sadd.s32 %s542, 1
      %s544 = scalar_select %p541, %s542, %s543
      %p547 = pneg %p541
      %p548 = scmp.eq.s32.totalorder %s84, 2
      %p549 = por %p547, %p548
      %p550 = scmp.ne.s32.totalorder %s542, %s545
      %p551 = scmp.eq.s32.totalorder %s84, 0
      %p552 = por %p550, %p551
      %p553 = scmp.ne.s32.totalorder %s542, %s545
      %p554 = scmp.eq.s32.totalorder %s89, 2
      %p555 = por %p553, %p554
      %p556 = scmp.ne.s32.totalorder %s545, %s546
      %p557 = scmp.eq.s32.totalorder %s89, 0
      %p558 = por %p556, %p557
      %p559 = scmp.ne.s32.totalorder %s545, %s546
      %p560 = scmp.eq.s32.totalorder %s90, 2
      %p561 = por %p559, %p560
      %p563 = scmp.ne.s32.totalorder %s546, %s562
      %p564 = scmp.eq.s32.totalorder %s90, 0
      %p565 = por %p563, %p564
      %s566 = ssub.s32 %s84, %s91
      %p567 = scmp.eq.s32.totalorder %s566, 0
      %s569 = sadd.s32 %s568, 1
      %s570 = scalar_select %p567, %s568, %s569
      %p573 = pneg %p567
      %p574 = scmp.eq.s32.totalorder %s84, 2
      %p575 = por %p573, %p574
      %p576 = scmp.ne.s32.totalorder %s568, %s571
      %p577 = scmp.eq.s32.totalorder %s84, 0
      %p578 = por %p576, %p577
      %p579 = scmp.ne.s32.totalorder %s568, %s571
      %p580 = scmp.eq.s32.totalorder %s89, 2
      %p581 = por %p579, %p580
      %p582 = scmp.ne.s32.totalorder %s571, %s572
      %p583 = scmp.eq.s32.totalorder %s89, 0
      %p584 = por %p582, %p583
      %p585 = scmp.ne.s32.totalorder %s571, %s572
      %p586 = scmp.eq.s32.totalorder %s90, 2
      %p587 = por %p585, %p586
      %p589 = scmp.ne.s32.totalorder %s572, %s588
      %p590 = scmp.eq.s32.totalorder %s90, 0
      %p591 = por %p589, %p590
      %s592 = ssub.s32 %s84, %s91
      %p593 = scmp.eq.s32.totalorder %s592, 0
      %s595 = sadd.s32 %s594, 1
      %s596 = scalar_select %p593, %s594, %s595
      %p599 = pneg %p593
      %p600 = scmp.eq.s32.totalorder %s84, 2
      %p601 = por %p599, %p600
      %p602 = scmp.ne.s32.totalorder %s594, %s597
      %p603 = scmp.eq.s32.totalorder %s84, 0
      %p604 = por %p602, %p603
      %p605 = scmp.ne.s32.totalorder %s594, %s597
      %p606 = scmp.eq.s32.totalorder %s89, 2
      %p607 = por %p605, %p606
      %p608 = scmp.ne.s32.totalorder %s597, %s598
      %p609 = scmp.eq.s32.totalorder %s89, 0
      %p610 = por %p608, %p609
      %p611 = scmp.ne.s32.totalorder %s597, %s598
      %p612 = scmp.eq.s32.totalorder %s90, 2
      %p613 = por %p611, %p612
      %p615 = scmp.ne.s32.totalorder %s598, %s614
      %p616 = scmp.eq.s32.totalorder %s90, 0
      %p617 = por %p615, %p616
      %s618 = ssub.s32 %s84, %s91
      %p619 = scmp.eq.s32.totalorder %s618, 0
      %s621 = sadd.s32 %s620, 1
      %s622 = scalar_select %p619, %s620, %s621
      %p625 = pneg %p619
      %p626 = scmp.eq.s32.totalorder %s84, 2
      %p627 = por %p625, %p626
      %p628 = scmp.ne.s32.totalorder %s620, %s623
      %p629 = scmp.eq.s32.totalorder %s84, 0
      %p630 = por %p628, %p629
      %p631 = scmp.ne.s32.totalorder %s620, %s623
      %p632 = scmp.eq.s32.totalorder %s89, 2
      %p633 = por %p631, %p632
      %p634 = scmp.ne.s32.totalorder %s623, %s624
      %p635 = scmp.eq.s32.totalorder %s89, 0
      %p636 = por %p634, %p635
      %p637 = scmp.ne.s32.totalorder %s623, %s624
      %p638 = scmp.eq.s32.totalorder %s90, 2
      %p639 = por %p637, %p638
      %p641 = scmp.ne.s32.totalorder %s624, %s640
      %p642 = scmp.eq.s32.totalorder %s90, 0
      %p643 = por %p641, %p642
      %s644 = ssub.s32 %s84, %s91
      %p645 = scmp.eq.s32.totalorder %s644, 0
      %s647 = sadd.s32 %s646, 1
      %s648 = scalar_select %p645, %s646, %s647
      %p651 = pneg %p645
      %p652 = scmp.eq.s32.totalorder %s84, 2
      %p653 = por %p651, %p652
      %p654 = scmp.ne.s32.totalorder %s646, %s649
      %p655 = scmp.eq.s32.totalorder %s84, 0
      %p656 = por %p654, %p655
      %p657 = scmp.ne.s32.totalorder %s646, %s649
      %p658 = scmp.eq.s32.totalorder %s89, 2
      %p659 = por %p657, %p658
      %p660 = scmp.ne.s32.totalorder %s649, %s650
      %p661 = scmp.eq.s32.totalorder %s89, 0
      %p662 = por %p660, %p661
      %p663 = scmp.ne.s32.totalorder %s649, %s650
      %p664 = scmp.eq.s32.totalorder %s90, 2
      %p665 = por %p663, %p664
      %p667 = scmp.ne.s32.totalorder %s650, %s666
      %p668 = scmp.eq.s32.totalorder %s90, 0
      %p669 = por %p667, %p668
      %s670 = ssub.s32 %s84, %s91
      %p671 = scmp.eq.s32.totalorder %s670, 0
      %s673 = sadd.s32 %s672, 1
      %s674 = scalar_select %p671, %s672, %s673
      %p677 = pneg %p671
      %p678 = scmp.eq.s32.totalorder %s84, 2
      %p679 = por %p677, %p678
      %p680 = scmp.ne.s32.totalorder %s672, %s675
      %p681 = scmp.eq.s32.totalorder %s84, 0
      %p682 = por %p680, %p681
      %p683 = scmp.ne.s32.totalorder %s672, %s675
      %p684 = scmp.eq.s32.totalorder %s89, 2
      %p685 = por %p683, %p684
      %p686 = scmp.ne.s32.totalorder %s675, %s676
      %p687 = scmp.eq.s32.totalorder %s89, 0
      %p688 = por %p686, %p687
      %p689 = scmp.ne.s32.totalorder %s675, %s676
      %p690 = scmp.eq.s32.totalorder %s90, 2
      %p691 = por %p689, %p690
      %p693 = scmp.ne.s32.totalorder %s676, %s692
      %p694 = scmp.eq.s32.totalorder %s90, 0
      %p695 = por %p693, %p694
      %s697 = sadd.s32 %s696, 1
      %p700 = scmp.eq.s32.totalorder %s84, 2
      %p701 = scmp.ne.s32.totalorder %s696, %s698
      %p702 = scmp.eq.s32.totalorder %s84, 0
      %p703 = por %p701, %p702
      %p704 = scmp.ne.s32.totalorder %s696, %s698
      %p705 = scmp.eq.s32.totalorder %s89, 2
      %p706 = por %p704, %p705
      %p707 = scmp.ne.s32.totalorder %s698, %s699
      %p708 = scmp.eq.s32.totalorder %s89, 0
      %p709 = por %p707, %p708
      %p710 = scmp.ne.s32.totalorder %s698, %s699
      %p711 = scmp.eq.s32.totalorder %s90, 2
      %p712 = por %p710, %p711
      %p714 = scmp.ne.s32.totalorder %s699, %s713
      %p715 = scmp.eq.s32.totalorder %s90, 0
      %p716 = por %p714, %p715
      %s718 = sadd.s32 %s717, 1
      %p721 = scmp.eq.s32.totalorder %s84, 2
      %p722 = scmp.ne.s32.totalorder %s717, %s719
      %p723 = scmp.eq.s32.totalorder %s84, 0
      %p724 = por %p722, %p723
      %p725 = scmp.ne.s32.totalorder %s717, %s719
      %p726 = scmp.eq.s32.totalorder %s89, 2
      %p727 = por %p725, %p726
      %p728 = scmp.ne.s32.totalorder %s719, %s720
      %p729 = scmp.eq.s32.totalorder %s89, 0
      %p730 = por %p728, %p729
      %p731 = scmp.ne.s32.totalorder %s719, %s720
      %p732 = scmp.eq.s32.totalorder %s90, 2
      %p733 = por %p731, %p732
      %p735 = scmp.ne.s32.totalorder %s720, %s734
      %p736 = scmp.eq.s32.totalorder %s90, 0
      %p737 = por %p735, %p736
      %s739 = sadd.s32 %s738, 1
      %p742 = scmp.eq.s32.totalorder %s84, 2
      %p743 = scmp.ne.s32.totalorder %s738, %s740
      %p744 = scmp.eq.s32.totalorder %s84, 0
      %p745 = por %p743, %p744
      %p746 = scmp.ne.s32.totalorder %s738, %s740
      %p747 = scmp.eq.s32.totalorder %s89, 2
      %p748 = por %p746, %p747
      %p749 = scmp.ne.s32.totalorder %s740, %s741
      %p750 = scmp.eq.s32.totalorder %s89, 0
      %p751 = por %p749, %p750
      %p752 = scmp.ne.s32.totalorder %s740, %s741
      %p753 = scmp.eq.s32.totalorder %s90, 2
      %p754 = por %p752, %p753
      %p756 = scmp.ne.s32.totalorder %s741, %s755
      %p757 = scmp.eq.s32.totalorder %s90, 0
      %p758 = por %p756, %p757
      %s760 = sadd.s32 %s759, 1
      %p763 = scmp.eq.s32.totalorder %s84, 2
      %p764 = scmp.ne.s32.totalorder %s759, %s761
      %p765 = scmp.eq.s32.totalorder %s84, 0
      %p766 = por %p764, %p765
      %p767 = scmp.ne.s32.totalorder %s759, %s761
      %p768 = scmp.eq.s32.totalorder %s89, 2
      %p769 = por %p767, %p768
      %p770 = scmp.ne.s32.totalorder %s761, %s762
      %p771 = scmp.eq.s32.totalorder %s89, 0
      %p772 = por %p770, %p771
      %p773 = scmp.ne.s32.totalorder %s761, %s762
      %p774 = scmp.eq.s32.totalorder %s90, 2
      %p775 = por %p773, %p774
      %p777 = scmp.ne.s32.totalorder %s762, %s776
      %p778 = scmp.eq.s32.totalorder %s90, 0
      %p779 = por %p777, %p778
      %s781 = sadd.s32 %s780, 1
      %p784 = scmp.eq.s32.totalorder %s84, 2
      %p785 = scmp.ne.s32.totalorder %s780, %s782
      %p786 = scmp.eq.s32.totalorder %s84, 0
      %p787 = por %p785, %p786
      %p788 = scmp.ne.s32.totalorder %s780, %s782
      %p789 = scmp.eq.s32.totalorder %s89, 2
      %p790 = por %p788, %p789
      %p791 = scmp.ne.s32.totalorder %s782, %s783
      %p792 = scmp.eq.s32.totalorder %s89, 0
      %p793 = por %p791, %p792
      %p794 = scmp.ne.s32.totalorder %s782, %s783
      %p795 = scmp.eq.s32.totalorder %s90, 2
      %p796 = por %p794, %p795
      %p798 = scmp.ne.s32.totalorder %s783, %s797
      %p799 = scmp.eq.s32.totalorder %s90, 0
      %p800 = por %p798, %p799
      %s802 = sadd.s32 %s801, 1
      %p805 = scmp.eq.s32.totalorder %s84, 2
      %p806 = scmp.ne.s32.totalorder %s801, %s803
      %p807 = scmp.eq.s32.totalorder %s84, 0
      %p808 = por %p806, %p807
      %p809 = scmp.ne.s32.totalorder %s801, %s803
      %p810 = scmp.eq.s32.totalorder %s89, 2
      %p811 = por %p809, %p810
      %p812 = scmp.ne.s32.totalorder %s803, %s804
      %p813 = scmp.eq.s32.totalorder %s89, 0
      %p814 = por %p812, %p813
      %p815 = scmp.ne.s32.totalorder %s803, %s804
      %p816 = scmp.eq.s32.totalorder %s90, 2
      %p817 = por %p815, %p816
      %p819 = scmp.ne.s32.totalorder %s804, %s818
      %p820 = scmp.eq.s32.totalorder %s90, 0
      %p821 = por %p819, %p820
      %s823 = sadd.s32 %s822, 1
      %p826 = scmp.eq.s32.totalorder %s84, 2
      %p827 = scmp.ne.s32.totalorder %s822, %s824
      %p828 = scmp.eq.s32.totalorder %s84, 0
      %p829 = por %p827, %p828
      %p830 = scmp.ne.s32.totalorder %s822, %s824
      %p831 = scmp.eq.s32.totalorder %s89, 2
      %p832 = por %p830, %p831
      %p833 = scmp.ne.s32.totalorder %s824, %s825
      %p834 = scmp.eq.s32.totalorder %s89, 0
      %p835 = por %p833, %p834
      %p836 = scmp.ne.s32.totalorder %s824, %s825
      %p837 = scmp.eq.s32.totalorder %s90, 2
      %p838 = por %p836, %p837
      %p840 = scmp.ne.s32.totalorder %s825, %s839
      %p841 = scmp.eq.s32.totalorder %s90, 0
      %p842 = por %p840, %p841
      %s844 = sadd.s32 %s843, 1
      %p847 = scmp.eq.s32.totalorder %s84, 2
      %p848 = scmp.ne.s32.totalorder %s843, %s845
      %p849 = scmp.eq.s32.totalorder %s84, 0
      %p850 = por %p848, %p849
      %p851 = scmp.ne.s32.totalorder %s843, %s845
      %p852 = scmp.eq.s32.totalorder %s89, 2
      %p853 = por %p851, %p852
      %p854 = scmp.ne.s32.totalorder %s845, %s846
      %p855 = scmp.eq.s32.totalorder %s89, 0
      %p856 = por %p854, %p855
      %p857 = scmp.ne.s32.totalorder %s845, %s846
      %p858 = scmp.eq.s32.totalorder %s90, 2
      %p859 = por %p857, %p858
      %p861 = scmp.ne.s32.totalorder %s846, %s860
      %p862 = scmp.eq.s32.totalorder %s90, 0
      %p863 = por %p861, %p862
      %s865 = sadd.s32 %s864, 1
      %p868 = scmp.eq.s32.totalorder %s84, 2
      %p869 = scmp.ne.s32.totalorder %s864, %s866
      %p870 = scmp.eq.s32.totalorder %s84, 0
      %p871 = por %p869, %p870
      %p872 = scmp.ne.s32.totalorder %s864, %s866
      %p873 = scmp.eq.s32.totalorder %s89, 2
      %p874 = por %p872, %p873
      %p875 = scmp.ne.s32.totalorder %s866, %s867
      %p876 = scmp.eq.s32.totalorder %s89, 0
      %p877 = por %p875, %p876
      %p878 = scmp.ne.s32.totalorder %s866, %s867
      %p879 = scmp.eq.s32.totalorder %s90, 2
      %p880 = por %p878, %p879
      %p882 = scmp.ne.s32.totalorder %s867, %s881
      %p883 = scmp.eq.s32.totalorder %s90, 0
      %p884 = por %p882, %p883
      %s886 = sadd.s32 %s885, 1
      %p889 = scmp.eq.s32.totalorder %s84, 2
      %p890 = scmp.ne.s32.totalorder %s885, %s887
      %p891 = scmp.eq.s32.totalorder %s84, 0
      %p892 = por %p890, %p891
      %p893 = scmp.ne.s32.totalorder %s885, %s887
      %p894 = scmp.eq.s32.totalorder %s89, 2
      %p895 = por %p893, %p894
      %p896 = scmp.ne.s32.totalorder %s887, %s888
      %p897 = scmp.eq.s32.totalorder %s89, 0
      %p898 = por %p896, %p897
      %p899 = scmp.ne.s32.totalorder %s887, %s888
      %p900 = scmp.eq.s32.totalorder %s90, 2
      %p901 = por %p899, %p900
      %p903 = scmp.ne.s32.totalorder %s888, %s902
      %p904 = scmp.eq.s32.totalorder %s90, 0
      %p905 = por %p903, %p904
      %s907 = sadd.s32 %s906, 1
      %p910 = scmp.eq.s32.totalorder %s84, 2
      %p911 = scmp.ne.s32.totalorder %s906, %s908
      %p912 = scmp.eq.s32.totalorder %s84, 0
      %p913 = por %p911, %p912
      %p914 = scmp.ne.s32.totalorder %s906, %s908
      %p915 = scmp.eq.s32.totalorder %s89, 2
      %p916 = por %p914, %p915
      %p917 = scmp.ne.s32.totalorder %s908, %s909
      %p918 = scmp.eq.s32.totalorder %s89, 0
      %p919 = por %p917, %p918
      %p920 = scmp.ne.s32.totalorder %s908, %s909
      %p921 = scmp.eq.s32.totalorder %s90, 2
      %p922 = por %p920, %p921
      %p924 = scmp.ne.s32.totalorder %s909, %s923
      %p925 = scmp.eq.s32.totalorder %s90, 0
      %p926 = por %p924, %p925
      %p927 = scmp.le.s32.totalorder 1, %s84
      %p928 = scmp.lt.s32.totalorder %s84, 4
      %p929 = pnand %p927, %p928
      %p930 = pneg %p929
      // Predicated region
      $region9: #{pi_forward.3} parent=5 // pred_check
        _
      $region10: #{pi_forward.3} parent=5 // pred_check_branch
        %932 = sbr.rel (%p929) target = $region12
      $region11: #{pi_forward.3} parent=5 // pred_region
        %s933 = ssub.s32 %s84, 1
        // Predicated region
        $region13: #{pi_forward.3} parent=11 // pred_check
          %p934 = pneg %p105
        $region14: #{pi_forward.3} parent=11 // pred_check_branch
          %936 = sbr.rel (%p934) target = $region16
        $region15: #{pi_forward.3} parent=11 // pred_region
          _
        $region16: #{pi_forward.3} parent=11 // pred_fallthru
          _
        // Predicated region
        $region17: #{pi_forward.3} parent=11 // pred_check
          %p937 = pneg %p126
        $region18: #{pi_forward.3} parent=11 // pred_check_branch
          %939 = sbr.rel (%p937) target = $region20
        $region19: #{pi_forward.3} parent=11 // pred_region
          _
        $region20: #{pi_forward.3} parent=11 // pred_fallthru
          _
        // Predicated region
        $region21: #{pi_forward.3} parent=11 // pred_check
          %p940 = pneg %p147
        $region22: #{pi_forward.3} parent=11 // pred_check_branch
          %942 = sbr.rel (%p940) target = $region24
        $region23: #{pi_forward.3} parent=11 // pred_region
          _
        $region24: #{pi_forward.3} parent=11 // pred_fallthru
          _
        // Predicated region
        $region25: #{pi_forward.3} parent=11 // pred_check
          %p943 = pneg %p168
        $region26: #{pi_forward.3} parent=11 // pred_check_branch
          %945 = sbr.rel (%p943) target = $region28
        $region27: #{pi_forward.3} parent=11 // pred_region
          _
        $region28: #{pi_forward.3} parent=11 // pred_fallthru
          _
        // Predicated region
        $region29: #{pi_forward.3} parent=11 // pred_check
          %p946 = pneg %p709
        $region30: #{pi_forward.3} parent=11 // pred_check_branch
          %948 = sbr.rel (%p946) target = $region32
        $region31: #{pi_forward.3} parent=11 // pred_region
          _
        $region32: #{pi_forward.3} parent=11 // pred_fallthru
          _
        // Predicated region
        $region33: #{pi_forward.3} parent=11 // pred_check
          %p949 = pneg %p730
        $region34: #{pi_forward.3} parent=11 // pred_check_branch
          %951 = sbr.rel (%p949) target = $region36
        $region35: #{pi_forward.3} parent=11 // pred_region
          _
        $region36: #{pi_forward.3} parent=11 // pred_fallthru
          _
        // Predicated region
        $region37: #{pi_forward.3} parent=11 // pred_check
          %p952 = pneg %p751
        $region38: #{pi_forward.3} parent=11 // pred_check_branch
          %954 = sbr.rel (%p952) target = $region40
        $region39: #{pi_forward.3} parent=11 // pred_region
          _
        $region40: #{pi_forward.3} parent=11 // pred_fallthru
          _
        // Predicated region
        $region41: #{pi_forward.3} parent=11 // pred_check
          %p955 = pneg %p772
        $region42: #{pi_forward.3} parent=11 // pred_check_branch
          %957 = sbr.rel (%p955) target = $region44
        $region43: #{pi_forward.3} parent=11 // pred_region
          _
        $region44: #{pi_forward.3} parent=11 // pred_fallthru
          _
        // Predicated region
        $region45: #{pi_forward.3} parent=11 // pred_check
          %p958 = pneg %p793
        $region46: #{pi_forward.3} parent=11 // pred_check_branch
          %960 = sbr.rel (%p958) target = $region48
        $region47: #{pi_forward.3} parent=11 // pred_region
          _
        $region48: #{pi_forward.3} parent=11 // pred_fallthru
          _
        // Predicated region
        $region49: #{pi_forward.3} parent=11 // pred_check
          %p961 = pneg %p814
        $region50: #{pi_forward.3} parent=11 // pred_check_branch
          %963 = sbr.rel (%p961) target = $region52
        $region51: #{pi_forward.3} parent=11 // pred_region
          _
        $region52: #{pi_forward.3} parent=11 // pred_fallthru
          _
        // Predicated region
        $region53: #{pi_forward.3} parent=11 // pred_check
          %p964 = pneg %p835
        $region54: #{pi_forward.3} parent=11 // pred_check_branch
          %966 = sbr.rel (%p964) target = $region56
        $region55: #{pi_forward.3} parent=11 // pred_region
          _
        $region56: #{pi_forward.3} parent=11 // pred_fallthru
          _
        // Predicated region
        $region57: #{pi_forward.3} parent=11 // pred_check
          %p967 = pneg %p856
        $region58: #{pi_forward.3} parent=11 // pred_check_branch
          %969 = sbr.rel (%p967) target = $region60
        $region59: #{pi_forward.3} parent=11 // pred_region
          _
        $region60: #{pi_forward.3} parent=11 // pred_fallthru
          _
        // Predicated region
        $region61: #{pi_forward.3} parent=11 // pred_check
          %p970 = pneg %p877
        $region62: #{pi_forward.3} parent=11 // pred_check_branch
          %972 = sbr.rel (%p970) target = $region64
        $region63: #{pi_forward.3} parent=11 // pred_region
          _
        $region64: #{pi_forward.3} parent=11 // pred_fallthru
          _
        // Predicated region
        $region65: #{pi_forward.3} parent=11 // pred_check
          %p973 = pneg %p898
        $region66: #{pi_forward.3} parent=11 // pred_check_branch
          %975 = sbr.rel (%p973) target = $region68
        $region67: #{pi_forward.3} parent=11 // pred_region
          _
        $region68: #{pi_forward.3} parent=11 // pred_fallthru
          _
      $region12: #{pi_forward.3} parent=5 // pred_fallthru
        _
      %p976 = scmp.lt.s32.totalorder %s84, 3
      // Predicated region
      $region69: #{pi_forward.3} parent=5 // pred_check
        %p977 = pneg %p976
      $region70: #{pi_forward.3} parent=5 // pred_check_branch
        %979 = sbr.rel (%p977) target = $region72
      $region71: #{pi_forward.3} parent=5 // pred_region
        // Predicated region
        $region73: #{pi_forward.3} parent=71 // pred_check
          %p980 = pneg %p188
        $region74: #{pi_forward.3} parent=71 // pred_check_branch
          %982 = sbr.rel (%p980) target = $region76
        $region75: #{pi_forward.3} parent=71 // pred_region
          %p983 = scmp.lt.s32.totalorder %s84, 2
          %s984 = scalar_select %p983, %s84, 2
          %s985 = smul.addr %s984, 192
          %s986 = smul.addr %s985, 4
          %s987 = scalar_lea.vmem %s9, %s986
        $region76: #{pi_forward.3} parent=71 // pred_fallthru
          _
        // Predicated region
        $region77: #{pi_forward.3} parent=71 // pred_check
          %p988 = pneg %p214
        $region78: #{pi_forward.3} parent=71 // pred_check_branch
          %990 = sbr.rel (%p988) target = $region80
        $region79: #{pi_forward.3} parent=71 // pred_region
          %p991 = scmp.lt.s32.totalorder %s84, 2
          %s992 = scalar_select %p991, %s84, 2
          %s993 = smul.addr %s992, 6
          %s994 = scalar_lea.vmem %s11, %s993
        $region80: #{pi_forward.3} parent=71 // pred_fallthru
          _
        // Predicated region
        $region81: #{pi_forward.3} parent=71 // pred_check
          %p995 = pneg %p240
        $region82: #{pi_forward.3} parent=71 // pred_check_branch
          %997 = sbr.rel (%p995) target = $region84
        $region83: #{pi_forward.3} parent=71 // pred_region
          %p998 = scmp.lt.s32.totalorder %s84, 2
          %s999 = scalar_select %p998, %s84, 2
          %s1000 = smul.addr %s999, 64
          %s1001 = smul.addr %s1000, 4
          %s1002 = scalar_lea.vmem %s13, %s1001
        $region84: #{pi_forward.3} parent=71 // pred_fallthru
          _
        // Predicated region
        $region85: #{pi_forward.3} parent=71 // pred_check
          %p1003 = pneg %p266
        $region86: #{pi_forward.3} parent=71 // pred_check_branch
          %1005 = sbr.rel (%p1003) target = $region88
        $region87: #{pi_forward.3} parent=71 // pred_region
          %p1006 = scmp.lt.s32.totalorder %s84, 2
          %s1007 = scalar_select %p1006, %s84, 2
          %s1008 = smul.addr %s1007, 2
          %s1009 = scalar_lea.vmem %s15, %s1008
        $region88: #{pi_forward.3} parent=71 // pred_fallthru
          _
        // Predicated region
        $region89: #{pi_forward.3} parent=71 // pred_check
          %p1010 = pneg %p292
        $region90: #{pi_forward.3} parent=71 // pred_check_branch
          %1012 = sbr.rel (%p1010) target = $region92
        $region91: #{pi_forward.3} parent=71 // pred_region
          %p1013 = scmp.lt.s32.totalorder %s84, 2
          %s1014 = scalar_select %p1013, %s84, 2
          %s1015 = smul.addr %s1014, 2
          %s1016 = scalar_lea.vmem %s17, %s1015
        $region92: #{pi_forward.3} parent=71 // pred_fallthru
          _
        // Predicated region
        $region93: #{pi_forward.3} parent=71 // pred_check
          %p1017 = pneg %p318
        $region94: #{pi_forward.3} parent=71 // pred_check_branch
          %1019 = sbr.rel (%p1017) target = $region96
        $region95: #{pi_forward.3} parent=71 // pred_region
          %p1020 = scmp.lt.s32.totalorder %s84, 2
          %s1021 = scalar_select %p1020, %s84, 2
          %s1022 = smul.addr %s1021, 2
          %s1023 = scalar_lea.vmem %s19, %s1022
        $region96: #{pi_forward.3} parent=71 // pred_fallthru
          _
        // Predicated region
        $region97: #{pi_forward.3} parent=71 // pred_check
          %p1024 = pneg %p344
        $region98: #{pi_forward.3} parent=71 // pred_check_branch
          %1026 = sbr.rel (%p1024) target = $region100
        $region99: #{pi_forward.3} parent=71 // pred_region
          %s1027 = sand.u32 %s334, 1
          %s1028 = scalar_lea.sflag [#allocation4], %s1027
          %s1029 = sand.u32 %s334, 1
          %s1030 = smul.addr %s1029, 256
          %s1031 = scalar_lea.vmem [#allocation3], %s1030
          %s1033 = ssub.s32 4096, 4096
          %1034 = vsyncadd %s1028, %s1033
          %s1035 = smul.addr %s84, 64
          %s1036 = smul.addr %s1035, 64
          %s1037 = scalar_lea.hbm %s21, %s1036
          %s1038 = sshll.u32 %s1031, 4
          %s1039 = int_to_ptr.vmem [resolvable:$true] %s1038
          %1044 = dma.hbm_to_vmem [thread:$0]  %s1037, 4096, %s1039, %s1028, 128, 128, 8
        $region100: #{pi_forward.3} parent=71 // pred_fallthru
          _
        // Predicated region
        $region101: #{pi_forward.3} parent=71 // pred_check
          %p1045 = pneg %p370
        $region102: #{pi_forward.3} parent=71 // pred_check_branch
          %1047 = sbr.rel (%p1045) target = $region104
        $region103: #{pi_forward.3} parent=71 // pred_region
          %p1048 = scmp.lt.s32.totalorder %s84, 2
          %s1049 = scalar_select %p1048, %s84, 2
          %s1050 = smul.addr %s1049, 2
          %s1051 = scalar_lea.vmem %s23, %s1050
        $region104: #{pi_forward.3} parent=71 // pred_fallthru
          _
        // Predicated region
        $region105: #{pi_forward.3} parent=71 // pred_check
          %p1052 = pneg %p396
        $region106: #{pi_forward.3} parent=71 // pred_check_branch
          %1054 = sbr.rel (%p1052) target = $region108
        $region107: #{pi_forward.3} parent=71 // pred_region
          %p1055 = scmp.lt.s32.totalorder %s84, 2
          %s1056 = scalar_select %p1055, %s84, 2
          %s1057 = smul.addr %s1056, 128
          %s1058 = smul.addr %s1057, 4
          %s1059 = scalar_lea.vmem %s25, %s1058
        $region108: #{pi_forward.3} parent=71 // pred_fallthru
          _
        // Predicated region
        $region109: #{pi_forward.3} parent=71 // pred_check
          %p1060 = pneg %p422
        $region110: #{pi_forward.3} parent=71 // pred_check_branch
          %1062 = sbr.rel (%p1060) target = $region112
        $region111: #{pi_forward.3} parent=71 // pred_region
          %p1063 = scmp.lt.s32.totalorder %s84, 2
          %s1064 = scalar_select %p1063, %s84, 2
          %s1065 = smul.addr %s1064, 4
          %s1066 = scalar_lea.vmem %s27, %s1065
        $region112: #{pi_forward.3} parent=71 // pred_fallthru
          _
        // Predicated region
        $region113: #{pi_forward.3} parent=71 // pred_check
          %p1067 = pneg %p448
        $region114: #{pi_forward.3} parent=71 // pred_check_branch
          %1069 = sbr.rel (%p1067) target = $region116
        $region115: #{pi_forward.3} parent=71 // pred_region
          %s1070 = sand.u32 %s84, 1
          %s1071 = scalar_lea.sflag [#allocation6], %s1070
          %s1072 = sand.u32 %s438, 1
          %s1073 = smul.addr %s1072, 256
          %s1074 = scalar_lea.vmem [#allocation5], %s1073
          %s1076 = ssub.s32 4096, 4096
          %1077 = vsyncadd %s1071, %s1076
          %s1078 = smul.addr %s84, 64
          %s1079 = smul.addr %s1078, 64
          %s1080 = scalar_lea.hbm %s29, %s1079
          %s1081 = sshll.u32 %s1074, 4
          %s1082 = int_to_ptr.vmem [resolvable:$true] %s1081
          %1087 = dma.hbm_to_vmem [thread:$0]  %s1080, 4096, %s1082, %s1071, 128, 128, 8
        $region116: #{pi_forward.3} parent=71 // pred_fallthru
          _
        // Predicated region
        $region117: #{pi_forward.3} parent=71 // pred_check
          %p1088 = pneg %p474
        $region118: #{pi_forward.3} parent=71 // pred_check_branch
          %1090 = sbr.rel (%p1088) target = $region120
        $region119: #{pi_forward.3} parent=71 // pred_region
          %p1091 = scmp.lt.s32.totalorder %s84, 2
          %s1092 = scalar_select %p1091, %s84, 2
          %s1093 = smul.addr %s1092, 2
          %s1094 = scalar_lea.vmem %s31, %s1093
        $region120: #{pi_forward.3} parent=71 // pred_fallthru
          _
        // Predicated region
        $region121: #{pi_forward.3} parent=71 // pred_check
          %p1095 = pneg %p500
        $region122: #{pi_forward.3} parent=71 // pred_check_branch
          %1097 = sbr.rel (%p1095) target = $region124
        $region123: #{pi_forward.3} parent=71 // pred_region
          %p1098 = scmp.lt.s32.totalorder %s84, 2
          %s1099 = scalar_select %p1098, %s84, 2
          %s1100 = smul.addr %s1099, 2
          %s1101 = scalar_lea.vmem %s33, %s1100
        $region124: #{pi_forward.3} parent=71 // pred_fallthru
          _
        // Predicated region
        $region125: #{pi_forward.3} parent=71 // pred_check
          %p1102 = pneg %p526
        $region126: #{pi_forward.3} parent=71 // pred_check_branch
          %1104 = sbr.rel (%p1102) target = $region128
        $region127: #{pi_forward.3} parent=71 // pred_region
          %p1105 = scmp.lt.s32.totalorder %s84, 2
          %s1106 = scalar_select %p1105, %s84, 2
          %s1107 = smul.addr %s1106, 2
          %s1108 = scalar_lea.vmem %s35, %s1107
        $region128: #{pi_forward.3} parent=71 // pred_fallthru
          _
        // Predicated region
        $region129: #{pi_forward.3} parent=71 // pred_check
          %p1109 = pneg %p552
        $region130: #{pi_forward.3} parent=71 // pred_check_branch
          %1111 = sbr.rel (%p1109) target = $region132
        $region131: #{pi_forward.3} parent=71 // pred_region
          %s1112 = sand.u32 %s84, 1
          %s1113 = scalar_lea.sflag [#allocation6], %s1112
          %s1114 = sand.u32 %s542, 1
          %s1115 = smul.addr %s1114, 256
          %s1116 = scalar_lea.vmem [#allocation7], %s1115
          %s1118 = ssub.s32 4096, 4096
          %1119 = vsyncadd %s1113, %s1118
          %s1120 = smul.addr %s84, 64
          %s1121 = smul.addr %s1120, 64
          %s1122 = scalar_lea.hbm %s37, %s1121
          %s1123 = sshll.u32 %s1116, 4
          %s1124 = int_to_ptr.vmem [resolvable:$true] %s1123
          %1129 = dma.hbm_to_vmem [thread:$0]  %s1122, 4096, %s1124, %s1113, 128, 128, 8
        $region132: #{pi_forward.3} parent=71 // pred_fallthru
          _
        // Predicated region
        $region133: #{pi_forward.3} parent=71 // pred_check
          %p1130 = pneg %p578
        $region134: #{pi_forward.3} parent=71 // pred_check_branch
          %1132 = sbr.rel (%p1130) target = $region136
        $region135: #{pi_forward.3} parent=71 // pred_region
          %p1133 = scmp.lt.s32.totalorder %s84, 2
          %s1134 = scalar_select %p1133, %s84, 2
          %s1135 = smul.addr %s1134, 2
          %s1136 = scalar_lea.vmem %s39, %s1135
        $region136: #{pi_forward.3} parent=71 // pred_fallthru
          _
        // Predicated region
        $region137: #{pi_forward.3} parent=71 // pred_check
          %p1137 = pneg %p604
        $region138: #{pi_forward.3} parent=71 // pred_check_branch
          %1139 = sbr.rel (%p1137) target = $region140
        $region139: #{pi_forward.3} parent=71 // pred_region
          %s1140 = sand.u32 %s594, 1
          %s1141 = scalar_lea.sflag [#allocation9], %s1140
          %s1142 = sand.u32 %s594, 1
          %s1143 = smul.addr %s1142, 256
          %s1144 = scalar_lea.vmem [#allocation8], %s1143
          %s1146 = ssub.s32 4096, 4096
          %1147 = vsyncadd %s1141, %s1146
          %s1148 = smul.addr %s84, 64
          %s1149 = smul.addr %s1148, 64
          %s1150 = scalar_lea.hbm %s41, %s1149
          %s1151 = sshll.u32 %s1144, 4
          %s1152 = int_to_ptr.vmem [resolvable:$true] %s1151
          %1157 = dma.hbm_to_vmem [thread:$0]  %s1150, 4096, %s1152, %s1141, 128, 128, 8
        $region140: #{pi_forward.3} parent=71 // pred_fallthru
          _
        // Predicated region
        $region141: #{pi_forward.3} parent=71 // pred_check
          %p1158 = pneg %p630
        $region142: #{pi_forward.3} parent=71 // pred_check_branch
          %1160 = sbr.rel (%p1158) target = $region144
        $region143: #{pi_forward.3} parent=71 // pred_region
          %p1161 = scmp.lt.s32.totalorder %s84, 2
          %s1162 = scalar_select %p1161, %s84, 2
          %s1163 = smul.addr %s1162, 2
          %s1164 = scalar_lea.vmem %s43, %s1163
        $region144: #{pi_forward.3} parent=71 // pred_fallthru
          _
        // Predicated region
        $region145: #{pi_forward.3} parent=71 // pred_check
          %p1165 = pneg %p656
        $region146: #{pi_forward.3} parent=71 // pred_check_branch
          %1167 = sbr.rel (%p1165) target = $region148
        $region147: #{pi_forward.3} parent=71 // pred_region
          %p1168 = scmp.lt.s32.totalorder %s84, 2
          %s1169 = scalar_select %p1168, %s84, 2
          %s1170 = smul.addr %s1169, 2
          %s1171 = scalar_lea.vmem %s45, %s1170
        $region148: #{pi_forward.3} parent=71 // pred_fallthru
          _
        // Predicated region
        $region149: #{pi_forward.3} parent=71 // pred_check
          %p1172 = pneg %p682
        $region150: #{pi_forward.3} parent=71 // pred_check_branch
          %1174 = sbr.rel (%p1172) target = $region152
        $region151: #{pi_forward.3} parent=71 // pred_region
          %p1175 = scmp.lt.s32.totalorder %s84, 2
          %s1176 = scalar_select %p1175, %s84, 2
          %s1177 = smul.addr %s1176, 2
          %s1178 = scalar_lea.vmem %s47, %s1177
        $region152: #{pi_forward.3} parent=71 // pred_fallthru
          _
      $region72: #{pi_forward.3} parent=5 // pred_fallthru
        _
      %p1179 = scmp.le.s32.totalorder 1, %s84
      %p1180 = scmp.lt.s32.totalorder %s84, 4
      %p1181 = pnand %p1179, %p1180
      %p1182 = pneg %p1181
      // Predicated region
      $region153: #{pi_forward.3} parent=5 // pred_check
        _
      $region154: #{pi_forward.3} parent=5 // pred_check_branch
        %1184 = sbr.rel (%p1181) target = $region156
      $region155: #{pi_forward.3} parent=5 // pred_region
        %s1185 = ssub.s32 %s84, 1
        %s1186 = sand.u32 %s337, 1
        %s1187 = scalar_lea.sflag [#allocation4], %s1186
        %s1188 = sand.u32 %s337, 1
        %s1189 = smul.addr %s1188, 256
        %s1190 = scalar_lea.vmem [#allocation3], %s1189
        // Predicated region
        $region157: #{pi_forward.3} parent=155 // pred_check
          %p1191 = pneg %p350
        $region158: #{pi_forward.3} parent=155 // pred_check_branch
          %1193 = sbr.rel (%p1191) target = $region160
        $region159: #{pi_forward.3} parent=155 // pred_region
          %1194 = dma.done %s1187, 4096
        $region160: #{pi_forward.3} parent=155 // pred_fallthru
          _
        %s1195 = sand.u32 %s89, 1
        %s1196 = scalar_lea.sflag [#allocation6], %s1195
        %s1197 = sand.u32 %s441, 1
        %s1198 = smul.addr %s1197, 256
        %s1199 = scalar_lea.vmem [#allocation5], %s1198
        // Predicated region
        $region161: #{pi_forward.3} parent=155 // pred_check
          %p1200 = pneg %p454
        $region162: #{pi_forward.3} parent=155 // pred_check_branch
          %1202 = sbr.rel (%p1200) target = $region164
        $region163: #{pi_forward.3} parent=155 // pred_region
          %1203 = dma.done %s1196, 4096
        $region164: #{pi_forward.3} parent=155 // pred_fallthru
          _
        %s1204 = sand.u32 %s89, 1
        %s1205 = scalar_lea.sflag [#allocation6], %s1204
        %s1206 = sand.u32 %s545, 1
        %s1207 = smul.addr %s1206, 256
        %s1208 = scalar_lea.vmem [#allocation7], %s1207
        // Predicated region
        $region165: #{pi_forward.3} parent=155 // pred_check
          %p1209 = pneg %p558
        $region166: #{pi_forward.3} parent=155 // pred_check_branch
          %1211 = sbr.rel (%p1209) target = $region168
        $region167: #{pi_forward.3} parent=155 // pred_region
          %1212 = dma.done %s1205, 4096
        $region168: #{pi_forward.3} parent=155 // pred_fallthru
          _
        %s1213 = sand.u32 %s597, 1
        %s1214 = scalar_lea.sflag [#allocation9], %s1213
        %s1215 = sand.u32 %s597, 1
        %s1216 = smul.addr %s1215, 256
        %s1217 = scalar_lea.vmem [#allocation8], %s1216
        // Predicated region
        $region169: #{pi_forward.3} parent=155 // pred_check
          %p1218 = pneg %p610
        $region170: #{pi_forward.3} parent=155 // pred_check_branch
          %1220 = sbr.rel (%p1218) target = $region172
        $region171: #{pi_forward.3} parent=155 // pred_region
          %1221 = dma.done %s1214, 4096
        $region172: #{pi_forward.3} parent=155 // pred_fallthru
          _
        %p1222 = pneg %p105
        %p1223 = pneg %p102
        %p1224 = pneg %p126
        %p1225 = pneg %p123
        %p1226 = pneg %p147
        %p1227 = pneg %p144
        %p1228 = pneg %p168
        %p1229 = pneg %p165
        %p1230 = scmp.lt.s32.totalorder %s89, 2
        %s1231 = scalar_select %p1230, %s89, 2
        %s1232 = smul.addr %s1231, 192
        %s1233 = smul.addr %s1232, 4
        %s1234 = scalar_lea.vmem %s9, %s1233
        %p1235 = pneg %p194
        %p1236 = pneg %p191
        %p1237 = scmp.lt.s32.totalorder %s89, 2
        %s1238 = scalar_select %p1237, %s89, 2
        %s1239 = smul.addr %s1238, 6
        %s1240 = scalar_lea.vmem %s11, %s1239
        %p1241 = pneg %p220
        %p1242 = pneg %p217
        %p1243 = scmp.lt.s32.totalorder %s89, 2
        %s1244 = scalar_select %p1243, %s89, 2
        %s1245 = smul.addr %s1244, 64
        %s1246 = smul.addr %s1245, 4
        %s1247 = scalar_lea.vmem %s13, %s1246
        %p1248 = pneg %p246
        %p1249 = pneg %p243
        %p1250 = scmp.lt.s32.totalorder %s89, 2
        %s1251 = scalar_select %p1250, %s89, 2
        %s1252 = smul.addr %s1251, 2
        %s1253 = scalar_lea.vmem %s15, %s1252
        %p1254 = pneg %p272
        %p1255 = pneg %p269
        %p1256 = scmp.lt.s32.totalorder %s89, 2
        %s1257 = scalar_select %p1256, %s89, 2
        %s1258 = smul.addr %s1257, 2
        %s1259 = scalar_lea.vmem %s17, %s1258
        %p1260 = pneg %p298
        %p1261 = pneg %p295
        %p1262 = scmp.lt.s32.totalorder %s89, 2
        %s1263 = scalar_select %p1262, %s89, 2
        %s1264 = smul.addr %s1263, 2
        %s1265 = scalar_lea.vmem %s19, %s1264
        %p1266 = pneg %p324
        %p1267 = pneg %p321
        %s1268 = sand.u32 %s337, 1
        %s1269 = scalar_lea.sflag [#allocation4], %s1268
        %s1270 = sand.u32 %s337, 1
        %s1271 = smul.addr %s1270, 256
        %s1272 = scalar_lea.vmem [#allocation3], %s1271
        %p1273 = pneg %p350
        %p1274 = pneg %p347
        %p1275 = scmp.lt.s32.totalorder %s89, 2
        %s1276 = scalar_select %p1275, %s89, 2
        %s1277 = smul.addr %s1276, 2
        %s1278 = scalar_lea.vmem %s23, %s1277
        %p1279 = pneg %p376
        %p1280 = pneg %p373
        %p1281 = scmp.lt.s32.totalorder %s89, 2
        %s1282 = scalar_select %p1281, %s89, 2
        %s1283 = smul.addr %s1282, 128
        %s1284 = smul.addr %s1283, 4
        %s1285 = scalar_lea.vmem %s25, %s1284
        %p1286 = pneg %p402
        %p1287 = pneg %p399
        %p1288 = scmp.lt.s32.totalorder %s89, 2
        %s1289 = scalar_select %p1288, %s89, 2
        %s1290 = smul.addr %s1289, 4
        %s1291 = scalar_lea.vmem %s27, %s1290
        %p1292 = pneg %p428
        %p1293 = pneg %p425
        %s1294 = sand.u32 %s89, 1
        %s1295 = scalar_lea.sflag [#allocation6], %s1294
        %s1296 = sand.u32 %s441, 1
        %s1297 = smul.addr %s1296, 256
        %s1298 = scalar_lea.vmem [#allocation5], %s1297
        %p1299 = pneg %p454
        %p1300 = pneg %p451
        %p1301 = scmp.lt.s32.totalorder %s89, 2
        %s1302 = scalar_select %p1301, %s89, 2
        %s1303 = smul.addr %s1302, 2
        %s1304 = scalar_lea.vmem %s31, %s1303
        %p1305 = pneg %p480
        %p1306 = pneg %p477
        %p1307 = scmp.lt.s32.totalorder %s89, 2
        %s1308 = scalar_select %p1307, %s89, 2
        %s1309 = smul.addr %s1308, 2
        %s1310 = scalar_lea.vmem %s33, %s1309
        %p1311 = pneg %p506
        %p1312 = pneg %p503
        %p1313 = scmp.lt.s32.totalorder %s89, 2
        %s1314 = scalar_select %p1313, %s89, 2
        %s1315 = smul.addr %s1314, 2
        %s1316 = scalar_lea.vmem %s35, %s1315
        %p1317 = pneg %p532
        %p1318 = pneg %p529
        %s1319 = sand.u32 %s89, 1
        %s1320 = scalar_lea.sflag [#allocation6], %s1319
        %s1321 = sand.u32 %s545, 1
        %s1322 = smul.addr %s1321, 256
        %s1323 = scalar_lea.vmem [#allocation7], %s1322
        %p1324 = pneg %p558
        %p1325 = pneg %p555
        %p1326 = scmp.lt.s32.totalorder %s89, 2
        %s1327 = scalar_select %p1326, %s89, 2
        %s1328 = smul.addr %s1327, 2
        %s1329 = scalar_lea.vmem %s39, %s1328
        %p1330 = pneg %p584
        %p1331 = pneg %p581
        %s1332 = sand.u32 %s597, 1
        %s1333 = scalar_lea.sflag [#allocation9], %s1332
        %s1334 = sand.u32 %s597, 1
        %s1335 = smul.addr %s1334, 256
        %s1336 = scalar_lea.vmem [#allocation8], %s1335
        %p1337 = pneg %p610
        %p1338 = pneg %p607
        %p1339 = scmp.lt.s32.totalorder %s89, 2
        %s1340 = scalar_select %p1339, %s89, 2
        %s1341 = smul.addr %s1340, 2
        %s1342 = scalar_lea.vmem %s43, %s1341
        %p1343 = pneg %p636
        %p1344 = pneg %p633
        %p1345 = scmp.lt.s32.totalorder %s89, 2
        %s1346 = scalar_select %p1345, %s89, 2
        %s1347 = smul.addr %s1346, 2
        %s1348 = scalar_lea.vmem %s45, %s1347
        %p1349 = pneg %p662
        %p1350 = pneg %p659
        %p1351 = scmp.lt.s32.totalorder %s89, 2
        %s1352 = scalar_select %p1351, %s89, 2
        %s1353 = smul.addr %s1352, 2
        %s1354 = scalar_lea.vmem %s47, %s1353
        %p1355 = pneg %p688
        %p1356 = pneg %p685
        %p1357 = pneg %p709
        %p1358 = pneg %p706
        %p1359 = pneg %p730
        %p1360 = pneg %p727
        %p1361 = pneg %p751
        %p1362 = pneg %p748
        %p1363 = pneg %p772
        %p1364 = pneg %p769
        %p1365 = pneg %p793
        %p1366 = pneg %p790
        %p1367 = pneg %p814
        %p1368 = pneg %p811
        %p1369 = pneg %p835
        %p1370 = pneg %p832
        %p1371 = pneg %p856
        %p1372 = pneg %p853
        %p1373 = pneg %p877
        %p1374 = pneg %p874
        %p1375 = pneg %p898
        %p1376 = pneg %p895
        %p1377 = pneg %p919
        %p1378 = pneg %p916
        %p1379 = scmp.lt.s32.totalorder %s89, 2
        %s1380 = scalar_select %p1379, %s89, 2
        %s1381 = smul.addr %s1380, 192
        %s1382 = smul.addr %s1381, 4
        %s1383 = scalar_lea.vmem %s9, %s1382
        %p1384 = scmp.lt.s32.totalorder %s89, 2
        %s1385 = scalar_select %p1384, %s89, 2
        %s1386 = smul.addr %s1385, 6
        %s1387 = scalar_lea.vmem %s11, %s1386
        %p1388 = scmp.lt.s32.totalorder %s89, 2
        %s1389 = scalar_select %p1388, %s89, 2
        %s1390 = smul.addr %s1389, 64
        %s1391 = smul.addr %s1390, 4
        %s1392 = scalar_lea.vmem %s13, %s1391
        %p1393 = scmp.lt.s32.totalorder %s89, 2
        %s1394 = scalar_select %p1393, %s89, 2
        %s1395 = smul.addr %s1394, 2
        %s1396 = scalar_lea.vmem %s15, %s1395
        %p1397 = scmp.lt.s32.totalorder %s89, 2
        %s1398 = scalar_select %p1397, %s89, 2
        %s1399 = smul.addr %s1398, 2
        %s1400 = scalar_lea.vmem %s17, %s1399
        %p1401 = scmp.lt.s32.totalorder %s89, 2
        %s1402 = scalar_select %p1401, %s89, 2
        %s1403 = smul.addr %s1402, 2
        %s1404 = scalar_lea.vmem %s19, %s1403
        %p1405 = scmp.lt.s32.totalorder %s89, 2
        %s1406 = scalar_select %p1405, %s89, 2
        %s1407 = smul.addr %s1406, 2
        %s1408 = scalar_lea.vmem %s23, %s1407
        %p1409 = scmp.lt.s32.totalorder %s89, 2
        %s1410 = scalar_select %p1409, %s89, 2
        %s1411 = smul.addr %s1410, 128
        %s1412 = smul.addr %s1411, 4
        %s1413 = scalar_lea.vmem %s25, %s1412
        %p1414 = scmp.lt.s32.totalorder %s89, 2
        %s1415 = scalar_select %p1414, %s89, 2
        %s1416 = smul.addr %s1415, 4
        %s1417 = scalar_lea.vmem %s27, %s1416
        %p1418 = scmp.lt.s32.totalorder %s89, 2
        %s1419 = scalar_select %p1418, %s89, 2
        %s1420 = smul.addr %s1419, 2
        %s1421 = scalar_lea.vmem %s31, %s1420
        %p1422 = scmp.lt.s32.totalorder %s89, 2
        %s1423 = scalar_select %p1422, %s89, 2
        %s1424 = smul.addr %s1423, 2
        %s1425 = scalar_lea.vmem %s33, %s1424
        %p1426 = scmp.lt.s32.totalorder %s89, 2
        %s1427 = scalar_select %p1426, %s89, 2
        %s1428 = smul.addr %s1427, 2
        %s1429 = scalar_lea.vmem %s35, %s1428
        %p1430 = scmp.lt.s32.totalorder %s89, 2
        %s1431 = scalar_select %p1430, %s89, 2
        %s1432 = smul.addr %s1431, 2
        %s1433 = scalar_lea.vmem %s39, %s1432
        %p1434 = scmp.lt.s32.totalorder %s89, 2
        %s1435 = scalar_select %p1434, %s89, 2
        %s1436 = smul.addr %s1435, 2
        %s1437 = scalar_lea.vmem %s43, %s1436
        %p1438 = scmp.lt.s32.totalorder %s89, 2
        %s1439 = scalar_select %p1438, %s89, 2
        %s1440 = smul.addr %s1439, 2
        %s1441 = scalar_lea.vmem %s45, %s1440
        %p1442 = scmp.lt.s32.totalorder %s89, 2
        %s1443 = scalar_select %p1442, %s89, 2
        %s1444 = smul.addr %s1443, 2
        %s1445 = scalar_lea.vmem %s47, %s1444
        %p1447 = scmp.eq.s32.totalorder %s89, 0
        // Predicated region
        $region173: #{pi_forward.3} parent=155 // pred_check
          %p1448 = pneg %p1447
        $region174: #{pi_forward.3} parent=155 // pred_check_branch
          %1450 = sbr.rel (%p1448) target = $region176
        $region175: #{pi_forward.3} parent=155 // pred_region
          %v1451 = vld [vmem:[%s1] sm:$0xff]
          %v1452 = vld [vmem:[%s1 + $0x8] sm:$0xff]
          %1453 = vst [vmem:[#allocation2] sm:$0xff] %v1451
          %1454 = vst [vmem:[#allocation2 + $0x8] sm:$0xff] %v1452
        $region176: #{pi_forward.3} parent=155 // pred_fallthru
          _
        %v1455 = vld [vmem:[#allocation2] sm:$0xff]
        %v1456 = vld [vmem:[#allocation2 + $0x8] sm:$0xff]
        %v1457 = vld [vmem:[%s3] sm:$0xff]
        %v1458 = vld [vmem:[%s3 + $0x8] sm:$0xff]
        %v1459 = vld [vmem:[%s3 + $0x10] sm:$0xff]
        %v1460 = vld [vmem:[%s3 + $0x18] sm:$0xff]
        %v1461 = vpack.c.bf16 %v1455, %v1455
        %v1462 = vpack.c.bf16 %v1456, %v1456
        %v1463 = vld [vmem:[%s1383] sm:$0xff]
        %v1464 = vld [vmem:[%s1383 + $0x8] sm:$0xff]
        %v1465 = vld [vmem:[%s1383 + $0x10] sm:$0xff]
        %v1466 = vld [vmem:[%s1383 + $0x18] sm:$0xff]
        %v1467 = vld [vmem:[%s1383 + $0x20] sm:$0xff]
        %v1468 = vld [vmem:[%s1383 + $0x28] sm:$0xff]
        %v1469 = vld [vmem:[%s1383 + $0x30] sm:$0xff]
        %v1470 = vld [vmem:[%s1383 + $0x38] sm:$0xff]
        %v1471 = vld [vmem:[%s1383 + $0x40] sm:$0xff]
        %v1472 = vld [vmem:[%s1383 + $0x48] sm:$0xff]
        %v1473 = vld [vmem:[%s1383 + $0x50] sm:$0xff]
        %v1474 = vld [vmem:[%s1383 + $0x58] sm:$0xff]
        %v1475 = vld [vmem:[%s1383 + $0x60] sm:$0xff]
        %v1476 = vld [vmem:[%s1383 + $0x68] sm:$0xff]
        %v1477 = vld [vmem:[%s1383 + $0x70] sm:$0xff]
        %v1478 = vld [vmem:[%s1383 + $0x78] sm:$0xff]
        %v1479 = vld [vmem:[%s1383 + $0x80] sm:$0xff]
        %v1480 = vld [vmem:[%s1383 + $0x88] sm:$0xff]
        %v1481 = vld [vmem:[%s1383 + $0x90] sm:$0xff]
        %v1482 = vld [vmem:[%s1383 + $0x98] sm:$0xff]
        %v1483 = vld [vmem:[%s1383 + $0xa0] sm:$0xff]
        %v1484 = vld [vmem:[%s1383 + $0xa8] sm:$0xff]
        %v1485 = vld [vmem:[%s1383 + $0xb0] sm:$0xff]
        %v1486 = vld [vmem:[%s1383 + $0xb8] sm:$0xff]
        %v1487 = vld [vmem:[%s1383 + $0xc0] sm:$0xff]
        %v1488 = vld [vmem:[%s1383 + $0xc8] sm:$0xff]
        %v1489 = vld [vmem:[%s1383 + $0xd0] sm:$0xff]
        %v1490 = vld [vmem:[%s1383 + $0xd8] sm:$0xff]
        %v1491 = vld [vmem:[%s1383 + $0xe0] sm:$0xff]
        %v1492 = vld [vmem:[%s1383 + $0xe8] sm:$0xff]
        %v1493 = vld [vmem:[%s1383 + $0xf0] sm:$0xff]
        %v1494 = vld [vmem:[%s1383 + $0xf8] sm:$0xff]
        %v1495 = vld [vmem:[%s1383 + $0x100] sm:$0xff]
        %v1496 = vld [vmem:[%s1383 + $0x108] sm:$0xff]
        %v1497 = vld [vmem:[%s1383 + $0x110] sm:$0xff]
        %v1498 = vld [vmem:[%s1383 + $0x118] sm:$0xff]
        %v1499 = vld [vmem:[%s1383 + $0x120] sm:$0xff]
        %v1500 = vld [vmem:[%s1383 + $0x128] sm:$0xff]
        %v1501 = vld [vmem:[%s1383 + $0x130] sm:$0xff]
        %v1502 = vld [vmem:[%s1383 + $0x138] sm:$0xff]
        %v1503 = vld [vmem:[%s1383 + $0x140] sm:$0xff]
        %v1504 = vld [vmem:[%s1383 + $0x148] sm:$0xff]
        %v1505 = vld [vmem:[%s1383 + $0x150] sm:$0xff]
        %v1506 = vld [vmem:[%s1383 + $0x158] sm:$0xff]
        %v1507 = vld [vmem:[%s1383 + $0x160] sm:$0xff]
        %v1508 = vld [vmem:[%s1383 + $0x168] sm:$0xff]
        %v1509 = vld [vmem:[%s1383 + $0x170] sm:$0xff]
        %v1510 = vld [vmem:[%s1383 + $0x178] sm:$0xff]
        %v1511 = vld [vmem:[%s1383 + $0x180] sm:$0xff]
        %v1512 = vld [vmem:[%s1383 + $0x188] sm:$0xff]
        %v1513 = vld [vmem:[%s1383 + $0x190] sm:$0xff]
        %v1514 = vld [vmem:[%s1383 + $0x198] sm:$0xff]
        %v1515 = vld [vmem:[%s1383 + $0x1a0] sm:$0xff]
        %v1516 = vld [vmem:[%s1383 + $0x1a8] sm:$0xff]
        %v1517 = vld [vmem:[%s1383 + $0x1b0] sm:$0xff]
        %v1518 = vld [vmem:[%s1383 + $0x1b8] sm:$0xff]
        %v1519 = vld [vmem:[%s1383 + $0x1c0] sm:$0xff]
        %v1520 = vld [vmem:[%s1383 + $0x1c8] sm:$0xff]
        %v1521 = vld [vmem:[%s1383 + $0x1d0] sm:$0xff]
        %v1522 = vld [vmem:[%s1383 + $0x1d8] sm:$0xff]
        %v1523 = vld [vmem:[%s1383 + $0x1e0] sm:$0xff]
        %v1524 = vld [vmem:[%s1383 + $0x1e8] sm:$0xff]
        %v1525 = vld [vmem:[%s1383 + $0x1f0] sm:$0xff]
        %v1526 = vld [vmem:[%s1383 + $0x1f8] sm:$0xff]
        %v1527 = vld [vmem:[%s1383 + $0x200] sm:$0xff]
        %v1528 = vld [vmem:[%s1383 + $0x208] sm:$0xff]
        %v1529 = vld [vmem:[%s1383 + $0x210] sm:$0xff]
        %v1530 = vld [vmem:[%s1383 + $0x218] sm:$0xff]
        %v1531 = vld [vmem:[%s1383 + $0x220] sm:$0xff]
        %v1532 = vld [vmem:[%s1383 + $0x228] sm:$0xff]
        %v1533 = vld [vmem:[%s1383 + $0x230] sm:$0xff]
        %v1534 = vld [vmem:[%s1383 + $0x238] sm:$0xff]
        %v1535 = vld [vmem:[%s1383 + $0x240] sm:$0xff]
        %v1536 = vld [vmem:[%s1383 + $0x248] sm:$0xff]
        %v1537 = vld [vmem:[%s1383 + $0x250] sm:$0xff]
        %v1538 = vld [vmem:[%s1383 + $0x258] sm:$0xff]
        %v1539 = vld [vmem:[%s1383 + $0x260] sm:$0xff]
        %v1540 = vld [vmem:[%s1383 + $0x268] sm:$0xff]
        %v1541 = vld [vmem:[%s1383 + $0x270] sm:$0xff]
        %v1542 = vld [vmem:[%s1383 + $0x278] sm:$0xff]
        %v1543 = vld [vmem:[%s1383 + $0x280] sm:$0xff]
        %v1544 = vld [vmem:[%s1383 + $0x288] sm:$0xff]
        %v1545 = vld [vmem:[%s1383 + $0x290] sm:$0xff]
        %v1546 = vld [vmem:[%s1383 + $0x298] sm:$0xff]
        %v1547 = vld [vmem:[%s1383 + $0x2a0] sm:$0xff]
        %v1548 = vld [vmem:[%s1383 + $0x2a8] sm:$0xff]
        %v1549 = vld [vmem:[%s1383 + $0x2b0] sm:$0xff]
        %v1550 = vld [vmem:[%s1383 + $0x2b8] sm:$0xff]
        %v1551 = vld [vmem:[%s1383 + $0x2c0] sm:$0xff]
        %v1552 = vld [vmem:[%s1383 + $0x2c8] sm:$0xff]
        %v1553 = vld [vmem:[%s1383 + $0x2d0] sm:$0xff]
        %v1554 = vld [vmem:[%s1383 + $0x2d8] sm:$0xff]
        %v1555 = vld [vmem:[%s1383 + $0x2e0] sm:$0xff]
        %v1556 = vld [vmem:[%s1383 + $0x2e8] sm:$0xff]
        %v1557 = vld [vmem:[%s1383 + $0x2f0] sm:$0xff]
        %v1558 = vld [vmem:[%s1383 + $0x2f8] sm:$0xff]
        %v1559 = vld [vmem:[%s1387] sm:$0x3f]
        %v1561 = vlaneseq
        %v1562 = vshrl.u32 %v1561, 7
        %v1563 = vsub.s32 0, %v1562
        %v1564 = vrot.slane %v1559, %v1563
        %v1565 = vlaneseq
        %v1566 = vshrl.u32 %v1565, 7
        %v1567 = vsub.s32 1, %v1566
        %v1568 = vrot.slane %v1559, %v1567
        %v1569 = vlaneseq
        %v1570 = vshrl.u32 %v1569, 7
        %v1571 = vsub.s32 2, %v1570
        %v1572 = vrot.slane %v1559, %v1571
        %v1573 = vlaneseq
        %v1574 = vshrl.u32 %v1573, 7
        %v1575 = vsub.s32 3, %v1574
        %v1576 = vrot.slane %v1559, %v1575
        %v1577 = vlaneseq
        %v1578 = vshrl.u32 %v1577, 7
        %v1579 = vsub.s32 4, %v1578
        %v1580 = vrot.slane %v1559, %v1579
        %v1581 = vlaneseq
        %v1582 = vshrl.u32 %v1581, 7
        %v1583 = vsub.s32 5, %v1582
        %v1584 = vrot.slane %v1559, %v1583
        %v1687 = vunpack.c.l.b16 %v1463
        %v1688 = vunpack.c.h.b16 %v1463
        %v1689 = vunpack.c.l.b16 %v1464
        %v1690 = vunpack.c.h.b16 %v1464
        %v1691 = vunpack.c.l.b16 %v1465
        %v1692 = vunpack.c.h.b16 %v1465
        %v1693 = vunpack.c.l.b16 %v1466
        %v1694 = vunpack.c.h.b16 %v1466
        %v1695 = vunpack.c.l.b16 %v1467
        %v1696 = vunpack.c.h.b16 %v1467
        %v1697 = vunpack.c.l.b16 %v1468
        %v1698 = vunpack.c.h.b16 %v1468
        %v1699 = vunpack.c.l.b16 %v1469
        %v1700 = vunpack.c.h.b16 %v1469
        %v1701 = vunpack.c.l.b16 %v1470
        %v1702 = vunpack.c.h.b16 %v1470
        %v1703 = vunpack.c.l.b16 %v1471
        %v1704 = vunpack.c.h.b16 %v1471
        %v1705 = vunpack.c.l.b16 %v1472
        %v1706 = vunpack.c.h.b16 %v1472
        %v1707 = vunpack.c.l.b16 %v1473
        %v1708 = vunpack.c.h.b16 %v1473
        %v1709 = vunpack.c.l.b16 %v1474
        %v1710 = vunpack.c.h.b16 %v1474
        %v1711 = vunpack.c.l.b16 %v1475
        %v1712 = vunpack.c.h.b16 %v1475
        %v1713 = vunpack.c.l.b16 %v1476
        %v1714 = vunpack.c.h.b16 %v1476
        %v1715 = vunpack.c.l.b16 %v1477
        %v1716 = vunpack.c.h.b16 %v1477
        %v1717 = vunpack.c.l.b16 %v1478
        %v1718 = vunpack.c.h.b16 %v1478
        %v1719 = vunpack.c.l.b16 %v1479
        %v1720 = vunpack.c.h.b16 %v1479
        %v1721 = vunpack.c.l.b16 %v1480
        %v1722 = vunpack.c.h.b16 %v1480
        %v1723 = vunpack.c.l.b16 %v1481
        %v1724 = vunpack.c.h.b16 %v1481
        %v1725 = vunpack.c.l.b16 %v1482
        %v1726 = vunpack.c.h.b16 %v1482
        %v1727 = vunpack.c.l.b16 %v1483
        %v1728 = vunpack.c.h.b16 %v1483
        %v1729 = vunpack.c.l.b16 %v1484
        %v1730 = vunpack.c.h.b16 %v1484
        %v1731 = vunpack.c.l.b16 %v1485
        %v1732 = vunpack.c.h.b16 %v1485
        %v1733 = vunpack.c.l.b16 %v1486
        %v1734 = vunpack.c.h.b16 %v1486
        %v1735 = vunpack.c.l.b16 %v1487
        %v1736 = vunpack.c.h.b16 %v1487
        %v1737 = vunpack.c.l.b16 %v1488
        %v1738 = vunpack.c.h.b16 %v1488
        %v1739 = vunpack.c.l.b16 %v1489
        %v1740 = vunpack.c.h.b16 %v1489
        %v1741 = vunpack.c.l.b16 %v1490
        %v1742 = vunpack.c.h.b16 %v1490
        %v1743 = vunpack.c.l.b16 %v1491
        %v1744 = vunpack.c.h.b16 %v1491
        %v1745 = vunpack.c.l.b16 %v1492
        %v1746 = vunpack.c.h.b16 %v1492
        %v1747 = vunpack.c.l.b16 %v1493
        %v1748 = vunpack.c.h.b16 %v1493
        %v1749 = vunpack.c.l.b16 %v1494
        %v1750 = vunpack.c.h.b16 %v1494
        %v1751 = vunpack.c.l.b16 %v1495
        %v1752 = vunpack.c.h.b16 %v1495
        %v1753 = vunpack.c.l.b16 %v1496
        %v1754 = vunpack.c.h.b16 %v1496
        %v1755 = vunpack.c.l.b16 %v1497
        %v1756 = vunpack.c.h.b16 %v1497
        %v1757 = vunpack.c.l.b16 %v1498
        %v1758 = vunpack.c.h.b16 %v1498
        %v1759 = vunpack.c.l.b16 %v1499
        %v1760 = vunpack.c.h.b16 %v1499
        %v1761 = vunpack.c.l.b16 %v1500
        %v1762 = vunpack.c.h.b16 %v1500
        %v1763 = vunpack.c.l.b16 %v1501
        %v1764 = vunpack.c.h.b16 %v1501
        %v1765 = vunpack.c.l.b16 %v1502
        %v1766 = vunpack.c.h.b16 %v1502
        %v1767 = vunpack.c.l.b16 %v1503
        %v1768 = vunpack.c.h.b16 %v1503
        %v1769 = vunpack.c.l.b16 %v1504
        %v1770 = vunpack.c.h.b16 %v1504
        %v1771 = vunpack.c.l.b16 %v1505
        %v1772 = vunpack.c.h.b16 %v1505
        %v1773 = vunpack.c.l.b16 %v1506
        %v1774 = vunpack.c.h.b16 %v1506
        %v1775 = vunpack.c.l.b16 %v1507
        %v1776 = vunpack.c.h.b16 %v1507
        %v1777 = vunpack.c.l.b16 %v1508
        %v1778 = vunpack.c.h.b16 %v1508
        %v1779 = vunpack.c.l.b16 %v1509
        %v1780 = vunpack.c.h.b16 %v1509
        %v1781 = vunpack.c.l.b16 %v1510
        %v1782 = vunpack.c.h.b16 %v1510
        %v1783 = vunpack.c.l.b16 %v1511
        %v1784 = vunpack.c.h.b16 %v1511
        %v1785 = vunpack.c.l.b16 %v1512
        %v1786 = vunpack.c.h.b16 %v1512
        %v1787 = vunpack.c.l.b16 %v1513
        %v1788 = vunpack.c.h.b16 %v1513
        %v1789 = vunpack.c.l.b16 %v1514
        %v1790 = vunpack.c.h.b16 %v1514
        %v1791 = vunpack.c.l.b16 %v1515
        %v1792 = vunpack.c.h.b16 %v1515
        %v1793 = vunpack.c.l.b16 %v1516
        %v1794 = vunpack.c.h.b16 %v1516
        %v1795 = vunpack.c.l.b16 %v1517
        %v1796 = vunpack.c.h.b16 %v1517
        %v1797 = vunpack.c.l.b16 %v1518
        %v1798 = vunpack.c.h.b16 %v1518
        %v1799 = vunpack.c.l.b16 %v1519
        %v1800 = vunpack.c.h.b16 %v1519
        %v1801 = vunpack.c.l.b16 %v1520
        %v1802 = vunpack.c.h.b16 %v1520
        %v1803 = vunpack.c.l.b16 %v1521
        %v1804 = vunpack.c.h.b16 %v1521
        %v1805 = vunpack.c.l.b16 %v1522
        %v1806 = vunpack.c.h.b16 %v1522
        %v1807 = vunpack.c.l.b16 %v1523
        %v1808 = vunpack.c.h.b16 %v1523
        %v1809 = vunpack.c.l.b16 %v1524
        %v1810 = vunpack.c.h.b16 %v1524
        %v1811 = vunpack.c.l.b16 %v1525
        %v1812 = vunpack.c.h.b16 %v1525
        %v1813 = vunpack.c.l.b16 %v1526
        %v1814 = vunpack.c.h.b16 %v1526
        %v1815 = vunpack.c.l.b16 %v1527
        %v1816 = vunpack.c.h.b16 %v1527
        %v1817 = vunpack.c.l.b16 %v1528
        %v1818 = vunpack.c.h.b16 %v1528
        %v1819 = vunpack.c.l.b16 %v1529
        %v1820 = vunpack.c.h.b16 %v1529
        %v1821 = vunpack.c.l.b16 %v1530
        %v1822 = vunpack.c.h.b16 %v1530
        %v1823 = vunpack.c.l.b16 %v1531
        %v1824 = vunpack.c.h.b16 %v1531
        %v1825 = vunpack.c.l.b16 %v1532
        %v1826 = vunpack.c.h.b16 %v1532
        %v1827 = vunpack.c.l.b16 %v1533
        %v1828 = vunpack.c.h.b16 %v1533
        %v1829 = vunpack.c.l.b16 %v1534
        %v1830 = vunpack.c.h.b16 %v1534
        %v1831 = vunpack.c.l.b16 %v1535
        %v1832 = vunpack.c.h.b16 %v1535
        %v1833 = vunpack.c.l.b16 %v1536
        %v1834 = vunpack.c.h.b16 %v1536
        %v1835 = vunpack.c.l.b16 %v1537
        %v1836 = vunpack.c.h.b16 %v1537
        %v1837 = vunpack.c.l.b16 %v1538
        %v1838 = vunpack.c.h.b16 %v1538
        %v1839 = vunpack.c.l.b16 %v1539
        %v1840 = vunpack.c.h.b16 %v1539
        %v1841 = vunpack.c.l.b16 %v1540
        %v1842 = vunpack.c.h.b16 %v1540
        %v1843 = vunpack.c.l.b16 %v1541
        %v1844 = vunpack.c.h.b16 %v1541
        %v1845 = vunpack.c.l.b16 %v1542
        %v1846 = vunpack.c.h.b16 %v1542
        %v1847 = vunpack.c.l.b16 %v1543
        %v1848 = vunpack.c.h.b16 %v1543
        %v1849 = vunpack.c.l.b16 %v1544
        %v1850 = vunpack.c.h.b16 %v1544
        %v1851 = vunpack.c.l.b16 %v1545
        %v1852 = vunpack.c.h.b16 %v1545
        %v1853 = vunpack.c.l.b16 %v1546
        %v1854 = vunpack.c.h.b16 %v1546
        %v1855 = vunpack.c.l.b16 %v1547
        %v1856 = vunpack.c.h.b16 %v1547
        %v1857 = vunpack.c.l.b16 %v1548
        %v1858 = vunpack.c.h.b16 %v1548
        %v1859 = vunpack.c.l.b16 %v1549
        %v1860 = vunpack.c.h.b16 %v1549
        %v1861 = vunpack.c.l.b16 %v1550
        %v1862 = vunpack.c.h.b16 %v1550
        %v1863 = vunpack.c.l.b16 %v1551
        %v1864 = vunpack.c.h.b16 %v1551
        %v1865 = vunpack.c.l.b16 %v1552
        %v1866 = vunpack.c.h.b16 %v1552
        %v1867 = vunpack.c.l.b16 %v1553
        %v1868 = vunpack.c.h.b16 %v1553
        %v1869 = vunpack.c.l.b16 %v1554
        %v1870 = vunpack.c.h.b16 %v1554
        %v1871 = vunpack.c.l.b16 %v1555
        %v1872 = vunpack.c.h.b16 %v1555
        %v1873 = vunpack.c.l.b16 %v1556
        %v1874 = vunpack.c.h.b16 %v1556
        %v1875 = vunpack.c.l.b16 %v1557
        %v1876 = vunpack.c.h.b16 %v1557
        %v1877 = vunpack.c.l.b16 %v1558
        %v1878 = vunpack.c.h.b16 %v1558
        %v1879 = vpack.c.b16 %v1693, %v1687
        %v1880 = vpack.c.b16 %v1694, %v1688
        %v1881 = vpack.c.b16 %v1695, %v1689
        %v1882 = vpack.c.b16 %v1696, %v1690
        %v1883 = vpack.c.b16 %v1697, %v1691
        %v1884 = vpack.c.b16 %v1698, %v1692
        %v1885 = vpack.c.b16 %v1705, %v1699
        %v1886 = vpack.c.b16 %v1706, %v1700
        %v1887 = vpack.c.b16 %v1707, %v1701
        %v1888 = vpack.c.b16 %v1708, %v1702
        %v1889 = vpack.c.b16 %v1709, %v1703
        %v1890 = vpack.c.b16 %v1710, %v1704
        %v1891 = vpack.c.b16 %v1717, %v1711
        %v1892 = vpack.c.b16 %v1718, %v1712
        %v1893 = vpack.c.b16 %v1719, %v1713
        %v1894 = vpack.c.b16 %v1720, %v1714
        %v1895 = vpack.c.b16 %v1721, %v1715
        %v1896 = vpack.c.b16 %v1722, %v1716
        %v1897 = vpack.c.b16 %v1729, %v1723
        %v1898 = vpack.c.b16 %v1730, %v1724
        %v1899 = vpack.c.b16 %v1731, %v1725
        %v1900 = vpack.c.b16 %v1732, %v1726
        %v1901 = vpack.c.b16 %v1733, %v1727
        %v1902 = vpack.c.b16 %v1734, %v1728
        %v1903 = vpack.c.b16 %v1741, %v1735
        %v1904 = vpack.c.b16 %v1742, %v1736
        %v1905 = vpack.c.b16 %v1743, %v1737
        %v1906 = vpack.c.b16 %v1744, %v1738
        %v1907 = vpack.c.b16 %v1745, %v1739
        %v1908 = vpack.c.b16 %v1746, %v1740
        %v1909 = vpack.c.b16 %v1753, %v1747
        %v1910 = vpack.c.b16 %v1754, %v1748
        %v1911 = vpack.c.b16 %v1755, %v1749
        %v1912 = vpack.c.b16 %v1756, %v1750
        %v1913 = vpack.c.b16 %v1757, %v1751
        %v1914 = vpack.c.b16 %v1758, %v1752
        %v1915 = vpack.c.b16 %v1765, %v1759
        %v1916 = vpack.c.b16 %v1766, %v1760
        %v1917 = vpack.c.b16 %v1767, %v1761
        %v1918 = vpack.c.b16 %v1768, %v1762
        %v1919 = vpack.c.b16 %v1769, %v1763
        %v1920 = vpack.c.b16 %v1770, %v1764
        %v1921 = vpack.c.b16 %v1777, %v1771
        %v1922 = vpack.c.b16 %v1778, %v1772
        %v1923 = vpack.c.b16 %v1779, %v1773
        %v1924 = vpack.c.b16 %v1780, %v1774
        %v1925 = vpack.c.b16 %v1781, %v1775
        %v1926 = vpack.c.b16 %v1782, %v1776
        %v1927 = vpack.c.b16 %v1789, %v1783
        %v1928 = vpack.c.b16 %v1790, %v1784
        %v1929 = vpack.c.b16 %v1791, %v1785
        %v1930 = vpack.c.b16 %v1792, %v1786
        %v1931 = vpack.c.b16 %v1793, %v1787
        %v1932 = vpack.c.b16 %v1794, %v1788
        %v1933 = vpack.c.b16 %v1801, %v1795
        %v1934 = vpack.c.b16 %v1802, %v1796
        %v1935 = vpack.c.b16 %v1803, %v1797
        %v1936 = vpack.c.b16 %v1804, %v1798
        %v1937 = vpack.c.b16 %v1805, %v1799
        %v1938 = vpack.c.b16 %v1806, %v1800
        %v1939 = vpack.c.b16 %v1813, %v1807
        %v1940 = vpack.c.b16 %v1814, %v1808
        %v1941 = vpack.c.b16 %v1815, %v1809
        %v1942 = vpack.c.b16 %v1816, %v1810
        %v1943 = vpack.c.b16 %v1817, %v1811
        %v1944 = vpack.c.b16 %v1818, %v1812
        %v1945 = vpack.c.b16 %v1825, %v1819
        %v1946 = vpack.c.b16 %v1826, %v1820
        %v1947 = vpack.c.b16 %v1827, %v1821
        %v1948 = vpack.c.b16 %v1828, %v1822
        %v1949 = vpack.c.b16 %v1829, %v1823
        %v1950 = vpack.c.b16 %v1830, %v1824
        %v1951 = vpack.c.b16 %v1837, %v1831
        %v1952 = vpack.c.b16 %v1838, %v1832
        %v1953 = vpack.c.b16 %v1839, %v1833
        %v1954 = vpack.c.b16 %v1840, %v1834
        %v1955 = vpack.c.b16 %v1841, %v1835
        %v1956 = vpack.c.b16 %v1842, %v1836
        %v1957 = vpack.c.b16 %v1849, %v1843
        %v1958 = vpack.c.b16 %v1850, %v1844
        %v1959 = vpack.c.b16 %v1851, %v1845
        %v1960 = vpack.c.b16 %v1852, %v1846
        %v1961 = vpack.c.b16 %v1853, %v1847
        %v1962 = vpack.c.b16 %v1854, %v1848
        %v1963 = vpack.c.b16 %v1861, %v1855
        %v1964 = vpack.c.b16 %v1862, %v1856
        %v1965 = vpack.c.b16 %v1863, %v1857
        %v1966 = vpack.c.b16 %v1864, %v1858
        %v1967 = vpack.c.b16 %v1865, %v1859
        %v1968 = vpack.c.b16 %v1866, %v1860
        %v1969 = vpack.c.b16 %v1873, %v1867
        %v1970 = vpack.c.b16 %v1874, %v1868
        %v1971 = vpack.c.b16 %v1875, %v1869
        %v1972 = vpack.c.b16 %v1876, %v1870
        %v1973 = vpack.c.b16 %v1877, %v1871
        %v1974 = vpack.c.b16 %v1878, %v1872
        %2071 = vmatprep.subr.bf16.mxu0 %v1922
        %2072 = vmatpush1.bf16.msra.mxu0 %v1921
        %2073 = vmatprep.subr.bf16.mxu0 %v1916
        %2074 = vmatpush1.bf16.msra.mxu0 %v1915
        %2075 = vmatprep.subr.bf16.mxu0 %v1910
        %2076 = vmatpush1.bf16.msra.mxu0 %v1909
        %2077 = vmatprep.subr.bf16.mxu0 %v1904
        %2078 = vmatpush1.bf16.msra.mxu0 %v1903
        %2079 = vmatprep.subr.bf16.mxu0 %v1898
        %2080 = vmatpush1.bf16.msra.mxu0 %v1897
        %2081 = vmatprep.subr.bf16.mxu0 %v1892
        %2082 = vmatpush1.bf16.msra.mxu0 %v1891
        %2083 = vmatprep.subr.bf16.mxu0 %v1886
        %2084 = vmatpush1.bf16.msra.mxu0 %v1885
        %2085 = vmatprep.subr.bf16.mxu0 %v1880
        %2086 = vmatpush1.bf16.msra.mxu0 %v1879
        %2087 = vmatprep.subr.bf16.mxu0 %v1970
        %2088 = vmatpush2.bf16.msra.mxu0 %v1969
        %2089 = vmatprep.subr.bf16.mxu0 %v1964
        %2090 = vmatpush2.bf16.msra.mxu0 %v1963
        %2091 = vmatprep.subr.bf16.mxu0 %v1958
        %2092 = vmatpush2.bf16.msra.mxu0 %v1957
        %2093 = vmatprep.subr.bf16.mxu0 %v1952
        %2094 = vmatpush2.bf16.msra.mxu0 %v1951
        %2095 = vmatprep.subr.bf16.mxu0 %v1946
        %2096 = vmatpush2.bf16.msra.mxu0 %v1945
        %2097 = vmatprep.subr.bf16.mxu0 %v1940
        %2098 = vmatpush2.bf16.msra.mxu0 %v1939
        %2099 = vmatprep.subr.bf16.mxu0 %v1934
        %2100 = vmatpush2.bf16.msra.mxu0 %v1933
        %2101 = vmatprep.subr.bf16.mxu0 %v1928
        %2102 = vmatpush2.bf16.msra.mxu0 %v1927
        %2103 = vmatprep.mubr.bf16.mxu0 %v1462
        %2104 = vmatmul.mubr.bf16.gmra.mxu0 %v1461
        %v2105 = vpop.f32.mrf.mxu0
        %v2106 = vadd.f32 %v1564, %v2105
        %v2107 = vpop.f32.mrf.mxu0
        %v2108 = vadd.f32 %v1568, %v2107
        %v2109 = vpop.f32.mrf.mxu0
        %v2110 = vpop.f32.mrf.mxu0
        %2111 = vdwg.mxu0
        %2112 = vmatprep.subr.bf16.mxu0 %v1924
        %2113 = vmatpush1.bf16.msra.mxu0 %v1923
        %2114 = vmatprep.subr.bf16.mxu0 %v1918
        %2115 = vmatpush1.bf16.msra.mxu0 %v1917
        %2116 = vmatprep.subr.bf16.mxu0 %v1912
        %2117 = vmatpush1.bf16.msra.mxu0 %v1911
        %2118 = vmatprep.subr.bf16.mxu0 %v1906
        %2119 = vmatpush1.bf16.msra.mxu0 %v1905
        %2120 = vmatprep.subr.bf16.mxu0 %v1900
        %2121 = vmatpush1.bf16.msra.mxu0 %v1899
        %2122 = vmatprep.subr.bf16.mxu0 %v1894
        %2123 = vmatpush1.bf16.msra.mxu0 %v1893
        %2124 = vmatprep.subr.bf16.mxu0 %v1888
        %2125 = vmatpush1.bf16.msra.mxu0 %v1887
        %2126 = vmatprep.subr.bf16.mxu0 %v1882
        %2127 = vmatpush1.bf16.msra.mxu0 %v1881
        %2128 = vmatprep.subr.bf16.mxu0 %v1972
        %2129 = vmatpush2.bf16.msra.mxu0 %v1971
        %2130 = vmatprep.subr.bf16.mxu0 %v1966
        %2131 = vmatpush2.bf16.msra.mxu0 %v1965
        %2132 = vmatprep.subr.bf16.mxu0 %v1960
        %2133 = vmatpush2.bf16.msra.mxu0 %v1959
        %2134 = vmatprep.subr.bf16.mxu0 %v1954
        %2135 = vmatpush2.bf16.msra.mxu0 %v1953
        %2136 = vmatprep.subr.bf16.mxu0 %v1948
        %2137 = vmatpush2.bf16.msra.mxu0 %v1947
        %2138 = vmatprep.subr.bf16.mxu0 %v1942
        %2139 = vmatpush2.bf16.msra.mxu0 %v1941
        %2140 = vmatprep.subr.bf16.mxu0 %v1936
        %2141 = vmatpush2.bf16.msra.mxu0 %v1935
        %2142 = vmatprep.subr.bf16.mxu0 %v1930
        %2143 = vmatpush2.bf16.msra.mxu0 %v1929
        %2144 = vmatprep.mubr.bf16.mxu0 %v1462
        %2145 = vmatmul.mubr.bf16.gmra.mxu0 %v1461
        %v2146 = vpop.f32.mrf.mxu0
        %v2147 = vadd.f32 %v1572, %v2146
        %v2148 = vpop.f32.mrf.mxu0
        %v2149 = vadd.f32 %v1576, %v2148
        %v2150 = vpop.f32.mrf.mxu0
        %v2151 = vpop.f32.mrf.mxu0
        %2152 = vdwg.mxu0
        %2153 = vmatprep.subr.bf16.mxu0 %v1926
        %2154 = vmatpush1.bf16.msra.mxu0 %v1925
        %2155 = vmatprep.subr.bf16.mxu0 %v1920
        %2156 = vmatpush1.bf16.msra.mxu0 %v1919
        %2157 = vmatprep.subr.bf16.mxu0 %v1914
        %2158 = vmatpush1.bf16.msra.mxu0 %v1913
        %2159 = vmatprep.subr.bf16.mxu0 %v1908
        %2160 = vmatpush1.bf16.msra.mxu0 %v1907
        %2161 = vmatprep.subr.bf16.mxu0 %v1902
        %2162 = vmatpush1.bf16.msra.mxu0 %v1901
        %2163 = vmatprep.subr.bf16.mxu0 %v1896
        %2164 = vmatpush1.bf16.msra.mxu0 %v1895
        %2165 = vmatprep.subr.bf16.mxu0 %v1890
        %2166 = vmatpush1.bf16.msra.mxu0 %v1889
        %2167 = vmatprep.subr.bf16.mxu0 %v1884
        %2168 = vmatpush1.bf16.msra.mxu0 %v1883
        %2169 = vmatprep.subr.bf16.mxu0 %v1974
        %2170 = vmatpush2.bf16.msra.mxu0 %v1973
        %2171 = vmatprep.subr.bf16.mxu0 %v1968
        %2172 = vmatpush2.bf16.msra.mxu0 %v1967
        %2173 = vmatprep.subr.bf16.mxu0 %v1962
        %2174 = vmatpush2.bf16.msra.mxu0 %v1961
        %2175 = vmatprep.subr.bf16.mxu0 %v1956
        %2176 = vmatpush2.bf16.msra.mxu0 %v1955
        %2177 = vmatprep.subr.bf16.mxu0 %v1950
        %2178 = vmatpush2.bf16.msra.mxu0 %v1949
        %2179 = vmatprep.subr.bf16.mxu0 %v1944
        %2180 = vmatpush2.bf16.msra.mxu0 %v1943
        %2181 = vmatprep.subr.bf16.mxu0 %v1938
        %2182 = vmatpush2.bf16.msra.mxu0 %v1937
        %2183 = vmatprep.subr.bf16.mxu0 %v1932
        %2184 = vmatpush2.bf16.msra.mxu0 %v1931
        %2185 = vmatprep.mubr.bf16.mxu0 %v1462
        %2186 = vmatmul.mubr.bf16.gmra.mxu0 %v1461
        %v2187 = vpop.f32.mrf.mxu0
        %v2188 = vadd.f32 %v1580, %v2187
        %v2189 = vpop.f32.mrf.mxu0
        %v2190 = vadd.f32 %v1584, %v2189
        %v2191 = vpop.f32.mrf.mxu0
        %v2192 = vpop.f32.mrf.mxu0
        %2193 = vdwg.mxu0
        %v2194 = vld [vmem:[%s5] sm:$0xff]
        %v2195 = vpack.c.bf16 %v2106, %v2106
        %v2196 = vpack.c.bf16 %v2147, %v2147
        %v2197 = vpack.c.bf16 %v2188, %v2188
        %vm2198 = vcmask 523264
        %v2200 = vsel %vm2198, %v2195, 0
        %v2203 = vsel %vm2198, %v2196, 0
        %2205 = vmatprep.subr.bf16.mxu0 0
        %2206 = vmatpush1.bf16.xpose.msra.mxu0 0
        %2207 = vmatprep.subr.bf16.mxu0 0
        %2208 = vmatpush1.bf16.xpose.msra.mxu0 0
        %2209 = vmatprep.subr.bf16.mxu0 0
        %2210 = vmatpush1.bf16.xpose.msra.mxu0 0
        %2211 = vmatprep.subr.bf16.mxu0 0
        %2212 = vmatpush1.bf16.xpose.msra.mxu0 0
        %2213 = vmatprep.subr.bf16.mxu0 0
        %2214 = vmatpush1.bf16.xpose.msra.mxu0 0
        %2215 = vmatprep.subr.bf16.mxu0 0
        %2216 = vmatpush1.bf16.xpose.msra.mxu0 0
        %2217 = vmatprep.subr.bf16.mxu0 0
        %2218 = vmatpush1.bf16.xpose.msra.mxu0 0
        %2219 = vmatprep.subr.bf16.mxu0 0
        %2220 = vmatpush1.bf16.xpose.msra.mxu0 %v2203
        %2221 = vmatprep.subr.bf16.mxu0 0
        %2222 = vmatpush2.bf16.xpose.msra.mxu0 0
        %2223 = vmatprep.subr.bf16.mxu0 0
        %2224 = vmatpush2.bf16.xpose.msra.mxu0 0
        %2225 = vmatprep.subr.bf16.mxu0 0
        %2226 = vmatpush2.bf16.xpose.msra.mxu0 0
        %2227 = vmatprep.subr.bf16.mxu0 0
        %2228 = vmatpush2.bf16.xpose.msra.mxu0 0
        %2229 = vmatprep.subr.bf16.mxu0 0
        %2230 = vmatpush2.bf16.xpose.msra.mxu0 0
        %2231 = vmatprep.subr.bf16.mxu0 0
        %2232 = vmatpush2.bf16.xpose.msra.mxu0 0
        %2233 = vmatprep.subr.bf16.mxu0 0
        %2234 = vmatpush2.bf16.xpose.msra.mxu0 0
        %2235 = vmatprep.subr.bf16.mxu0 0
        %2236 = vmatpush2.bf16.xpose.msra.mxu0 0
        %2237 = vmatprep.mubr.bf16.mxu0 0
        %2238 = vmatmul.mubr.bf16.gmra.mxu0 %v2200
        %v2239 = vpop.f32.mrf.mxu0
        %v2240 = vadd.f32 %v2194, %v2239
        %v2241 = vpop.f32.mrf.mxu0
        %v2242 = vpop.f32.mrf.mxu0
        %v2243 = vpop.f32.mrf.mxu0
        %2244 = vdwg.mxu0
        %vm2245 = vcmask 64512
        %v2246 = vsel %vm2245, %v2240, -inf
        %2247 = vmax.xlane.f32.xlu0 %v2246
        %v2248 = vpop.xlane.xlu0 %2247
        %v2249 = vsub.f32 %v2240, %v2248
        %v2250 = vmul.f32 %v2249, 1.442695
        %v2251 = vpow.pop %v2250
        %v2252 = vsel %vm2245, %v2251, 0.0
        %2253 = vadd.xlane.f32.xlu0 %v2252
        %v2254 = vpop.xlane.xlu0 %2253
        %v2255 = vrcp.pop %v2254
        %v2256 = vmul.f32 %v2251, %v2255
        %v2257 = vpack.c.bf16 %v2256, %v2256
        %v2259 = vsel %vm2245, %v2257, 0
        %vm2261 = vcmask 1043456
        %v2263 = vsel %vm2261, %v2197, 0
        %2265 = vmatprep.subr.bf16.mxu0 0
        %2266 = vmatpush1.bf16.msra.mxu0 0
        %2267 = vmatprep.subr.bf16.mxu0 0
        %2268 = vmatpush1.bf16.msra.mxu0 0
        %2269 = vmatprep.subr.bf16.mxu0 0
        %2270 = vmatpush1.bf16.msra.mxu0 0
        %2271 = vmatprep.subr.bf16.mxu0 0
        %2272 = vmatpush1.bf16.msra.mxu0 0
        %2273 = vmatprep.subr.bf16.mxu0 0
        %2274 = vmatpush1.bf16.msra.mxu0 0
        %2275 = vmatprep.subr.bf16.mxu0 0
        %2276 = vmatpush1.bf16.msra.mxu0 0
        %2277 = vmatprep.subr.bf16.mxu0 0
        %2278 = vmatpush1.bf16.msra.mxu0 0
        %2279 = vmatprep.subr.bf16.mxu0 0
        %2280 = vmatpush1.bf16.msra.mxu0 %v2263
        %2281 = vmatprep.subr.bf16.mxu0 0
        %2282 = vmatpush2.bf16.msra.mxu0 0
        %2283 = vmatprep.subr.bf16.mxu0 0
        %2284 = vmatpush2.bf16.msra.mxu0 0
        %2285 = vmatprep.subr.bf16.mxu0 0
        %2286 = vmatpush2.bf16.msra.mxu0 0
        %2287 = vmatprep.subr.bf16.mxu0 0
        %2288 = vmatpush2.bf16.msra.mxu0 0
        %2289 = vmatprep.subr.bf16.mxu0 0
        %2290 = vmatpush2.bf16.msra.mxu0 0
        %2291 = vmatprep.subr.bf16.mxu0 0
        %2292 = vmatpush2.bf16.msra.mxu0 0
        %2293 = vmatprep.subr.bf16.mxu0 0
        %2294 = vmatpush2.bf16.msra.mxu0 0
        %2295 = vmatprep.subr.bf16.mxu0 0
        %2296 = vmatpush2.bf16.msra.mxu0 0
        %2297 = vmatprep.mubr.bf16.mxu0 0
        %2298 = vmatmul.mubr.bf16.gmra.mxu0 %v2259
        %v2299 = vpop.f32.mrf.mxu0
        %v2300 = vadd.f32 0.0, %v2299
        %v2301 = vpop.f32.mrf.mxu0
        %v2302 = vpop.f32.mrf.mxu0
        %v2303 = vpop.f32.mrf.mxu0
        %2304 = vdwg.mxu0
        %v2305 = vpack.c.bf16 %v2300, %v2300
        %v2306 = vld [vmem:[%s1392] sm:$0xff]
        %v2307 = vld [vmem:[%s1392 + $0x8] sm:$0xff]
        %v2308 = vld [vmem:[%s1392 + $0x10] sm:$0xff]
        %v2309 = vld [vmem:[%s1392 + $0x18] sm:$0xff]
        %v2310 = vld [vmem:[%s1392 + $0x20] sm:$0xff]
        %v2311 = vld [vmem:[%s1392 + $0x28] sm:$0xff]
        %v2312 = vld [vmem:[%s1392 + $0x30] sm:$0xff]
        %v2313 = vld [vmem:[%s1392 + $0x38] sm:$0xff]
        %2315 = vrot.lane.b32.xlu0 %v2195, 64
        %v2316 = vpop.permute.xlu0 %2315
        %2318 = vrot.lane.b32.xlu0 %v2196, 64
        %v2319 = vpop.permute.xlu0 %2318
        %v2321 = vsel %vm2198, %v2316, 0
        %v2324 = vsel %vm2198, %v2319, 0
        %2326 = vmatprep.subr.bf16.mxu0 0
        %2327 = vmatpush1.bf16.xpose.msra.mxu0 0
        %2328 = vmatprep.subr.bf16.mxu0 0
        %2329 = vmatpush1.bf16.xpose.msra.mxu0 0
        %2330 = vmatprep.subr.bf16.mxu0 0
        %2331 = vmatpush1.bf16.xpose.msra.mxu0 0
        %2332 = vmatprep.subr.bf16.mxu0 0
        %2333 = vmatpush1.bf16.xpose.msra.mxu0 0
        %2334 = vmatprep.subr.bf16.mxu0 0
        %2335 = vmatpush1.bf16.xpose.msra.mxu0 0
        %2336 = vmatprep.subr.bf16.mxu0 0
        %2337 = vmatpush1.bf16.xpose.msra.mxu0 0
        %2338 = vmatprep.subr.bf16.mxu0 0
        %2339 = vmatpush1.bf16.xpose.msra.mxu0 0
        %2340 = vmatprep.subr.bf16.mxu0 0
        %2341 = vmatpush1.bf16.xpose.msra.mxu0 %v2324
        %2342 = vmatprep.subr.bf16.mxu0 0
        %2343 = vmatpush2.bf16.xpose.msra.mxu0 0
        %2344 = vmatprep.subr.bf16.mxu0 0
        %2345 = vmatpush2.bf16.xpose.msra.mxu0 0
        %2346 = vmatprep.subr.bf16.mxu0 0
        %2347 = vmatpush2.bf16.xpose.msra.mxu0 0
        %2348 = vmatprep.subr.bf16.mxu0 0
        %2349 = vmatpush2.bf16.xpose.msra.mxu0 0
        %2350 = vmatprep.subr.bf16.mxu0 0
        %2351 = vmatpush2.bf16.xpose.msra.mxu0 0
        %2352 = vmatprep.subr.bf16.mxu0 0
        %2353 = vmatpush2.bf16.xpose.msra.mxu0 0
        %2354 = vmatprep.subr.bf16.mxu0 0
        %2355 = vmatpush2.bf16.xpose.msra.mxu0 0
        %2356 = vmatprep.subr.bf16.mxu0 0
        %2357 = vmatpush2.bf16.xpose.msra.mxu0 0
        %2358 = vmatprep.mubr.bf16.mxu0 0
        %2359 = vmatmul.mubr.bf16.gmra.mxu0 %v2321
        %v2360 = vpop.f32.mrf.mxu0
        %v2361 = vadd.f32 %v2194, %v2360
        %v2362 = vpop.f32.mrf.mxu0
        %v2363 = vpop.f32.mrf.mxu0
        %v2364 = vpop.f32.mrf.mxu0
        %2365 = vdwg.mxu0
        %v2366 = vsel %vm2245, %v2361, -inf
        %2367 = vmax.xlane.f32.xlu0 %v2366
        %v2368 = vpop.xlane.xlu0 %2367
        %v2369 = vsub.f32 %v2361, %v2368
        %v2370 = vmul.f32 %v2369, 1.442695
        %v2371 = vpow.pop %v2370
        %v2372 = vsel %vm2245, %v2371, 0.0
        %2373 = vadd.xlane.f32.xlu0 %v2372
        %v2374 = vpop.xlane.xlu0 %2373
        %v2375 = vrcp.pop %v2374
        %v2376 = vmul.f32 %v2371, %v2375
        %v2377 = vpack.c.bf16 %v2376, %v2376
        %2379 = vrot.lane.b32.xlu0 %v2197, 64
        %v2380 = vpop.permute.xlu0 %2379
        %v2382 = vsel %vm2245, %v2377, 0
        %v2385 = vsel %vm2261, %v2380, 0
        %2387 = vmatprep.subr.bf16.mxu0 0
        %2388 = vmatpush1.bf16.msra.mxu0 0
        %2389 = vmatprep.subr.bf16.mxu0 0
        %2390 = vmatpush1.bf16.msra.mxu0 0
        %2391 = vmatprep.subr.bf16.mxu0 0
        %2392 = vmatpush1.bf16.msra.mxu0 0
        %2393 = vmatprep.subr.bf16.mxu0 0
        %2394 = vmatpush1.bf16.msra.mxu0 0
        %2395 = vmatprep.subr.bf16.mxu0 0
        %2396 = vmatpush1.bf16.msra.mxu0 0
        %2397 = vmatprep.subr.bf16.mxu0 0
        %2398 = vmatpush1.bf16.msra.mxu0 0
        %2399 = vmatprep.subr.bf16.mxu0 0
        %2400 = vmatpush1.bf16.msra.mxu0 0
        %2401 = vmatprep.subr.bf16.mxu0 0
        %2402 = vmatpush1.bf16.msra.mxu0 %v2385
        %2403 = vmatprep.subr.bf16.mxu0 0
        %2404 = vmatpush2.bf16.msra.mxu0 0
        %2405 = vmatprep.subr.bf16.mxu0 0
        %2406 = vmatpush2.bf16.msra.mxu0 0
        %2407 = vmatprep.subr.bf16.mxu0 0
        %2408 = vmatpush2.bf16.msra.mxu0 0
        %2409 = vmatprep.subr.bf16.mxu0 0
        %2410 = vmatpush2.bf16.msra.mxu0 0
        %2411 = vmatprep.subr.bf16.mxu0 0
        %2412 = vmatpush2.bf16.msra.mxu0 0
        %2413 = vmatprep.subr.bf16.mxu0 0
        %2414 = vmatpush2.bf16.msra.mxu0 0
        %2415 = vmatprep.subr.bf16.mxu0 0
        %2416 = vmatpush2.bf16.msra.mxu0 0
        %2417 = vmatprep.subr.bf16.mxu0 0
        %2418 = vmatpush2.bf16.msra.mxu0 0
        %2419 = vmatprep.mubr.bf16.mxu0 0
        %2420 = vmatmul.mubr.bf16.gmra.mxu0 %v2382
        %v2421 = vpop.f32.mrf.mxu0
        %v2422 = vadd.f32 0.0, %v2421
        %v2423 = vpop.f32.mrf.mxu0
        %v2424 = vpop.f32.mrf.mxu0
        %v2425 = vpop.f32.mrf.mxu0
        %2426 = vdwg.mxu0
        %v2427 = vpack.c.bf16 %v2422, %v2422
        %v2428 = vld [vmem:[%s1392 + $0x40] sm:$0xff]
        %v2429 = vld [vmem:[%s1392 + $0x48] sm:$0xff]
        %v2430 = vld [vmem:[%s1392 + $0x50] sm:$0xff]
        %v2431 = vld [vmem:[%s1392 + $0x58] sm:$0xff]
        %v2432 = vld [vmem:[%s1392 + $0x60] sm:$0xff]
        %v2433 = vld [vmem:[%s1392 + $0x68] sm:$0xff]
        %v2434 = vld [vmem:[%s1392 + $0x70] sm:$0xff]
        %v2435 = vld [vmem:[%s1392 + $0x78] sm:$0xff]
        %v2444 = vunpack.c.l.b16 %v2428
        %v2445 = vunpack.c.h.b16 %v2428
        %v2446 = vunpack.c.l.b16 %v2429
        %v2447 = vunpack.c.h.b16 %v2429
        %v2448 = vunpack.c.l.b16 %v2430
        %v2449 = vunpack.c.h.b16 %v2430
        %v2450 = vunpack.c.l.b16 %v2431
        %v2451 = vunpack.c.h.b16 %v2431
        %v2452 = vunpack.c.l.b16 %v2432
        %v2453 = vunpack.c.h.b16 %v2432
        %v2454 = vunpack.c.l.b16 %v2433
        %v2455 = vunpack.c.h.b16 %v2433
        %v2456 = vunpack.c.l.b16 %v2434
        %v2457 = vunpack.c.h.b16 %v2434
        %v2458 = vunpack.c.l.b16 %v2435
        %v2459 = vunpack.c.h.b16 %v2435
        %v2460 = vpack.c.b16 %v2446, %v2444
        %v2461 = vpack.c.b16 %v2447, %v2445
        %v2462 = vpack.c.b16 %v2450, %v2448
        %v2463 = vpack.c.b16 %v2451, %v2449
        %v2464 = vpack.c.b16 %v2454, %v2452
        %v2465 = vpack.c.b16 %v2455, %v2453
        %v2466 = vpack.c.b16 %v2458, %v2456
        %v2467 = vpack.c.b16 %v2459, %v2457
        %v2477 = vsel %vm2198, %v2427, 0
        %2479 = vmatprep.subr.bf16.mxu0 0
        %2480 = vmatpush1.bf16.msra.mxu0 0
        %2481 = vmatprep.subr.bf16.mxu0 0
        %2482 = vmatpush1.bf16.msra.mxu0 0
        %2483 = vmatprep.subr.bf16.mxu0 0
        %2484 = vmatpush1.bf16.msra.mxu0 0
        %2485 = vmatprep.subr.bf16.mxu0 0
        %2486 = vmatpush1.bf16.msra.mxu0 0
        %2487 = vmatprep.subr.bf16.mxu0 %v2467
        %2488 = vmatpush1.bf16.msra.mxu0 %v2466
        %2489 = vmatprep.subr.bf16.mxu0 %v2465
        %2490 = vmatpush1.bf16.msra.mxu0 %v2464
        %2491 = vmatprep.subr.bf16.mxu0 %v2463
        %2492 = vmatpush1.bf16.msra.mxu0 %v2462
        %2493 = vmatprep.subr.bf16.mxu0 %v2461
        %2494 = vmatpush1.bf16.msra.mxu0 %v2460
        %2495 = vmatprep.subr.bf16.mxu0 0
        %2496 = vmatpush2.bf16.msra.mxu0 0
        %2497 = vmatprep.subr.bf16.mxu0 0
        %2498 = vmatpush2.bf16.msra.mxu0 0
        %2499 = vmatprep.subr.bf16.mxu0 0
        %2500 = vmatpush2.bf16.msra.mxu0 0
        %2501 = vmatprep.subr.bf16.mxu0 0
        %2502 = vmatpush2.bf16.msra.mxu0 0
        %2503 = vmatprep.subr.bf16.mxu0 0
        %2504 = vmatpush2.bf16.msra.mxu0 0
        %2505 = vmatprep.subr.bf16.mxu0 0
        %2506 = vmatpush2.bf16.msra.mxu0 0
        %2507 = vmatprep.subr.bf16.mxu0 0
        %2508 = vmatpush2.bf16.msra.mxu0 0
        %2509 = vmatprep.subr.bf16.mxu0 0
        %2510 = vmatpush2.bf16.msra.mxu0 0
        %2511 = vmatprep.mubr.bf16.mxu0 0
        %2512 = vmatmul.mubr.bf16.gmra.mxu0 %v2477
        %v2513 = vpop.f32.mrf.mxu0
        %v2514 = vadd.f32 0.0, %v2513
        %v2515 = vpop.f32.mrf.mxu0
        %v2516 = vadd.f32 0.0, %v2515
        %v2517 = vpop.f32.mrf.mxu0
        %v2518 = vpop.f32.mrf.mxu0
        %2519 = vdwg.mxu0
        %v2528 = vunpack.c.l.b16 %v2306
        %v2529 = vunpack.c.h.b16 %v2306
        %v2530 = vunpack.c.l.b16 %v2307
        %v2531 = vunpack.c.h.b16 %v2307
        %v2532 = vunpack.c.l.b16 %v2308
        %v2533 = vunpack.c.h.b16 %v2308
        %v2534 = vunpack.c.l.b16 %v2309
        %v2535 = vunpack.c.h.b16 %v2309
        %v2536 = vunpack.c.l.b16 %v2310
        %v2537 = vunpack.c.h.b16 %v2310
        %v2538 = vunpack.c.l.b16 %v2311
        %v2539 = vunpack.c.h.b16 %v2311
        %v2540 = vunpack.c.l.b16 %v2312
        %v2541 = vunpack.c.h.b16 %v2312
        %v2542 = vunpack.c.l.b16 %v2313
        %v2543 = vunpack.c.h.b16 %v2313
        %v2544 = vpack.c.b16 %v2530, %v2528
        %v2545 = vpack.c.b16 %v2531, %v2529
        %v2546 = vpack.c.b16 %v2534, %v2532
        %v2547 = vpack.c.b16 %v2535, %v2533
        %v2548 = vpack.c.b16 %v2538, %v2536
        %v2549 = vpack.c.b16 %v2539, %v2537
        %v2550 = vpack.c.b16 %v2542, %v2540
        %v2551 = vpack.c.b16 %v2543, %v2541
        %v2561 = vsel %vm2198, %v2305, 0
        %2563 = vmatprep.subr.bf16.mxu0 0
        %2564 = vmatpush1.bf16.msra.mxu0 0
        %2565 = vmatprep.subr.bf16.mxu0 0
        %2566 = vmatpush1.bf16.msra.mxu0 0
        %2567 = vmatprep.subr.bf16.mxu0 0
        %2568 = vmatpush1.bf16.msra.mxu0 0
        %2569 = vmatprep.subr.bf16.mxu0 0
        %2570 = vmatpush1.bf16.msra.mxu0 0
        %2571 = vmatprep.subr.bf16.mxu0 %v2551
        %2572 = vmatpush1.bf16.msra.mxu0 %v2550
        %2573 = vmatprep.subr.bf16.mxu0 %v2549
        %2574 = vmatpush1.bf16.msra.mxu0 %v2548
        %2575 = vmatprep.subr.bf16.mxu0 %v2547
        %2576 = vmatpush1.bf16.msra.mxu0 %v2546
        %2577 = vmatprep.subr.bf16.mxu0 %v2545
        %2578 = vmatpush1.bf16.msra.mxu0 %v2544
        %2579 = vmatprep.subr.bf16.mxu0 0
        %2580 = vmatpush2.bf16.msra.mxu0 0
        %2581 = vmatprep.subr.bf16.mxu0 0
        %2582 = vmatpush2.bf16.msra.mxu0 0
        %2583 = vmatprep.subr.bf16.mxu0 0
        %2584 = vmatpush2.bf16.msra.mxu0 0
        %2585 = vmatprep.subr.bf16.mxu0 0
        %2586 = vmatpush2.bf16.msra.mxu0 0
        %2587 = vmatprep.subr.bf16.mxu0 0
        %2588 = vmatpush2.bf16.msra.mxu0 0
        %2589 = vmatprep.subr.bf16.mxu0 0
        %2590 = vmatpush2.bf16.msra.mxu0 0
        %2591 = vmatprep.subr.bf16.mxu0 0
        %2592 = vmatpush2.bf16.msra.mxu0 0
        %2593 = vmatprep.subr.bf16.mxu0 0
        %2594 = vmatpush2.bf16.msra.mxu0 0
        %2595 = vmatprep.mubr.bf16.mxu0 0
        %2596 = vmatmul.mubr.bf16.gmra.mxu0 %v2561
        %v2597 = vpop.f32.mrf.mxu0
        %v2598 = vadd.f32 %v2514, %v2597
        %v2599 = vpop.f32.mrf.mxu0
        %v2600 = vadd.f32 %v2516, %v2599
        %v2601 = vpop.f32.mrf.mxu0
        %v2602 = vpop.f32.mrf.mxu0
        %2603 = vdwg.mxu0
        %v2604 = vpack.c.bf16 %v2108, %v2108
        %v2605 = vpack.c.bf16 %v2149, %v2149
        %v2606 = vpack.c.bf16 %v2190, %v2190
        %v2608 = vsel %vm2198, %v2604, 0
        %v2611 = vsel %vm2198, %v2605, 0
        %2613 = vmatprep.subr.bf16.mxu0 0
        %2614 = vmatpush1.bf16.xpose.msra.mxu0 0
        %2615 = vmatprep.subr.bf16.mxu0 0
        %2616 = vmatpush1.bf16.xpose.msra.mxu0 0
        %2617 = vmatprep.subr.bf16.mxu0 0
        %2618 = vmatpush1.bf16.xpose.msra.mxu0 0
        %2619 = vmatprep.subr.bf16.mxu0 0
        %2620 = vmatpush1.bf16.xpose.msra.mxu0 0
        %2621 = vmatprep.subr.bf16.mxu0 0
        %2622 = vmatpush1.bf16.xpose.msra.mxu0 0
        %2623 = vmatprep.subr.bf16.mxu0 0
        %2624 = vmatpush1.bf16.xpose.msra.mxu0 0
        %2625 = vmatprep.subr.bf16.mxu0 0
        %2626 = vmatpush1.bf16.xpose.msra.mxu0 0
        %2627 = vmatprep.subr.bf16.mxu0 0
        %2628 = vmatpush1.bf16.xpose.msra.mxu0 %v2611
        %2629 = vmatprep.subr.bf16.mxu0 0
        %2630 = vmatpush2.bf16.xpose.msra.mxu0 0
        %2631 = vmatprep.subr.bf16.mxu0 0
        %2632 = vmatpush2.bf16.xpose.msra.mxu0 0
        %2633 = vmatprep.subr.bf16.mxu0 0
        %2634 = vmatpush2.bf16.xpose.msra.mxu0 0
        %2635 = vmatprep.subr.bf16.mxu0 0
        %2636 = vmatpush2.bf16.xpose.msra.mxu0 0
        %2637 = vmatprep.subr.bf16.mxu0 0
        %2638 = vmatpush2.bf16.xpose.msra.mxu0 0
        %2639 = vmatprep.subr.bf16.mxu0 0
        %2640 = vmatpush2.bf16.xpose.msra.mxu0 0
        %2641 = vmatprep.subr.bf16.mxu0 0
        %2642 = vmatpush2.bf16.xpose.msra.mxu0 0
        %2643 = vmatprep.subr.bf16.mxu0 0
        %2644 = vmatpush2.bf16.xpose.msra.mxu0 0
        %2645 = vmatprep.mubr.bf16.mxu0 0
        %2646 = vmatmul.mubr.bf16.gmra.mxu0 %v2608
        %v2647 = vpop.f32.mrf.mxu0
        %v2648 = vadd.f32 %v2194, %v2647
        %v2649 = vpop.f32.mrf.mxu0
        %v2650 = vpop.f32.mrf.mxu0
        %v2651 = vpop.f32.mrf.mxu0
        %2652 = vdwg.mxu0
        %v2653 = vsel %vm2245, %v2648, -inf
        %2654 = vmax.xlane.f32.xlu0 %v2653
        %v2655 = vpop.xlane.xlu0 %2654
        %v2656 = vsub.f32 %v2648, %v2655
        %v2657 = vmul.f32 %v2656, 1.442695
        %v2658 = vpow.pop %v2657
        %v2659 = vsel %vm2245, %v2658, 0.0
        %2660 = vadd.xlane.f32.xlu0 %v2659
        %v2661 = vpop.xlane.xlu0 %2660
        %v2662 = vrcp.pop %v2661
        %v2663 = vmul.f32 %v2658, %v2662
        %v2664 = vpack.c.bf16 %v2663, %v2663
        %v2666 = vsel %vm2245, %v2664, 0
        %v2669 = vsel %vm2261, %v2606, 0
        %2671 = vmatprep.subr.bf16.mxu0 0
        %2672 = vmatpush1.bf16.msra.mxu0 0
        %2673 = vmatprep.subr.bf16.mxu0 0
        %2674 = vmatpush1.bf16.msra.mxu0 0
        %2675 = vmatprep.subr.bf16.mxu0 0
        %2676 = vmatpush1.bf16.msra.mxu0 0
        %2677 = vmatprep.subr.bf16.mxu0 0
        %2678 = vmatpush1.bf16.msra.mxu0 0
        %2679 = vmatprep.subr.bf16.mxu0 0
        %2680 = vmatpush1.bf16.msra.mxu0 0
        %2681 = vmatprep.subr.bf16.mxu0 0
        %2682 = vmatpush1.bf16.msra.mxu0 0
        %2683 = vmatprep.subr.bf16.mxu0 0
        %2684 = vmatpush1.bf16.msra.mxu0 0
        %2685 = vmatprep.subr.bf16.mxu0 0
        %2686 = vmatpush1.bf16.msra.mxu0 %v2669
        %2687 = vmatprep.subr.bf16.mxu0 0
        %2688 = vmatpush2.bf16.msra.mxu0 0
        %2689 = vmatprep.subr.bf16.mxu0 0
        %2690 = vmatpush2.bf16.msra.mxu0 0
        %2691 = vmatprep.subr.bf16.mxu0 0
        %2692 = vmatpush2.bf16.msra.mxu0 0
        %2693 = vmatprep.subr.bf16.mxu0 0
        %2694 = vmatpush2.bf16.msra.mxu0 0
        %2695 = vmatprep.subr.bf16.mxu0 0
        %2696 = vmatpush2.bf16.msra.mxu0 0
        %2697 = vmatprep.subr.bf16.mxu0 0
        %2698 = vmatpush2.bf16.msra.mxu0 0
        %2699 = vmatprep.subr.bf16.mxu0 0
        %2700 = vmatpush2.bf16.msra.mxu0 0
        %2701 = vmatprep.subr.bf16.mxu0 0
        %2702 = vmatpush2.bf16.msra.mxu0 0
        %2703 = vmatprep.mubr.bf16.mxu0 0
        %2704 = vmatmul.mubr.bf16.gmra.mxu0 %v2666
        %v2705 = vpop.f32.mrf.mxu0
        %v2706 = vadd.f32 0.0, %v2705
        %v2707 = vpop.f32.mrf.mxu0
        %v2708 = vpop.f32.mrf.mxu0
        %v2709 = vpop.f32.mrf.mxu0
        %2710 = vdwg.mxu0
        %v2711 = vpack.c.bf16 %v2706, %v2706
        %v2712 = vld [vmem:[%s1392 + $0x80] sm:$0xff]
        %v2713 = vld [vmem:[%s1392 + $0x88] sm:$0xff]
        %v2714 = vld [vmem:[%s1392 + $0x90] sm:$0xff]
        %v2715 = vld [vmem:[%s1392 + $0x98] sm:$0xff]
        %v2716 = vld [vmem:[%s1392 + $0xa0] sm:$0xff]
        %v2717 = vld [vmem:[%s1392 + $0xa8] sm:$0xff]
        %v2718 = vld [vmem:[%s1392 + $0xb0] sm:$0xff]
        %v2719 = vld [vmem:[%s1392 + $0xb8] sm:$0xff]
        %v2728 = vunpack.c.l.b16 %v2712
        %v2729 = vunpack.c.h.b16 %v2712
        %v2730 = vunpack.c.l.b16 %v2713
        %v2731 = vunpack.c.h.b16 %v2713
        %v2732 = vunpack.c.l.b16 %v2714
        %v2733 = vunpack.c.h.b16 %v2714
        %v2734 = vunpack.c.l.b16 %v2715
        %v2735 = vunpack.c.h.b16 %v2715
        %v2736 = vunpack.c.l.b16 %v2716
        %v2737 = vunpack.c.h.b16 %v2716
        %v2738 = vunpack.c.l.b16 %v2717
        %v2739 = vunpack.c.h.b16 %v2717
        %v2740 = vunpack.c.l.b16 %v2718
        %v2741 = vunpack.c.h.b16 %v2718
        %v2742 = vunpack.c.l.b16 %v2719
        %v2743 = vunpack.c.h.b16 %v2719
        %v2744 = vpack.c.b16 %v2730, %v2728
        %v2745 = vpack.c.b16 %v2731, %v2729
        %v2746 = vpack.c.b16 %v2734, %v2732
        %v2747 = vpack.c.b16 %v2735, %v2733
        %v2748 = vpack.c.b16 %v2738, %v2736
        %v2749 = vpack.c.b16 %v2739, %v2737
        %v2750 = vpack.c.b16 %v2742, %v2740
        %v2751 = vpack.c.b16 %v2743, %v2741
        %v2761 = vsel %vm2198, %v2711, 0
        %2763 = vmatprep.subr.bf16.mxu0 0
        %2764 = vmatpush1.bf16.msra.mxu0 0
        %2765 = vmatprep.subr.bf16.mxu0 0
        %2766 = vmatpush1.bf16.msra.mxu0 0
        %2767 = vmatprep.subr.bf16.mxu0 0
        %2768 = vmatpush1.bf16.msra.mxu0 0
        %2769 = vmatprep.subr.bf16.mxu0 0
        %2770 = vmatpush1.bf16.msra.mxu0 0
        %2771 = vmatprep.subr.bf16.mxu0 %v2751
        %2772 = vmatpush1.bf16.msra.mxu0 %v2750
        %2773 = vmatprep.subr.bf16.mxu0 %v2749
        %2774 = vmatpush1.bf16.msra.mxu0 %v2748
        %2775 = vmatprep.subr.bf16.mxu0 %v2747
        %2776 = vmatpush1.bf16.msra.mxu0 %v2746
        %2777 = vmatprep.subr.bf16.mxu0 %v2745
        %2778 = vmatpush1.bf16.msra.mxu0 %v2744
        %2779 = vmatprep.subr.bf16.mxu0 0
        %2780 = vmatpush2.bf16.msra.mxu0 0
        %2781 = vmatprep.subr.bf16.mxu0 0
        %2782 = vmatpush2.bf16.msra.mxu0 0
        %2783 = vmatprep.subr.bf16.mxu0 0
        %2784 = vmatpush2.bf16.msra.mxu0 0
        %2785 = vmatprep.subr.bf16.mxu0 0
        %2786 = vmatpush2.bf16.msra.mxu0 0
        %2787 = vmatprep.subr.bf16.mxu0 0
        %2788 = vmatpush2.bf16.msra.mxu0 0
        %2789 = vmatprep.subr.bf16.mxu0 0
        %2790 = vmatpush2.bf16.msra.mxu0 0
        %2791 = vmatprep.subr.bf16.mxu0 0
        %2792 = vmatpush2.bf16.msra.mxu0 0
        %2793 = vmatprep.subr.bf16.mxu0 0
        %2794 = vmatpush2.bf16.msra.mxu0 0
        %2795 = vmatprep.mubr.bf16.mxu0 0
        %2796 = vmatmul.mubr.bf16.gmra.mxu0 %v2761
        %v2797 = vpop.f32.mrf.mxu0
        %v2798 = vadd.f32 0.0, %v2797
        %v2799 = vpop.f32.mrf.mxu0
        %v2800 = vadd.f32 0.0, %v2799
        %v2801 = vpop.f32.mrf.mxu0
        %v2802 = vpop.f32.mrf.mxu0
        %2803 = vdwg.mxu0
        %v2804 = vadd.f32 %v2598, %v2798
        %v2805 = vadd.f32 %v2600, %v2800
        %2807 = vrot.lane.b32.xlu0 %v2604, 64
        %v2808 = vpop.permute.xlu0 %2807
        %2810 = vrot.lane.b32.xlu0 %v2605, 64
        %v2811 = vpop.permute.xlu0 %2810
        %v2813 = vsel %vm2198, %v2808, 0
        %v2816 = vsel %vm2198, %v2811, 0
        %2818 = vmatprep.subr.bf16.mxu0 0
        %2819 = vmatpush1.bf16.xpose.msra.mxu0 0
        %2820 = vmatprep.subr.bf16.mxu0 0
        %2821 = vmatpush1.bf16.xpose.msra.mxu0 0
        %2822 = vmatprep.subr.bf16.mxu0 0
        %2823 = vmatpush1.bf16.xpose.msra.mxu0 0
        %2824 = vmatprep.subr.bf16.mxu0 0
        %2825 = vmatpush1.bf16.xpose.msra.mxu0 0
        %2826 = vmatprep.subr.bf16.mxu0 0
        %2827 = vmatpush1.bf16.xpose.msra.mxu0 0
        %2828 = vmatprep.subr.bf16.mxu0 0
        %2829 = vmatpush1.bf16.xpose.msra.mxu0 0
        %2830 = vmatprep.subr.bf16.mxu0 0
        %2831 = vmatpush1.bf16.xpose.msra.mxu0 0
        %2832 = vmatprep.subr.bf16.mxu0 0
        %2833 = vmatpush1.bf16.xpose.msra.mxu0 %v2816
        %2834 = vmatprep.subr.bf16.mxu0 0
        %2835 = vmatpush2.bf16.xpose.msra.mxu0 0
        %2836 = vmatprep.subr.bf16.mxu0 0
        %2837 = vmatpush2.bf16.xpose.msra.mxu0 0
        %2838 = vmatprep.subr.bf16.mxu0 0
        %2839 = vmatpush2.bf16.xpose.msra.mxu0 0
        %2840 = vmatprep.subr.bf16.mxu0 0
        %2841 = vmatpush2.bf16.xpose.msra.mxu0 0
        %2842 = vmatprep.subr.bf16.mxu0 0
        %2843 = vmatpush2.bf16.xpose.msra.mxu0 0
        %2844 = vmatprep.subr.bf16.mxu0 0
        %2845 = vmatpush2.bf16.xpose.msra.mxu0 0
        %2846 = vmatprep.subr.bf16.mxu0 0
        %2847 = vmatpush2.bf16.xpose.msra.mxu0 0
        %2848 = vmatprep.subr.bf16.mxu0 0
        %2849 = vmatpush2.bf16.xpose.msra.mxu0 0
        %2850 = vmatprep.mubr.bf16.mxu0 0
        %2851 = vmatmul.mubr.bf16.gmra.mxu0 %v2813
        %v2852 = vpop.f32.mrf.mxu0
        %v2853 = vadd.f32 %v2194, %v2852
        %v2854 = vpop.f32.mrf.mxu0
        %v2855 = vpop.f32.mrf.mxu0
        %v2856 = vpop.f32.mrf.mxu0
        %2857 = vdwg.mxu0
        %v2858 = vsel %vm2245, %v2853, -inf
        %2859 = vmax.xlane.f32.xlu0 %v2858
        %v2860 = vpop.xlane.xlu0 %2859
        %v2861 = vsub.f32 %v2853, %v2860
        %v2862 = vmul.f32 %v2861, 1.442695
        %v2863 = vpow.pop %v2862
        %v2864 = vsel %vm2245, %v2863, 0.0
        %2865 = vadd.xlane.f32.xlu0 %v2864
        %v2866 = vpop.xlane.xlu0 %2865
        %v2867 = vrcp.pop %v2866
        %v2868 = vmul.f32 %v2863, %v2867
        %v2869 = vpack.c.bf16 %v2868, %v2868
        %2871 = vrot.lane.b32.xlu0 %v2606, 64
        %v2872 = vpop.permute.xlu0 %2871
        %v2874 = vsel %vm2245, %v2869, 0
        %v2877 = vsel %vm2261, %v2872, 0
        %2879 = vmatprep.subr.bf16.mxu0 0
        %2880 = vmatpush1.bf16.msra.mxu0 0
        %2881 = vmatprep.subr.bf16.mxu0 0
        %2882 = vmatpush1.bf16.msra.mxu0 0
        %2883 = vmatprep.subr.bf16.mxu0 0
        %2884 = vmatpush1.bf16.msra.mxu0 0
        %2885 = vmatprep.subr.bf16.mxu0 0
        %2886 = vmatpush1.bf16.msra.mxu0 0
        %2887 = vmatprep.subr.bf16.mxu0 0
        %2888 = vmatpush1.bf16.msra.mxu0 0
        %2889 = vmatprep.subr.bf16.mxu0 0
        %2890 = vmatpush1.bf16.msra.mxu0 0
        %2891 = vmatprep.subr.bf16.mxu0 0
        %2892 = vmatpush1.bf16.msra.mxu0 0
        %2893 = vmatprep.subr.bf16.mxu0 0
        %2894 = vmatpush1.bf16.msra.mxu0 %v2877
        %2895 = vmatprep.subr.bf16.mxu0 0
        %2896 = vmatpush2.bf16.msra.mxu0 0
        %2897 = vmatprep.subr.bf16.mxu0 0
        %2898 = vmatpush2.bf16.msra.mxu0 0
        %2899 = vmatprep.subr.bf16.mxu0 0
        %2900 = vmatpush2.bf16.msra.mxu0 0
        %2901 = vmatprep.subr.bf16.mxu0 0
        %2902 = vmatpush2.bf16.msra.mxu0 0
        %2903 = vmatprep.subr.bf16.mxu0 0
        %2904 = vmatpush2.bf16.msra.mxu0 0
        %2905 = vmatprep.subr.bf16.mxu0 0
        %2906 = vmatpush2.bf16.msra.mxu0 0
        %2907 = vmatprep.subr.bf16.mxu0 0
        %2908 = vmatpush2.bf16.msra.mxu0 0
        %2909 = vmatprep.subr.bf16.mxu0 0
        %2910 = vmatpush2.bf16.msra.mxu0 0
        %2911 = vmatprep.mubr.bf16.mxu0 0
        %2912 = vmatmul.mubr.bf16.gmra.mxu0 %v2874
        %v2913 = vpop.f32.mrf.mxu0
        %v2914 = vadd.f32 0.0, %v2913
        %v2915 = vpop.f32.mrf.mxu0
        %v2916 = vpop.f32.mrf.mxu0
        %v2917 = vpop.f32.mrf.mxu0
        %2918 = vdwg.mxu0
        %v2919 = vpack.c.bf16 %v2914, %v2914
        %v2920 = vld [vmem:[%s1392 + $0xc0] sm:$0xff]
        %v2921 = vld [vmem:[%s1392 + $0xc8] sm:$0xff]
        %v2922 = vld [vmem:[%s1392 + $0xd0] sm:$0xff]
        %v2923 = vld [vmem:[%s1392 + $0xd8] sm:$0xff]
        %v2924 = vld [vmem:[%s1392 + $0xe0] sm:$0xff]
        %v2925 = vld [vmem:[%s1392 + $0xe8] sm:$0xff]
        %v2926 = vld [vmem:[%s1392 + $0xf0] sm:$0xff]
        %v2927 = vld [vmem:[%s1392 + $0xf8] sm:$0xff]
        %v2936 = vunpack.c.l.b16 %v2920
        %v2937 = vunpack.c.h.b16 %v2920
        %v2938 = vunpack.c.l.b16 %v2921
        %v2939 = vunpack.c.h.b16 %v2921
        %v2940 = vunpack.c.l.b16 %v2922
        %v2941 = vunpack.c.h.b16 %v2922
        %v2942 = vunpack.c.l.b16 %v2923
        %v2943 = vunpack.c.h.b16 %v2923
        %v2944 = vunpack.c.l.b16 %v2924
        %v2945 = vunpack.c.h.b16 %v2924
        %v2946 = vunpack.c.l.b16 %v2925
        %v2947 = vunpack.c.h.b16 %v2925
        %v2948 = vunpack.c.l.b16 %v2926
        %v2949 = vunpack.c.h.b16 %v2926
        %v2950 = vunpack.c.l.b16 %v2927
        %v2951 = vunpack.c.h.b16 %v2927
        %v2952 = vpack.c.b16 %v2938, %v2936
        %v2953 = vpack.c.b16 %v2939, %v2937
        %v2954 = vpack.c.b16 %v2942, %v2940
        %v2955 = vpack.c.b16 %v2943, %v2941
        %v2956 = vpack.c.b16 %v2946, %v2944
        %v2957 = vpack.c.b16 %v2947, %v2945
        %v2958 = vpack.c.b16 %v2950, %v2948
        %v2959 = vpack.c.b16 %v2951, %v2949
        %v2969 = vsel %vm2198, %v2919, 0
        %2971 = vmatprep.subr.bf16.mxu0 0
        %2972 = vmatpush1.bf16.msra.mxu0 0
        %2973 = vmatprep.subr.bf16.mxu0 0
        %2974 = vmatpush1.bf16.msra.mxu0 0
        %2975 = vmatprep.subr.bf16.mxu0 0
        %2976 = vmatpush1.bf16.msra.mxu0 0
        %2977 = vmatprep.subr.bf16.mxu0 0
        %2978 = vmatpush1.bf16.msra.mxu0 0
        %2979 = vmatprep.subr.bf16.mxu0 %v2959
        %2980 = vmatpush1.bf16.msra.mxu0 %v2958
        %2981 = vmatprep.subr.bf16.mxu0 %v2957
        %2982 = vmatpush1.bf16.msra.mxu0 %v2956
        %2983 = vmatprep.subr.bf16.mxu0 %v2955
        %2984 = vmatpush1.bf16.msra.mxu0 %v2954
        %2985 = vmatprep.subr.bf16.mxu0 %v2953
        %2986 = vmatpush1.bf16.msra.mxu0 %v2952
        %2987 = vmatprep.subr.bf16.mxu0 0
        %2988 = vmatpush2.bf16.msra.mxu0 0
        %2989 = vmatprep.subr.bf16.mxu0 0
        %2990 = vmatpush2.bf16.msra.mxu0 0
        %2991 = vmatprep.subr.bf16.mxu0 0
        %2992 = vmatpush2.bf16.msra.mxu0 0
        %2993 = vmatprep.subr.bf16.mxu0 0
        %2994 = vmatpush2.bf16.msra.mxu0 0
        %2995 = vmatprep.subr.bf16.mxu0 0
        %2996 = vmatpush2.bf16.msra.mxu0 0
        %2997 = vmatprep.subr.bf16.mxu0 0
        %2998 = vmatpush2.bf16.msra.mxu0 0
        %2999 = vmatprep.subr.bf16.mxu0 0
        %3000 = vmatpush2.bf16.msra.mxu0 0
        %3001 = vmatprep.subr.bf16.mxu0 0
        %3002 = vmatpush2.bf16.msra.mxu0 0
        %3003 = vmatprep.mubr.bf16.mxu0 0
        %3004 = vmatmul.mubr.bf16.gmra.mxu0 %v2969
        %v3005 = vpop.f32.mrf.mxu0
        %v3006 = vadd.f32 0.0, %v3005
        %v3007 = vpop.f32.mrf.mxu0
        %v3008 = vadd.f32 0.0, %v3007
        %v3009 = vpop.f32.mrf.mxu0
        %v3010 = vpop.f32.mrf.mxu0
        %3011 = vdwg.mxu0
        %v3012 = vadd.f32 %v2804, %v3006
        %v3013 = vadd.f32 %v2805, %v3008
        %v3014 = vld [vmem:[%s1396] sm:$0x3]
        %v3016 = vlaneseq
        %v3017 = vshrl.u32 %v3016, 7
        %v3018 = vsub.s32 0, %v3017
        %v3019 = vrot.slane %v3014, %v3018
        %v3020 = vlaneseq
        %v3021 = vshrl.u32 %v3020, 7
        %v3022 = vsub.s32 1, %v3021
        %v3023 = vrot.slane %v3014, %v3022
        %v3026 = vadd.f32 %v3012, %v3019
        %v3027 = vadd.f32 %v3013, %v3023
        %v3028 = vadd.f32 %v1455, %v3026
        %v3029 = vadd.f32 %v1456, %v3027
        %v3030 = vadd.f32 %v3028, %v3029
        %3031 = vadd.xlane.f32.xlu0 %v3030
        %v3032 = vpop.xlane.xlu0 %3031
        %v3033 = vrcp.pop 256.0
        %v3034 = vmul.f32 %v3032, %v3033
        %v3035 = vsub.f32 %v3028, %v3034
        %v3036 = vsub.f32 %v3029, %v3034
        %v3037 = vmul.f32 %v3035, %v3035
        %v3038 = vmul.f32 %v3036, %v3036
        %v3039 = vadd.f32 %v3037, %v3038
        %3040 = vadd.xlane.f32.xlu0 %v3039
        %v3041 = vpop.xlane.xlu0 %3040
        %v3042 = vmul.f32 %v3041, %v3033
        %v3043 = vadd.f32 %v3042, 1e-05
        %v3044 = vrsqrt.pop %v3043
        %v3045 = vmul.f32 %v3035, %v3044
        %v3046 = vmul.f32 %v3036, %v3044
        %v3047 = vld [vmem:[%s1400] sm:$0x3]
        %v3049 = vlaneseq
        %v3050 = vshrl.u32 %v3049, 7
        %v3051 = vsub.s32 0, %v3050
        %v3052 = vrot.slane %v3047, %v3051
        %v3053 = vlaneseq
        %v3054 = vshrl.u32 %v3053, 7
        %v3055 = vsub.s32 1, %v3054
        %v3056 = vrot.slane %v3047, %v3055
        %v3059 = vmul.f32 %v3045, %v3052
        %v3060 = vmul.f32 %v3046, %v3056
        %v3061 = vld [vmem:[%s1404] sm:$0x3]
        %v3063 = vlaneseq
        %v3064 = vshrl.u32 %v3063, 7
        %v3065 = vsub.s32 0, %v3064
        %v3066 = vrot.slane %v3061, %v3065
        %v3067 = vlaneseq
        %v3068 = vshrl.u32 %v3067, 7
        %v3069 = vsub.s32 1, %v3068
        %v3070 = vrot.slane %v3061, %v3069
        %v3073 = vadd.f32 %v3059, %v3066
        %v3074 = vadd.f32 %v3060, %v3070
        %v3075 = vpack.c.bf16 %v3073, %v3073
        %v3076 = vpack.c.bf16 %v3074, %v3074
        %v3077 = vld [vmem:[%s1190] sm:$0xff]
        %v3078 = vld [vmem:[%s1190 + $0x8] sm:$0xff]
        %v3079 = vld [vmem:[%s1190 + $0x10] sm:$0xff]
        %v3080 = vld [vmem:[%s1190 + $0x18] sm:$0xff]
        %v3081 = vld [vmem:[%s1190 + $0x20] sm:$0xff]
        %v3082 = vld [vmem:[%s1190 + $0x28] sm:$0xff]
        %v3083 = vld [vmem:[%s1190 + $0x30] sm:$0xff]
        %v3084 = vld [vmem:[%s1190 + $0x38] sm:$0xff]
        %v3085 = vld [vmem:[%s1190 + $0x40] sm:$0xff]
        %v3086 = vld [vmem:[%s1190 + $0x48] sm:$0xff]
        %v3087 = vld [vmem:[%s1190 + $0x50] sm:$0xff]
        %v3088 = vld [vmem:[%s1190 + $0x58] sm:$0xff]
        %v3089 = vld [vmem:[%s1190 + $0x60] sm:$0xff]
        %v3090 = vld [vmem:[%s1190 + $0x68] sm:$0xff]
        %v3091 = vld [vmem:[%s1190 + $0x70] sm:$0xff]
        %v3092 = vld [vmem:[%s1190 + $0x78] sm:$0xff]
        %v3093 = vld [vmem:[%s1190 + $0x80] sm:$0xff]
        %v3094 = vld [vmem:[%s1190 + $0x88] sm:$0xff]
        %v3095 = vld [vmem:[%s1190 + $0x90] sm:$0xff]
        %v3096 = vld [vmem:[%s1190 + $0x98] sm:$0xff]
        %v3097 = vld [vmem:[%s1190 + $0xa0] sm:$0xff]
        %v3098 = vld [vmem:[%s1190 + $0xa8] sm:$0xff]
        %v3099 = vld [vmem:[%s1190 + $0xb0] sm:$0xff]
        %v3100 = vld [vmem:[%s1190 + $0xb8] sm:$0xff]
        %v3101 = vld [vmem:[%s1190 + $0xc0] sm:$0xff]
        %v3102 = vld [vmem:[%s1190 + $0xc8] sm:$0xff]
        %v3103 = vld [vmem:[%s1190 + $0xd0] sm:$0xff]
        %v3104 = vld [vmem:[%s1190 + $0xd8] sm:$0xff]
        %v3105 = vld [vmem:[%s1190 + $0xe0] sm:$0xff]
        %v3106 = vld [vmem:[%s1190 + $0xe8] sm:$0xff]
        %v3107 = vld [vmem:[%s1190 + $0xf0] sm:$0xff]
        %v3108 = vld [vmem:[%s1190 + $0xf8] sm:$0xff]
        %v3109 = vld [vmem:[%s1408] sm:$0x3]
        %v3111 = vlaneseq
        %v3112 = vshrl.u32 %v3111, 7
        %v3113 = vsub.s32 0, %v3112
        %v3114 = vrot.slane %v3109, %v3113
        %v3115 = vlaneseq
        %v3116 = vshrl.u32 %v3115, 7
        %v3117 = vsub.s32 1, %v3116
        %v3118 = vrot.slane %v3109, %v3117
        %v3153 = vunpack.c.l.b16 %v3077
        %v3154 = vunpack.c.h.b16 %v3077
        %v3155 = vunpack.c.l.b16 %v3078
        %v3156 = vunpack.c.h.b16 %v3078
        %v3157 = vunpack.c.l.b16 %v3079
        %v3158 = vunpack.c.h.b16 %v3079
        %v3159 = vunpack.c.l.b16 %v3080
        %v3160 = vunpack.c.h.b16 %v3080
        %v3161 = vunpack.c.l.b16 %v3081
        %v3162 = vunpack.c.h.b16 %v3081
        %v3163 = vunpack.c.l.b16 %v3082
        %v3164 = vunpack.c.h.b16 %v3082
        %v3165 = vunpack.c.l.b16 %v3083
        %v3166 = vunpack.c.h.b16 %v3083
        %v3167 = vunpack.c.l.b16 %v3084
        %v3168 = vunpack.c.h.b16 %v3084
        %v3169 = vunpack.c.l.b16 %v3085
        %v3170 = vunpack.c.h.b16 %v3085
        %v3171 = vunpack.c.l.b16 %v3086
        %v3172 = vunpack.c.h.b16 %v3086
        %v3173 = vunpack.c.l.b16 %v3087
        %v3174 = vunpack.c.h.b16 %v3087
        %v3175 = vunpack.c.l.b16 %v3088
        %v3176 = vunpack.c.h.b16 %v3088
        %v3177 = vunpack.c.l.b16 %v3089
        %v3178 = vunpack.c.h.b16 %v3089
        %v3179 = vunpack.c.l.b16 %v3090
        %v3180 = vunpack.c.h.b16 %v3090
        %v3181 = vunpack.c.l.b16 %v3091
        %v3182 = vunpack.c.h.b16 %v3091
        %v3183 = vunpack.c.l.b16 %v3092
        %v3184 = vunpack.c.h.b16 %v3092
        %v3185 = vunpack.c.l.b16 %v3093
        %v3186 = vunpack.c.h.b16 %v3093
        %v3187 = vunpack.c.l.b16 %v3094
        %v3188 = vunpack.c.h.b16 %v3094
        %v3189 = vunpack.c.l.b16 %v3095
        %v3190 = vunpack.c.h.b16 %v3095
        %v3191 = vunpack.c.l.b16 %v3096
        %v3192 = vunpack.c.h.b16 %v3096
        %v3193 = vunpack.c.l.b16 %v3097
        %v3194 = vunpack.c.h.b16 %v3097
        %v3195 = vunpack.c.l.b16 %v3098
        %v3196 = vunpack.c.h.b16 %v3098
        %v3197 = vunpack.c.l.b16 %v3099
        %v3198 = vunpack.c.h.b16 %v3099
        %v3199 = vunpack.c.l.b16 %v3100
        %v3200 = vunpack.c.h.b16 %v3100
        %v3201 = vunpack.c.l.b16 %v3101
        %v3202 = vunpack.c.h.b16 %v3101
        %v3203 = vunpack.c.l.b16 %v3102
        %v3204 = vunpack.c.h.b16 %v3102
        %v3205 = vunpack.c.l.b16 %v3103
        %v3206 = vunpack.c.h.b16 %v3103
        %v3207 = vunpack.c.l.b16 %v3104
        %v3208 = vunpack.c.h.b16 %v3104
        %v3209 = vunpack.c.l.b16 %v3105
        %v3210 = vunpack.c.h.b16 %v3105
        %v3211 = vunpack.c.l.b16 %v3106
        %v3212 = vunpack.c.h.b16 %v3106
        %v3213 = vunpack.c.l.b16 %v3107
        %v3214 = vunpack.c.h.b16 %v3107
        %v3215 = vunpack.c.l.b16 %v3108
        %v3216 = vunpack.c.h.b16 %v3108
        %v3217 = vpack.c.b16 %v3155, %v3153
        %v3218 = vpack.c.b16 %v3156, %v3154
        %v3219 = vpack.c.b16 %v3159, %v3157
        %v3220 = vpack.c.b16 %v3160, %v3158
        %v3221 = vpack.c.b16 %v3163, %v3161
        %v3222 = vpack.c.b16 %v3164, %v3162
        %v3223 = vpack.c.b16 %v3167, %v3165
        %v3224 = vpack.c.b16 %v3168, %v3166
        %v3225 = vpack.c.b16 %v3171, %v3169
        %v3226 = vpack.c.b16 %v3172, %v3170
        %v3227 = vpack.c.b16 %v3175, %v3173
        %v3228 = vpack.c.b16 %v3176, %v3174
        %v3229 = vpack.c.b16 %v3179, %v3177
        %v3230 = vpack.c.b16 %v3180, %v3178
        %v3231 = vpack.c.b16 %v3183, %v3181
        %v3232 = vpack.c.b16 %v3184, %v3182
        %v3233 = vpack.c.b16 %v3187, %v3185
        %v3234 = vpack.c.b16 %v3188, %v3186
        %v3235 = vpack.c.b16 %v3191, %v3189
        %v3236 = vpack.c.b16 %v3192, %v3190
        %v3237 = vpack.c.b16 %v3195, %v3193
        %v3238 = vpack.c.b16 %v3196, %v3194
        %v3239 = vpack.c.b16 %v3199, %v3197
        %v3240 = vpack.c.b16 %v3200, %v3198
        %v3241 = vpack.c.b16 %v3203, %v3201
        %v3242 = vpack.c.b16 %v3204, %v3202
        %v3243 = vpack.c.b16 %v3207, %v3205
        %v3244 = vpack.c.b16 %v3208, %v3206
        %v3245 = vpack.c.b16 %v3211, %v3209
        %v3246 = vpack.c.b16 %v3212, %v3210
        %v3247 = vpack.c.b16 %v3215, %v3213
        %v3248 = vpack.c.b16 %v3216, %v3214
        %3281 = vmatprep.subr.bf16.mxu0 %v3232
        %3282 = vmatpush1.bf16.msra.mxu0 %v3231
        %3283 = vmatprep.subr.bf16.mxu0 %v3230
        %3284 = vmatpush1.bf16.msra.mxu0 %v3229
        %3285 = vmatprep.subr.bf16.mxu0 %v3228
        %3286 = vmatpush1.bf16.msra.mxu0 %v3227
        %3287 = vmatprep.subr.bf16.mxu0 %v3226
        %3288 = vmatpush1.bf16.msra.mxu0 %v3225
        %3289 = vmatprep.subr.bf16.mxu0 %v3224
        %3290 = vmatpush1.bf16.msra.mxu0 %v3223
        %3291 = vmatprep.subr.bf16.mxu0 %v3222
        %3292 = vmatpush1.bf16.msra.mxu0 %v3221
        %3293 = vmatprep.subr.bf16.mxu0 %v3220
        %3294 = vmatpush1.bf16.msra.mxu0 %v3219
        %3295 = vmatprep.subr.bf16.mxu0 %v3218
        %3296 = vmatpush1.bf16.msra.mxu0 %v3217
        %3297 = vmatprep.subr.bf16.mxu0 %v3248
        %3298 = vmatpush2.bf16.msra.mxu0 %v3247
        %3299 = vmatprep.subr.bf16.mxu0 %v3246
        %3300 = vmatpush2.bf16.msra.mxu0 %v3245
        %3301 = vmatprep.subr.bf16.mxu0 %v3244
        %3302 = vmatpush2.bf16.msra.mxu0 %v3243
        %3303 = vmatprep.subr.bf16.mxu0 %v3242
        %3304 = vmatpush2.bf16.msra.mxu0 %v3241
        %3305 = vmatprep.subr.bf16.mxu0 %v3240
        %3306 = vmatpush2.bf16.msra.mxu0 %v3239
        %3307 = vmatprep.subr.bf16.mxu0 %v3238
        %3308 = vmatpush2.bf16.msra.mxu0 %v3237
        %3309 = vmatprep.subr.bf16.mxu0 %v3236
        %3310 = vmatpush2.bf16.msra.mxu0 %v3235
        %3311 = vmatprep.subr.bf16.mxu0 %v3234
        %3312 = vmatpush2.bf16.msra.mxu0 %v3233
        %3313 = vmatprep.mubr.bf16.mxu0 %v3076
        %3314 = vmatmul.mubr.bf16.gmra.mxu0 %v3075
        %v3315 = vpop.f32.mrf.mxu0
        %v3316 = vadd.f32 %v3114, %v3315
        %v3317 = vpop.f32.mrf.mxu0
        %v3318 = vadd.f32 %v3118, %v3317
        %v3319 = vpop.f32.mrf.mxu0
        %v3320 = vpop.f32.mrf.mxu0
        %3321 = vdwg.mxu0
        %v3322 = vpack.c.bf16 %v1459, %v1457
        %v3323 = vpack.c.bf16 %v1460, %v1458
        %v3324 = vld [vmem:[%s1413] sm:$0xff]
        %v3325 = vld [vmem:[%s1413 + $0x8] sm:$0xff]
        %v3326 = vld [vmem:[%s1413 + $0x10] sm:$0xff]
        %v3327 = vld [vmem:[%s1413 + $0x18] sm:$0xff]
        %v3328 = vld [vmem:[%s1413 + $0x20] sm:$0xff]
        %v3329 = vld [vmem:[%s1413 + $0x28] sm:$0xff]
        %v3330 = vld [vmem:[%s1413 + $0x30] sm:$0xff]
        %v3331 = vld [vmem:[%s1413 + $0x38] sm:$0xff]
        %v3332 = vld [vmem:[%s1413 + $0x40] sm:$0xff]
        %v3333 = vld [vmem:[%s1413 + $0x48] sm:$0xff]
        %v3334 = vld [vmem:[%s1413 + $0x50] sm:$0xff]
        %v3335 = vld [vmem:[%s1413 + $0x58] sm:$0xff]
        %v3336 = vld [vmem:[%s1413 + $0x60] sm:$0xff]
        %v3337 = vld [vmem:[%s1413 + $0x68] sm:$0xff]
        %v3338 = vld [vmem:[%s1413 + $0x70] sm:$0xff]
        %v3339 = vld [vmem:[%s1413 + $0x78] sm:$0xff]
        %v3340 = vld [vmem:[%s1413 + $0x80] sm:$0xff]
        %v3341 = vld [vmem:[%s1413 + $0x88] sm:$0xff]
        %v3342 = vld [vmem:[%s1413 + $0x90] sm:$0xff]
        %v3343 = vld [vmem:[%s1413 + $0x98] sm:$0xff]
        %v3344 = vld [vmem:[%s1413 + $0xa0] sm:$0xff]
        %v3345 = vld [vmem:[%s1413 + $0xa8] sm:$0xff]
        %v3346 = vld [vmem:[%s1413 + $0xb0] sm:$0xff]
        %v3347 = vld [vmem:[%s1413 + $0xb8] sm:$0xff]
        %v3348 = vld [vmem:[%s1413 + $0xc0] sm:$0xff]
        %v3349 = vld [vmem:[%s1413 + $0xc8] sm:$0xff]
        %v3350 = vld [vmem:[%s1413 + $0xd0] sm:$0xff]
        %v3351 = vld [vmem:[%s1413 + $0xd8] sm:$0xff]
        %v3352 = vld [vmem:[%s1413 + $0xe0] sm:$0xff]
        %v3353 = vld [vmem:[%s1413 + $0xe8] sm:$0xff]
        %v3354 = vld [vmem:[%s1413 + $0xf0] sm:$0xff]
        %v3355 = vld [vmem:[%s1413 + $0xf8] sm:$0xff]
        %v3356 = vld [vmem:[%s1413 + $0x100] sm:$0xff]
        %v3357 = vld [vmem:[%s1413 + $0x108] sm:$0xff]
        %v3358 = vld [vmem:[%s1413 + $0x110] sm:$0xff]
        %v3359 = vld [vmem:[%s1413 + $0x118] sm:$0xff]
        %v3360 = vld [vmem:[%s1413 + $0x120] sm:$0xff]
        %v3361 = vld [vmem:[%s1413 + $0x128] sm:$0xff]
        %v3362 = vld [vmem:[%s1413 + $0x130] sm:$0xff]
        %v3363 = vld [vmem:[%s1413 + $0x138] sm:$0xff]
        %v3364 = vld [vmem:[%s1413 + $0x140] sm:$0xff]
        %v3365 = vld [vmem:[%s1413 + $0x148] sm:$0xff]
        %v3366 = vld [vmem:[%s1413 + $0x150] sm:$0xff]
        %v3367 = vld [vmem:[%s1413 + $0x158] sm:$0xff]
        %v3368 = vld [vmem:[%s1413 + $0x160] sm:$0xff]
        %v3369 = vld [vmem:[%s1413 + $0x168] sm:$0xff]
        %v3370 = vld [vmem:[%s1413 + $0x170] sm:$0xff]
        %v3371 = vld [vmem:[%s1413 + $0x178] sm:$0xff]
        %v3372 = vld [vmem:[%s1413 + $0x180] sm:$0xff]
        %v3373 = vld [vmem:[%s1413 + $0x188] sm:$0xff]
        %v3374 = vld [vmem:[%s1413 + $0x190] sm:$0xff]
        %v3375 = vld [vmem:[%s1413 + $0x198] sm:$0xff]
        %v3376 = vld [vmem:[%s1413 + $0x1a0] sm:$0xff]
        %v3377 = vld [vmem:[%s1413 + $0x1a8] sm:$0xff]
        %v3378 = vld [vmem:[%s1413 + $0x1b0] sm:$0xff]
        %v3379 = vld [vmem:[%s1413 + $0x1b8] sm:$0xff]
        %v3380 = vld [vmem:[%s1413 + $0x1c0] sm:$0xff]
        %v3381 = vld [vmem:[%s1413 + $0x1c8] sm:$0xff]
        %v3382 = vld [vmem:[%s1413 + $0x1d0] sm:$0xff]
        %v3383 = vld [vmem:[%s1413 + $0x1d8] sm:$0xff]
        %v3384 = vld [vmem:[%s1413 + $0x1e0] sm:$0xff]
        %v3385 = vld [vmem:[%s1413 + $0x1e8] sm:$0xff]
        %v3386 = vld [vmem:[%s1413 + $0x1f0] sm:$0xff]
        %v3387 = vld [vmem:[%s1413 + $0x1f8] sm:$0xff]
        %v3388 = vld [vmem:[%s1417] sm:$0xf]
        %v3390 = vlaneseq
        %v3391 = vshrl.u32 %v3390, 7
        %v3392 = vsub.s32 0, %v3391
        %v3393 = vrot.slane %v3388, %v3392
        %v3394 = vlaneseq
        %v3395 = vshrl.u32 %v3394, 7
        %v3396 = vsub.s32 1, %v3395
        %v3397 = vrot.slane %v3388, %v3396
        %v3398 = vlaneseq
        %v3399 = vshrl.u32 %v3398, 7
        %v3400 = vsub.s32 2, %v3399
        %v3401 = vrot.slane %v3388, %v3400
        %v3402 = vlaneseq
        %v3403 = vshrl.u32 %v3402, 7
        %v3404 = vsub.s32 3, %v3403
        %v3405 = vrot.slane %v3388, %v3404
        %v3474 = vunpack.c.l.b16 %v3324
        %v3475 = vunpack.c.h.b16 %v3324
        %v3476 = vunpack.c.l.b16 %v3325
        %v3477 = vunpack.c.h.b16 %v3325
        %v3478 = vunpack.c.l.b16 %v3326
        %v3479 = vunpack.c.h.b16 %v3326
        %v3480 = vunpack.c.l.b16 %v3327
        %v3481 = vunpack.c.h.b16 %v3327
        %v3482 = vunpack.c.l.b16 %v3328
        %v3483 = vunpack.c.h.b16 %v3328
        %v3484 = vunpack.c.l.b16 %v3329
        %v3485 = vunpack.c.h.b16 %v3329
        %v3486 = vunpack.c.l.b16 %v3330
        %v3487 = vunpack.c.h.b16 %v3330
        %v3488 = vunpack.c.l.b16 %v3331
        %v3489 = vunpack.c.h.b16 %v3331
        %v3490 = vunpack.c.l.b16 %v3332
        %v3491 = vunpack.c.h.b16 %v3332
        %v3492 = vunpack.c.l.b16 %v3333
        %v3493 = vunpack.c.h.b16 %v3333
        %v3494 = vunpack.c.l.b16 %v3334
        %v3495 = vunpack.c.h.b16 %v3334
        %v3496 = vunpack.c.l.b16 %v3335
        %v3497 = vunpack.c.h.b16 %v3335
        %v3498 = vunpack.c.l.b16 %v3336
        %v3499 = vunpack.c.h.b16 %v3336
        %v3500 = vunpack.c.l.b16 %v3337
        %v3501 = vunpack.c.h.b16 %v3337
        %v3502 = vunpack.c.l.b16 %v3338
        %v3503 = vunpack.c.h.b16 %v3338
        %v3504 = vunpack.c.l.b16 %v3339
        %v3505 = vunpack.c.h.b16 %v3339
        %v3506 = vunpack.c.l.b16 %v3340
        %v3507 = vunpack.c.h.b16 %v3340
        %v3508 = vunpack.c.l.b16 %v3341
        %v3509 = vunpack.c.h.b16 %v3341
        %v3510 = vunpack.c.l.b16 %v3342
        %v3511 = vunpack.c.h.b16 %v3342
        %v3512 = vunpack.c.l.b16 %v3343
        %v3513 = vunpack.c.h.b16 %v3343
        %v3514 = vunpack.c.l.b16 %v3344
        %v3515 = vunpack.c.h.b16 %v3344
        %v3516 = vunpack.c.l.b16 %v3345
        %v3517 = vunpack.c.h.b16 %v3345
        %v3518 = vunpack.c.l.b16 %v3346
        %v3519 = vunpack.c.h.b16 %v3346
        %v3520 = vunpack.c.l.b16 %v3347
        %v3521 = vunpack.c.h.b16 %v3347
        %v3522 = vunpack.c.l.b16 %v3348
        %v3523 = vunpack.c.h.b16 %v3348
        %v3524 = vunpack.c.l.b16 %v3349
        %v3525 = vunpack.c.h.b16 %v3349
        %v3526 = vunpack.c.l.b16 %v3350
        %v3527 = vunpack.c.h.b16 %v3350
        %v3528 = vunpack.c.l.b16 %v3351
        %v3529 = vunpack.c.h.b16 %v3351
        %v3530 = vunpack.c.l.b16 %v3352
        %v3531 = vunpack.c.h.b16 %v3352
        %v3532 = vunpack.c.l.b16 %v3353
        %v3533 = vunpack.c.h.b16 %v3353
        %v3534 = vunpack.c.l.b16 %v3354
        %v3535 = vunpack.c.h.b16 %v3354
        %v3536 = vunpack.c.l.b16 %v3355
        %v3537 = vunpack.c.h.b16 %v3355
        %v3538 = vunpack.c.l.b16 %v3356
        %v3539 = vunpack.c.h.b16 %v3356
        %v3540 = vunpack.c.l.b16 %v3357
        %v3541 = vunpack.c.h.b16 %v3357
        %v3542 = vunpack.c.l.b16 %v3358
        %v3543 = vunpack.c.h.b16 %v3358
        %v3544 = vunpack.c.l.b16 %v3359
        %v3545 = vunpack.c.h.b16 %v3359
        %v3546 = vunpack.c.l.b16 %v3360
        %v3547 = vunpack.c.h.b16 %v3360
        %v3548 = vunpack.c.l.b16 %v3361
        %v3549 = vunpack.c.h.b16 %v3361
        %v3550 = vunpack.c.l.b16 %v3362
        %v3551 = vunpack.c.h.b16 %v3362
        %v3552 = vunpack.c.l.b16 %v3363
        %v3553 = vunpack.c.h.b16 %v3363
        %v3554 = vunpack.c.l.b16 %v3364
        %v3555 = vunpack.c.h.b16 %v3364
        %v3556 = vunpack.c.l.b16 %v3365
        %v3557 = vunpack.c.h.b16 %v3365
        %v3558 = vunpack.c.l.b16 %v3366
        %v3559 = vunpack.c.h.b16 %v3366
        %v3560 = vunpack.c.l.b16 %v3367
        %v3561 = vunpack.c.h.b16 %v3367
        %v3562 = vunpack.c.l.b16 %v3368
        %v3563 = vunpack.c.h.b16 %v3368
        %v3564 = vunpack.c.l.b16 %v3369
        %v3565 = vunpack.c.h.b16 %v3369
        %v3566 = vunpack.c.l.b16 %v3370
        %v3567 = vunpack.c.h.b16 %v3370
        %v3568 = vunpack.c.l.b16 %v3371
        %v3569 = vunpack.c.h.b16 %v3371
        %v3570 = vunpack.c.l.b16 %v3372
        %v3571 = vunpack.c.h.b16 %v3372
        %v3572 = vunpack.c.l.b16 %v3373
        %v3573 = vunpack.c.h.b16 %v3373
        %v3574 = vunpack.c.l.b16 %v3374
        %v3575 = vunpack.c.h.b16 %v3374
        %v3576 = vunpack.c.l.b16 %v3375
        %v3577 = vunpack.c.h.b16 %v3375
        %v3578 = vunpack.c.l.b16 %v3376
        %v3579 = vunpack.c.h.b16 %v3376
        %v3580 = vunpack.c.l.b16 %v3377
        %v3581 = vunpack.c.h.b16 %v3377
        %v3582 = vunpack.c.l.b16 %v3378
        %v3583 = vunpack.c.h.b16 %v3378
        %v3584 = vunpack.c.l.b16 %v3379
        %v3585 = vunpack.c.h.b16 %v3379
        %v3586 = vunpack.c.l.b16 %v3380
        %v3587 = vunpack.c.h.b16 %v3380
        %v3588 = vunpack.c.l.b16 %v3381
        %v3589 = vunpack.c.h.b16 %v3381
        %v3590 = vunpack.c.l.b16 %v3382
        %v3591 = vunpack.c.h.b16 %v3382
        %v3592 = vunpack.c.l.b16 %v3383
        %v3593 = vunpack.c.h.b16 %v3383
        %v3594 = vunpack.c.l.b16 %v3384
        %v3595 = vunpack.c.h.b16 %v3384
        %v3596 = vunpack.c.l.b16 %v3385
        %v3597 = vunpack.c.h.b16 %v3385
        %v3598 = vunpack.c.l.b16 %v3386
        %v3599 = vunpack.c.h.b16 %v3386
        %v3600 = vunpack.c.l.b16 %v3387
        %v3601 = vunpack.c.h.b16 %v3387
        %v3602 = vpack.c.b16 %v3478, %v3474
        %v3603 = vpack.c.b16 %v3479, %v3475
        %v3604 = vpack.c.b16 %v3480, %v3476
        %v3605 = vpack.c.b16 %v3481, %v3477
        %v3606 = vpack.c.b16 %v3486, %v3482
        %v3607 = vpack.c.b16 %v3487, %v3483
        %v3608 = vpack.c.b16 %v3488, %v3484
        %v3609 = vpack.c.b16 %v3489, %v3485
        %v3610 = vpack.c.b16 %v3494, %v3490
        %v3611 = vpack.c.b16 %v3495, %v3491
        %v3612 = vpack.c.b16 %v3496, %v3492
        %v3613 = vpack.c.b16 %v3497, %v3493
        %v3614 = vpack.c.b16 %v3502, %v3498
        %v3615 = vpack.c.b16 %v3503, %v3499
        %v3616 = vpack.c.b16 %v3504, %v3500
        %v3617 = vpack.c.b16 %v3505, %v3501
        %v3618 = vpack.c.b16 %v3510, %v3506
        %v3619 = vpack.c.b16 %v3511, %v3507
        %v3620 = vpack.c.b16 %v3512, %v3508
        %v3621 = vpack.c.b16 %v3513, %v3509
        %v3622 = vpack.c.b16 %v3518, %v3514
        %v3623 = vpack.c.b16 %v3519, %v3515
        %v3624 = vpack.c.b16 %v3520, %v3516
        %v3625 = vpack.c.b16 %v3521, %v3517
        %v3626 = vpack.c.b16 %v3526, %v3522
        %v3627 = vpack.c.b16 %v3527, %v3523
        %v3628 = vpack.c.b16 %v3528, %v3524
        %v3629 = vpack.c.b16 %v3529, %v3525
        %v3630 = vpack.c.b16 %v3534, %v3530
        %v3631 = vpack.c.b16 %v3535, %v3531
        %v3632 = vpack.c.b16 %v3536, %v3532
        %v3633 = vpack.c.b16 %v3537, %v3533
        %v3634 = vpack.c.b16 %v3542, %v3538
        %v3635 = vpack.c.b16 %v3543, %v3539
        %v3636 = vpack.c.b16 %v3544, %v3540
        %v3637 = vpack.c.b16 %v3545, %v3541
        %v3638 = vpack.c.b16 %v3550, %v3546
        %v3639 = vpack.c.b16 %v3551, %v3547
        %v3640 = vpack.c.b16 %v3552, %v3548
        %v3641 = vpack.c.b16 %v3553, %v3549
        %v3642 = vpack.c.b16 %v3558, %v3554
        %v3643 = vpack.c.b16 %v3559, %v3555
        %v3644 = vpack.c.b16 %v3560, %v3556
        %v3645 = vpack.c.b16 %v3561, %v3557
        %v3646 = vpack.c.b16 %v3566, %v3562
        %v3647 = vpack.c.b16 %v3567, %v3563
        %v3648 = vpack.c.b16 %v3568, %v3564
        %v3649 = vpack.c.b16 %v3569, %v3565
        %v3650 = vpack.c.b16 %v3574, %v3570
        %v3651 = vpack.c.b16 %v3575, %v3571
        %v3652 = vpack.c.b16 %v3576, %v3572
        %v3653 = vpack.c.b16 %v3577, %v3573
        %v3654 = vpack.c.b16 %v3582, %v3578
        %v3655 = vpack.c.b16 %v3583, %v3579
        %v3656 = vpack.c.b16 %v3584, %v3580
        %v3657 = vpack.c.b16 %v3585, %v3581
        %v3658 = vpack.c.b16 %v3590, %v3586
        %v3659 = vpack.c.b16 %v3591, %v3587
        %v3660 = vpack.c.b16 %v3592, %v3588
        %v3661 = vpack.c.b16 %v3593, %v3589
        %v3662 = vpack.c.b16 %v3598, %v3594
        %v3663 = vpack.c.b16 %v3599, %v3595
        %v3664 = vpack.c.b16 %v3600, %v3596
        %v3665 = vpack.c.b16 %v3601, %v3597
        %3730 = vmatprep.subr.bf16.mxu0 %v3631
        %3731 = vmatpush1.bf16.msra.mxu0 %v3630
        %3732 = vmatprep.subr.bf16.mxu0 %v3627
        %3733 = vmatpush1.bf16.msra.mxu0 %v3626
        %3734 = vmatprep.subr.bf16.mxu0 %v3623
        %3735 = vmatpush1.bf16.msra.mxu0 %v3622
        %3736 = vmatprep.subr.bf16.mxu0 %v3619
        %3737 = vmatpush1.bf16.msra.mxu0 %v3618
        %3738 = vmatprep.subr.bf16.mxu0 %v3615
        %3739 = vmatpush1.bf16.msra.mxu0 %v3614
        %3740 = vmatprep.subr.bf16.mxu0 %v3611
        %3741 = vmatpush1.bf16.msra.mxu0 %v3610
        %3742 = vmatprep.subr.bf16.mxu0 %v3607
        %3743 = vmatpush1.bf16.msra.mxu0 %v3606
        %3744 = vmatprep.subr.bf16.mxu0 %v3603
        %3745 = vmatpush1.bf16.msra.mxu0 %v3602
        %3746 = vmatprep.subr.bf16.mxu0 %v3663
        %3747 = vmatpush2.bf16.msra.mxu0 %v3662
        %3748 = vmatprep.subr.bf16.mxu0 %v3659
        %3749 = vmatpush2.bf16.msra.mxu0 %v3658
        %3750 = vmatprep.subr.bf16.mxu0 %v3655
        %3751 = vmatpush2.bf16.msra.mxu0 %v3654
        %3752 = vmatprep.subr.bf16.mxu0 %v3651
        %3753 = vmatpush2.bf16.msra.mxu0 %v3650
        %3754 = vmatprep.subr.bf16.mxu0 %v3647
        %3755 = vmatpush2.bf16.msra.mxu0 %v3646
        %3756 = vmatprep.subr.bf16.mxu0 %v3643
        %3757 = vmatpush2.bf16.msra.mxu0 %v3642
        %3758 = vmatprep.subr.bf16.mxu0 %v3639
        %3759 = vmatpush2.bf16.msra.mxu0 %v3638
        %3760 = vmatprep.subr.bf16.mxu0 %v3635
        %3761 = vmatpush2.bf16.msra.mxu0 %v3634
        %3762 = vmatprep.mubr.bf16.mxu0 %v3323
        %3763 = vmatmul.mubr.bf16.gmra.mxu0 %v3322
        %v3764 = vpop.f32.mrf.mxu0
        %v3765 = vadd.f32 %v3393, %v3764
        %v3766 = vpop.f32.mrf.mxu0
        %v3767 = vadd.f32 %v3397, %v3766
        %v3768 = vpop.f32.mrf.mxu0
        %v3769 = vadd.f32 %v3393, %v3768
        %v3770 = vpop.f32.mrf.mxu0
        %v3771 = vadd.f32 %v3397, %v3770
        %3772 = vdwg.mxu0
        %3773 = vmatprep.subr.bf16.mxu0 %v3633
        %3774 = vmatpush1.bf16.msra.mxu0 %v3632
        %3775 = vmatprep.subr.bf16.mxu0 %v3629
        %3776 = vmatpush1.bf16.msra.mxu0 %v3628
        %3777 = vmatprep.subr.bf16.mxu0 %v3625
        %3778 = vmatpush1.bf16.msra.mxu0 %v3624
        %3779 = vmatprep.subr.bf16.mxu0 %v3621
        %3780 = vmatpush1.bf16.msra.mxu0 %v3620
        %3781 = vmatprep.subr.bf16.mxu0 %v3617
        %3782 = vmatpush1.bf16.msra.mxu0 %v3616
        %3783 = vmatprep.subr.bf16.mxu0 %v3613
        %3784 = vmatpush1.bf16.msra.mxu0 %v3612
        %3785 = vmatprep.subr.bf16.mxu0 %v3609
        %3786 = vmatpush1.bf16.msra.mxu0 %v3608
        %3787 = vmatprep.subr.bf16.mxu0 %v3605
        %3788 = vmatpush1.bf16.msra.mxu0 %v3604
        %3789 = vmatprep.subr.bf16.mxu0 %v3665
        %3790 = vmatpush2.bf16.msra.mxu0 %v3664
        %3791 = vmatprep.subr.bf16.mxu0 %v3661
        %3792 = vmatpush2.bf16.msra.mxu0 %v3660
        %3793 = vmatprep.subr.bf16.mxu0 %v3657
        %3794 = vmatpush2.bf16.msra.mxu0 %v3656
        %3795 = vmatprep.subr.bf16.mxu0 %v3653
        %3796 = vmatpush2.bf16.msra.mxu0 %v3652
        %3797 = vmatprep.subr.bf16.mxu0 %v3649
        %3798 = vmatpush2.bf16.msra.mxu0 %v3648
        %3799 = vmatprep.subr.bf16.mxu0 %v3645
        %3800 = vmatpush2.bf16.msra.mxu0 %v3644
        %3801 = vmatprep.subr.bf16.mxu0 %v3641
        %3802 = vmatpush2.bf16.msra.mxu0 %v3640
        %3803 = vmatprep.subr.bf16.mxu0 %v3637
        %3804 = vmatpush2.bf16.msra.mxu0 %v3636
        %3805 = vmatprep.mubr.bf16.mxu0 %v3323
        %3806 = vmatmul.mubr.bf16.gmra.mxu0 %v3322
        %v3807 = vpop.f32.mrf.mxu0
        %v3808 = vadd.f32 %v3401, %v3807
        %v3809 = vpop.f32.mrf.mxu0
        %v3810 = vadd.f32 %v3405, %v3809
        %v3811 = vpop.f32.mrf.mxu0
        %v3812 = vadd.f32 %v3401, %v3811
        %v3813 = vpop.f32.mrf.mxu0
        %v3814 = vadd.f32 %v3405, %v3813
        %3815 = vdwg.mxu0
        %v3816 = vld [vmem:[%s7] sm:$0xff]
        %v3817 = vpack.c.bf16 %v3316, %v3316
        %v3818 = vpack.c.bf16 %v3769, %v3765
        %v3819 = vpack.c.bf16 %v3812, %v3808
        %v3821 = vsel %vm2198, %v3817, 0
        %v3824 = vsel %vm2198, %v3818, 0
        %3826 = vmatprep.subr.bf16.mxu0 0
        %3827 = vmatpush1.bf16.xpose.msra.mxu0 0
        %3828 = vmatprep.subr.bf16.mxu0 0
        %3829 = vmatpush1.bf16.xpose.msra.mxu0 0
        %3830 = vmatprep.subr.bf16.mxu0 0
        %3831 = vmatpush1.bf16.xpose.msra.mxu0 0
        %3832 = vmatprep.subr.bf16.mxu0 0
        %3833 = vmatpush1.bf16.xpose.msra.mxu0 0
        %3834 = vmatprep.subr.bf16.mxu0 0
        %3835 = vmatpush1.bf16.xpose.msra.mxu0 0
        %3836 = vmatprep.subr.bf16.mxu0 0
        %3837 = vmatpush1.bf16.xpose.msra.mxu0 0
        %3838 = vmatprep.subr.bf16.mxu0 0
        %3839 = vmatpush1.bf16.xpose.msra.mxu0 0
        %3840 = vmatprep.subr.bf16.mxu0 0
        %3841 = vmatpush1.bf16.xpose.msra.mxu0 %v3824
        %3842 = vmatprep.subr.bf16.mxu0 0
        %3843 = vmatpush2.bf16.xpose.msra.mxu0 0
        %3844 = vmatprep.subr.bf16.mxu0 0
        %3845 = vmatpush2.bf16.xpose.msra.mxu0 0
        %3846 = vmatprep.subr.bf16.mxu0 0
        %3847 = vmatpush2.bf16.xpose.msra.mxu0 0
        %3848 = vmatprep.subr.bf16.mxu0 0
        %3849 = vmatpush2.bf16.xpose.msra.mxu0 0
        %3850 = vmatprep.subr.bf16.mxu0 0
        %3851 = vmatpush2.bf16.xpose.msra.mxu0 0
        %3852 = vmatprep.subr.bf16.mxu0 0
        %3853 = vmatpush2.bf16.xpose.msra.mxu0 0
        %3854 = vmatprep.subr.bf16.mxu0 0
        %3855 = vmatpush2.bf16.xpose.msra.mxu0 0
        %3856 = vmatprep.subr.bf16.mxu0 0
        %3857 = vmatpush2.bf16.xpose.msra.mxu0 0
        %3858 = vmatprep.mubr.bf16.mxu0 0
        %3859 = vmatmul.mubr.bf16.gmra.mxu0 %v3821
        %v3860 = vpop.f32.mrf.mxu0
        %v3861 = vadd.f32 %v3816, %v3860
        %v3862 = vpop.f32.mrf.mxu0
        %v3863 = vpop.f32.mrf.mxu0
        %v3864 = vpop.f32.mrf.mxu0
        %3865 = vdwg.mxu0
        %vm3866 = vcmask 130048
        %v3867 = vsel %vm3866, %v3861, -inf
        %3868 = vmax.xlane.f32.xlu0 %v3867
        %v3869 = vpop.xlane.xlu0 %3868
        %v3870 = vsub.f32 %v3861, %v3869
        %v3871 = vmul.f32 %v3870, 1.442695
        %v3872 = vpow.pop %v3871
        %v3873 = vsel %vm3866, %v3872, 0.0
        %3874 = vadd.xlane.f32.xlu0 %v3873
        %v3875 = vpop.xlane.xlu0 %3874
        %v3876 = vrcp.pop %v3875
        %v3877 = vmul.f32 %v3872, %v3876
        %v3878 = vpack.c.bf16 %v3877, %v3877
        %v3880 = vsel %vm3866, %v3878, 0
        %3882 = vmatprep.subr.bf16.mxu0 0
        %3883 = vmatpush1.bf16.msra.mxu0 0
        %3884 = vmatprep.subr.bf16.mxu0 0
        %3885 = vmatpush1.bf16.msra.mxu0 0
        %3886 = vmatprep.subr.bf16.mxu0 0
        %3887 = vmatpush1.bf16.msra.mxu0 0
        %3888 = vmatprep.subr.bf16.mxu0 0
        %3889 = vmatpush1.bf16.msra.mxu0 0
        %3890 = vmatprep.subr.bf16.mxu0 0
        %3891 = vmatpush1.bf16.msra.mxu0 0
        %3892 = vmatprep.subr.bf16.mxu0 0
        %3893 = vmatpush1.bf16.msra.mxu0 0
        %3894 = vmatprep.subr.bf16.mxu0 0
        %3895 = vmatpush1.bf16.msra.mxu0 0
        %3896 = vmatprep.subr.bf16.mxu0 0
        %3897 = vmatpush1.bf16.msra.mxu0 %v3819
        %3898 = vmatprep.subr.bf16.mxu0 0
        %3899 = vmatpush2.bf16.msra.mxu0 0
        %3900 = vmatprep.subr.bf16.mxu0 0
        %3901 = vmatpush2.bf16.msra.mxu0 0
        %3902 = vmatprep.subr.bf16.mxu0 0
        %3903 = vmatpush2.bf16.msra.mxu0 0
        %3904 = vmatprep.subr.bf16.mxu0 0
        %3905 = vmatpush2.bf16.msra.mxu0 0
        %3906 = vmatprep.subr.bf16.mxu0 0
        %3907 = vmatpush2.bf16.msra.mxu0 0
        %3908 = vmatprep.subr.bf16.mxu0 0
        %3909 = vmatpush2.bf16.msra.mxu0 0
        %3910 = vmatprep.subr.bf16.mxu0 0
        %3911 = vmatpush2.bf16.msra.mxu0 0
        %3912 = vmatprep.subr.bf16.mxu0 0
        %3913 = vmatpush2.bf16.msra.mxu0 0
        %3914 = vmatprep.mubr.bf16.mxu0 0
        %3915 = vmatmul.mubr.bf16.gmra.mxu0 %v3880
        %v3916 = vpop.f32.mrf.mxu0
        %v3917 = vadd.f32 0.0, %v3916
        %v3918 = vpop.f32.mrf.mxu0
        %v3919 = vpop.f32.mrf.mxu0
        %v3920 = vpop.f32.mrf.mxu0
        %3921 = vdwg.mxu0
        %v3922 = vpack.c.bf16 %v3917, %v3917
        %v3923 = vld [vmem:[%s1199] sm:$0xff]
        %v3924 = vld [vmem:[%s1199 + $0x8] sm:$0xff]
        %v3925 = vld [vmem:[%s1199 + $0x10] sm:$0xff]
        %v3926 = vld [vmem:[%s1199 + $0x18] sm:$0xff]
        %v3927 = vld [vmem:[%s1199 + $0x20] sm:$0xff]
        %v3928 = vld [vmem:[%s1199 + $0x28] sm:$0xff]
        %v3929 = vld [vmem:[%s1199 + $0x30] sm:$0xff]
        %v3930 = vld [vmem:[%s1199 + $0x38] sm:$0xff]
        %3932 = vrot.lane.b32.xlu0 %v3817, 64
        %v3933 = vpop.permute.xlu0 %3932
        %3935 = vrot.lane.b32.xlu0 %v3818, 64
        %v3936 = vpop.permute.xlu0 %3935
        %v3938 = vsel %vm2198, %v3933, 0
        %v3941 = vsel %vm2198, %v3936, 0
        %3943 = vmatprep.subr.bf16.mxu0 0
        %3944 = vmatpush1.bf16.xpose.msra.mxu0 0
        %3945 = vmatprep.subr.bf16.mxu0 0
        %3946 = vmatpush1.bf16.xpose.msra.mxu0 0
        %3947 = vmatprep.subr.bf16.mxu0 0
        %3948 = vmatpush1.bf16.xpose.msra.mxu0 0
        %3949 = vmatprep.subr.bf16.mxu0 0
        %3950 = vmatpush1.bf16.xpose.msra.mxu0 0
        %3951 = vmatprep.subr.bf16.mxu0 0
        %3952 = vmatpush1.bf16.xpose.msra.mxu0 0
        %3953 = vmatprep.subr.bf16.mxu0 0
        %3954 = vmatpush1.bf16.xpose.msra.mxu0 0
        %3955 = vmatprep.subr.bf16.mxu0 0
        %3956 = vmatpush1.bf16.xpose.msra.mxu0 0
        %3957 = vmatprep.subr.bf16.mxu0 0
        %3958 = vmatpush1.bf16.xpose.msra.mxu0 %v3941
        %3959 = vmatprep.subr.bf16.mxu0 0
        %3960 = vmatpush2.bf16.xpose.msra.mxu0 0
        %3961 = vmatprep.subr.bf16.mxu0 0
        %3962 = vmatpush2.bf16.xpose.msra.mxu0 0
        %3963 = vmatprep.subr.bf16.mxu0 0
        %3964 = vmatpush2.bf16.xpose.msra.mxu0 0
        %3965 = vmatprep.subr.bf16.mxu0 0
        %3966 = vmatpush2.bf16.xpose.msra.mxu0 0
        %3967 = vmatprep.subr.bf16.mxu0 0
        %3968 = vmatpush2.bf16.xpose.msra.mxu0 0
        %3969 = vmatprep.subr.bf16.mxu0 0
        %3970 = vmatpush2.bf16.xpose.msra.mxu0 0
        %3971 = vmatprep.subr.bf16.mxu0 0
        %3972 = vmatpush2.bf16.xpose.msra.mxu0 0
        %3973 = vmatprep.subr.bf16.mxu0 0
        %3974 = vmatpush2.bf16.xpose.msra.mxu0 0
        %3975 = vmatprep.mubr.bf16.mxu0 0
        %3976 = vmatmul.mubr.bf16.gmra.mxu0 %v3938
        %v3977 = vpop.f32.mrf.mxu0
        %v3978 = vadd.f32 %v3816, %v3977
        %v3979 = vpop.f32.mrf.mxu0
        %v3980 = vpop.f32.mrf.mxu0
        %v3981 = vpop.f32.mrf.mxu0
        %3982 = vdwg.mxu0
        %v3983 = vsel %vm3866, %v3978, -inf
        %3984 = vmax.xlane.f32.xlu0 %v3983
        %v3985 = vpop.xlane.xlu0 %3984
        %v3986 = vsub.f32 %v3978, %v3985
        %v3987 = vmul.f32 %v3986, 1.442695
        %v3988 = vpow.pop %v3987
        %v3989 = vsel %vm3866, %v3988, 0.0
        %3990 = vadd.xlane.f32.xlu0 %v3989
        %v3991 = vpop.xlane.xlu0 %3990
        %v3992 = vrcp.pop %v3991
        %v3993 = vmul.f32 %v3988, %v3992
        %v3994 = vpack.c.bf16 %v3993, %v3993
        %3996 = vrot.lane.b32.xlu0 %v3819, 64
        %v3997 = vpop.permute.xlu0 %3996
        %v4000 = vsel %vm3866, %v3994, 0
        %4002 = vmatprep.subr.bf16.mxu0 0
        %4003 = vmatpush1.bf16.msra.mxu0 0
        %4004 = vmatprep.subr.bf16.mxu0 0
        %4005 = vmatpush1.bf16.msra.mxu0 0
        %4006 = vmatprep.subr.bf16.mxu0 0
        %4007 = vmatpush1.bf16.msra.mxu0 0
        %4008 = vmatprep.subr.bf16.mxu0 0
        %4009 = vmatpush1.bf16.msra.mxu0 0
        %4010 = vmatprep.subr.bf16.mxu0 0
        %4011 = vmatpush1.bf16.msra.mxu0 0
        %4012 = vmatprep.subr.bf16.mxu0 0
        %4013 = vmatpush1.bf16.msra.mxu0 0
        %4014 = vmatprep.subr.bf16.mxu0 0
        %4015 = vmatpush1.bf16.msra.mxu0 0
        %4016 = vmatprep.subr.bf16.mxu0 0
        %4017 = vmatpush1.bf16.msra.mxu0 %v3997
        %4018 = vmatprep.subr.bf16.mxu0 0
        %4019 = vmatpush2.bf16.msra.mxu0 0
        %4020 = vmatprep.subr.bf16.mxu0 0
        %4021 = vmatpush2.bf16.msra.mxu0 0
        %4022 = vmatprep.subr.bf16.mxu0 0
        %4023 = vmatpush2.bf16.msra.mxu0 0
        %4024 = vmatprep.subr.bf16.mxu0 0
        %4025 = vmatpush2.bf16.msra.mxu0 0
        %4026 = vmatprep.subr.bf16.mxu0 0
        %4027 = vmatpush2.bf16.msra.mxu0 0
        %4028 = vmatprep.subr.bf16.mxu0 0
        %4029 = vmatpush2.bf16.msra.mxu0 0
        %4030 = vmatprep.subr.bf16.mxu0 0
        %4031 = vmatpush2.bf16.msra.mxu0 0
        %4032 = vmatprep.subr.bf16.mxu0 0
        %4033 = vmatpush2.bf16.msra.mxu0 0
        %4034 = vmatprep.mubr.bf16.mxu0 0
        %4035 = vmatmul.mubr.bf16.gmra.mxu0 %v4000
        %v4036 = vpop.f32.mrf.mxu0
        %v4037 = vadd.f32 0.0, %v4036
        %v4038 = vpop.f32.mrf.mxu0
        %v4039 = vpop.f32.mrf.mxu0
        %v4040 = vpop.f32.mrf.mxu0
        %4041 = vdwg.mxu0
        %v4042 = vpack.c.bf16 %v4037, %v4037
        %v4043 = vld [vmem:[%s1199 + $0x40] sm:$0xff]
        %v4044 = vld [vmem:[%s1199 + $0x48] sm:$0xff]
        %v4045 = vld [vmem:[%s1199 + $0x50] sm:$0xff]
        %v4046 = vld [vmem:[%s1199 + $0x58] sm:$0xff]
        %v4047 = vld [vmem:[%s1199 + $0x60] sm:$0xff]
        %v4048 = vld [vmem:[%s1199 + $0x68] sm:$0xff]
        %v4049 = vld [vmem:[%s1199 + $0x70] sm:$0xff]
        %v4050 = vld [vmem:[%s1199 + $0x78] sm:$0xff]
        %v4059 = vunpack.c.l.b16 %v4043
        %v4060 = vunpack.c.h.b16 %v4043
        %v4061 = vunpack.c.l.b16 %v4044
        %v4062 = vunpack.c.h.b16 %v4044
        %v4063 = vunpack.c.l.b16 %v4045
        %v4064 = vunpack.c.h.b16 %v4045
        %v4065 = vunpack.c.l.b16 %v4046
        %v4066 = vunpack.c.h.b16 %v4046
        %v4067 = vunpack.c.l.b16 %v4047
        %v4068 = vunpack.c.h.b16 %v4047
        %v4069 = vunpack.c.l.b16 %v4048
        %v4070 = vunpack.c.h.b16 %v4048
        %v4071 = vunpack.c.l.b16 %v4049
        %v4072 = vunpack.c.h.b16 %v4049
        %v4073 = vunpack.c.l.b16 %v4050
        %v4074 = vunpack.c.h.b16 %v4050
        %v4075 = vpack.c.b16 %v4061, %v4059
        %v4076 = vpack.c.b16 %v4062, %v4060
        %v4077 = vpack.c.b16 %v4065, %v4063
        %v4078 = vpack.c.b16 %v4066, %v4064
        %v4079 = vpack.c.b16 %v4069, %v4067
        %v4080 = vpack.c.b16 %v4070, %v4068
        %v4081 = vpack.c.b16 %v4073, %v4071
        %v4082 = vpack.c.b16 %v4074, %v4072
        %v4092 = vsel %vm2198, %v4042, 0
        %4094 = vmatprep.subr.bf16.mxu0 0
        %4095 = vmatpush1.bf16.msra.mxu0 0
        %4096 = vmatprep.subr.bf16.mxu0 0
        %4097 = vmatpush1.bf16.msra.mxu0 0
        %4098 = vmatprep.subr.bf16.mxu0 0
        %4099 = vmatpush1.bf16.msra.mxu0 0
        %4100 = vmatprep.subr.bf16.mxu0 0
        %4101 = vmatpush1.bf16.msra.mxu0 0
        %4102 = vmatprep.subr.bf16.mxu0 %v4082
        %4103 = vmatpush1.bf16.msra.mxu0 %v4081
        %4104 = vmatprep.subr.bf16.mxu0 %v4080
        %4105 = vmatpush1.bf16.msra.mxu0 %v4079
        %4106 = vmatprep.subr.bf16.mxu0 %v4078
        %4107 = vmatpush1.bf16.msra.mxu0 %v4077
        %4108 = vmatprep.subr.bf16.mxu0 %v4076
        %4109 = vmatpush1.bf16.msra.mxu0 %v4075
        %4110 = vmatprep.subr.bf16.mxu0 0
        %4111 = vmatpush2.bf16.msra.mxu0 0
        %4112 = vmatprep.subr.bf16.mxu0 0
        %4113 = vmatpush2.bf16.msra.mxu0 0
        %4114 = vmatprep.subr.bf16.mxu0 0
        %4115 = vmatpush2.bf16.msra.mxu0 0
        %4116 = vmatprep.subr.bf16.mxu0 0
        %4117 = vmatpush2.bf16.msra.mxu0 0
        %4118 = vmatprep.subr.bf16.mxu0 0
        %4119 = vmatpush2.bf16.msra.mxu0 0
        %4120 = vmatprep.subr.bf16.mxu0 0
        %4121 = vmatpush2.bf16.msra.mxu0 0
        %4122 = vmatprep.subr.bf16.mxu0 0
        %4123 = vmatpush2.bf16.msra.mxu0 0
        %4124 = vmatprep.subr.bf16.mxu0 0
        %4125 = vmatpush2.bf16.msra.mxu0 0
        %4126 = vmatprep.mubr.bf16.mxu0 0
        %4127 = vmatmul.mubr.bf16.gmra.mxu0 %v4092
        %v4128 = vpop.f32.mrf.mxu0
        %v4129 = vadd.f32 0.0, %v4128
        %v4130 = vpop.f32.mrf.mxu0
        %v4131 = vadd.f32 0.0, %v4130
        %v4132 = vpop.f32.mrf.mxu0
        %v4133 = vpop.f32.mrf.mxu0
        %4134 = vdwg.mxu0
        %v4143 = vunpack.c.l.b16 %v3923
        %v4144 = vunpack.c.h.b16 %v3923
        %v4145 = vunpack.c.l.b16 %v3924
        %v4146 = vunpack.c.h.b16 %v3924
        %v4147 = vunpack.c.l.b16 %v3925
        %v4148 = vunpack.c.h.b16 %v3925
        %v4149 = vunpack.c.l.b16 %v3926
        %v4150 = vunpack.c.h.b16 %v3926
        %v4151 = vunpack.c.l.b16 %v3927
        %v4152 = vunpack.c.h.b16 %v3927
        %v4153 = vunpack.c.l.b16 %v3928
        %v4154 = vunpack.c.h.b16 %v3928
        %v4155 = vunpack.c.l.b16 %v3929
        %v4156 = vunpack.c.h.b16 %v3929
        %v4157 = vunpack.c.l.b16 %v3930
        %v4158 = vunpack.c.h.b16 %v3930
        %v4159 = vpack.c.b16 %v4145, %v4143
        %v4160 = vpack.c.b16 %v4146, %v4144
        %v4161 = vpack.c.b16 %v4149, %v4147
        %v4162 = vpack.c.b16 %v4150, %v4148
        %v4163 = vpack.c.b16 %v4153, %v4151
        %v4164 = vpack.c.b16 %v4154, %v4152
        %v4165 = vpack.c.b16 %v4157, %v4155
        %v4166 = vpack.c.b16 %v4158, %v4156
        %v4176 = vsel %vm2198, %v3922, 0
        %4178 = vmatprep.subr.bf16.mxu0 0
        %4179 = vmatpush1.bf16.msra.mxu0 0
        %4180 = vmatprep.subr.bf16.mxu0 0
        %4181 = vmatpush1.bf16.msra.mxu0 0
        %4182 = vmatprep.subr.bf16.mxu0 0
        %4183 = vmatpush1.bf16.msra.mxu0 0
        %4184 = vmatprep.subr.bf16.mxu0 0
        %4185 = vmatpush1.bf16.msra.mxu0 0
        %4186 = vmatprep.subr.bf16.mxu0 %v4166
        %4187 = vmatpush1.bf16.msra.mxu0 %v4165
        %4188 = vmatprep.subr.bf16.mxu0 %v4164
        %4189 = vmatpush1.bf16.msra.mxu0 %v4163
        %4190 = vmatprep.subr.bf16.mxu0 %v4162
        %4191 = vmatpush1.bf16.msra.mxu0 %v4161
        %4192 = vmatprep.subr.bf16.mxu0 %v4160
        %4193 = vmatpush1.bf16.msra.mxu0 %v4159
        %4194 = vmatprep.subr.bf16.mxu0 0
        %4195 = vmatpush2.bf16.msra.mxu0 0
        %4196 = vmatprep.subr.bf16.mxu0 0
        %4197 = vmatpush2.bf16.msra.mxu0 0
        %4198 = vmatprep.subr.bf16.mxu0 0
        %4199 = vmatpush2.bf16.msra.mxu0 0
        %4200 = vmatprep.subr.bf16.mxu0 0
        %4201 = vmatpush2.bf16.msra.mxu0 0
        %4202 = vmatprep.subr.bf16.mxu0 0
        %4203 = vmatpush2.bf16.msra.mxu0 0
        %4204 = vmatprep.subr.bf16.mxu0 0
        %4205 = vmatpush2.bf16.msra.mxu0 0
        %4206 = vmatprep.subr.bf16.mxu0 0
        %4207 = vmatpush2.bf16.msra.mxu0 0
        %4208 = vmatprep.subr.bf16.mxu0 0
        %4209 = vmatpush2.bf16.msra.mxu0 0
        %4210 = vmatprep.mubr.bf16.mxu0 0
        %4211 = vmatmul.mubr.bf16.gmra.mxu0 %v4176
        %v4212 = vpop.f32.mrf.mxu0
        %v4213 = vadd.f32 %v4129, %v4212
        %v4214 = vpop.f32.mrf.mxu0
        %v4215 = vadd.f32 %v4131, %v4214
        %v4216 = vpop.f32.mrf.mxu0
        %v4217 = vpop.f32.mrf.mxu0
        %4218 = vdwg.mxu0
        %v4219 = vpack.c.bf16 %v3318, %v3318
        %v4220 = vpack.c.bf16 %v3771, %v3767
        %v4221 = vpack.c.bf16 %v3814, %v3810
        %v4223 = vsel %vm2198, %v4219, 0
        %v4226 = vsel %vm2198, %v4220, 0
        %4228 = vmatprep.subr.bf16.mxu0 0
        %4229 = vmatpush1.bf16.xpose.msra.mxu0 0
        %4230 = vmatprep.subr.bf16.mxu0 0
        %4231 = vmatpush1.bf16.xpose.msra.mxu0 0
        %4232 = vmatprep.subr.bf16.mxu0 0
        %4233 = vmatpush1.bf16.xpose.msra.mxu0 0
        %4234 = vmatprep.subr.bf16.mxu0 0
        %4235 = vmatpush1.bf16.xpose.msra.mxu0 0
        %4236 = vmatprep.subr.bf16.mxu0 0
        %4237 = vmatpush1.bf16.xpose.msra.mxu0 0
        %4238 = vmatprep.subr.bf16.mxu0 0
        %4239 = vmatpush1.bf16.xpose.msra.mxu0 0
        %4240 = vmatprep.subr.bf16.mxu0 0
        %4241 = vmatpush1.bf16.xpose.msra.mxu0 0
        %4242 = vmatprep.subr.bf16.mxu0 0
        %4243 = vmatpush1.bf16.xpose.msra.mxu0 %v4226
        %4244 = vmatprep.subr.bf16.mxu0 0
        %4245 = vmatpush2.bf16.xpose.msra.mxu0 0
        %4246 = vmatprep.subr.bf16.mxu0 0
        %4247 = vmatpush2.bf16.xpose.msra.mxu0 0
        %4248 = vmatprep.subr.bf16.mxu0 0
        %4249 = vmatpush2.bf16.xpose.msra.mxu0 0
        %4250 = vmatprep.subr.bf16.mxu0 0
        %4251 = vmatpush2.bf16.xpose.msra.mxu0 0
        %4252 = vmatprep.subr.bf16.mxu0 0
        %4253 = vmatpush2.bf16.xpose.msra.mxu0 0
        %4254 = vmatprep.subr.bf16.mxu0 0
        %4255 = vmatpush2.bf16.xpose.msra.mxu0 0
        %4256 = vmatprep.subr.bf16.mxu0 0
        %4257 = vmatpush2.bf16.xpose.msra.mxu0 0
        %4258 = vmatprep.subr.bf16.mxu0 0
        %4259 = vmatpush2.bf16.xpose.msra.mxu0 0
        %4260 = vmatprep.mubr.bf16.mxu0 0
        %4261 = vmatmul.mubr.bf16.gmra.mxu0 %v4223
        %v4262 = vpop.f32.mrf.mxu0
        %v4263 = vadd.f32 %v3816, %v4262
        %v4264 = vpop.f32.mrf.mxu0
        %v4265 = vpop.f32.mrf.mxu0
        %v4266 = vpop.f32.mrf.mxu0
        %4267 = vdwg.mxu0
        %v4268 = vsel %vm3866, %v4263, -inf
        %4269 = vmax.xlane.f32.xlu0 %v4268
        %v4270 = vpop.xlane.xlu0 %4269
        %v4271 = vsub.f32 %v4263, %v4270
        %v4272 = vmul.f32 %v4271, 1.442695
        %v4273 = vpow.pop %v4272
        %v4274 = vsel %vm3866, %v4273, 0.0
        %4275 = vadd.xlane.f32.xlu0 %v4274
        %v4276 = vpop.xlane.xlu0 %4275
        %v4277 = vrcp.pop %v4276
        %v4278 = vmul.f32 %v4273, %v4277
        %v4279 = vpack.c.bf16 %v4278, %v4278
        %v4281 = vsel %vm3866, %v4279, 0
        %4283 = vmatprep.subr.bf16.mxu0 0
        %4284 = vmatpush1.bf16.msra.mxu0 0
        %4285 = vmatprep.subr.bf16.mxu0 0
        %4286 = vmatpush1.bf16.msra.mxu0 0
        %4287 = vmatprep.subr.bf16.mxu0 0
        %4288 = vmatpush1.bf16.msra.mxu0 0
        %4289 = vmatprep.subr.bf16.mxu0 0
        %4290 = vmatpush1.bf16.msra.mxu0 0
        %4291 = vmatprep.subr.bf16.mxu0 0
        %4292 = vmatpush1.bf16.msra.mxu0 0
        %4293 = vmatprep.subr.bf16.mxu0 0
        %4294 = vmatpush1.bf16.msra.mxu0 0
        %4295 = vmatprep.subr.bf16.mxu0 0
        %4296 = vmatpush1.bf16.msra.mxu0 0
        %4297 = vmatprep.subr.bf16.mxu0 0
        %4298 = vmatpush1.bf16.msra.mxu0 %v4221
        %4299 = vmatprep.subr.bf16.mxu0 0
        %4300 = vmatpush2.bf16.msra.mxu0 0
        %4301 = vmatprep.subr.bf16.mxu0 0
        %4302 = vmatpush2.bf16.msra.mxu0 0
        %4303 = vmatprep.subr.bf16.mxu0 0
        %4304 = vmatpush2.bf16.msra.mxu0 0
        %4305 = vmatprep.subr.bf16.mxu0 0
        %4306 = vmatpush2.bf16.msra.mxu0 0
        %4307 = vmatprep.subr.bf16.mxu0 0
        %4308 = vmatpush2.bf16.msra.mxu0 0
        %4309 = vmatprep.subr.bf16.mxu0 0
        %4310 = vmatpush2.bf16.msra.mxu0 0
        %4311 = vmatprep.subr.bf16.mxu0 0
        %4312 = vmatpush2.bf16.msra.mxu0 0
        %4313 = vmatprep.subr.bf16.mxu0 0
        %4314 = vmatpush2.bf16.msra.mxu0 0
        %4315 = vmatprep.mubr.bf16.mxu0 0
        %4316 = vmatmul.mubr.bf16.gmra.mxu0 %v4281
        %v4317 = vpop.f32.mrf.mxu0
        %v4318 = vadd.f32 0.0, %v4317
        %v4319 = vpop.f32.mrf.mxu0
        %v4320 = vpop.f32.mrf.mxu0
        %v4321 = vpop.f32.mrf.mxu0
        %4322 = vdwg.mxu0
        %v4323 = vpack.c.bf16 %v4318, %v4318
        %v4324 = vld [vmem:[%s1199 + $0x80] sm:$0xff]
        %v4325 = vld [vmem:[%s1199 + $0x88] sm:$0xff]
        %v4326 = vld [vmem:[%s1199 + $0x90] sm:$0xff]
        %v4327 = vld [vmem:[%s1199 + $0x98] sm:$0xff]
        %v4328 = vld [vmem:[%s1199 + $0xa0] sm:$0xff]
        %v4329 = vld [vmem:[%s1199 + $0xa8] sm:$0xff]
        %v4330 = vld [vmem:[%s1199 + $0xb0] sm:$0xff]
        %v4331 = vld [vmem:[%s1199 + $0xb8] sm:$0xff]
        %v4340 = vunpack.c.l.b16 %v4324
        %v4341 = vunpack.c.h.b16 %v4324
        %v4342 = vunpack.c.l.b16 %v4325
        %v4343 = vunpack.c.h.b16 %v4325
        %v4344 = vunpack.c.l.b16 %v4326
        %v4345 = vunpack.c.h.b16 %v4326
        %v4346 = vunpack.c.l.b16 %v4327
        %v4347 = vunpack.c.h.b16 %v4327
        %v4348 = vunpack.c.l.b16 %v4328
        %v4349 = vunpack.c.h.b16 %v4328
        %v4350 = vunpack.c.l.b16 %v4329
        %v4351 = vunpack.c.h.b16 %v4329
        %v4352 = vunpack.c.l.b16 %v4330
        %v4353 = vunpack.c.h.b16 %v4330
        %v4354 = vunpack.c.l.b16 %v4331
        %v4355 = vunpack.c.h.b16 %v4331
        %v4356 = vpack.c.b16 %v4342, %v4340
        %v4357 = vpack.c.b16 %v4343, %v4341
        %v4358 = vpack.c.b16 %v4346, %v4344
        %v4359 = vpack.c.b16 %v4347, %v4345
        %v4360 = vpack.c.b16 %v4350, %v4348
        %v4361 = vpack.c.b16 %v4351, %v4349
        %v4362 = vpack.c.b16 %v4354, %v4352
        %v4363 = vpack.c.b16 %v4355, %v4353
        %v4373 = vsel %vm2198, %v4323, 0
        %4375 = vmatprep.subr.bf16.mxu0 0
        %4376 = vmatpush1.bf16.msra.mxu0 0
        %4377 = vmatprep.subr.bf16.mxu0 0
        %4378 = vmatpush1.bf16.msra.mxu0 0
        %4379 = vmatprep.subr.bf16.mxu0 0
        %4380 = vmatpush1.bf16.msra.mxu0 0
        %4381 = vmatprep.subr.bf16.mxu0 0
        %4382 = vmatpush1.bf16.msra.mxu0 0
        %4383 = vmatprep.subr.bf16.mxu0 %v4363
        %4384 = vmatpush1.bf16.msra.mxu0 %v4362
        %4385 = vmatprep.subr.bf16.mxu0 %v4361
        %4386 = vmatpush1.bf16.msra.mxu0 %v4360
        %4387 = vmatprep.subr.bf16.mxu0 %v4359
        %4388 = vmatpush1.bf16.msra.mxu0 %v4358
        %4389 = vmatprep.subr.bf16.mxu0 %v4357
        %4390 = vmatpush1.bf16.msra.mxu0 %v4356
        %4391 = vmatprep.subr.bf16.mxu0 0
        %4392 = vmatpush2.bf16.msra.mxu0 0
        %4393 = vmatprep.subr.bf16.mxu0 0
        %4394 = vmatpush2.bf16.msra.mxu0 0
        %4395 = vmatprep.subr.bf16.mxu0 0
        %4396 = vmatpush2.bf16.msra.mxu0 0
        %4397 = vmatprep.subr.bf16.mxu0 0
        %4398 = vmatpush2.bf16.msra.mxu0 0
        %4399 = vmatprep.subr.bf16.mxu0 0
        %4400 = vmatpush2.bf16.msra.mxu0 0
        %4401 = vmatprep.subr.bf16.mxu0 0
        %4402 = vmatpush2.bf16.msra.mxu0 0
        %4403 = vmatprep.subr.bf16.mxu0 0
        %4404 = vmatpush2.bf16.msra.mxu0 0
        %4405 = vmatprep.subr.bf16.mxu0 0
        %4406 = vmatpush2.bf16.msra.mxu0 0
        %4407 = vmatprep.mubr.bf16.mxu0 0
        %4408 = vmatmul.mubr.bf16.gmra.mxu0 %v4373
        %v4409 = vpop.f32.mrf.mxu0
        %v4410 = vadd.f32 0.0, %v4409
        %v4411 = vpop.f32.mrf.mxu0
        %v4412 = vadd.f32 0.0, %v4411
        %v4413 = vpop.f32.mrf.mxu0
        %v4414 = vpop.f32.mrf.mxu0
        %4415 = vdwg.mxu0
        %v4416 = vadd.f32 %v4213, %v4410
        %v4417 = vadd.f32 %v4215, %v4412
        %4419 = vrot.lane.b32.xlu0 %v4219, 64
        %v4420 = vpop.permute.xlu0 %4419
        %4422 = vrot.lane.b32.xlu0 %v4220, 64
        %v4423 = vpop.permute.xlu0 %4422
        %v4425 = vsel %vm2198, %v4420, 0
        %v4428 = vsel %vm2198, %v4423, 0
        %4430 = vmatprep.subr.bf16.mxu0 0
        %4431 = vmatpush1.bf16.xpose.msra.mxu0 0
        %4432 = vmatprep.subr.bf16.mxu0 0
        %4433 = vmatpush1.bf16.xpose.msra.mxu0 0
        %4434 = vmatprep.subr.bf16.mxu0 0
        %4435 = vmatpush1.bf16.xpose.msra.mxu0 0
        %4436 = vmatprep.subr.bf16.mxu0 0
        %4437 = vmatpush1.bf16.xpose.msra.mxu0 0
        %4438 = vmatprep.subr.bf16.mxu0 0
        %4439 = vmatpush1.bf16.xpose.msra.mxu0 0
        %4440 = vmatprep.subr.bf16.mxu0 0
        %4441 = vmatpush1.bf16.xpose.msra.mxu0 0
        %4442 = vmatprep.subr.bf16.mxu0 0
        %4443 = vmatpush1.bf16.xpose.msra.mxu0 0
        %4444 = vmatprep.subr.bf16.mxu0 0
        %4445 = vmatpush1.bf16.xpose.msra.mxu0 %v4428
        %4446 = vmatprep.subr.bf16.mxu0 0
        %4447 = vmatpush2.bf16.xpose.msra.mxu0 0
        %4448 = vmatprep.subr.bf16.mxu0 0
        %4449 = vmatpush2.bf16.xpose.msra.mxu0 0
        %4450 = vmatprep.subr.bf16.mxu0 0
        %4451 = vmatpush2.bf16.xpose.msra.mxu0 0
        %4452 = vmatprep.subr.bf16.mxu0 0
        %4453 = vmatpush2.bf16.xpose.msra.mxu0 0
        %4454 = vmatprep.subr.bf16.mxu0 0
        %4455 = vmatpush2.bf16.xpose.msra.mxu0 0
        %4456 = vmatprep.subr.bf16.mxu0 0
        %4457 = vmatpush2.bf16.xpose.msra.mxu0 0
        %4458 = vmatprep.subr.bf16.mxu0 0
        %4459 = vmatpush2.bf16.xpose.msra.mxu0 0
        %4460 = vmatprep.subr.bf16.mxu0 0
        %4461 = vmatpush2.bf16.xpose.msra.mxu0 0
        %4462 = vmatprep.mubr.bf16.mxu0 0
        %4463 = vmatmul.mubr.bf16.gmra.mxu0 %v4425
        %v4464 = vpop.f32.mrf.mxu0
        %v4465 = vadd.f32 %v3816, %v4464
        %v4466 = vpop.f32.mrf.mxu0
        %v4467 = vpop.f32.mrf.mxu0
        %v4468 = vpop.f32.mrf.mxu0
        %4469 = vdwg.mxu0
        %v4470 = vsel %vm3866, %v4465, -inf
        %4471 = vmax.xlane.f32.xlu0 %v4470
        %v4472 = vpop.xlane.xlu0 %4471
        %v4473 = vsub.f32 %v4465, %v4472
        %v4474 = vmul.f32 %v4473, 1.442695
        %v4475 = vpow.pop %v4474
        %v4476 = vsel %vm3866, %v4475, 0.0
        %4477 = vadd.xlane.f32.xlu0 %v4476
        %v4478 = vpop.xlane.xlu0 %4477
        %v4479 = vrcp.pop %v4478
        %v4480 = vmul.f32 %v4475, %v4479
        %v4481 = vpack.c.bf16 %v4480, %v4480
        %4483 = vrot.lane.b32.xlu0 %v4221, 64
        %v4484 = vpop.permute.xlu0 %4483
        %v4487 = vsel %vm3866, %v4481, 0
        %4489 = vmatprep.subr.bf16.mxu0 0
        %4490 = vmatpush1.bf16.msra.mxu0 0
        %4491 = vmatprep.subr.bf16.mxu0 0
        %4492 = vmatpush1.bf16.msra.mxu0 0
        %4493 = vmatprep.subr.bf16.mxu0 0
        %4494 = vmatpush1.bf16.msra.mxu0 0
        %4495 = vmatprep.subr.bf16.mxu0 0
        %4496 = vmatpush1.bf16.msra.mxu0 0
        %4497 = vmatprep.subr.bf16.mxu0 0
        %4498 = vmatpush1.bf16.msra.mxu0 0
        %4499 = vmatprep.subr.bf16.mxu0 0
        %4500 = vmatpush1.bf16.msra.mxu0 0
        %4501 = vmatprep.subr.bf16.mxu0 0
        %4502 = vmatpush1.bf16.msra.mxu0 0
        %4503 = vmatprep.subr.bf16.mxu0 0
        %4504 = vmatpush1.bf16.msra.mxu0 %v4484
        %4505 = vmatprep.subr.bf16.mxu0 0
        %4506 = vmatpush2.bf16.msra.mxu0 0
        %4507 = vmatprep.subr.bf16.mxu0 0
        %4508 = vmatpush2.bf16.msra.mxu0 0
        %4509 = vmatprep.subr.bf16.mxu0 0
        %4510 = vmatpush2.bf16.msra.mxu0 0
        %4511 = vmatprep.subr.bf16.mxu0 0
        %4512 = vmatpush2.bf16.msra.mxu0 0
        %4513 = vmatprep.subr.bf16.mxu0 0
        %4514 = vmatpush2.bf16.msra.mxu0 0
        %4515 = vmatprep.subr.bf16.mxu0 0
        %4516 = vmatpush2.bf16.msra.mxu0 0
        %4517 = vmatprep.subr.bf16.mxu0 0
        %4518 = vmatpush2.bf16.msra.mxu0 0
        %4519 = vmatprep.subr.bf16.mxu0 0
        %4520 = vmatpush2.bf16.msra.mxu0 0
        %4521 = vmatprep.mubr.bf16.mxu0 0
        %4522 = vmatmul.mubr.bf16.gmra.mxu0 %v4487
        %v4523 = vpop.f32.mrf.mxu0
        %v4524 = vadd.f32 0.0, %v4523
        %v4525 = vpop.f32.mrf.mxu0
        %v4526 = vpop.f32.mrf.mxu0
        %v4527 = vpop.f32.mrf.mxu0
        %4528 = vdwg.mxu0
        %v4529 = vpack.c.bf16 %v4524, %v4524
        %v4530 = vld [vmem:[%s1199 + $0xc0] sm:$0xff]
        %v4531 = vld [vmem:[%s1199 + $0xc8] sm:$0xff]
        %v4532 = vld [vmem:[%s1199 + $0xd0] sm:$0xff]
        %v4533 = vld [vmem:[%s1199 + $0xd8] sm:$0xff]
        %v4534 = vld [vmem:[%s1199 + $0xe0] sm:$0xff]
        %v4535 = vld [vmem:[%s1199 + $0xe8] sm:$0xff]
        %v4536 = vld [vmem:[%s1199 + $0xf0] sm:$0xff]
        %v4537 = vld [vmem:[%s1199 + $0xf8] sm:$0xff]
        %v4546 = vunpack.c.l.b16 %v4530
        %v4547 = vunpack.c.h.b16 %v4530
        %v4548 = vunpack.c.l.b16 %v4531
        %v4549 = vunpack.c.h.b16 %v4531
        %v4550 = vunpack.c.l.b16 %v4532
        %v4551 = vunpack.c.h.b16 %v4532
        %v4552 = vunpack.c.l.b16 %v4533
        %v4553 = vunpack.c.h.b16 %v4533
        %v4554 = vunpack.c.l.b16 %v4534
        %v4555 = vunpack.c.h.b16 %v4534
        %v4556 = vunpack.c.l.b16 %v4535
        %v4557 = vunpack.c.h.b16 %v4535
        %v4558 = vunpack.c.l.b16 %v4536
        %v4559 = vunpack.c.h.b16 %v4536
        %v4560 = vunpack.c.l.b16 %v4537
        %v4561 = vunpack.c.h.b16 %v4537
        %v4562 = vpack.c.b16 %v4548, %v4546
        %v4563 = vpack.c.b16 %v4549, %v4547
        %v4564 = vpack.c.b16 %v4552, %v4550
        %v4565 = vpack.c.b16 %v4553, %v4551
        %v4566 = vpack.c.b16 %v4556, %v4554
        %v4567 = vpack.c.b16 %v4557, %v4555
        %v4568 = vpack.c.b16 %v4560, %v4558
        %v4569 = vpack.c.b16 %v4561, %v4559
        %v4579 = vsel %vm2198, %v4529, 0
        %4581 = vmatprep.subr.bf16.mxu0 0
        %4582 = vmatpush1.bf16.msra.mxu0 0
        %4583 = vmatprep.subr.bf16.mxu0 0
        %4584 = vmatpush1.bf16.msra.mxu0 0
        %4585 = vmatprep.subr.bf16.mxu0 0
        %4586 = vmatpush1.bf16.msra.mxu0 0
        %4587 = vmatprep.subr.bf16.mxu0 0
        %4588 = vmatpush1.bf16.msra.mxu0 0
        %4589 = vmatprep.subr.bf16.mxu0 %v4569
        %4590 = vmatpush1.bf16.msra.mxu0 %v4568
        %4591 = vmatprep.subr.bf16.mxu0 %v4567
        %4592 = vmatpush1.bf16.msra.mxu0 %v4566
        %4593 = vmatprep.subr.bf16.mxu0 %v4565
        %4594 = vmatpush1.bf16.msra.mxu0 %v4564
        %4595 = vmatprep.subr.bf16.mxu0 %v4563
        %4596 = vmatpush1.bf16.msra.mxu0 %v4562
        %4597 = vmatprep.subr.bf16.mxu0 0
        %4598 = vmatpush2.bf16.msra.mxu0 0
        %4599 = vmatprep.subr.bf16.mxu0 0
        %4600 = vmatpush2.bf16.msra.mxu0 0
        %4601 = vmatprep.subr.bf16.mxu0 0
        %4602 = vmatpush2.bf16.msra.mxu0 0
        %4603 = vmatprep.subr.bf16.mxu0 0
        %4604 = vmatpush2.bf16.msra.mxu0 0
        %4605 = vmatprep.subr.bf16.mxu0 0
        %4606 = vmatpush2.bf16.msra.mxu0 0
        %4607 = vmatprep.subr.bf16.mxu0 0
        %4608 = vmatpush2.bf16.msra.mxu0 0
        %4609 = vmatprep.subr.bf16.mxu0 0
        %4610 = vmatpush2.bf16.msra.mxu0 0
        %4611 = vmatprep.subr.bf16.mxu0 0
        %4612 = vmatpush2.bf16.msra.mxu0 0
        %4613 = vmatprep.mubr.bf16.mxu0 0
        %4614 = vmatmul.mubr.bf16.gmra.mxu0 %v4579
        %v4615 = vpop.f32.mrf.mxu0
        %v4616 = vadd.f32 0.0, %v4615
        %v4617 = vpop.f32.mrf.mxu0
        %v4618 = vadd.f32 0.0, %v4617
        %v4619 = vpop.f32.mrf.mxu0
        %v4620 = vpop.f32.mrf.mxu0
        %4621 = vdwg.mxu0
        %v4622 = vadd.f32 %v4416, %v4616
        %v4623 = vadd.f32 %v4417, %v4618
        %v4624 = vld [vmem:[%s1421] sm:$0x3]
        %v4626 = vlaneseq
        %v4627 = vshrl.u32 %v4626, 7
        %v4628 = vsub.s32 0, %v4627
        %v4629 = vrot.slane %v4624, %v4628
        %v4630 = vlaneseq
        %v4631 = vshrl.u32 %v4630, 7
        %v4632 = vsub.s32 1, %v4631
        %v4633 = vrot.slane %v4624, %v4632
        %v4636 = vadd.f32 %v4622, %v4629
        %v4637 = vadd.f32 %v4623, %v4633
        %v4638 = vadd.f32 %v3073, %v4636
        %v4639 = vadd.f32 %v3074, %v4637
        %v4640 = vadd.f32 %v4638, %v4639
        %4641 = vadd.xlane.f32.xlu0 %v4640
        %v4642 = vpop.xlane.xlu0 %4641
        %v4643 = vmul.f32 %v4642, %v3033
        %v4644 = vsub.f32 %v4638, %v4643
        %v4645 = vsub.f32 %v4639, %v4643
        %v4646 = vmul.f32 %v4644, %v4644
        %v4647 = vmul.f32 %v4645, %v4645
        %v4648 = vadd.f32 %v4646, %v4647
        %4649 = vadd.xlane.f32.xlu0 %v4648
        %v4650 = vpop.xlane.xlu0 %4649
        %v4651 = vmul.f32 %v4650, %v3033
        %v4652 = vadd.f32 %v4651, 1e-05
        %v4653 = vrsqrt.pop %v4652
        %v4654 = vmul.f32 %v4644, %v4653
        %v4655 = vmul.f32 %v4645, %v4653
        %v4656 = vld [vmem:[%s1425] sm:$0x3]
        %v4658 = vlaneseq
        %v4659 = vshrl.u32 %v4658, 7
        %v4660 = vsub.s32 0, %v4659
        %v4661 = vrot.slane %v4656, %v4660
        %v4662 = vlaneseq
        %v4663 = vshrl.u32 %v4662, 7
        %v4664 = vsub.s32 1, %v4663
        %v4665 = vrot.slane %v4656, %v4664
        %v4668 = vmul.f32 %v4654, %v4661
        %v4669 = vmul.f32 %v4655, %v4665
        %v4670 = vld [vmem:[%s1429] sm:$0x3]
        %v4672 = vlaneseq
        %v4673 = vshrl.u32 %v4672, 7
        %v4674 = vsub.s32 0, %v4673
        %v4675 = vrot.slane %v4670, %v4674
        %v4676 = vlaneseq
        %v4677 = vshrl.u32 %v4676, 7
        %v4678 = vsub.s32 1, %v4677
        %v4679 = vrot.slane %v4670, %v4678
        %v4682 = vadd.f32 %v4668, %v4675
        %v4683 = vadd.f32 %v4669, %v4679
        %v4684 = vpack.c.bf16 %v4682, %v4682
        %v4685 = vpack.c.bf16 %v4683, %v4683
        %v4686 = vld [vmem:[%s1208] sm:$0xff]
        %v4687 = vld [vmem:[%s1208 + $0x8] sm:$0xff]
        %v4688 = vld [vmem:[%s1208 + $0x10] sm:$0xff]
        %v4689 = vld [vmem:[%s1208 + $0x18] sm:$0xff]
        %v4690 = vld [vmem:[%s1208 + $0x20] sm:$0xff]
        %v4691 = vld [vmem:[%s1208 + $0x28] sm:$0xff]
        %v4692 = vld [vmem:[%s1208 + $0x30] sm:$0xff]
        %v4693 = vld [vmem:[%s1208 + $0x38] sm:$0xff]
        %v4694 = vld [vmem:[%s1208 + $0x40] sm:$0xff]
        %v4695 = vld [vmem:[%s1208 + $0x48] sm:$0xff]
        %v4696 = vld [vmem:[%s1208 + $0x50] sm:$0xff]
        %v4697 = vld [vmem:[%s1208 + $0x58] sm:$0xff]
        %v4698 = vld [vmem:[%s1208 + $0x60] sm:$0xff]
        %v4699 = vld [vmem:[%s1208 + $0x68] sm:$0xff]
        %v4700 = vld [vmem:[%s1208 + $0x70] sm:$0xff]
        %v4701 = vld [vmem:[%s1208 + $0x78] sm:$0xff]
        %v4702 = vld [vmem:[%s1208 + $0x80] sm:$0xff]
        %v4703 = vld [vmem:[%s1208 + $0x88] sm:$0xff]
        %v4704 = vld [vmem:[%s1208 + $0x90] sm:$0xff]
        %v4705 = vld [vmem:[%s1208 + $0x98] sm:$0xff]
        %v4706 = vld [vmem:[%s1208 + $0xa0] sm:$0xff]
        %v4707 = vld [vmem:[%s1208 + $0xa8] sm:$0xff]
        %v4708 = vld [vmem:[%s1208 + $0xb0] sm:$0xff]
        %v4709 = vld [vmem:[%s1208 + $0xb8] sm:$0xff]
        %v4710 = vld [vmem:[%s1208 + $0xc0] sm:$0xff]
        %v4711 = vld [vmem:[%s1208 + $0xc8] sm:$0xff]
        %v4712 = vld [vmem:[%s1208 + $0xd0] sm:$0xff]
        %v4713 = vld [vmem:[%s1208 + $0xd8] sm:$0xff]
        %v4714 = vld [vmem:[%s1208 + $0xe0] sm:$0xff]
        %v4715 = vld [vmem:[%s1208 + $0xe8] sm:$0xff]
        %v4716 = vld [vmem:[%s1208 + $0xf0] sm:$0xff]
        %v4717 = vld [vmem:[%s1208 + $0xf8] sm:$0xff]
        %v4718 = vld [vmem:[%s1433] sm:$0x3]
        %v4720 = vlaneseq
        %v4721 = vshrl.u32 %v4720, 7
        %v4722 = vsub.s32 0, %v4721
        %v4723 = vrot.slane %v4718, %v4722
        %v4724 = vlaneseq
        %v4725 = vshrl.u32 %v4724, 7
        %v4726 = vsub.s32 1, %v4725
        %v4727 = vrot.slane %v4718, %v4726
        %v4762 = vunpack.c.l.b16 %v4686
        %v4763 = vunpack.c.h.b16 %v4686
        %v4764 = vunpack.c.l.b16 %v4687
        %v4765 = vunpack.c.h.b16 %v4687
        %v4766 = vunpack.c.l.b16 %v4688
        %v4767 = vunpack.c.h.b16 %v4688
        %v4768 = vunpack.c.l.b16 %v4689
        %v4769 = vunpack.c.h.b16 %v4689
        %v4770 = vunpack.c.l.b16 %v4690
        %v4771 = vunpack.c.h.b16 %v4690
        %v4772 = vunpack.c.l.b16 %v4691
        %v4773 = vunpack.c.h.b16 %v4691
        %v4774 = vunpack.c.l.b16 %v4692
        %v4775 = vunpack.c.h.b16 %v4692
        %v4776 = vunpack.c.l.b16 %v4693
        %v4777 = vunpack.c.h.b16 %v4693
        %v4778 = vunpack.c.l.b16 %v4694
        %v4779 = vunpack.c.h.b16 %v4694
        %v4780 = vunpack.c.l.b16 %v4695
        %v4781 = vunpack.c.h.b16 %v4695
        %v4782 = vunpack.c.l.b16 %v4696
        %v4783 = vunpack.c.h.b16 %v4696
        %v4784 = vunpack.c.l.b16 %v4697
        %v4785 = vunpack.c.h.b16 %v4697
        %v4786 = vunpack.c.l.b16 %v4698
        %v4787 = vunpack.c.h.b16 %v4698
        %v4788 = vunpack.c.l.b16 %v4699
        %v4789 = vunpack.c.h.b16 %v4699
        %v4790 = vunpack.c.l.b16 %v4700
        %v4791 = vunpack.c.h.b16 %v4700
        %v4792 = vunpack.c.l.b16 %v4701
        %v4793 = vunpack.c.h.b16 %v4701
        %v4794 = vunpack.c.l.b16 %v4702
        %v4795 = vunpack.c.h.b16 %v4702
        %v4796 = vunpack.c.l.b16 %v4703
        %v4797 = vunpack.c.h.b16 %v4703
        %v4798 = vunpack.c.l.b16 %v4704
        %v4799 = vunpack.c.h.b16 %v4704
        %v4800 = vunpack.c.l.b16 %v4705
        %v4801 = vunpack.c.h.b16 %v4705
        %v4802 = vunpack.c.l.b16 %v4706
        %v4803 = vunpack.c.h.b16 %v4706
        %v4804 = vunpack.c.l.b16 %v4707
        %v4805 = vunpack.c.h.b16 %v4707
        %v4806 = vunpack.c.l.b16 %v4708
        %v4807 = vunpack.c.h.b16 %v4708
        %v4808 = vunpack.c.l.b16 %v4709
        %v4809 = vunpack.c.h.b16 %v4709
        %v4810 = vunpack.c.l.b16 %v4710
        %v4811 = vunpack.c.h.b16 %v4710
        %v4812 = vunpack.c.l.b16 %v4711
        %v4813 = vunpack.c.h.b16 %v4711
        %v4814 = vunpack.c.l.b16 %v4712
        %v4815 = vunpack.c.h.b16 %v4712
        %v4816 = vunpack.c.l.b16 %v4713
        %v4817 = vunpack.c.h.b16 %v4713
        %v4818 = vunpack.c.l.b16 %v4714
        %v4819 = vunpack.c.h.b16 %v4714
        %v4820 = vunpack.c.l.b16 %v4715
        %v4821 = vunpack.c.h.b16 %v4715
        %v4822 = vunpack.c.l.b16 %v4716
        %v4823 = vunpack.c.h.b16 %v4716
        %v4824 = vunpack.c.l.b16 %v4717
        %v4825 = vunpack.c.h.b16 %v4717
        %v4826 = vpack.c.b16 %v4764, %v4762
        %v4827 = vpack.c.b16 %v4765, %v4763
        %v4828 = vpack.c.b16 %v4768, %v4766
        %v4829 = vpack.c.b16 %v4769, %v4767
        %v4830 = vpack.c.b16 %v4772, %v4770
        %v4831 = vpack.c.b16 %v4773, %v4771
        %v4832 = vpack.c.b16 %v4776, %v4774
        %v4833 = vpack.c.b16 %v4777, %v4775
        %v4834 = vpack.c.b16 %v4780, %v4778
        %v4835 = vpack.c.b16 %v4781, %v4779
        %v4836 = vpack.c.b16 %v4784, %v4782
        %v4837 = vpack.c.b16 %v4785, %v4783
        %v4838 = vpack.c.b16 %v4788, %v4786
        %v4839 = vpack.c.b16 %v4789, %v4787
        %v4840 = vpack.c.b16 %v4792, %v4790
        %v4841 = vpack.c.b16 %v4793, %v4791
        %v4842 = vpack.c.b16 %v4796, %v4794
        %v4843 = vpack.c.b16 %v4797, %v4795
        %v4844 = vpack.c.b16 %v4800, %v4798
        %v4845 = vpack.c.b16 %v4801, %v4799
        %v4846 = vpack.c.b16 %v4804, %v4802
        %v4847 = vpack.c.b16 %v4805, %v4803
        %v4848 = vpack.c.b16 %v4808, %v4806
        %v4849 = vpack.c.b16 %v4809, %v4807
        %v4850 = vpack.c.b16 %v4812, %v4810
        %v4851 = vpack.c.b16 %v4813, %v4811
        %v4852 = vpack.c.b16 %v4816, %v4814
        %v4853 = vpack.c.b16 %v4817, %v4815
        %v4854 = vpack.c.b16 %v4820, %v4818
        %v4855 = vpack.c.b16 %v4821, %v4819
        %v4856 = vpack.c.b16 %v4824, %v4822
        %v4857 = vpack.c.b16 %v4825, %v4823
        %4890 = vmatprep.subr.bf16.mxu0 %v4841
        %4891 = vmatpush1.bf16.msra.mxu0 %v4840
        %4892 = vmatprep.subr.bf16.mxu0 %v4839
        %4893 = vmatpush1.bf16.msra.mxu0 %v4838
        %4894 = vmatprep.subr.bf16.mxu0 %v4837
        %4895 = vmatpush1.bf16.msra.mxu0 %v4836
        %4896 = vmatprep.subr.bf16.mxu0 %v4835
        %4897 = vmatpush1.bf16.msra.mxu0 %v4834
        %4898 = vmatprep.subr.bf16.mxu0 %v4833
        %4899 = vmatpush1.bf16.msra.mxu0 %v4832
        %4900 = vmatprep.subr.bf16.mxu0 %v4831
        %4901 = vmatpush1.bf16.msra.mxu0 %v4830
        %4902 = vmatprep.subr.bf16.mxu0 %v4829
        %4903 = vmatpush1.bf16.msra.mxu0 %v4828
        %4904 = vmatprep.subr.bf16.mxu0 %v4827
        %4905 = vmatpush1.bf16.msra.mxu0 %v4826
        %4906 = vmatprep.subr.bf16.mxu0 %v4857
        %4907 = vmatpush2.bf16.msra.mxu0 %v4856
        %4908 = vmatprep.subr.bf16.mxu0 %v4855
        %4909 = vmatpush2.bf16.msra.mxu0 %v4854
        %4910 = vmatprep.subr.bf16.mxu0 %v4853
        %4911 = vmatpush2.bf16.msra.mxu0 %v4852
        %4912 = vmatprep.subr.bf16.mxu0 %v4851
        %4913 = vmatpush2.bf16.msra.mxu0 %v4850
        %4914 = vmatprep.subr.bf16.mxu0 %v4849
        %4915 = vmatpush2.bf16.msra.mxu0 %v4848
        %4916 = vmatprep.subr.bf16.mxu0 %v4847
        %4917 = vmatpush2.bf16.msra.mxu0 %v4846
        %4918 = vmatprep.subr.bf16.mxu0 %v4845
        %4919 = vmatpush2.bf16.msra.mxu0 %v4844
        %4920 = vmatprep.subr.bf16.mxu0 %v4843
        %4921 = vmatpush2.bf16.msra.mxu0 %v4842
        %4922 = vmatprep.mubr.bf16.mxu0 %v4685
        %4923 = vmatmul.mubr.bf16.gmra.mxu0 %v4684
        %v4924 = vpop.f32.mrf.mxu0
        %v4925 = vadd.f32 %v4723, %v4924
        %v4926 = vpop.f32.mrf.mxu0
        %v4927 = vadd.f32 %v4727, %v4926
        %v4928 = vpop.f32.mrf.mxu0
        %v4929 = vpop.f32.mrf.mxu0
        %4930 = vdwg.mxu0
        %v4931 = vmax.f32 %v4925, 0.0
        %v4932 = vmax.f32 %v4927, 0.0
        %v4933 = vpack.c.bf16 %v4931, %v4931
        %v4934 = vpack.c.bf16 %v4932, %v4932
        %v4935 = vld [vmem:[%s1217] sm:$0xff]
        %v4936 = vld [vmem:[%s1217 + $0x8] sm:$0xff]
        %v4937 = vld [vmem:[%s1217 + $0x10] sm:$0xff]
        %v4938 = vld [vmem:[%s1217 + $0x18] sm:$0xff]
        %v4939 = vld [vmem:[%s1217 + $0x20] sm:$0xff]
        %v4940 = vld [vmem:[%s1217 + $0x28] sm:$0xff]
        %v4941 = vld [vmem:[%s1217 + $0x30] sm:$0xff]
        %v4942 = vld [vmem:[%s1217 + $0x38] sm:$0xff]
        %v4943 = vld [vmem:[%s1217 + $0x40] sm:$0xff]
        %v4944 = vld [vmem:[%s1217 + $0x48] sm:$0xff]
        %v4945 = vld [vmem:[%s1217 + $0x50] sm:$0xff]
        %v4946 = vld [vmem:[%s1217 + $0x58] sm:$0xff]
        %v4947 = vld [vmem:[%s1217 + $0x60] sm:$0xff]
        %v4948 = vld [vmem:[%s1217 + $0x68] sm:$0xff]
        %v4949 = vld [vmem:[%s1217 + $0x70] sm:$0xff]
        %v4950 = vld [vmem:[%s1217 + $0x78] sm:$0xff]
        %v4951 = vld [vmem:[%s1217 + $0x80] sm:$0xff]
        %v4952 = vld [vmem:[%s1217 + $0x88] sm:$0xff]
        %v4953 = vld [vmem:[%s1217 + $0x90] sm:$0xff]
        %v4954 = vld [vmem:[%s1217 + $0x98] sm:$0xff]
        %v4955 = vld [vmem:[%s1217 + $0xa0] sm:$0xff]
        %v4956 = vld [vmem:[%s1217 + $0xa8] sm:$0xff]
        %v4957 = vld [vmem:[%s1217 + $0xb0] sm:$0xff]
        %v4958 = vld [vmem:[%s1217 + $0xb8] sm:$0xff]
        %v4959 = vld [vmem:[%s1217 + $0xc0] sm:$0xff]
        %v4960 = vld [vmem:[%s1217 + $0xc8] sm:$0xff]
        %v4961 = vld [vmem:[%s1217 + $0xd0] sm:$0xff]
        %v4962 = vld [vmem:[%s1217 + $0xd8] sm:$0xff]
        %v4963 = vld [vmem:[%s1217 + $0xe0] sm:$0xff]
        %v4964 = vld [vmem:[%s1217 + $0xe8] sm:$0xff]
        %v4965 = vld [vmem:[%s1217 + $0xf0] sm:$0xff]
        %v4966 = vld [vmem:[%s1217 + $0xf8] sm:$0xff]
        %v4967 = vld [vmem:[%s1437] sm:$0x3]
        %v4969 = vlaneseq
        %v4970 = vshrl.u32 %v4969, 7
        %v4971 = vsub.s32 0, %v4970
        %v4972 = vrot.slane %v4967, %v4971
        %v4973 = vlaneseq
        %v4974 = vshrl.u32 %v4973, 7
        %v4975 = vsub.s32 1, %v4974
        %v4976 = vrot.slane %v4967, %v4975
        %v5011 = vunpack.c.l.b16 %v4935
        %v5012 = vunpack.c.h.b16 %v4935
        %v5013 = vunpack.c.l.b16 %v4936
        %v5014 = vunpack.c.h.b16 %v4936
        %v5015 = vunpack.c.l.b16 %v4937
        %v5016 = vunpack.c.h.b16 %v4937
        %v5017 = vunpack.c.l.b16 %v4938
        %v5018 = vunpack.c.h.b16 %v4938
        %v5019 = vunpack.c.l.b16 %v4939
        %v5020 = vunpack.c.h.b16 %v4939
        %v5021 = vunpack.c.l.b16 %v4940
        %v5022 = vunpack.c.h.b16 %v4940
        %v5023 = vunpack.c.l.b16 %v4941
        %v5024 = vunpack.c.h.b16 %v4941
        %v5025 = vunpack.c.l.b16 %v4942
        %v5026 = vunpack.c.h.b16 %v4942
        %v5027 = vunpack.c.l.b16 %v4943
        %v5028 = vunpack.c.h.b16 %v4943
        %v5029 = vunpack.c.l.b16 %v4944
        %v5030 = vunpack.c.h.b16 %v4944
        %v5031 = vunpack.c.l.b16 %v4945
        %v5032 = vunpack.c.h.b16 %v4945
        %v5033 = vunpack.c.l.b16 %v4946
        %v5034 = vunpack.c.h.b16 %v4946
        %v5035 = vunpack.c.l.b16 %v4947
        %v5036 = vunpack.c.h.b16 %v4947
        %v5037 = vunpack.c.l.b16 %v4948
        %v5038 = vunpack.c.h.b16 %v4948
        %v5039 = vunpack.c.l.b16 %v4949
        %v5040 = vunpack.c.h.b16 %v4949
        %v5041 = vunpack.c.l.b16 %v4950
        %v5042 = vunpack.c.h.b16 %v4950
        %v5043 = vunpack.c.l.b16 %v4951
        %v5044 = vunpack.c.h.b16 %v4951
        %v5045 = vunpack.c.l.b16 %v4952
        %v5046 = vunpack.c.h.b16 %v4952
        %v5047 = vunpack.c.l.b16 %v4953
        %v5048 = vunpack.c.h.b16 %v4953
        %v5049 = vunpack.c.l.b16 %v4954
        %v5050 = vunpack.c.h.b16 %v4954
        %v5051 = vunpack.c.l.b16 %v4955
        %v5052 = vunpack.c.h.b16 %v4955
        %v5053 = vunpack.c.l.b16 %v4956
        %v5054 = vunpack.c.h.b16 %v4956
        %v5055 = vunpack.c.l.b16 %v4957
        %v5056 = vunpack.c.h.b16 %v4957
        %v5057 = vunpack.c.l.b16 %v4958
        %v5058 = vunpack.c.h.b16 %v4958
        %v5059 = vunpack.c.l.b16 %v4959
        %v5060 = vunpack.c.h.b16 %v4959
        %v5061 = vunpack.c.l.b16 %v4960
        %v5062 = vunpack.c.h.b16 %v4960
        %v5063 = vunpack.c.l.b16 %v4961
        %v5064 = vunpack.c.h.b16 %v4961
        %v5065 = vunpack.c.l.b16 %v4962
        %v5066 = vunpack.c.h.b16 %v4962
        %v5067 = vunpack.c.l.b16 %v4963
        %v5068 = vunpack.c.h.b16 %v4963
        %v5069 = vunpack.c.l.b16 %v4964
        %v5070 = vunpack.c.h.b16 %v4964
        %v5071 = vunpack.c.l.b16 %v4965
        %v5072 = vunpack.c.h.b16 %v4965
        %v5073 = vunpack.c.l.b16 %v4966
        %v5074 = vunpack.c.h.b16 %v4966
        %v5075 = vpack.c.b16 %v5013, %v5011
        %v5076 = vpack.c.b16 %v5014, %v5012
        %v5077 = vpack.c.b16 %v5017, %v5015
        %v5078 = vpack.c.b16 %v5018, %v5016
        %v5079 = vpack.c.b16 %v5021, %v5019
        %v5080 = vpack.c.b16 %v5022, %v5020
        %v5081 = vpack.c.b16 %v5025, %v5023
        %v5082 = vpack.c.b16 %v5026, %v5024
        %v5083 = vpack.c.b16 %v5029, %v5027
        %v5084 = vpack.c.b16 %v5030, %v5028
        %v5085 = vpack.c.b16 %v5033, %v5031
        %v5086 = vpack.c.b16 %v5034, %v5032
        %v5087 = vpack.c.b16 %v5037, %v5035
        %v5088 = vpack.c.b16 %v5038, %v5036
        %v5089 = vpack.c.b16 %v5041, %v5039
        %v5090 = vpack.c.b16 %v5042, %v5040
        %v5091 = vpack.c.b16 %v5045, %v5043
        %v5092 = vpack.c.b16 %v5046, %v5044
        %v5093 = vpack.c.b16 %v5049, %v5047
        %v5094 = vpack.c.b16 %v5050, %v5048
        %v5095 = vpack.c.b16 %v5053, %v5051
        %v5096 = vpack.c.b16 %v5054, %v5052
        %v5097 = vpack.c.b16 %v5057, %v5055
        %v5098 = vpack.c.b16 %v5058, %v5056
        %v5099 = vpack.c.b16 %v5061, %v5059
        %v5100 = vpack.c.b16 %v5062, %v5060
        %v5101 = vpack.c.b16 %v5065, %v5063
        %v5102 = vpack.c.b16 %v5066, %v5064
        %v5103 = vpack.c.b16 %v5069, %v5067
        %v5104 = vpack.c.b16 %v5070, %v5068
        %v5105 = vpack.c.b16 %v5073, %v5071
        %v5106 = vpack.c.b16 %v5074, %v5072
        %5139 = vmatprep.subr.bf16.mxu0 %v5090
        %5140 = vmatpush1.bf16.msra.mxu0 %v5089
        %5141 = vmatprep.subr.bf16.mxu0 %v5088
        %5142 = vmatpush1.bf16.msra.mxu0 %v5087
        %5143 = vmatprep.subr.bf16.mxu0 %v5086
        %5144 = vmatpush1.bf16.msra.mxu0 %v5085
        %5145 = vmatprep.subr.bf16.mxu0 %v5084
        %5146 = vmatpush1.bf16.msra.mxu0 %v5083
        %5147 = vmatprep.subr.bf16.mxu0 %v5082
        %5148 = vmatpush1.bf16.msra.mxu0 %v5081
        %5149 = vmatprep.subr.bf16.mxu0 %v5080
        %5150 = vmatpush1.bf16.msra.mxu0 %v5079
        %5151 = vmatprep.subr.bf16.mxu0 %v5078
        %5152 = vmatpush1.bf16.msra.mxu0 %v5077
        %5153 = vmatprep.subr.bf16.mxu0 %v5076
        %5154 = vmatpush1.bf16.msra.mxu0 %v5075
        %5155 = vmatprep.subr.bf16.mxu0 %v5106
        %5156 = vmatpush2.bf16.msra.mxu0 %v5105
        %5157 = vmatprep.subr.bf16.mxu0 %v5104
        %5158 = vmatpush2.bf16.msra.mxu0 %v5103
        %5159 = vmatprep.subr.bf16.mxu0 %v5102
        %5160 = vmatpush2.bf16.msra.mxu0 %v5101
        %5161 = vmatprep.subr.bf16.mxu0 %v5100
        %5162 = vmatpush2.bf16.msra.mxu0 %v5099
        %5163 = vmatprep.subr.bf16.mxu0 %v5098
        %5164 = vmatpush2.bf16.msra.mxu0 %v5097
        %5165 = vmatprep.subr.bf16.mxu0 %v5096
        %5166 = vmatpush2.bf16.msra.mxu0 %v5095
        %5167 = vmatprep.subr.bf16.mxu0 %v5094
        %5168 = vmatpush2.bf16.msra.mxu0 %v5093
        %5169 = vmatprep.subr.bf16.mxu0 %v5092
        %5170 = vmatpush2.bf16.msra.mxu0 %v5091
        %5171 = vmatprep.mubr.bf16.mxu0 %v4934
        %5172 = vmatmul.mubr.bf16.gmra.mxu0 %v4933
        %v5173 = vpop.f32.mrf.mxu0
        %v5174 = vadd.f32 %v4972, %v5173
        %v5175 = vpop.f32.mrf.mxu0
        %v5176 = vadd.f32 %v4976, %v5175
        %v5177 = vpop.f32.mrf.mxu0
        %v5178 = vpop.f32.mrf.mxu0
        %5179 = vdwg.mxu0
        %v5180 = vadd.f32 %v4682, %v5174
        %v5181 = vadd.f32 %v4683, %v5176
        %v5182 = vadd.f32 %v5180, %v5181
        %5183 = vadd.xlane.f32.xlu0 %v5182
        %v5184 = vpop.xlane.xlu0 %5183
        %v5185 = vmul.f32 %v5184, %v3033
        %v5186 = vsub.f32 %v5180, %v5185
        %v5187 = vsub.f32 %v5181, %v5185
        %v5188 = vmul.f32 %v5186, %v5186
        %v5189 = vmul.f32 %v5187, %v5187
        %v5190 = vadd.f32 %v5188, %v5189
        %5191 = vadd.xlane.f32.xlu0 %v5190
        %v5192 = vpop.xlane.xlu0 %5191
        %v5193 = vmul.f32 %v5192, %v3033
        %v5194 = vadd.f32 %v5193, 1e-05
        %v5195 = vrsqrt.pop %v5194
        %v5196 = vmul.f32 %v5186, %v5195
        %v5197 = vmul.f32 %v5187, %v5195
        %v5198 = vld [vmem:[%s1441] sm:$0x3]
        %v5200 = vlaneseq
        %v5201 = vshrl.u32 %v5200, 7
        %v5202 = vsub.s32 0, %v5201
        %v5203 = vrot.slane %v5198, %v5202
        %v5204 = vlaneseq
        %v5205 = vshrl.u32 %v5204, 7
        %v5206 = vsub.s32 1, %v5205
        %v5207 = vrot.slane %v5198, %v5206
        %v5210 = vmul.f32 %v5196, %v5203
        %v5211 = vmul.f32 %v5197, %v5207
        %v5212 = vld [vmem:[%s1445] sm:$0x3]
        %v5214 = vlaneseq
        %v5215 = vshrl.u32 %v5214, 7
        %v5216 = vsub.s32 0, %v5215
        %v5217 = vrot.slane %v5212, %v5216
        %v5218 = vlaneseq
        %v5219 = vshrl.u32 %v5218, 7
        %v5220 = vsub.s32 1, %v5219
        %v5221 = vrot.slane %v5212, %v5220
        %v5224 = vadd.f32 %v5210, %v5217
        %v5225 = vadd.f32 %v5211, %v5221
        %5226 = vst [vmem:[#allocation2] sm:$0xff] %v5224
        %5227 = vst [vmem:[#allocation2 + $0x8] sm:$0xff] %v5225
        %p5228 = scmp.eq.s32.totalorder %s89, 2
        // Predicated region
        $region177: #{pi_forward.3} parent=155 // pred_check
          %p5229 = pneg %p5228
        $region178: #{pi_forward.3} parent=155 // pred_check_branch
          %5231 = sbr.rel (%p5229) target = $region180
        $region179: #{pi_forward.3} parent=155 // pred_region
          %v5232 = vadd.f32 %v5224, %v5225
          %5233 = vadd.xlane.f32.xlu0 %v5232
          %v5234 = vpop.xlane.xlu0 %5233
          %v5235 = vmul.f32 %v5234, %v3033
          %v5236 = vsub.f32 %v5224, %v5235
          %v5237 = vsub.f32 %v5225, %v5235
          %v5238 = vmul.f32 %v5236, %v5236
          %v5239 = vmul.f32 %v5237, %v5237
          %v5240 = vadd.f32 %v5238, %v5239
          %5241 = vadd.xlane.f32.xlu0 %v5240
          %v5242 = vpop.xlane.xlu0 %5241
          %v5243 = vmul.f32 %v5242, %v3033
          %v5244 = vadd.f32 %v5243, 1e-05
          %v5245 = vrsqrt.pop %v5244
          %v5246 = vmul.f32 %v5236, %v5245
          %v5247 = vmul.f32 %v5237, %v5245
          %v5248 = vld [vmem:[%s49] sm:$0x3]
          %v5250 = vlaneseq
          %v5251 = vshrl.u32 %v5250, 7
          %v5252 = vsub.s32 0, %v5251
          %v5253 = vrot.slane %v5248, %v5252
          %v5254 = vlaneseq
          %v5255 = vshrl.u32 %v5254, 7
          %v5256 = vsub.s32 1, %v5255
          %v5257 = vrot.slane %v5248, %v5256
          %v5260 = vmul.f32 %v5246, %v5253
          %v5261 = vmul.f32 %v5247, %v5257
          %v5262 = vld [vmem:[%s51] sm:$0x3]
          %v5264 = vlaneseq
          %v5265 = vshrl.u32 %v5264, 7
          %v5266 = vsub.s32 0, %v5265
          %v5267 = vrot.slane %v5262, %v5266
          %v5268 = vlaneseq
          %v5269 = vshrl.u32 %v5268, 7
          %v5270 = vsub.s32 1, %v5269
          %v5271 = vrot.slane %v5262, %v5270
          %v5274 = vadd.f32 %v5260, %v5267
          %v5275 = vadd.f32 %v5261, %v5271
          %v5276 = vpack.c.bf16 %v5274, %v5274
          %v5277 = vpack.c.bf16 %v5275, %v5275
          %v5278 = vld [vmem:[%s53] sm:$0xf]
          %v5279 = vld [vmem:[%s53 + $0x4] sm:$0xf]
          %v5280 = vld [vmem:[%s53 + $0x8] sm:$0xf]
          %v5281 = vld [vmem:[%s53 + $0xc] sm:$0xf]
          %v5282 = vld [vmem:[%s53 + $0x10] sm:$0xf]
          %v5283 = vld [vmem:[%s53 + $0x14] sm:$0xf]
          %v5284 = vld [vmem:[%s53 + $0x18] sm:$0xf]
          %v5285 = vld [vmem:[%s53 + $0x1c] sm:$0xf]
          %v5286 = vld [vmem:[%s53 + $0x20] sm:$0xf]
          %v5287 = vld [vmem:[%s53 + $0x24] sm:$0xf]
          %v5288 = vld [vmem:[%s53 + $0x28] sm:$0xf]
          %v5289 = vld [vmem:[%s53 + $0x2c] sm:$0xf]
          %v5290 = vld [vmem:[%s53 + $0x30] sm:$0xf]
          %v5291 = vld [vmem:[%s53 + $0x34] sm:$0xf]
          %v5292 = vld [vmem:[%s53 + $0x38] sm:$0xf]
          %v5293 = vld [vmem:[%s53 + $0x3c] sm:$0xf]
          %v5294 = vld [vmem:[%s53 + $0x40] sm:$0xf]
          %v5295 = vld [vmem:[%s53 + $0x44] sm:$0xf]
          %v5296 = vld [vmem:[%s53 + $0x48] sm:$0xf]
          %v5297 = vld [vmem:[%s53 + $0x4c] sm:$0xf]
          %v5298 = vld [vmem:[%s53 + $0x50] sm:$0xf]
          %v5299 = vld [vmem:[%s53 + $0x54] sm:$0xf]
          %v5300 = vld [vmem:[%s53 + $0x58] sm:$0xf]
          %v5301 = vld [vmem:[%s53 + $0x5c] sm:$0xf]
          %v5302 = vld [vmem:[%s53 + $0x60] sm:$0xf]
          %v5303 = vld [vmem:[%s53 + $0x64] sm:$0xf]
          %v5304 = vld [vmem:[%s53 + $0x68] sm:$0xf]
          %v5305 = vld [vmem:[%s53 + $0x6c] sm:$0xf]
          %v5306 = vld [vmem:[%s53 + $0x70] sm:$0xf]
          %v5307 = vld [vmem:[%s53 + $0x74] sm:$0xf]
          %v5308 = vld [vmem:[%s53 + $0x78] sm:$0xf]
          %v5309 = vld [vmem:[%s53 + $0x7c] sm:$0xf]
          %v5310 = vld [vmem:[%s55] sm:$0x1]
          %v5312 = vlaneseq
          %v5313 = vshrl.u32 %v5312, 7
          %v5314 = vsub.s32 0, %v5313
          %v5315 = vrot.slane %v5310, %v5314
          %v5349 = vunpack.c.l.b16 %v5278
          %v5350 = vunpack.c.l.b16 %v5279
          %v5351 = vunpack.c.l.b16 %v5280
          %v5352 = vunpack.c.l.b16 %v5281
          %v5353 = vunpack.c.l.b16 %v5282
          %v5354 = vunpack.c.l.b16 %v5283
          %v5355 = vunpack.c.l.b16 %v5284
          %v5356 = vunpack.c.l.b16 %v5285
          %v5357 = vunpack.c.l.b16 %v5286
          %v5358 = vunpack.c.l.b16 %v5287
          %v5359 = vunpack.c.l.b16 %v5288
          %v5360 = vunpack.c.l.b16 %v5289
          %v5361 = vunpack.c.l.b16 %v5290
          %v5362 = vunpack.c.l.b16 %v5291
          %v5363 = vunpack.c.l.b16 %v5292
          %v5364 = vunpack.c.l.b16 %v5293
          %v5365 = vunpack.c.l.b16 %v5294
          %v5366 = vunpack.c.l.b16 %v5295
          %v5367 = vunpack.c.l.b16 %v5296
          %v5368 = vunpack.c.l.b16 %v5297
          %v5369 = vunpack.c.l.b16 %v5298
          %v5370 = vunpack.c.l.b16 %v5299
          %v5371 = vunpack.c.l.b16 %v5300
          %v5372 = vunpack.c.l.b16 %v5301
          %v5373 = vunpack.c.l.b16 %v5302
          %v5374 = vunpack.c.l.b16 %v5303
          %v5375 = vunpack.c.l.b16 %v5304
          %v5376 = vunpack.c.l.b16 %v5305
          %v5377 = vunpack.c.l.b16 %v5306
          %v5378 = vunpack.c.l.b16 %v5307
          %v5379 = vunpack.c.l.b16 %v5308
          %v5380 = vunpack.c.l.b16 %v5309
          %v5381 = vpack.c.b16 %v5350, %v5349
          %v5382 = vpack.c.b16 %v5352, %v5351
          %v5383 = vpack.c.b16 %v5354, %v5353
          %v5384 = vpack.c.b16 %v5356, %v5355
          %v5385 = vpack.c.b16 %v5358, %v5357
          %v5386 = vpack.c.b16 %v5360, %v5359
          %v5387 = vpack.c.b16 %v5362, %v5361
          %v5388 = vpack.c.b16 %v5364, %v5363
          %v5389 = vpack.c.b16 %v5366, %v5365
          %v5390 = vpack.c.b16 %v5368, %v5367
          %v5391 = vpack.c.b16 %v5370, %v5369
          %v5392 = vpack.c.b16 %v5372, %v5371
          %v5393 = vpack.c.b16 %v5374, %v5373
          %v5394 = vpack.c.b16 %v5376, %v5375
          %v5395 = vpack.c.b16 %v5378, %v5377
          %v5396 = vpack.c.b16 %v5380, %v5379
          %5413 = vmatprep.subr.bf16.mxu0 0
          %5414 = vmatpush1.bf16.msra.mxu0 %v5388
          %5415 = vmatprep.subr.bf16.mxu0 0
          %5416 = vmatpush1.bf16.msra.mxu0 %v5387
          %5417 = vmatprep.subr.bf16.mxu0 0
          %5418 = vmatpush1.bf16.msra.mxu0 %v5386
          %5419 = vmatprep.subr.bf16.mxu0 0
          %5420 = vmatpush1.bf16.msra.mxu0 %v5385
          %5421 = vmatprep.subr.bf16.mxu0 0
          %5422 = vmatpush1.bf16.msra.mxu0 %v5384
          %5423 = vmatprep.subr.bf16.mxu0 0
          %5424 = vmatpush1.bf16.msra.mxu0 %v5383
          %5425 = vmatprep.subr.bf16.mxu0 0
          %5426 = vmatpush1.bf16.msra.mxu0 %v5382
          %5427 = vmatprep.subr.bf16.mxu0 0
          %5428 = vmatpush1.bf16.msra.mxu0 %v5381
          %5429 = vmatprep.subr.bf16.mxu0 0
          %5430 = vmatpush2.bf16.msra.mxu0 %v5396
          %5431 = vmatprep.subr.bf16.mxu0 0
          %5432 = vmatpush2.bf16.msra.mxu0 %v5395
          %5433 = vmatprep.subr.bf16.mxu0 0
          %5434 = vmatpush2.bf16.msra.mxu0 %v5394
          %5435 = vmatprep.subr.bf16.mxu0 0
          %5436 = vmatpush2.bf16.msra.mxu0 %v5393
          %5437 = vmatprep.subr.bf16.mxu0 0
          %5438 = vmatpush2.bf16.msra.mxu0 %v5392
          %5439 = vmatprep.subr.bf16.mxu0 0
          %5440 = vmatpush2.bf16.msra.mxu0 %v5391
          %5441 = vmatprep.subr.bf16.mxu0 0
          %5442 = vmatpush2.bf16.msra.mxu0 %v5390
          %5443 = vmatprep.subr.bf16.mxu0 0
          %5444 = vmatpush2.bf16.msra.mxu0 %v5389
          %5445 = vmatprep.mubr.bf16.mxu0 %v5277
          %5446 = vmatmul.mubr.bf16.gmra.mxu0 %v5276
          %v5447 = vpop.f32.mrf.mxu0
          %v5448 = vadd.f32 %v5315, %v5447
          %v5449 = vpop.f32.mrf.mxu0
          %v5450 = vpop.f32.mrf.mxu0
          %v5451 = vpop.f32.mrf.mxu0
          %5452 = vdwg.mxu0
          %v5453 = vmul.f32 %v5448, 0.5
          %v5454 = vmul.f32 %v5448, 0.70710677
          %v5455 = verf.f32.pop %v5454
          %v5456 = vadd.f32 %v5455, 1.0
          %v5457 = vmul.f32 %v5453, %v5456
          %v5458 = vpack.c.bf16 %v5457, %v5457
          %v5459 = vld [vmem:[%s57] sm:$0xf]
          %v5460 = vld [vmem:[%s57 + $0x4] sm:$0xf]
          %v5461 = vld [vmem:[%s57 + $0x8] sm:$0xf]
          %v5462 = vld [vmem:[%s57 + $0xc] sm:$0xf]
          %v5463 = vld [vmem:[%s57 + $0x10] sm:$0xf]
          %v5464 = vld [vmem:[%s57 + $0x14] sm:$0xf]
          %v5465 = vld [vmem:[%s57 + $0x18] sm:$0xf]
          %v5466 = vld [vmem:[%s57 + $0x1c] sm:$0xf]
          %v5467 = vld [vmem:[%s59] sm:$0x1]
          %v5469 = vlaneseq
          %v5470 = vshrl.u32 %v5469, 7
          %v5471 = vsub.s32 0, %v5470
          %v5472 = vrot.slane %v5467, %v5471
          %v5482 = vunpack.c.l.b16 %v5459
          %v5483 = vunpack.c.l.b16 %v5460
          %v5484 = vunpack.c.l.b16 %v5461
          %v5485 = vunpack.c.l.b16 %v5462
          %v5486 = vunpack.c.l.b16 %v5463
          %v5487 = vunpack.c.l.b16 %v5464
          %v5488 = vunpack.c.l.b16 %v5465
          %v5489 = vunpack.c.l.b16 %v5466
          %v5490 = vpack.c.b16 %v5483, %v5482
          %v5491 = vpack.c.b16 %v5485, %v5484
          %v5492 = vpack.c.b16 %v5487, %v5486
          %v5493 = vpack.c.b16 %v5489, %v5488
          %v5499 = vsel %vm2198, %v5458, 0
          %5501 = vmatprep.subr.bf16.mxu0 0
          %5502 = vmatpush1.bf16.msra.mxu0 0
          %5503 = vmatprep.subr.bf16.mxu0 0
          %5504 = vmatpush1.bf16.msra.mxu0 0
          %5505 = vmatprep.subr.bf16.mxu0 0
          %5506 = vmatpush1.bf16.msra.mxu0 0
          %5507 = vmatprep.subr.bf16.mxu0 0
          %5508 = vmatpush1.bf16.msra.mxu0 0
          %5509 = vmatprep.subr.bf16.mxu0 0
          %5510 = vmatpush1.bf16.msra.mxu0 %v5493
          %5511 = vmatprep.subr.bf16.mxu0 0
          %5512 = vmatpush1.bf16.msra.mxu0 %v5492
          %5513 = vmatprep.subr.bf16.mxu0 0
          %5514 = vmatpush1.bf16.msra.mxu0 %v5491
          %5515 = vmatprep.subr.bf16.mxu0 0
          %5516 = vmatpush1.bf16.msra.mxu0 %v5490
          %5517 = vmatprep.subr.bf16.mxu0 0
          %5518 = vmatpush2.bf16.msra.mxu0 0
          %5519 = vmatprep.subr.bf16.mxu0 0
          %5520 = vmatpush2.bf16.msra.mxu0 0
          %5521 = vmatprep.subr.bf16.mxu0 0
          %5522 = vmatpush2.bf16.msra.mxu0 0
          %5523 = vmatprep.subr.bf16.mxu0 0
          %5524 = vmatpush2.bf16.msra.mxu0 0
          %5525 = vmatprep.subr.bf16.mxu0 0
          %5526 = vmatpush2.bf16.msra.mxu0 0
          %5527 = vmatprep.subr.bf16.mxu0 0
          %5528 = vmatpush2.bf16.msra.mxu0 0
          %5529 = vmatprep.subr.bf16.mxu0 0
          %5530 = vmatpush2.bf16.msra.mxu0 0
          %5531 = vmatprep.subr.bf16.mxu0 0
          %5532 = vmatpush2.bf16.msra.mxu0 0
          %5533 = vmatprep.mubr.bf16.mxu0 0
          %5534 = vmatmul.mubr.bf16.gmra.mxu0 %v5499
          %v5535 = vpop.f32.mrf.mxu0
          %v5536 = vadd.f32 %v5472, %v5535
          %v5537 = vpop.f32.mrf.mxu0
          %v5538 = vpop.f32.mrf.mxu0
          %v5539 = vpop.f32.mrf.mxu0
          %5540 = vdwg.mxu0
          %v5541 = vmul.f32 %v5536, 0.5
          %v5542 = vmul.f32 %v5536, 0.70710677
          %v5543 = verf.f32.pop %v5542
          %v5544 = vadd.f32 %v5543, 1.0
          %v5545 = vmul.f32 %v5541, %v5544
          %v5546 = vpack.c.bf16 %v5545, %v5545
          %v5547 = vld [vmem:[%s61] sm:$0xf]
          %v5548 = vld [vmem:[%s61 + $0x4] sm:$0xf]
          %v5549 = vld [vmem:[%s61 + $0x8] sm:$0xf]
          %v5550 = vld [vmem:[%s61 + $0xc] sm:$0xf]
          %v5551 = vld [vmem:[%s61 + $0x10] sm:$0xf]
          %v5552 = vld [vmem:[%s61 + $0x14] sm:$0xf]
          %v5553 = vld [vmem:[%s61 + $0x18] sm:$0xf]
          %v5554 = vld [vmem:[%s61 + $0x1c] sm:$0xf]
          %v5555 = vld [vmem:[%s63] sm:$0x1]
          %v5557 = vlaneseq
          %v5558 = vshrl.u32 %v5557, 7
          %v5559 = vsub.s32 0, %v5558
          %v5560 = vrot.slane %v5555, %v5559
          %v5570 = vunpack.c.l.b16 %v5547
          %v5571 = vunpack.c.l.b16 %v5548
          %v5572 = vunpack.c.l.b16 %v5549
          %v5573 = vunpack.c.l.b16 %v5550
          %v5574 = vunpack.c.l.b16 %v5551
          %v5575 = vunpack.c.l.b16 %v5552
          %v5576 = vunpack.c.l.b16 %v5553
          %v5577 = vunpack.c.l.b16 %v5554
          %v5578 = vpack.c.b16 %v5571, %v5570
          %v5579 = vpack.c.b16 %v5573, %v5572
          %v5580 = vpack.c.b16 %v5575, %v5574
          %v5581 = vpack.c.b16 %v5577, %v5576
          %v5587 = vsel %vm2198, %v5546, 0
          %5589 = vmatprep.subr.bf16.mxu0 0
          %5590 = vmatpush1.bf16.msra.mxu0 0
          %5591 = vmatprep.subr.bf16.mxu0 0
          %5592 = vmatpush1.bf16.msra.mxu0 0
          %5593 = vmatprep.subr.bf16.mxu0 0
          %5594 = vmatpush1.bf16.msra.mxu0 0
          %5595 = vmatprep.subr.bf16.mxu0 0
          %5596 = vmatpush1.bf16.msra.mxu0 0
          %5597 = vmatprep.subr.bf16.mxu0 0
          %5598 = vmatpush1.bf16.msra.mxu0 %v5581
          %5599 = vmatprep.subr.bf16.mxu0 0
          %5600 = vmatpush1.bf16.msra.mxu0 %v5580
          %5601 = vmatprep.subr.bf16.mxu0 0
          %5602 = vmatpush1.bf16.msra.mxu0 %v5579
          %5603 = vmatprep.subr.bf16.mxu0 0
          %5604 = vmatpush1.bf16.msra.mxu0 %v5578
          %5605 = vmatprep.subr.bf16.mxu0 0
          %5606 = vmatpush2.bf16.msra.mxu0 0
          %5607 = vmatprep.subr.bf16.mxu0 0
          %5608 = vmatpush2.bf16.msra.mxu0 0
          %5609 = vmatprep.subr.bf16.mxu0 0
          %5610 = vmatpush2.bf16.msra.mxu0 0
          %5611 = vmatprep.subr.bf16.mxu0 0
          %5612 = vmatpush2.bf16.msra.mxu0 0
          %5613 = vmatprep.subr.bf16.mxu0 0
          %5614 = vmatpush2.bf16.msra.mxu0 0
          %5615 = vmatprep.subr.bf16.mxu0 0
          %5616 = vmatpush2.bf16.msra.mxu0 0
          %5617 = vmatprep.subr.bf16.mxu0 0
          %5618 = vmatpush2.bf16.msra.mxu0 0
          %5619 = vmatprep.subr.bf16.mxu0 0
          %5620 = vmatpush2.bf16.msra.mxu0 0
          %5621 = vmatprep.mubr.bf16.mxu0 0
          %5622 = vmatmul.mubr.bf16.gmra.mxu0 %v5587
          %v5623 = vpop.f32.mrf.mxu0
          %v5624 = vadd.f32 %v5560, %v5623
          %v5625 = vpop.f32.mrf.mxu0
          %v5626 = vpop.f32.mrf.mxu0
          %v5627 = vpop.f32.mrf.mxu0
          %5628 = vdwg.mxu0
          %v5629 = vmul.f32 %v5624, 0.5
          %v5630 = vmul.f32 %v5624, 0.70710677
          %v5631 = verf.f32.pop %v5630
          %v5632 = vadd.f32 %v5631, 1.0
          %v5633 = vmul.f32 %v5629, %v5632
          %v5634 = vpack.c.bf16 %v5633, %v5633
          %v5635 = vld [vmem:[%s65] sm:$0xf]
          %v5636 = vld [vmem:[%s65 + $0x4] sm:$0xf]
          %v5637 = vld [vmem:[%s65 + $0x8] sm:$0xf]
          %v5638 = vld [vmem:[%s65 + $0xc] sm:$0xf]
          %v5639 = vld [vmem:[%s65 + $0x10] sm:$0xf]
          %v5640 = vld [vmem:[%s65 + $0x14] sm:$0xf]
          %v5641 = vld [vmem:[%s65 + $0x18] sm:$0xf]
          %v5642 = vld [vmem:[%s65 + $0x1c] sm:$0xf]
          %v5643 = vld [vmem:[%s67] sm:$0x1]
          %v5645 = vlaneseq
          %v5646 = vshrl.u32 %v5645, 7
          %v5647 = vsub.s32 0, %v5646
          %v5648 = vrot.slane %v5643, %v5647
          %v5658 = vunpack.c.l.b16 %v5635
          %v5659 = vunpack.c.l.b16 %v5636
          %v5660 = vunpack.c.l.b16 %v5637
          %v5661 = vunpack.c.l.b16 %v5638
          %v5662 = vunpack.c.l.b16 %v5639
          %v5663 = vunpack.c.l.b16 %v5640
          %v5664 = vunpack.c.l.b16 %v5641
          %v5665 = vunpack.c.l.b16 %v5642
          %v5666 = vpack.c.b16 %v5659, %v5658
          %v5667 = vpack.c.b16 %v5661, %v5660
          %v5668 = vpack.c.b16 %v5663, %v5662
          %v5669 = vpack.c.b16 %v5665, %v5664
          %v5675 = vsel %vm2198, %v5634, 0
          %5677 = vmatprep.subr.bf16.mxu0 0
          %5678 = vmatpush1.bf16.msra.mxu0 0
          %5679 = vmatprep.subr.bf16.mxu0 0
          %5680 = vmatpush1.bf16.msra.mxu0 0
          %5681 = vmatprep.subr.bf16.mxu0 0
          %5682 = vmatpush1.bf16.msra.mxu0 0
          %5683 = vmatprep.subr.bf16.mxu0 0
          %5684 = vmatpush1.bf16.msra.mxu0 0
          %5685 = vmatprep.subr.bf16.mxu0 0
          %5686 = vmatpush1.bf16.msra.mxu0 %v5669
          %5687 = vmatprep.subr.bf16.mxu0 0
          %5688 = vmatpush1.bf16.msra.mxu0 %v5668
          %5689 = vmatprep.subr.bf16.mxu0 0
          %5690 = vmatpush1.bf16.msra.mxu0 %v5667
          %5691 = vmatprep.subr.bf16.mxu0 0
          %5692 = vmatpush1.bf16.msra.mxu0 %v5666
          %5693 = vmatprep.subr.bf16.mxu0 0
          %5694 = vmatpush2.bf16.msra.mxu0 0
          %5695 = vmatprep.subr.bf16.mxu0 0
          %5696 = vmatpush2.bf16.msra.mxu0 0
          %5697 = vmatprep.subr.bf16.mxu0 0
          %5698 = vmatpush2.bf16.msra.mxu0 0
          %5699 = vmatprep.subr.bf16.mxu0 0
          %5700 = vmatpush2.bf16.msra.mxu0 0
          %5701 = vmatprep.subr.bf16.mxu0 0
          %5702 = vmatpush2.bf16.msra.mxu0 0
          %5703 = vmatprep.subr.bf16.mxu0 0
          %5704 = vmatpush2.bf16.msra.mxu0 0
          %5705 = vmatprep.subr.bf16.mxu0 0
          %5706 = vmatpush2.bf16.msra.mxu0 0
          %5707 = vmatprep.subr.bf16.mxu0 0
          %5708 = vmatpush2.bf16.msra.mxu0 0
          %5709 = vmatprep.mubr.bf16.mxu0 0
          %5710 = vmatmul.mubr.bf16.gmra.mxu0 %v5675
          %v5711 = vpop.f32.mrf.mxu0
          %v5712 = vadd.f32 %v5648, %v5711
          %v5713 = vpop.f32.mrf.mxu0
          %v5714 = vpop.f32.mrf.mxu0
          %v5715 = vpop.f32.mrf.mxu0
          %5716 = vdwg.mxu0
          %v5717 = vtanh.pop %v5712
          %5718 = vst [vmem:[%s69] sm:$0xff] %v5717
        $region180: #{pi_forward.3} parent=155 // pred_fallthru
          _
        // Predicated region
        $region181: #{pi_forward.3} parent=155 // pred_check
          %p5719 = pneg %p916
        $region182: #{pi_forward.3} parent=155 // pred_check_branch
          %5721 = sbr.rel (%p5719) target = $region184
        $region183: #{pi_forward.3} parent=155 // pred_region
          _
        $region184: #{pi_forward.3} parent=155 // pred_fallthru
          _
        // Predicated region
        $region185: #{pi_forward.3} parent=155 // pred_check
          %p5722 = pneg %p916
        $region186: #{pi_forward.3} parent=155 // pred_check_branch
          %5724 = sbr.rel (%p5722) target = $region188
        $region187: #{pi_forward.3} parent=155 // pred_region
          _
        $region188: #{pi_forward.3} parent=155 // pred_fallthru
          _
      $region156: #{pi_forward.3} parent=5 // pred_fallthru
        _
      %p5725 = scmp.le.s32.totalorder 2, %s84
      // Predicated region
      $region189: #{pi_forward.3} parent=5 // pred_check
        %p5726 = pneg %p5725
      $region190: #{pi_forward.3} parent=5 // pred_check_branch
        %5728 = sbr.rel (%p5726) target = $region192
      $region191: #{pi_forward.3} parent=5 // pred_region
        %s5729 = ssub.s32 %s84, 2
      $region192: #{pi_forward.3} parent=5 // pred_fallthru
        _
    $region6: #{pi_forward.3} parent=1 // loop_footer
      %s88 = sadd.s32 1, %s84
    $region7: #{pi_forward.3} parent=1 // loop_footer_branch
      %83 = sbr.rel target = $region3
    $region8: #{pi_forward.3} parent=1 // loop_exit
      _
    %5730 = vsyncpa [#allocation4], 1
    %s5731 = scalar_lea.sflag [#allocation4], 1
    %5732 = vsyncpa %s5731, 1
    %5733 = vsyncpa [#allocation6], 1
    %s5734 = scalar_lea.sflag [#allocation6], 1
    %5735 = vsyncpa %s5734, 1
    %5736 = vsyncpa [#allocation9], 1
    %s5737 = scalar_lea.sflag [#allocation9], 1
    %5738 = vsyncpa %s5737, 1

</llo_original>
